<compile_context>
chip_gen: v7x
topology: tpu7x:2x2x1
jax: 0.10.0
libtpu: 0.0.40
codegen_flags: <defaults>
</compile_context>

<pallas_src>
import functools
import math

import numpy as np
import jax
import jax.numpy as jnp
from jax.experimental import pallas as pl
from jax.experimental.pallas import tpu as pltpu


# ----------------------------- kernel helpers ------------------------------

def _layer_norm(x, w, b, eps=1e-5):
    # x: [N, H] f32, w/b: [1, H] f32  (biased variance, like torch.nn.LayerNorm)
    mu = jnp.mean(x, axis=-1, keepdims=True)
    var = jnp.mean((x - mu) ** 2, axis=-1, keepdims=True)
    return (x - mu) * jax.lax.rsqrt(var + eps) * w + b


# ------------------------------- the kernel --------------------------------

def transformer_dqn_kernel(nhead, num_layers,
                           x_ref, w_emb_ref, b_emb_ref, pe_ref,
                           qw_ref, qb_ref, kw_ref, kb_ref, vw_ref, vb_ref,
                           ow_ref, ob_ref,
                           n1_w_ref, n1_b_ref, n2_w_ref, n2_b_ref,
                           ff1_w_ref, ff1_b_ref, ff2_w_ref, ff2_b_ref,
                           fc_w_ref, fc_b_ref,
                           q_ref):
    Bt, S, Din = x_ref.shape          # batch tile handled by this program
    N = Bt * S
    H = w_emb_ref.shape[1]
    hd = qw_ref.shape[2]              # head dim
    scale = 1.0 / math.sqrt(hd)
    bf16 = jnp.bfloat16

    # --- input embedding + positional encoding; flat [N, H] from here on ---
    x2 = x_ref[...].reshape(N, Din).astype(bf16)
    h = jnp.dot(x2, w_emb_ref[...], preferred_element_type=jnp.float32)
    h = h + b_emb_ref[...]
    # leading-dim reshape is layout-free; pe is [S, H], broadcast over batch tile
    h = (h.reshape(Bt, S, H) + pe_ref[...]).reshape(N, H)         # f32 [N, H]

    for l in range(num_layers):                  # static unroll (L is tiny)
        # ----- multi-head self-attention (post-norm residual) -----
        hb = h.astype(bf16)

        # Per-head Q/K/V projections from pre-split weights: no lane slicing.
        q_parts, k_parts, v_parts = [], [], []
        for hh in range(nhead):                  # static unroll over heads
            idx = l * nhead + hh
            qh = jnp.dot(hb, qw_ref[idx], preferred_element_type=jnp.float32) \
                + qb_ref[pl.ds(idx, 1), :]
            kh = jnp.dot(hb, kw_ref[idx], preferred_element_type=jnp.float32) \
                + kb_ref[pl.ds(idx, 1), :]
            vh = jnp.dot(hb, vw_ref[idx], preferred_element_type=jnp.float32) \
                + vb_ref[pl.ds(idx, 1), :]
            q_parts.append(qh.reshape(Bt, S, hd))
            k_parts.append(kh.reshape(Bt, S, hd))
            v_parts.append(vh.reshape(Bt, S, hd))

        # Batch heads into the leading (major) dim: [nhead*Bt, S, hd].
        # Major-dim concat -> no cross-lane shuffle work.
        q_g = jnp.concatenate(q_parts, axis=0).astype(bf16)
        k_g = jnp.concatenate(k_parts, axis=0).astype(bf16)
        v_g = jnp.concatenate(v_parts, axis=0).astype(bf16)

        # ONE batched dot_general for scores, ONE for PV (batch = nhead*Bt).
        s = jnp.einsum('gqd,gkd->gqk', q_g, k_g,
                       preferred_element_type=jnp.float32) * scale
        s = s - jnp.max(s, axis=-1, keepdims=True)
        p = jnp.exp(s)
        p = p * pl.reciprocal(jnp.sum(p, axis=-1, keepdims=True), approx=True)
        o_g = jnp.einsum('gqk,gkd->gqd', p.astype(bf16), v_g,
                         preferred_element_type=jnp.float32).astype(bf16)

        # Accumulated per-head output projection (no lane concat).
        attn = None
        for hh in range(nhead):
            idx = l * nhead + hh
            o_h = o_g[hh * Bt:(hh + 1) * Bt].reshape(N, hd)   # leading-dim slice
            contrib = jnp.dot(o_h, ow_ref[idx],
                              preferred_element_type=jnp.float32)
            attn = contrib if attn is None else attn + contrib
        attn = attn + ob_ref[pl.ds(l, 1), :]

        h = _layer_norm(h + attn,
                        n1_w_ref[pl.ds(l, 1), :], n1_b_ref[pl.ds(l, 1), :])

        # ----- feed-forward -----
        hb = h.astype(bf16)
        f = jnp.dot(hb, ff1_w_ref[l], preferred_element_type=jnp.float32)
        f = jnp.maximum(f + ff1_b_ref[pl.ds(l, 1), :], 0.0).astype(bf16)
        g = jnp.dot(f, ff2_w_ref[l], preferred_element_type=jnp.float32)
        g = g + ff2_b_ref[pl.ds(l, 1), :]

        h = _layer_norm(h + g,
                        n2_w_ref[pl.ds(l, 1), :], n2_b_ref[pl.ds(l, 1), :])

    # transformer_output.transpose(0,1)[-1]  ==  last sequence position
    last = h.reshape(Bt, S, H)[:, S - 1, :].astype(bf16)          # [Bt, H]
    q_vals = jnp.dot(last, fc_w_ref[...],
                     preferred_element_type=jnp.float32) + fc_b_ref[...]
    q_ref[...] = q_vals.reshape(q_ref.shape).astype(q_ref.dtype)


# ------------------------------ host wrapper --------------------------------

def transformer_dqn_forward(x, kernel_params, *, nhead, num_layers, batch_tile=1):
    B, S, Din = x.shape
    H = kernel_params[0].shape[1]          # w_emb: [Din, H]
    F = kernel_params[15].shape[-1]        # ff1_w: [L, H, F]
    A = kernel_params[-1].shape[-1]        # fc_b:  [1, A]
    assert B % batch_tile == 0
    grid = (B // batch_tile,)

    kernel = functools.partial(transformer_dqn_kernel, nhead, num_layers)

    def whole(arr):
        # whole-array block, same block every grid step (Pallas skips re-DMA
        # when the block index is unchanged across iterations).
        zeros = (0,) * arr.ndim
        return pl.BlockSpec(arr.shape, lambda b, _z=zeros: _z)

    in_specs = [pl.BlockSpec((batch_tile, S, Din), lambda b: (b, 0, 0))]
    in_specs += [whole(p) for p in kernel_params]
    # 3-D output so the last two block dims equal the full array dims.
    out_specs = pl.BlockSpec((batch_tile, 1, A), lambda b: (b, 0, 0))

    # Advisory cost estimate (FLOPs dominated by the two FF GEMMs per layer).
    N = B * S
    flops = (2 * N * Din * H
             + num_layers * (8 * N * H * H + 4 * N * S * H + 4 * N * H * F)
             + 2 * B * H * A)
    transcendentals = num_layers * (B * nhead * S * S + 2 * N)
    bytes_accessed = x.size * x.dtype.itemsize + B * A * 4
    for p in kernel_params:
        bytes_accessed += p.size * p.dtype.itemsize

    out = pl.pallas_call(
        kernel,
        out_shape=jax.ShapeDtypeStruct((B, 1, A), jnp.float32),
        grid=grid,
        in_specs=in_specs,
        out_specs=out_specs,
        compiler_params=pltpu.CompilerParams(
            dimension_semantics=("parallel",),       # v7x: shard batch over 2 TCs
            vmem_limit_bytes=32 * 1024 * 1024),
        cost_estimate=pl.CostEstimate(
            flops=int(flops),
            transcendentals=int(transcendentals),
            bytes_accessed=int(bytes_accessed)),
    )(x, *kernel_params)
    return out.reshape(B, A)


# --------------------------- params & reference -----------------------------

def make_positional_encoding(seq_length, hidden_dim):
    pos = np.arange(seq_length, dtype=np.float32)[:, None]
    div = np.exp(np.arange(0, hidden_dim, 2, dtype=np.float32)
                 * (-math.log(10000.0) / hidden_dim))
    pe = np.zeros((seq_length, hidden_dim), np.float32)
    pe[:, 0::2] = np.sin(pos * div)
    pe[:, 1::2] = np.cos(pos * div)
    return jnp.asarray(pe)


def init_params(key, input_dim, hidden_dim, nhead, num_layers,
                seq_length, num_actions, ff_dim):
    ks = iter(jax.random.split(key, 32))

    def u(shape, fan_in):
        s = 1.0 / math.sqrt(fan_in)
        return jax.random.uniform(next(ks), shape, jnp.float32, -s, s)

    H, F, L = hidden_dim, ff_dim, num_layers
    w_emb = u((input_dim, H), input_dim)
    b_emb = u((1, H), input_dim)
    pe = make_positional_encoding(seq_length, H)

    in_w = u((L, H, 3 * H), H)
    in_b = u((L, 3 * H), H)
    out_w = u((L, H, H), H)
    out_b = u((L, H), H)
    n1_w = jnp.ones((L, H), jnp.float32)
    n1_b = jnp.zeros((L, H), jnp.float32)
    n2_w = jnp.ones((L, H), jnp.float32)
    n2_b = jnp.zeros((L, H), jnp.float32)
    ff1_w = u((L, H, F), H)
    ff1_b = u((L, F), H)
    ff2_w = u((L, F, H), F)
    ff2_b = u((L, H), F)
    fc_w = u((H, num_actions), H)
    fc_b = u((1, num_actions), H)

    return (w_emb, b_emb, pe, in_w, in_b, out_w, out_b,
            n1_w, n1_b, n2_w, n2_b, ff1_w, ff1_b, ff2_w, ff2_b, fc_w, fc_b)


def prepare_kernel_params(params, *, nhead):
    """Re-layout the reference (f32, fused-QKV) params for the kernel:
    split Q/K/V and the output projection PER HEAD host-side (so the kernel does
    no in-kernel lane slicing or head concat), keep PE as [S, H] (no batch tile),
    and cast every matmul weight to bf16 (MXU-native); biases and LayerNorm
    params stay f32."""
    (w_emb, b_emb, pe, in_w, in_b, out_w, out_b,
     n1_w, n1_b, n2_w, n2_b, ff1_w, ff1_b, ff2_w, ff2_b, fc_w, fc_b) = params
    L, H = out_b.shape
    hd = H // nhead
    bf16 = jnp.bfloat16

    def split_w(w):      # [L, H, H] (head-major output cols) -> [L*nhead, H, hd]
        return (w.reshape(L, H, nhead, hd).transpose(0, 2, 1, 3)
                 .reshape(L * nhead, H, hd))

    def split_b(b):      # [L, H] -> [L*nhead, hd]
        return b.reshape(L * nhead, hd)

    q_w, k_w, v_w = in_w[:, :, :H], in_w[:, :, H:2 * H], in_w[:, :, 2 * H:]
    q_b, k_b, v_b = in_b[:, :H], in_b[:, H:2 * H], in_b[:, 2 * H:]
    ow_h = out_w.reshape(L, nhead, hd, H).reshape(L * nhead, hd, H)

    return (w_emb.astype(bf16), b_emb, pe,
            split_w(q_w).astype(bf16), split_b(q_b),
            split_w(k_w).astype(bf16), split_b(k_b),
            split_w(v_w).astype(bf16), split_b(v_b),
            ow_h.astype(bf16), out_b,
            n1_w, n1_b, n2_w, n2_b,
            ff1_w.astype(bf16), ff1_b,
            ff2_w.astype(bf16), ff2_b,
            fc_w.astype(bf16), fc_b)


def reference_forward(x, params, *, nhead, num_layers):
    (w_emb, b_emb, pe, in_w, in_b, out_w, out_b,
     n1_w, n1_b, n2_w, n2_b, ff1_w, ff1_b, ff2_w, ff2_b, fc_w, fc_b) = params

    def ln(v, w, b, eps=1e-5):
        mu = jnp.mean(v, -1, keepdims=True)
        var = jnp.mean((v - mu) ** 2, -1, keepdims=True)
        return (v - mu) / jnp.sqrt(var + eps) * w + b

    H = w_emb.shape[1]
    hd = H // nhead
    h = x @ w_emb + b_emb
    h = h + pe[None]
    for l in range(num_layers):
        qkv = h @ in_w[l] + in_b[l]
        q, k, v = qkv[..., :H], qkv[..., H:2 * H], qkv[..., 2 * H:]
        outs = []
        for hh in range(nhead):
            sl = slice(hh * hd, (hh + 1) * hd)
            s = jnp.einsum('bqd,bkd->bqk', q[..., sl], k[..., sl]) / math.sqrt(hd)
            p = jax.nn.softmax(s, axis=-1)
            outs.append(jnp.einsum('bqk,bkd->bqd', p, v[..., sl]))
        attn = jnp.concatenate(outs, -1) @ out_w[l] + out_b[l]
        h = ln(h + attn, n1_w[l], n1_b[l])
        f = jnp.maximum(h @ ff1_w[l] + ff1_b[l], 0.0)
        f = f @ ff2_w[l] + ff2_b[l]
        h = ln(h + f, n2_w[l], n2_b[l])
    return h[:, -1, :] @ fc_w + fc_b


# ---------------------------------- main -------------------------------------

if __name__ == "__main__":
    # small shapes consistent with the module
    batch = 2
    input_dim = 16
    hidden_dim = 32
    nhead = 4
    num_layers = 2
    seq_length = 8
    num_actions = 4
    ff_dim = 2048  # nn.TransformerEncoderLayer default dim_feedforward

    key = jax.random.PRNGKey(0)
    k_x, k_p = jax.random.split(key)
    x = jax.random.normal(k_x, (batch, seq_length, input_dim), jnp.float32)
    params = init_params(k_p, input_dim, hidden_dim, nhead, num_layers,
                         seq_length, num_actions, ff_dim)
    kparams = prepare_kernel_params(params, nhead=nhead)

    q_kernel = transformer_dqn_forward(x, kparams, nhead=nhead,
                                       num_layers=num_layers, batch_tile=1)
    q_kernel = jax.block_until_ready(q_kernel)

    q_ref = reference_forward(x, params, nhead=nhead, num_layers=num_layers)
    q_ref = jax.block_until_ready(q_ref)

    assert q_kernel.shape == (batch, num_actions)
    # Kernel matmuls use bf16 operands (f32 accumulation) and an approximate
    # reciprocal in the softmax denominator; reference is pure f32 — tolerance
    # accounts for those roundings.
    np.testing.assert_allclose(np.asarray(q_kernel), np.asarray(q_ref),
                               rtol=3e-2, atol=3e-2)
    print("KERNEL_OK")
</pallas_src>

<mosaic_0001>
module attributes {stable_mosaic.version = 11 : i64} {
  func.func @transformer_dqn_kernel(%arg0: i32, %arg1: memref<1x8x16xf32, #tpu.memory_space<vmem>>, %arg2: memref<16x32xbf16, #tpu.memory_space<vmem>>, %arg3: memref<1x32xf32, #tpu.memory_space<vmem>>, %arg4: memref<8x32xf32, #tpu.memory_space<vmem>>, %arg5: memref<8x32x8xbf16, #tpu.memory_space<vmem>>, %arg6: memref<8x8xf32, #tpu.memory_space<vmem>>, %arg7: memref<8x32x8xbf16, #tpu.memory_space<vmem>>, %arg8: memref<8x8xf32, #tpu.memory_space<vmem>>, %arg9: memref<8x32x8xbf16, #tpu.memory_space<vmem>>, %arg10: memref<8x8xf32, #tpu.memory_space<vmem>>, %arg11: memref<8x8x32xbf16, #tpu.memory_space<vmem>>, %arg12: memref<2x32xf32, #tpu.memory_space<vmem>>, %arg13: memref<2x32xf32, #tpu.memory_space<vmem>>, %arg14: memref<2x32xf32, #tpu.memory_space<vmem>>, %arg15: memref<2x32xf32, #tpu.memory_space<vmem>>, %arg16: memref<2x32xf32, #tpu.memory_space<vmem>>, %arg17: memref<2x32x2048xbf16, #tpu.memory_space<vmem>>, %arg18: memref<2x2048xf32, #tpu.memory_space<vmem>>, %arg19: memref<2x2048x32xbf16, #tpu.memory_space<vmem>>, %arg20: memref<2x32xf32, #tpu.memory_space<vmem>>, %arg21: memref<32x4xbf16, #tpu.memory_space<vmem>>, %arg22: memref<1x4xf32, #tpu.memory_space<vmem>>, %arg23: memref<1x1x4xf32, #tpu.memory_space<vmem>>) attributes {dimension_semantics = [#tpu.dimension_semantics<parallel>], iteration_bounds = array<i64: 2>, scalar_prefetch = 0 : i64, scratch_operands = 0 : i64, tpu.core_type = #tpu.core_type<tc>, window_params = [{transform_indices = @transform_0, window_bounds = array<i64: 1, 8, 16>}, {pipeline_mode = #tpu.pipeline_mode<synchronous>, transform_indices = @transform_1, window_bounds = array<i64: 16, 32>}, {pipeline_mode = #tpu.pipeline_mode<synchronous>, transform_indices = @transform_2, window_bounds = array<i64: 1, 32>}, {pipeline_mode = #tpu.pipeline_mode<synchronous>, transform_indices = @transform_3, window_bounds = array<i64: 8, 32>}, {pipeline_mode = #tpu.pipeline_mode<synchronous>, transform_indices = @transform_4, window_bounds = array<i64: 8, 32, 8>}, {pipeline_mode = #tpu.pipeline_mode<synchronous>, transform_indices = @transform_5, window_bounds = array<i64: 8, 8>}, {pipeline_mode = #tpu.pipeline_mode<synchronous>, transform_indices = @transform_6, window_bounds = array<i64: 8, 32, 8>}, {pipeline_mode = #tpu.pipeline_mode<synchronous>, transform_indices = @transform_7, window_bounds = array<i64: 8, 8>}, {pipeline_mode = #tpu.pipeline_mode<synchronous>, transform_indices = @transform_8, window_bounds = array<i64: 8, 32, 8>}, {pipeline_mode = #tpu.pipeline_mode<synchronous>, transform_indices = @transform_9, window_bounds = array<i64: 8, 8>}, {pipeline_mode = #tpu.pipeline_mode<synchronous>, transform_indices = @transform_10, window_bounds = array<i64: 8, 8, 32>}, {pipeline_mode = #tpu.pipeline_mode<synchronous>, transform_indices = @transform_11, window_bounds = array<i64: 2, 32>}, {pipeline_mode = #tpu.pipeline_mode<synchronous>, transform_indices = @transform_12, window_bounds = array<i64: 2, 32>}, {pipeline_mode = #tpu.pipeline_mode<synchronous>, transform_indices = @transform_13, window_bounds = array<i64: 2, 32>}, {pipeline_mode = #tpu.pipeline_mode<synchronous>, transform_indices = @transform_14, window_bounds = array<i64: 2, 32>}, {pipeline_mode = #tpu.pipeline_mode<synchronous>, transform_indices = @transform_15, window_bounds = array<i64: 2, 32>}, {pipeline_mode = #tpu.pipeline_mode<synchronous>, transform_indices = @transform_16, window_bounds = array<i64: 2, 32, 2048>}, {pipeline_mode = #tpu.pipeline_mode<synchronous>, transform_indices = @transform_17, window_bounds = array<i64: 2, 2048>}, {pipeline_mode = #tpu.pipeline_mode<synchronous>, transform_indices = @transform_18, window_bounds = array<i64: 2, 2048, 32>}, {pipeline_mode = #tpu.pipeline_mode<synchronous>, transform_indices = @transform_19, window_bounds = array<i64: 2, 32>}, {pipeline_mode = #tpu.pipeline_mode<synchronous>, transform_indices = @transform_20, window_bounds = array<i64: 32, 4>}, {pipeline_mode = #tpu.pipeline_mode<synchronous>, transform_indices = @transform_21, window_bounds = array<i64: 1, 4>}, {transform_indices = @transform_22, window_bounds = array<i64: 1, 1, 4>}]} {
    %c0 = arith.constant 0 : index
    %c0_0 = arith.constant 0 : index
    %c0_1 = arith.constant 0 : index
    %0 = vector.load %arg1[%c0, %c0_0, %c0_1] : memref<1x8x16xf32, #tpu.memory_space<vmem>>, vector<1x8x16xf32>
    %1 = vector.shape_cast %0 : vector<1x8x16xf32> to vector<8x16xf32>
    %2 = arith.truncf %1 : vector<8x16xf32> to vector<8x16xbf16>
    %c0_2 = arith.constant 0 : index
    %c0_3 = arith.constant 0 : index
    %3 = vector.load %arg2[%c0_2, %c0_3] : memref<16x32xbf16, #tpu.memory_space<vmem>>, vector<16x32xbf16>
    %cst = arith.constant dense<0.000000e+00> : vector<8x32xf32>
    %4 = tpu.matmul %2, %3, %cst {dimension_numbers = #tpu.dot_dimension_numbers<[1], [0], [0], [1], [0, 0, 1, 1], [], []>} : vector<8x16xbf16>, vector<16x32xbf16>, vector<8x32xf32> -> vector<8x32xf32>
    %c0_4 = arith.constant 0 : index
    %c0_5 = arith.constant 0 : index
    %5 = vector.load %arg3[%c0_4, %c0_5] : memref<1x32xf32, #tpu.memory_space<vmem>>, vector<1x32xf32>
    %6 = vector.broadcast %5 : vector<1x32xf32> to vector<8x32xf32>
    %7 = arith.addf %4, %6 : vector<8x32xf32>
    %8 = vector.shape_cast %7 : vector<8x32xf32> to vector<1x8x32xf32>
    %c0_6 = arith.constant 0 : index
    %c0_7 = arith.constant 0 : index
    %9 = vector.load %arg4[%c0_6, %c0_7] : memref<8x32xf32, #tpu.memory_space<vmem>>, vector<8x32xf32>
    %10 = vector.shape_cast %9 : vector<8x32xf32> to vector<1x8x32xf32>
    %11 = arith.addf %8, %10 : vector<1x8x32xf32>
    %12 = vector.shape_cast %11 : vector<1x8x32xf32> to vector<8x32xf32>
    %13 = arith.truncf %12 : vector<8x32xf32> to vector<8x32xbf16>
    %c0_8 = arith.constant 0 : index
    %c0_9 = arith.constant 0 : index
    %c0_10 = arith.constant 0 : index
    %14 = vector.load %arg5[%c0_8, %c0_9, %c0_10] : memref<8x32x8xbf16, #tpu.memory_space<vmem>>, vector<1x32x8xbf16>
    %15 = vector.shape_cast %14 : vector<1x32x8xbf16> to vector<32x8xbf16>
    %cst_11 = arith.constant dense<0.000000e+00> : vector<8x8xf32>
    %16 = tpu.matmul %13, %15, %cst_11 {dimension_numbers = #tpu.dot_dimension_numbers<[1], [0], [0], [1], [0, 0, 1, 1], [], []>} : vector<8x32xbf16>, vector<32x8xbf16>, vector<8x8xf32> -> vector<8x8xf32>
    %c0_12 = arith.constant 0 : index
    %c0_13 = arith.constant 0 : index
    %17 = vector.load %arg6[%c0_12, %c0_13] : memref<8x8xf32, #tpu.memory_space<vmem>>, vector<1x8xf32>
    %18 = vector.broadcast %17 : vector<1x8xf32> to vector<8x8xf32>
    %19 = arith.addf %16, %18 : vector<8x8xf32>
    %c0_14 = arith.constant 0 : index
    %c0_15 = arith.constant 0 : index
    %c0_16 = arith.constant 0 : index
    %20 = vector.load %arg7[%c0_14, %c0_15, %c0_16] : memref<8x32x8xbf16, #tpu.memory_space<vmem>>, vector<1x32x8xbf16>
    %21 = vector.shape_cast %20 : vector<1x32x8xbf16> to vector<32x8xbf16>
    %cst_17 = arith.constant dense<0.000000e+00> : vector<8x8xf32>
    %22 = tpu.matmul %13, %21, %cst_17 {dimension_numbers = #tpu.dot_dimension_numbers<[1], [0], [0], [1], [0, 0, 1, 1], [], []>} : vector<8x32xbf16>, vector<32x8xbf16>, vector<8x8xf32> -> vector<8x8xf32>
    %c0_18 = arith.constant 0 : index
    %c0_19 = arith.constant 0 : index
    %23 = vector.load %arg8[%c0_18, %c0_19] : memref<8x8xf32, #tpu.memory_space<vmem>>, vector<1x8xf32>
    %24 = vector.broadcast %23 : vector<1x8xf32> to vector<8x8xf32>
    %25 = arith.addf %22, %24 : vector<8x8xf32>
    %c0_20 = arith.constant 0 : index
    %c0_21 = arith.constant 0 : index
    %c0_22 = arith.constant 0 : index
    %26 = vector.load %arg9[%c0_20, %c0_21, %c0_22] : memref<8x32x8xbf16, #tpu.memory_space<vmem>>, vector<1x32x8xbf16>
    %27 = vector.shape_cast %26 : vector<1x32x8xbf16> to vector<32x8xbf16>
    %cst_23 = arith.constant dense<0.000000e+00> : vector<8x8xf32>
    %28 = tpu.matmul %13, %27, %cst_23 {dimension_numbers = #tpu.dot_dimension_numbers<[1], [0], [0], [1], [0, 0, 1, 1], [], []>} : vector<8x32xbf16>, vector<32x8xbf16>, vector<8x8xf32> -> vector<8x8xf32>
    %c0_24 = arith.constant 0 : index
    %c0_25 = arith.constant 0 : index
    %29 = vector.load %arg10[%c0_24, %c0_25] : memref<8x8xf32, #tpu.memory_space<vmem>>, vector<1x8xf32>
    %30 = vector.broadcast %29 : vector<1x8xf32> to vector<8x8xf32>
    %31 = arith.addf %28, %30 : vector<8x8xf32>
    %32 = vector.shape_cast %19 : vector<8x8xf32> to vector<1x8x8xf32>
    %33 = vector.shape_cast %25 : vector<8x8xf32> to vector<1x8x8xf32>
    %34 = vector.shape_cast %31 : vector<8x8xf32> to vector<1x8x8xf32>
    %c1 = arith.constant 1 : index
    %c0_26 = arith.constant 0 : index
    %c0_27 = arith.constant 0 : index
    %35 = vector.load %arg5[%c1, %c0_26, %c0_27] : memref<8x32x8xbf16, #tpu.memory_space<vmem>>, vector<1x32x8xbf16>
    %36 = vector.shape_cast %35 : vector<1x32x8xbf16> to vector<32x8xbf16>
    %cst_28 = arith.constant dense<0.000000e+00> : vector<8x8xf32>
    %37 = tpu.matmul %13, %36, %cst_28 {dimension_numbers = #tpu.dot_dimension_numbers<[1], [0], [0], [1], [0, 0, 1, 1], [], []>} : vector<8x32xbf16>, vector<32x8xbf16>, vector<8x8xf32> -> vector<8x8xf32>
    %c1_29 = arith.constant 1 : index
    %c0_30 = arith.constant 0 : index
    %38 = vector.load %arg6[%c1_29, %c0_30] : memref<8x8xf32, #tpu.memory_space<vmem>>, vector<1x8xf32>
    %39 = vector.broadcast %38 : vector<1x8xf32> to vector<8x8xf32>
    %40 = arith.addf %37, %39 : vector<8x8xf32>
    %c1_31 = arith.constant 1 : index
    %c0_32 = arith.constant 0 : index
    %c0_33 = arith.constant 0 : index
    %41 = vector.load %arg7[%c1_31, %c0_32, %c0_33] : memref<8x32x8xbf16, #tpu.memory_space<vmem>>, vector<1x32x8xbf16>
    %42 = vector.shape_cast %41 : vector<1x32x8xbf16> to vector<32x8xbf16>
    %cst_34 = arith.constant dense<0.000000e+00> : vector<8x8xf32>
    %43 = tpu.matmul %13, %42, %cst_34 {dimension_numbers = #tpu.dot_dimension_numbers<[1], [0], [0], [1], [0, 0, 1, 1], [], []>} : vector<8x32xbf16>, vector<32x8xbf16>, vector<8x8xf32> -> vector<8x8xf32>
    %c1_35 = arith.constant 1 : index
    %c0_36 = arith.constant 0 : index
    %44 = vector.load %arg8[%c1_35, %c0_36] : memref<8x8xf32, #tpu.memory_space<vmem>>, vector<1x8xf32>
    %45 = vector.broadcast %44 : vector<1x8xf32> to vector<8x8xf32>
    %46 = arith.addf %43, %45 : vector<8x8xf32>
    %c1_37 = arith.constant 1 : index
    %c0_38 = arith.constant 0 : index
    %c0_39 = arith.constant 0 : index
    %47 = vector.load %arg9[%c1_37, %c0_38, %c0_39] : memref<8x32x8xbf16, #tpu.memory_space<vmem>>, vector<1x32x8xbf16>
    %48 = vector.shape_cast %47 : vector<1x32x8xbf16> to vector<32x8xbf16>
    %cst_40 = arith.constant dense<0.000000e+00> : vector<8x8xf32>
    %49 = tpu.matmul %13, %48, %cst_40 {dimension_numbers = #tpu.dot_dimension_numbers<[1], [0], [0], [1], [0, 0, 1, 1], [], []>} : vector<8x32xbf16>, vector<32x8xbf16>, vector<8x8xf32> -> vector<8x8xf32>
    %c1_41 = arith.constant 1 : index
    %c0_42 = arith.constant 0 : index
    %50 = vector.load %arg10[%c1_41, %c0_42] : memref<8x8xf32, #tpu.memory_space<vmem>>, vector<1x8xf32>
    %51 = vector.broadcast %50 : vector<1x8xf32> to vector<8x8xf32>
    %52 = arith.addf %49, %51 : vector<8x8xf32>
    %53 = vector.shape_cast %40 : vector<8x8xf32> to vector<1x8x8xf32>
    %54 = vector.shape_cast %46 : vector<8x8xf32> to vector<1x8x8xf32>
    %55 = vector.shape_cast %52 : vector<8x8xf32> to vector<1x8x8xf32>
    %c2 = arith.constant 2 : index
    %c0_43 = arith.constant 0 : index
    %c0_44 = arith.constant 0 : index
    %56 = vector.load %arg5[%c2, %c0_43, %c0_44] : memref<8x32x8xbf16, #tpu.memory_space<vmem>>, vector<1x32x8xbf16>
    %57 = vector.shape_cast %56 : vector<1x32x8xbf16> to vector<32x8xbf16>
    %cst_45 = arith.constant dense<0.000000e+00> : vector<8x8xf32>
    %58 = tpu.matmul %13, %57, %cst_45 {dimension_numbers = #tpu.dot_dimension_numbers<[1], [0], [0], [1], [0, 0, 1, 1], [], []>} : vector<8x32xbf16>, vector<32x8xbf16>, vector<8x8xf32> -> vector<8x8xf32>
    %c2_46 = arith.constant 2 : index
    %c0_47 = arith.constant 0 : index
    %59 = vector.load %arg6[%c2_46, %c0_47] : memref<8x8xf32, #tpu.memory_space<vmem>>, vector<1x8xf32>
    %60 = vector.broadcast %59 : vector<1x8xf32> to vector<8x8xf32>
    %61 = arith.addf %58, %60 : vector<8x8xf32>
    %c2_48 = arith.constant 2 : index
    %c0_49 = arith.constant 0 : index
    %c0_50 = arith.constant 0 : index
    %62 = vector.load %arg7[%c2_48, %c0_49, %c0_50] : memref<8x32x8xbf16, #tpu.memory_space<vmem>>, vector<1x32x8xbf16>
    %63 = vector.shape_cast %62 : vector<1x32x8xbf16> to vector<32x8xbf16>
    %cst_51 = arith.constant dense<0.000000e+00> : vector<8x8xf32>
    %64 = tpu.matmul %13, %63, %cst_51 {dimension_numbers = #tpu.dot_dimension_numbers<[1], [0], [0], [1], [0, 0, 1, 1], [], []>} : vector<8x32xbf16>, vector<32x8xbf16>, vector<8x8xf32> -> vector<8x8xf32>
    %c2_52 = arith.constant 2 : index
    %c0_53 = arith.constant 0 : index
    %65 = vector.load %arg8[%c2_52, %c0_53] : memref<8x8xf32, #tpu.memory_space<vmem>>, vector<1x8xf32>
    %66 = vector.broadcast %65 : vector<1x8xf32> to vector<8x8xf32>
    %67 = arith.addf %64, %66 : vector<8x8xf32>
    %c2_54 = arith.constant 2 : index
    %c0_55 = arith.constant 0 : index
    %c0_56 = arith.constant 0 : index
    %68 = vector.load %arg9[%c2_54, %c0_55, %c0_56] : memref<8x32x8xbf16, #tpu.memory_space<vmem>>, vector<1x32x8xbf16>
    %69 = vector.shape_cast %68 : vector<1x32x8xbf16> to vector<32x8xbf16>
    %cst_57 = arith.constant dense<0.000000e+00> : vector<8x8xf32>
    %70 = tpu.matmul %13, %69, %cst_57 {dimension_numbers = #tpu.dot_dimension_numbers<[1], [0], [0], [1], [0, 0, 1, 1], [], []>} : vector<8x32xbf16>, vector<32x8xbf16>, vector<8x8xf32> -> vector<8x8xf32>
    %c2_58 = arith.constant 2 : index
    %c0_59 = arith.constant 0 : index
    %71 = vector.load %arg10[%c2_58, %c0_59] : memref<8x8xf32, #tpu.memory_space<vmem>>, vector<1x8xf32>
    %72 = vector.broadcast %71 : vector<1x8xf32> to vector<8x8xf32>
    %73 = arith.addf %70, %72 : vector<8x8xf32>
    %74 = vector.shape_cast %61 : vector<8x8xf32> to vector<1x8x8xf32>
    %75 = vector.shape_cast %67 : vector<8x8xf32> to vector<1x8x8xf32>
    %76 = vector.shape_cast %73 : vector<8x8xf32> to vector<1x8x8xf32>
    %c3 = arith.constant 3 : index
    %c0_60 = arith.constant 0 : index
    %c0_61 = arith.constant 0 : index
    %77 = vector.load %arg5[%c3, %c0_60, %c0_61] : memref<8x32x8xbf16, #tpu.memory_space<vmem>>, vector<1x32x8xbf16>
    %78 = vector.shape_cast %77 : vector<1x32x8xbf16> to vector<32x8xbf16>
    %cst_62 = arith.constant dense<0.000000e+00> : vector<8x8xf32>
    %79 = tpu.matmul %13, %78, %cst_62 {dimension_numbers = #tpu.dot_dimension_numbers<[1], [0], [0], [1], [0, 0, 1, 1], [], []>} : vector<8x32xbf16>, vector<32x8xbf16>, vector<8x8xf32> -> vector<8x8xf32>
    %c3_63 = arith.constant 3 : index
    %c0_64 = arith.constant 0 : index
    %80 = vector.load %arg6[%c3_63, %c0_64] : memref<8x8xf32, #tpu.memory_space<vmem>>, vector<1x8xf32>
    %81 = vector.broadcast %80 : vector<1x8xf32> to vector<8x8xf32>
    %82 = arith.addf %79, %81 : vector<8x8xf32>
    %c3_65 = arith.constant 3 : index
    %c0_66 = arith.constant 0 : index
    %c0_67 = arith.constant 0 : index
    %83 = vector.load %arg7[%c3_65, %c0_66, %c0_67] : memref<8x32x8xbf16, #tpu.memory_space<vmem>>, vector<1x32x8xbf16>
    %84 = vector.shape_cast %83 : vector<1x32x8xbf16> to vector<32x8xbf16>
    %cst_68 = arith.constant dense<0.000000e+00> : vector<8x8xf32>
    %85 = tpu.matmul %13, %84, %cst_68 {dimension_numbers = #tpu.dot_dimension_numbers<[1], [0], [0], [1], [0, 0, 1, 1], [], []>} : vector<8x32xbf16>, vector<32x8xbf16>, vector<8x8xf32> -> vector<8x8xf32>
    %c3_69 = arith.constant 3 : index
    %c0_70 = arith.constant 0 : index
    %86 = vector.load %arg8[%c3_69, %c0_70] : memref<8x8xf32, #tpu.memory_space<vmem>>, vector<1x8xf32>
    %87 = vector.broadcast %86 : vector<1x8xf32> to vector<8x8xf32>
    %88 = arith.addf %85, %87 : vector<8x8xf32>
    %c3_71 = arith.constant 3 : index
    %c0_72 = arith.constant 0 : index
    %c0_73 = arith.constant 0 : index
    %89 = vector.load %arg9[%c3_71, %c0_72, %c0_73] : memref<8x32x8xbf16, #tpu.memory_space<vmem>>, vector<1x32x8xbf16>
    %90 = vector.shape_cast %89 : vector<1x32x8xbf16> to vector<32x8xbf16>
    %cst_74 = arith.constant dense<0.000000e+00> : vector<8x8xf32>
    %91 = tpu.matmul %13, %90, %cst_74 {dimension_numbers = #tpu.dot_dimension_numbers<[1], [0], [0], [1], [0, 0, 1, 1], [], []>} : vector<8x32xbf16>, vector<32x8xbf16>, vector<8x8xf32> -> vector<8x8xf32>
    %c3_75 = arith.constant 3 : index
    %c0_76 = arith.constant 0 : index
    %92 = vector.load %arg10[%c3_75, %c0_76] : memref<8x8xf32, #tpu.memory_space<vmem>>, vector<1x8xf32>
    %93 = vector.broadcast %92 : vector<1x8xf32> to vector<8x8xf32>
    %94 = arith.addf %91, %93 : vector<8x8xf32>
    %95 = vector.shape_cast %82 : vector<8x8xf32> to vector<1x8x8xf32>
    %96 = vector.shape_cast %88 : vector<8x8xf32> to vector<1x8x8xf32>
    %97 = vector.shape_cast %94 : vector<8x8xf32> to vector<1x8x8xf32>
    %98 = tpu.concatenate %32, %53, %74, %95 in 0 : vector<1x8x8xf32>, vector<1x8x8xf32>, vector<1x8x8xf32>, vector<1x8x8xf32> -> vector<4x8x8xf32>
    %99 = arith.truncf %98 : vector<4x8x8xf32> to vector<4x8x8xbf16>
    %100 = tpu.concatenate %33, %54, %75, %96 in 0 : vector<1x8x8xf32>, vector<1x8x8xf32>, vector<1x8x8xf32>, vector<1x8x8xf32> -> vector<4x8x8xf32>
    %101 = arith.truncf %100 : vector<4x8x8xf32> to vector<4x8x8xbf16>
    %102 = tpu.concatenate %34, %55, %76, %97 in 0 : vector<1x8x8xf32>, vector<1x8x8xf32>, vector<1x8x8xf32>, vector<1x8x8xf32> -> vector<4x8x8xf32>
    %103 = arith.truncf %102 : vector<4x8x8xf32> to vector<4x8x8xbf16>
    "tpu.trace_start"() <{level = 10 : i32, message = "gqd,gkd->gqk"}> : () -> ()
    %cst_77 = arith.constant dense<0.000000e+00> : vector<4x8x8xf32>
    %104 = tpu.matmul %99, %101, %cst_77 {dimension_numbers = #tpu.dot_dimension_numbers<[2], [2], [1], [1], [0, 0, 0, 1, 1, 1], [0], [0]>} : vector<4x8x8xbf16>, vector<4x8x8xbf16>, vector<4x8x8xf32> -> vector<4x8x8xf32>
    "tpu.trace_stop"() : () -> ()
    %cst_78 = arith.constant 0.353553385 : f32
    %105 = vector.broadcast %cst_78 : f32 to vector<4x8x8xf32>
    %106 = arith.mulf %104, %105 : vector<4x8x8xf32>
    %cst_79 = arith.constant dense<0xFF800000> : vector<4x8xf32>
    %107 = vector.multi_reduction <maximumf>, %106, %cst_79 [2] : vector<4x8x8xf32> to vector<4x8xf32>
    %108 = vector.shape_cast %107 : vector<4x8xf32> to vector<4x8x1xf32>
    %109 = vector.broadcast %108 : vector<4x8x1xf32> to vector<4x8x8xf32>
    %110 = arith.subf %106, %109 : vector<4x8x8xf32>
    %111 = math.exp %110 : vector<4x8x8xf32>
    %cst_80 = arith.constant dense<0.000000e+00> : vector<4x8xf32>
    %112 = vector.multi_reduction <add>, %111, %cst_80 [2] : vector<4x8x8xf32> to vector<4x8xf32>
    %113 = vector.shape_cast %112 : vector<4x8xf32> to vector<4x8x1xf32>
    %114 = tpu.reciprocal %113 {approx = true} : vector<4x8x1xf32> -> vector<4x8x1xf32>
    %115 = vector.broadcast %114 : vector<4x8x1xf32> to vector<4x8x8xf32>
    %116 = arith.mulf %111, %115 : vector<4x8x8xf32>
    %117 = arith.truncf %116 : vector<4x8x8xf32> to vector<4x8x8xbf16>
    "tpu.trace_start"() <{level = 10 : i32, message = "gqk,gkd->gqd"}> : () -> ()
    %cst_81 = arith.constant dense<0.000000e+00> : vector<4x8x8xf32>
    %118 = tpu.matmul %117, %103, %cst_81 {dimension_numbers = #tpu.dot_dimension_numbers<[2], [1], [1], [2], [0, 0, 0, 1, 1, 2], [0], [0]>} : vector<4x8x8xbf16>, vector<4x8x8xbf16>, vector<4x8x8xf32> -> vector<4x8x8xf32>
    "tpu.trace_stop"() : () -> ()
    %119 = arith.truncf %118 : vector<4x8x8xf32> to vector<4x8x8xbf16>
    %120 = vector.extract_strided_slice %119 {offsets = [0, 0, 0], sizes = [1, 8, 8], strides = [1, 1, 1]} : vector<4x8x8xbf16> to vector<1x8x8xbf16>
    %121 = vector.shape_cast %120 : vector<1x8x8xbf16> to vector<8x8xbf16>
    %c0_82 = arith.constant 0 : index
    %c0_83 = arith.constant 0 : index
    %c0_84 = arith.constant 0 : index
    %122 = vector.load %arg11[%c0_82, %c0_83, %c0_84] : memref<8x8x32xbf16, #tpu.memory_space<vmem>>, vector<1x8x32xbf16>
    %123 = vector.shape_cast %122 : vector<1x8x32xbf16> to vector<8x32xbf16>
    %cst_85 = arith.constant dense<0.000000e+00> : vector<8x32xf32>
    %124 = tpu.matmul %121, %123, %cst_85 {dimension_numbers = #tpu.dot_dimension_numbers<[1], [0], [0], [1], [0, 0, 1, 1], [], []>} : vector<8x8xbf16>, vector<8x32xbf16>, vector<8x32xf32> -> vector<8x32xf32>
    %125 = vector.extract_strided_slice %119 {offsets = [1, 0, 0], sizes = [1, 8, 8], strides = [1, 1, 1]} : vector<4x8x8xbf16> to vector<1x8x8xbf16>
    %126 = vector.shape_cast %125 : vector<1x8x8xbf16> to vector<8x8xbf16>
    %c1_86 = arith.constant 1 : index
    %c0_87 = arith.constant 0 : index
    %c0_88 = arith.constant 0 : index
    %127 = vector.load %arg11[%c1_86, %c0_87, %c0_88] : memref<8x8x32xbf16, #tpu.memory_space<vmem>>, vector<1x8x32xbf16>
    %128 = vector.shape_cast %127 : vector<1x8x32xbf16> to vector<8x32xbf16>
    %cst_89 = arith.constant dense<0.000000e+00> : vector<8x32xf32>
    %129 = tpu.matmul %126, %128, %cst_89 {dimension_numbers = #tpu.dot_dimension_numbers<[1], [0], [0], [1], [0, 0, 1, 1], [], []>} : vector<8x8xbf16>, vector<8x32xbf16>, vector<8x32xf32> -> vector<8x32xf32>
    %130 = arith.addf %124, %129 : vector<8x32xf32>
    %131 = vector.extract_strided_slice %119 {offsets = [2, 0, 0], sizes = [1, 8, 8], strides = [1, 1, 1]} : vector<4x8x8xbf16> to vector<1x8x8xbf16>
    %132 = vector.shape_cast %131 : vector<1x8x8xbf16> to vector<8x8xbf16>
    %c2_90 = arith.constant 2 : index
    %c0_91 = arith.constant 0 : index
    %c0_92 = arith.constant 0 : index
    %133 = vector.load %arg11[%c2_90, %c0_91, %c0_92] : memref<8x8x32xbf16, #tpu.memory_space<vmem>>, vector<1x8x32xbf16>
    %134 = vector.shape_cast %133 : vector<1x8x32xbf16> to vector<8x32xbf16>
    %cst_93 = arith.constant dense<0.000000e+00> : vector<8x32xf32>
    %135 = tpu.matmul %132, %134, %cst_93 {dimension_numbers = #tpu.dot_dimension_numbers<[1], [0], [0], [1], [0, 0, 1, 1], [], []>} : vector<8x8xbf16>, vector<8x32xbf16>, vector<8x32xf32> -> vector<8x32xf32>
    %136 = arith.addf %130, %135 : vector<8x32xf32>
    %137 = vector.extract_strided_slice %119 {offsets = [3, 0, 0], sizes = [1, 8, 8], strides = [1, 1, 1]} : vector<4x8x8xbf16> to vector<1x8x8xbf16>
    %138 = vector.shape_cast %137 : vector<1x8x8xbf16> to vector<8x8xbf16>
    %c3_94 = arith.constant 3 : index
    %c0_95 = arith.constant 0 : index
    %c0_96 = arith.constant 0 : index
    %139 = vector.load %arg11[%c3_94, %c0_95, %c0_96] : memref<8x8x32xbf16, #tpu.memory_space<vmem>>, vector<1x8x32xbf16>
    %140 = vector.shape_cast %139 : vector<1x8x32xbf16> to vector<8x32xbf16>
    %cst_97 = arith.constant dense<0.000000e+00> : vector<8x32xf32>
    %141 = tpu.matmul %138, %140, %cst_97 {dimension_numbers = #tpu.dot_dimension_numbers<[1], [0], [0], [1], [0, 0, 1, 1], [], []>} : vector<8x8xbf16>, vector<8x32xbf16>, vector<8x32xf32> -> vector<8x32xf32>
    %142 = arith.addf %136, %141 : vector<8x32xf32>
    %c0_98 = arith.constant 0 : index
    %c0_99 = arith.constant 0 : index
    %143 = vector.load %arg12[%c0_98, %c0_99] : memref<2x32xf32, #tpu.memory_space<vmem>>, vector<1x32xf32>
    %144 = vector.broadcast %143 : vector<1x32xf32> to vector<8x32xf32>
    %145 = arith.addf %142, %144 : vector<8x32xf32>
    %146 = arith.addf %12, %145 : vector<8x32xf32>
    %c0_100 = arith.constant 0 : index
    %c0_101 = arith.constant 0 : index
    %147 = vector.load %arg13[%c0_100, %c0_101] : memref<2x32xf32, #tpu.memory_space<vmem>>, vector<1x32xf32>
    %c0_102 = arith.constant 0 : index
    %c0_103 = arith.constant 0 : index
    %148 = vector.load %arg14[%c0_102, %c0_103] : memref<2x32xf32, #tpu.memory_space<vmem>>, vector<1x32xf32>
    %cst_104 = arith.constant dense<0.000000e+00> : vector<8xf32>
    %149 = vector.multi_reduction <add>, %146, %cst_104 [1] : vector<8x32xf32> to vector<8xf32>
    %150 = vector.shape_cast %149 : vector<8xf32> to vector<8x1xf32>
    %cst_105 = arith.constant 3.200000e+01 : f32
    %151 = vector.broadcast %cst_105 : f32 to vector<8x1xf32>
    %152 = arith.divf %150, %151 : vector<8x1xf32>
    %153 = vector.broadcast %152 : vector<8x1xf32> to vector<8x32xf32>
    %154 = arith.subf %146, %153 : vector<8x32xf32>
    %155 = arith.mulf %154, %154 : vector<8x32xf32>
    %cst_106 = arith.constant dense<0.000000e+00> : vector<8xf32>
    %156 = vector.multi_reduction <add>, %155, %cst_106 [1] : vector<8x32xf32> to vector<8xf32>
    %157 = vector.shape_cast %156 : vector<8xf32> to vector<8x1xf32>
    %cst_107 = arith.constant 3.200000e+01 : f32
    %158 = vector.broadcast %cst_107 : f32 to vector<8x1xf32>
    %159 = arith.divf %157, %158 : vector<8x1xf32>
    %160 = vector.broadcast %152 : vector<8x1xf32> to vector<8x32xf32>
    %161 = arith.subf %146, %160 : vector<8x32xf32>
    %cst_108 = arith.constant 9.99999974E-6 : f32
    %162 = vector.broadcast %cst_108 : f32 to vector<8x1xf32>
    %163 = arith.addf %159, %162 : vector<8x1xf32>
    %164 = math.rsqrt %163 : vector<8x1xf32>
    %165 = vector.broadcast %164 : vector<8x1xf32> to vector<8x32xf32>
    %166 = arith.mulf %161, %165 : vector<8x32xf32>
    %167 = vector.broadcast %147 : vector<1x32xf32> to vector<8x32xf32>
    %168 = arith.mulf %166, %167 : vector<8x32xf32>
    %169 = vector.broadcast %148 : vector<1x32xf32> to vector<8x32xf32>
    %170 = arith.addf %168, %169 : vector<8x32xf32>
    %171 = arith.truncf %170 : vector<8x32xf32> to vector<8x32xbf16>
    %c0_109 = arith.constant 0 : index
    %c0_110 = arith.constant 0 : index
    %c0_111 = arith.constant 0 : index
    %172 = vector.load %arg17[%c0_109, %c0_110, %c0_111] : memref<2x32x2048xbf16, #tpu.memory_space<vmem>>, vector<1x32x2048xbf16>
    %173 = vector.shape_cast %172 : vector<1x32x2048xbf16> to vector<32x2048xbf16>
    %cst_112 = arith.constant dense<0.000000e+00> : vector<8x2048xf32>
    %174 = tpu.matmul %171, %173, %cst_112 {dimension_numbers = #tpu.dot_dimension_numbers<[1], [0], [0], [1], [0, 0, 1, 1], [], []>} : vector<8x32xbf16>, vector<32x2048xbf16>, vector<8x2048xf32> -> vector<8x2048xf32>
    %c0_113 = arith.constant 0 : index
    %c0_114 = arith.constant 0 : index
    %175 = vector.load %arg18[%c0_113, %c0_114] : memref<2x2048xf32, #tpu.memory_space<vmem>>, vector<1x2048xf32>
    %176 = vector.broadcast %175 : vector<1x2048xf32> to vector<8x2048xf32>
    %177 = arith.addf %174, %176 : vector<8x2048xf32>
    %cst_115 = arith.constant 0.000000e+00 : f32
    %178 = vector.broadcast %cst_115 : f32 to vector<8x2048xf32>
    %179 = arith.maximumf %177, %178 : vector<8x2048xf32>
    %180 = arith.truncf %179 : vector<8x2048xf32> to vector<8x2048xbf16>
    %c0_116 = arith.constant 0 : index
    %c0_117 = arith.constant 0 : index
    %c0_118 = arith.constant 0 : index
    %181 = vector.load %arg19[%c0_116, %c0_117, %c0_118] : memref<2x2048x32xbf16, #tpu.memory_space<vmem>>, vector<1x2048x32xbf16>
    %182 = vector.shape_cast %181 : vector<1x2048x32xbf16> to vector<2048x32xbf16>
    %cst_119 = arith.constant dense<0.000000e+00> : vector<8x32xf32>
    %183 = tpu.matmul %180, %182, %cst_119 {dimension_numbers = #tpu.dot_dimension_numbers<[1], [0], [0], [1], [0, 0, 1, 1], [], []>} : vector<8x2048xbf16>, vector<2048x32xbf16>, vector<8x32xf32> -> vector<8x32xf32>
    %c0_120 = arith.constant 0 : index
    %c0_121 = arith.constant 0 : index
    %184 = vector.load %arg20[%c0_120, %c0_121] : memref<2x32xf32, #tpu.memory_space<vmem>>, vector<1x32xf32>
    %185 = vector.broadcast %184 : vector<1x32xf32> to vector<8x32xf32>
    %186 = arith.addf %183, %185 : vector<8x32xf32>
    %187 = arith.addf %170, %186 : vector<8x32xf32>
    %c0_122 = arith.constant 0 : index
    %c0_123 = arith.constant 0 : index
    %188 = vector.load %arg15[%c0_122, %c0_123] : memref<2x32xf32, #tpu.memory_space<vmem>>, vector<1x32xf32>
    %c0_124 = arith.constant 0 : index
    %c0_125 = arith.constant 0 : index
    %189 = vector.load %arg16[%c0_124, %c0_125] : memref<2x32xf32, #tpu.memory_space<vmem>>, vector<1x32xf32>
    %cst_126 = arith.constant dense<0.000000e+00> : vector<8xf32>
    %190 = vector.multi_reduction <add>, %187, %cst_126 [1] : vector<8x32xf32> to vector<8xf32>
    %191 = vector.shape_cast %190 : vector<8xf32> to vector<8x1xf32>
    %cst_127 = arith.constant 3.200000e+01 : f32
    %192 = vector.broadcast %cst_127 : f32 to vector<8x1xf32>
    %193 = arith.divf %191, %192 : vector<8x1xf32>
    %194 = vector.broadcast %193 : vector<8x1xf32> to vector<8x32xf32>
    %195 = arith.subf %187, %194 : vector<8x32xf32>
    %196 = arith.mulf %195, %195 : vector<8x32xf32>
    %cst_128 = arith.constant dense<0.000000e+00> : vector<8xf32>
    %197 = vector.multi_reduction <add>, %196, %cst_128 [1] : vector<8x32xf32> to vector<8xf32>
    %198 = vector.shape_cast %197 : vector<8xf32> to vector<8x1xf32>
    %cst_129 = arith.constant 3.200000e+01 : f32
    %199 = vector.broadcast %cst_129 : f32 to vector<8x1xf32>
    %200 = arith.divf %198, %199 : vector<8x1xf32>
    %201 = vector.broadcast %193 : vector<8x1xf32> to vector<8x32xf32>
    %202 = arith.subf %187, %201 : vector<8x32xf32>
    %cst_130 = arith.constant 9.99999974E-6 : f32
    %203 = vector.broadcast %cst_130 : f32 to vector<8x1xf32>
    %204 = arith.addf %200, %203 : vector<8x1xf32>
    %205 = math.rsqrt %204 : vector<8x1xf32>
    %206 = vector.broadcast %205 : vector<8x1xf32> to vector<8x32xf32>
    %207 = arith.mulf %202, %206 : vector<8x32xf32>
    %208 = vector.broadcast %188 : vector<1x32xf32> to vector<8x32xf32>
    %209 = arith.mulf %207, %208 : vector<8x32xf32>
    %210 = vector.broadcast %189 : vector<1x32xf32> to vector<8x32xf32>
    %211 = arith.addf %209, %210 : vector<8x32xf32>
    %212 = arith.truncf %211 : vector<8x32xf32> to vector<8x32xbf16>
    %c4 = arith.constant 4 : index
    %c0_131 = arith.constant 0 : index
    %c0_132 = arith.constant 0 : index
    %213 = vector.load %arg5[%c4, %c0_131, %c0_132] : memref<8x32x8xbf16, #tpu.memory_space<vmem>>, vector<1x32x8xbf16>
    %214 = vector.shape_cast %213 : vector<1x32x8xbf16> to vector<32x8xbf16>
    %cst_133 = arith.constant dense<0.000000e+00> : vector<8x8xf32>
    %215 = tpu.matmul %212, %214, %cst_133 {dimension_numbers = #tpu.dot_dimension_numbers<[1], [0], [0], [1], [0, 0, 1, 1], [], []>} : vector<8x32xbf16>, vector<32x8xbf16>, vector<8x8xf32> -> vector<8x8xf32>
    %c4_134 = arith.constant 4 : index
    %c0_135 = arith.constant 0 : index
    %216 = vector.load %arg6[%c4_134, %c0_135] : memref<8x8xf32, #tpu.memory_space<vmem>>, vector<1x8xf32>
    %217 = vector.broadcast %216 : vector<1x8xf32> to vector<8x8xf32>
    %218 = arith.addf %215, %217 : vector<8x8xf32>
    %c4_136 = arith.constant 4 : index
    %c0_137 = arith.constant 0 : index
    %c0_138 = arith.constant 0 : index
    %219 = vector.load %arg7[%c4_136, %c0_137, %c0_138] : memref<8x32x8xbf16, #tpu.memory_space<vmem>>, vector<1x32x8xbf16>
    %220 = vector.shape_cast %219 : vector<1x32x8xbf16> to vector<32x8xbf16>
    %cst_139 = arith.constant dense<0.000000e+00> : vector<8x8xf32>
    %221 = tpu.matmul %212, %220, %cst_139 {dimension_numbers = #tpu.dot_dimension_numbers<[1], [0], [0], [1], [0, 0, 1, 1], [], []>} : vector<8x32xbf16>, vector<32x8xbf16>, vector<8x8xf32> -> vector<8x8xf32>
    %c4_140 = arith.constant 4 : index
    %c0_141 = arith.constant 0 : index
    %222 = vector.load %arg8[%c4_140, %c0_141] : memref<8x8xf32, #tpu.memory_space<vmem>>, vector<1x8xf32>
    %223 = vector.broadcast %222 : vector<1x8xf32> to vector<8x8xf32>
    %224 = arith.addf %221, %223 : vector<8x8xf32>
    %c4_142 = arith.constant 4 : index
    %c0_143 = arith.constant 0 : index
    %c0_144 = arith.constant 0 : index
    %225 = vector.load %arg9[%c4_142, %c0_143, %c0_144] : memref<8x32x8xbf16, #tpu.memory_space<vmem>>, vector<1x32x8xbf16>
    %226 = vector.shape_cast %225 : vector<1x32x8xbf16> to vector<32x8xbf16>
    %cst_145 = arith.constant dense<0.000000e+00> : vector<8x8xf32>
    %227 = tpu.matmul %212, %226, %cst_145 {dimension_numbers = #tpu.dot_dimension_numbers<[1], [0], [0], [1], [0, 0, 1, 1], [], []>} : vector<8x32xbf16>, vector<32x8xbf16>, vector<8x8xf32> -> vector<8x8xf32>
    %c4_146 = arith.constant 4 : index
    %c0_147 = arith.constant 0 : index
    %228 = vector.load %arg10[%c4_146, %c0_147] : memref<8x8xf32, #tpu.memory_space<vmem>>, vector<1x8xf32>
    %229 = vector.broadcast %228 : vector<1x8xf32> to vector<8x8xf32>
    %230 = arith.addf %227, %229 : vector<8x8xf32>
    %231 = vector.shape_cast %218 : vector<8x8xf32> to vector<1x8x8xf32>
    %232 = vector.shape_cast %224 : vector<8x8xf32> to vector<1x8x8xf32>
    %233 = vector.shape_cast %230 : vector<8x8xf32> to vector<1x8x8xf32>
    %c5 = arith.constant 5 : index
    %c0_148 = arith.constant 0 : index
    %c0_149 = arith.constant 0 : index
    %234 = vector.load %arg5[%c5, %c0_148, %c0_149] : memref<8x32x8xbf16, #tpu.memory_space<vmem>>, vector<1x32x8xbf16>
    %235 = vector.shape_cast %234 : vector<1x32x8xbf16> to vector<32x8xbf16>
    %cst_150 = arith.constant dense<0.000000e+00> : vector<8x8xf32>
    %236 = tpu.matmul %212, %235, %cst_150 {dimension_numbers = #tpu.dot_dimension_numbers<[1], [0], [0], [1], [0, 0, 1, 1], [], []>} : vector<8x32xbf16>, vector<32x8xbf16>, vector<8x8xf32> -> vector<8x8xf32>
    %c5_151 = arith.constant 5 : index
    %c0_152 = arith.constant 0 : index
    %237 = vector.load %arg6[%c5_151, %c0_152] : memref<8x8xf32, #tpu.memory_space<vmem>>, vector<1x8xf32>
    %238 = vector.broadcast %237 : vector<1x8xf32> to vector<8x8xf32>
    %239 = arith.addf %236, %238 : vector<8x8xf32>
    %c5_153 = arith.constant 5 : index
    %c0_154 = arith.constant 0 : index
    %c0_155 = arith.constant 0 : index
    %240 = vector.load %arg7[%c5_153, %c0_154, %c0_155] : memref<8x32x8xbf16, #tpu.memory_space<vmem>>, vector<1x32x8xbf16>
    %241 = vector.shape_cast %240 : vector<1x32x8xbf16> to vector<32x8xbf16>
    %cst_156 = arith.constant dense<0.000000e+00> : vector<8x8xf32>
    %242 = tpu.matmul %212, %241, %cst_156 {dimension_numbers = #tpu.dot_dimension_numbers<[1], [0], [0], [1], [0, 0, 1, 1], [], []>} : vector<8x32xbf16>, vector<32x8xbf16>, vector<8x8xf32> -> vector<8x8xf32>
    %c5_157 = arith.constant 5 : index
    %c0_158 = arith.constant 0 : index
    %243 = vector.load %arg8[%c5_157, %c0_158] : memref<8x8xf32, #tpu.memory_space<vmem>>, vector<1x8xf32>
    %244 = vector.broadcast %243 : vector<1x8xf32> to vector<8x8xf32>
    %245 = arith.addf %242, %244 : vector<8x8xf32>
    %c5_159 = arith.constant 5 : index
    %c0_160 = arith.constant 0 : index
    %c0_161 = arith.constant 0 : index
    %246 = vector.load %arg9[%c5_159, %c0_160, %c0_161] : memref<8x32x8xbf16, #tpu.memory_space<vmem>>, vector<1x32x8xbf16>
    %247 = vector.shape_cast %246 : vector<1x32x8xbf16> to vector<32x8xbf16>
    %cst_162 = arith.constant dense<0.000000e+00> : vector<8x8xf32>
    %248 = tpu.matmul %212, %247, %cst_162 {dimension_numbers = #tpu.dot_dimension_numbers<[1], [0], [0], [1], [0, 0, 1, 1], [], []>} : vector<8x32xbf16>, vector<32x8xbf16>, vector<8x8xf32> -> vector<8x8xf32>
    %c5_163 = arith.constant 5 : index
    %c0_164 = arith.constant 0 : index
    %249 = vector.load %arg10[%c5_163, %c0_164] : memref<8x8xf32, #tpu.memory_space<vmem>>, vector<1x8xf32>
    %250 = vector.broadcast %249 : vector<1x8xf32> to vector<8x8xf32>
    %251 = arith.addf %248, %250 : vector<8x8xf32>
    %252 = vector.shape_cast %239 : vector<8x8xf32> to vector<1x8x8xf32>
    %253 = vector.shape_cast %245 : vector<8x8xf32> to vector<1x8x8xf32>
    %254 = vector.shape_cast %251 : vector<8x8xf32> to vector<1x8x8xf32>
    %c6 = arith.constant 6 : index
    %c0_165 = arith.constant 0 : index
    %c0_166 = arith.constant 0 : index
    %255 = vector.load %arg5[%c6, %c0_165, %c0_166] : memref<8x32x8xbf16, #tpu.memory_space<vmem>>, vector<1x32x8xbf16>
    %256 = vector.shape_cast %255 : vector<1x32x8xbf16> to vector<32x8xbf16>
    %cst_167 = arith.constant dense<0.000000e+00> : vector<8x8xf32>
    %257 = tpu.matmul %212, %256, %cst_167 {dimension_numbers = #tpu.dot_dimension_numbers<[1], [0], [0], [1], [0, 0, 1, 1], [], []>} : vector<8x32xbf16>, vector<32x8xbf16>, vector<8x8xf32> -> vector<8x8xf32>
    %c6_168 = arith.constant 6 : index
    %c0_169 = arith.constant 0 : index
    %258 = vector.load %arg6[%c6_168, %c0_169] : memref<8x8xf32, #tpu.memory_space<vmem>>, vector<1x8xf32>
    %259 = vector.broadcast %258 : vector<1x8xf32> to vector<8x8xf32>
    %260 = arith.addf %257, %259 : vector<8x8xf32>
    %c6_170 = arith.constant 6 : index
    %c0_171 = arith.constant 0 : index
    %c0_172 = arith.constant 0 : index
    %261 = vector.load %arg7[%c6_170, %c0_171, %c0_172] : memref<8x32x8xbf16, #tpu.memory_space<vmem>>, vector<1x32x8xbf16>
    %262 = vector.shape_cast %261 : vector<1x32x8xbf16> to vector<32x8xbf16>
    %cst_173 = arith.constant dense<0.000000e+00> : vector<8x8xf32>
    %263 = tpu.matmul %212, %262, %cst_173 {dimension_numbers = #tpu.dot_dimension_numbers<[1], [0], [0], [1], [0, 0, 1, 1], [], []>} : vector<8x32xbf16>, vector<32x8xbf16>, vector<8x8xf32> -> vector<8x8xf32>
    %c6_174 = arith.constant 6 : index
    %c0_175 = arith.constant 0 : index
    %264 = vector.load %arg8[%c6_174, %c0_175] : memref<8x8xf32, #tpu.memory_space<vmem>>, vector<1x8xf32>
    %265 = vector.broadcast %264 : vector<1x8xf32> to vector<8x8xf32>
    %266 = arith.addf %263, %265 : vector<8x8xf32>
    %c6_176 = arith.constant 6 : index
    %c0_177 = arith.constant 0 : index
    %c0_178 = arith.constant 0 : index
    %267 = vector.load %arg9[%c6_176, %c0_177, %c0_178] : memref<8x32x8xbf16, #tpu.memory_space<vmem>>, vector<1x32x8xbf16>
    %268 = vector.shape_cast %267 : vector<1x32x8xbf16> to vector<32x8xbf16>
    %cst_179 = arith.constant dense<0.000000e+00> : vector<8x8xf32>
    %269 = tpu.matmul %212, %268, %cst_179 {dimension_numbers = #tpu.dot_dimension_numbers<[1], [0], [0], [1], [0, 0, 1, 1], [], []>} : vector<8x32xbf16>, vector<32x8xbf16>, vector<8x8xf32> -> vector<8x8xf32>
    %c6_180 = arith.constant 6 : index
    %c0_181 = arith.constant 0 : index
    %270 = vector.load %arg10[%c6_180, %c0_181] : memref<8x8xf32, #tpu.memory_space<vmem>>, vector<1x8xf32>
    %271 = vector.broadcast %270 : vector<1x8xf32> to vector<8x8xf32>
    %272 = arith.addf %269, %271 : vector<8x8xf32>
    %273 = vector.shape_cast %260 : vector<8x8xf32> to vector<1x8x8xf32>
    %274 = vector.shape_cast %266 : vector<8x8xf32> to vector<1x8x8xf32>
    %275 = vector.shape_cast %272 : vector<8x8xf32> to vector<1x8x8xf32>
    %c7 = arith.constant 7 : index
    %c0_182 = arith.constant 0 : index
    %c0_183 = arith.constant 0 : index
    %276 = vector.load %arg5[%c7, %c0_182, %c0_183] : memref<8x32x8xbf16, #tpu.memory_space<vmem>>, vector<1x32x8xbf16>
    %277 = vector.shape_cast %276 : vector<1x32x8xbf16> to vector<32x8xbf16>
    %cst_184 = arith.constant dense<0.000000e+00> : vector<8x8xf32>
    %278 = tpu.matmul %212, %277, %cst_184 {dimension_numbers = #tpu.dot_dimension_numbers<[1], [0], [0], [1], [0, 0, 1, 1], [], []>} : vector<8x32xbf16>, vector<32x8xbf16>, vector<8x8xf32> -> vector<8x8xf32>
    %c7_185 = arith.constant 7 : index
    %c0_186 = arith.constant 0 : index
    %279 = vector.load %arg6[%c7_185, %c0_186] : memref<8x8xf32, #tpu.memory_space<vmem>>, vector<1x8xf32>
    %280 = vector.broadcast %279 : vector<1x8xf32> to vector<8x8xf32>
    %281 = arith.addf %278, %280 : vector<8x8xf32>
    %c7_187 = arith.constant 7 : index
    %c0_188 = arith.constant 0 : index
    %c0_189 = arith.constant 0 : index
    %282 = vector.load %arg7[%c7_187, %c0_188, %c0_189] : memref<8x32x8xbf16, #tpu.memory_space<vmem>>, vector<1x32x8xbf16>
    %283 = vector.shape_cast %282 : vector<1x32x8xbf16> to vector<32x8xbf16>
    %cst_190 = arith.constant dense<0.000000e+00> : vector<8x8xf32>
    %284 = tpu.matmul %212, %283, %cst_190 {dimension_numbers = #tpu.dot_dimension_numbers<[1], [0], [0], [1], [0, 0, 1, 1], [], []>} : vector<8x32xbf16>, vector<32x8xbf16>, vector<8x8xf32> -> vector<8x8xf32>
    %c7_191 = arith.constant 7 : index
    %c0_192 = arith.constant 0 : index
    %285 = vector.load %arg8[%c7_191, %c0_192] : memref<8x8xf32, #tpu.memory_space<vmem>>, vector<1x8xf32>
    %286 = vector.broadcast %285 : vector<1x8xf32> to vector<8x8xf32>
    %287 = arith.addf %284, %286 : vector<8x8xf32>
    %c7_193 = arith.constant 7 : index
    %c0_194 = arith.constant 0 : index
    %c0_195 = arith.constant 0 : index
    %288 = vector.load %arg9[%c7_193, %c0_194, %c0_195] : memref<8x32x8xbf16, #tpu.memory_space<vmem>>, vector<1x32x8xbf16>
    %289 = vector.shape_cast %288 : vector<1x32x8xbf16> to vector<32x8xbf16>
    %cst_196 = arith.constant dense<0.000000e+00> : vector<8x8xf32>
    %290 = tpu.matmul %212, %289, %cst_196 {dimension_numbers = #tpu.dot_dimension_numbers<[1], [0], [0], [1], [0, 0, 1, 1], [], []>} : vector<8x32xbf16>, vector<32x8xbf16>, vector<8x8xf32> -> vector<8x8xf32>
    %c7_197 = arith.constant 7 : index
    %c0_198 = arith.constant 0 : index
    %291 = vector.load %arg10[%c7_197, %c0_198] : memref<8x8xf32, #tpu.memory_space<vmem>>, vector<1x8xf32>
    %292 = vector.broadcast %291 : vector<1x8xf32> to vector<8x8xf32>
    %293 = arith.addf %290, %292 : vector<8x8xf32>
    %294 = vector.shape_cast %281 : vector<8x8xf32> to vector<1x8x8xf32>
    %295 = vector.shape_cast %287 : vector<8x8xf32> to vector<1x8x8xf32>
    %296 = vector.shape_cast %293 : vector<8x8xf32> to vector<1x8x8xf32>
    %297 = tpu.concatenate %231, %252, %273, %294 in 0 : vector<1x8x8xf32>, vector<1x8x8xf32>, vector<1x8x8xf32>, vector<1x8x8xf32> -> vector<4x8x8xf32>
    %298 = arith.truncf %297 : vector<4x8x8xf32> to vector<4x8x8xbf16>
    %299 = tpu.concatenate %232, %253, %274, %295 in 0 : vector<1x8x8xf32>, vector<1x8x8xf32>, vector<1x8x8xf32>, vector<1x8x8xf32> -> vector<4x8x8xf32>
    %300 = arith.truncf %299 : vector<4x8x8xf32> to vector<4x8x8xbf16>
    %301 = tpu.concatenate %233, %254, %275, %296 in 0 : vector<1x8x8xf32>, vector<1x8x8xf32>, vector<1x8x8xf32>, vector<1x8x8xf32> -> vector<4x8x8xf32>
    %302 = arith.truncf %301 : vector<4x8x8xf32> to vector<4x8x8xbf16>
    "tpu.trace_start"() <{level = 10 : i32, message = "gqd,gkd->gqk"}> : () -> ()
    %cst_199 = arith.constant dense<0.000000e+00> : vector<4x8x8xf32>
    %303 = tpu.matmul %298, %300, %cst_199 {dimension_numbers = #tpu.dot_dimension_numbers<[2], [2], [1], [1], [0, 0, 0, 1, 1, 1], [0], [0]>} : vector<4x8x8xbf16>, vector<4x8x8xbf16>, vector<4x8x8xf32> -> vector<4x8x8xf32>
    "tpu.trace_stop"() : () -> ()
    %cst_200 = arith.constant 0.353553385 : f32
    %304 = vector.broadcast %cst_200 : f32 to vector<4x8x8xf32>
    %305 = arith.mulf %303, %304 : vector<4x8x8xf32>
    %cst_201 = arith.constant dense<0xFF800000> : vector<4x8xf32>
    %306 = vector.multi_reduction <maximumf>, %305, %cst_201 [2] : vector<4x8x8xf32> to vector<4x8xf32>
    %307 = vector.shape_cast %306 : vector<4x8xf32> to vector<4x8x1xf32>
    %308 = vector.broadcast %307 : vector<4x8x1xf32> to vector<4x8x8xf32>
    %309 = arith.subf %305, %308 : vector<4x8x8xf32>
    %310 = math.exp %309 : vector<4x8x8xf32>
    %cst_202 = arith.constant dense<0.000000e+00> : vector<4x8xf32>
    %311 = vector.multi_reduction <add>, %310, %cst_202 [2] : vector<4x8x8xf32> to vector<4x8xf32>
    %312 = vector.shape_cast %311 : vector<4x8xf32> to vector<4x8x1xf32>
    %313 = tpu.reciprocal %312 {approx = true} : vector<4x8x1xf32> -> vector<4x8x1xf32>
    %314 = vector.broadcast %313 : vector<4x8x1xf32> to vector<4x8x8xf32>
    %315 = arith.mulf %310, %314 : vector<4x8x8xf32>
    %316 = arith.truncf %315 : vector<4x8x8xf32> to vector<4x8x8xbf16>
    "tpu.trace_start"() <{level = 10 : i32, message = "gqk,gkd->gqd"}> : () -> ()
    %cst_203 = arith.constant dense<0.000000e+00> : vector<4x8x8xf32>
    %317 = tpu.matmul %316, %302, %cst_203 {dimension_numbers = #tpu.dot_dimension_numbers<[2], [1], [1], [2], [0, 0, 0, 1, 1, 2], [0], [0]>} : vector<4x8x8xbf16>, vector<4x8x8xbf16>, vector<4x8x8xf32> -> vector<4x8x8xf32>
    "tpu.trace_stop"() : () -> ()
    %318 = arith.truncf %317 : vector<4x8x8xf32> to vector<4x8x8xbf16>
    %319 = vector.extract_strided_slice %318 {offsets = [0, 0, 0], sizes = [1, 8, 8], strides = [1, 1, 1]} : vector<4x8x8xbf16> to vector<1x8x8xbf16>
    %320 = vector.shape_cast %319 : vector<1x8x8xbf16> to vector<8x8xbf16>
    %c4_204 = arith.constant 4 : index
    %c0_205 = arith.constant 0 : index
    %c0_206 = arith.constant 0 : index
    %321 = vector.load %arg11[%c4_204, %c0_205, %c0_206] : memref<8x8x32xbf16, #tpu.memory_space<vmem>>, vector<1x8x32xbf16>
    %322 = vector.shape_cast %321 : vector<1x8x32xbf16> to vector<8x32xbf16>
    %cst_207 = arith.constant dense<0.000000e+00> : vector<8x32xf32>
    %323 = tpu.matmul %320, %322, %cst_207 {dimension_numbers = #tpu.dot_dimension_numbers<[1], [0], [0], [1], [0, 0, 1, 1], [], []>} : vector<8x8xbf16>, vector<8x32xbf16>, vector<8x32xf32> -> vector<8x32xf32>
    %324 = vector.extract_strided_slice %318 {offsets = [1, 0, 0], sizes = [1, 8, 8], strides = [1, 1, 1]} : vector<4x8x8xbf16> to vector<1x8x8xbf16>
    %325 = vector.shape_cast %324 : vector<1x8x8xbf16> to vector<8x8xbf16>
    %c5_208 = arith.constant 5 : index
    %c0_209 = arith.constant 0 : index
    %c0_210 = arith.constant 0 : index
    %326 = vector.load %arg11[%c5_208, %c0_209, %c0_210] : memref<8x8x32xbf16, #tpu.memory_space<vmem>>, vector<1x8x32xbf16>
    %327 = vector.shape_cast %326 : vector<1x8x32xbf16> to vector<8x32xbf16>
    %cst_211 = arith.constant dense<0.000000e+00> : vector<8x32xf32>
    %328 = tpu.matmul %325, %327, %cst_211 {dimension_numbers = #tpu.dot_dimension_numbers<[1], [0], [0], [1], [0, 0, 1, 1], [], []>} : vector<8x8xbf16>, vector<8x32xbf16>, vector<8x32xf32> -> vector<8x32xf32>
    %329 = arith.addf %323, %328 : vector<8x32xf32>
    %330 = vector.extract_strided_slice %318 {offsets = [2, 0, 0], sizes = [1, 8, 8], strides = [1, 1, 1]} : vector<4x8x8xbf16> to vector<1x8x8xbf16>
    %331 = vector.shape_cast %330 : vector<1x8x8xbf16> to vector<8x8xbf16>
    %c6_212 = arith.constant 6 : index
    %c0_213 = arith.constant 0 : index
    %c0_214 = arith.constant 0 : index
    %332 = vector.load %arg11[%c6_212, %c0_213, %c0_214] : memref<8x8x32xbf16, #tpu.memory_space<vmem>>, vector<1x8x32xbf16>
    %333 = vector.shape_cast %332 : vector<1x8x32xbf16> to vector<8x32xbf16>
    %cst_215 = arith.constant dense<0.000000e+00> : vector<8x32xf32>
    %334 = tpu.matmul %331, %333, %cst_215 {dimension_numbers = #tpu.dot_dimension_numbers<[1], [0], [0], [1], [0, 0, 1, 1], [], []>} : vector<8x8xbf16>, vector<8x32xbf16>, vector<8x32xf32> -> vector<8x32xf32>
    %335 = arith.addf %329, %334 : vector<8x32xf32>
    %336 = vector.extract_strided_slice %318 {offsets = [3, 0, 0], sizes = [1, 8, 8], strides = [1, 1, 1]} : vector<4x8x8xbf16> to vector<1x8x8xbf16>
    %337 = vector.shape_cast %336 : vector<1x8x8xbf16> to vector<8x8xbf16>
    %c7_216 = arith.constant 7 : index
    %c0_217 = arith.constant 0 : index
    %c0_218 = arith.constant 0 : index
    %338 = vector.load %arg11[%c7_216, %c0_217, %c0_218] : memref<8x8x32xbf16, #tpu.memory_space<vmem>>, vector<1x8x32xbf16>
    %339 = vector.shape_cast %338 : vector<1x8x32xbf16> to vector<8x32xbf16>
    %cst_219 = arith.constant dense<0.000000e+00> : vector<8x32xf32>
    %340 = tpu.matmul %337, %339, %cst_219 {dimension_numbers = #tpu.dot_dimension_numbers<[1], [0], [0], [1], [0, 0, 1, 1], [], []>} : vector<8x8xbf16>, vector<8x32xbf16>, vector<8x32xf32> -> vector<8x32xf32>
    %341 = arith.addf %335, %340 : vector<8x32xf32>
    %c1_220 = arith.constant 1 : index
    %c0_221 = arith.constant 0 : index
    %342 = vector.load %arg12[%c1_220, %c0_221] : memref<2x32xf32, #tpu.memory_space<vmem>>, vector<1x32xf32>
    %343 = vector.broadcast %342 : vector<1x32xf32> to vector<8x32xf32>
    %344 = arith.addf %341, %343 : vector<8x32xf32>
    %345 = arith.addf %211, %344 : vector<8x32xf32>
    %c1_222 = arith.constant 1 : index
    %c0_223 = arith.constant 0 : index
    %346 = vector.load %arg13[%c1_222, %c0_223] : memref<2x32xf32, #tpu.memory_space<vmem>>, vector<1x32xf32>
    %c1_224 = arith.constant 1 : index
    %c0_225 = arith.constant 0 : index
    %347 = vector.load %arg14[%c1_224, %c0_225] : memref<2x32xf32, #tpu.memory_space<vmem>>, vector<1x32xf32>
    %cst_226 = arith.constant dense<0.000000e+00> : vector<8xf32>
    %348 = vector.multi_reduction <add>, %345, %cst_226 [1] : vector<8x32xf32> to vector<8xf32>
    %349 = vector.shape_cast %348 : vector<8xf32> to vector<8x1xf32>
    %cst_227 = arith.constant 3.200000e+01 : f32
    %350 = vector.broadcast %cst_227 : f32 to vector<8x1xf32>
    %351 = arith.divf %349, %350 : vector<8x1xf32>
    %352 = vector.broadcast %351 : vector<8x1xf32> to vector<8x32xf32>
    %353 = arith.subf %345, %352 : vector<8x32xf32>
    %354 = arith.mulf %353, %353 : vector<8x32xf32>
    %cst_228 = arith.constant dense<0.000000e+00> : vector<8xf32>
    %355 = vector.multi_reduction <add>, %354, %cst_228 [1] : vector<8x32xf32> to vector<8xf32>
    %356 = vector.shape_cast %355 : vector<8xf32> to vector<8x1xf32>
    %cst_229 = arith.constant 3.200000e+01 : f32
    %357 = vector.broadcast %cst_229 : f32 to vector<8x1xf32>
    %358 = arith.divf %356, %357 : vector<8x1xf32>
    %359 = vector.broadcast %351 : vector<8x1xf32> to vector<8x32xf32>
    %360 = arith.subf %345, %359 : vector<8x32xf32>
    %cst_230 = arith.constant 9.99999974E-6 : f32
    %361 = vector.broadcast %cst_230 : f32 to vector<8x1xf32>
    %362 = arith.addf %358, %361 : vector<8x1xf32>
    %363 = math.rsqrt %362 : vector<8x1xf32>
    %364 = vector.broadcast %363 : vector<8x1xf32> to vector<8x32xf32>
    %365 = arith.mulf %360, %364 : vector<8x32xf32>
    %366 = vector.broadcast %346 : vector<1x32xf32> to vector<8x32xf32>
    %367 = arith.mulf %365, %366 : vector<8x32xf32>
    %368 = vector.broadcast %347 : vector<1x32xf32> to vector<8x32xf32>
    %369 = arith.addf %367, %368 : vector<8x32xf32>
    %370 = arith.truncf %369 : vector<8x32xf32> to vector<8x32xbf16>
    %c1_231 = arith.constant 1 : index
    %c0_232 = arith.constant 0 : index
    %c0_233 = arith.constant 0 : index
    %371 = vector.load %arg17[%c1_231, %c0_232, %c0_233] : memref<2x32x2048xbf16, #tpu.memory_space<vmem>>, vector<1x32x2048xbf16>
    %372 = vector.shape_cast %371 : vector<1x32x2048xbf16> to vector<32x2048xbf16>
    %cst_234 = arith.constant dense<0.000000e+00> : vector<8x2048xf32>
    %373 = tpu.matmul %370, %372, %cst_234 {dimension_numbers = #tpu.dot_dimension_numbers<[1], [0], [0], [1], [0, 0, 1, 1], [], []>} : vector<8x32xbf16>, vector<32x2048xbf16>, vector<8x2048xf32> -> vector<8x2048xf32>
    %c1_235 = arith.constant 1 : index
    %c0_236 = arith.constant 0 : index
    %374 = vector.load %arg18[%c1_235, %c0_236] : memref<2x2048xf32, #tpu.memory_space<vmem>>, vector<1x2048xf32>
    %375 = vector.broadcast %374 : vector<1x2048xf32> to vector<8x2048xf32>
    %376 = arith.addf %373, %375 : vector<8x2048xf32>
    %cst_237 = arith.constant 0.000000e+00 : f32
    %377 = vector.broadcast %cst_237 : f32 to vector<8x2048xf32>
    %378 = arith.maximumf %376, %377 : vector<8x2048xf32>
    %379 = arith.truncf %378 : vector<8x2048xf32> to vector<8x2048xbf16>
    %c1_238 = arith.constant 1 : index
    %c0_239 = arith.constant 0 : index
    %c0_240 = arith.constant 0 : index
    %380 = vector.load %arg19[%c1_238, %c0_239, %c0_240] : memref<2x2048x32xbf16, #tpu.memory_space<vmem>>, vector<1x2048x32xbf16>
    %381 = vector.shape_cast %380 : vector<1x2048x32xbf16> to vector<2048x32xbf16>
    %cst_241 = arith.constant dense<0.000000e+00> : vector<8x32xf32>
    %382 = tpu.matmul %379, %381, %cst_241 {dimension_numbers = #tpu.dot_dimension_numbers<[1], [0], [0], [1], [0, 0, 1, 1], [], []>} : vector<8x2048xbf16>, vector<2048x32xbf16>, vector<8x32xf32> -> vector<8x32xf32>
    %c1_242 = arith.constant 1 : index
    %c0_243 = arith.constant 0 : index
    %383 = vector.load %arg20[%c1_242, %c0_243] : memref<2x32xf32, #tpu.memory_space<vmem>>, vector<1x32xf32>
    %384 = vector.broadcast %383 : vector<1x32xf32> to vector<8x32xf32>
    %385 = arith.addf %382, %384 : vector<8x32xf32>
    %386 = arith.addf %369, %385 : vector<8x32xf32>
    %c1_244 = arith.constant 1 : index
    %c0_245 = arith.constant 0 : index
    %387 = vector.load %arg15[%c1_244, %c0_245] : memref<2x32xf32, #tpu.memory_space<vmem>>, vector<1x32xf32>
    %c1_246 = arith.constant 1 : index
    %c0_247 = arith.constant 0 : index
    %388 = vector.load %arg16[%c1_246, %c0_247] : memref<2x32xf32, #tpu.memory_space<vmem>>, vector<1x32xf32>
    %cst_248 = arith.constant dense<0.000000e+00> : vector<8xf32>
    %389 = vector.multi_reduction <add>, %386, %cst_248 [1] : vector<8x32xf32> to vector<8xf32>
    %390 = vector.shape_cast %389 : vector<8xf32> to vector<8x1xf32>
    %cst_249 = arith.constant 3.200000e+01 : f32
    %391 = vector.broadcast %cst_249 : f32 to vector<8x1xf32>
    %392 = arith.divf %390, %391 : vector<8x1xf32>
    %393 = vector.broadcast %392 : vector<8x1xf32> to vector<8x32xf32>
    %394 = arith.subf %386, %393 : vector<8x32xf32>
    %395 = arith.mulf %394, %394 : vector<8x32xf32>
    %cst_250 = arith.constant dense<0.000000e+00> : vector<8xf32>
    %396 = vector.multi_reduction <add>, %395, %cst_250 [1] : vector<8x32xf32> to vector<8xf32>
    %397 = vector.shape_cast %396 : vector<8xf32> to vector<8x1xf32>
    %cst_251 = arith.constant 3.200000e+01 : f32
    %398 = vector.broadcast %cst_251 : f32 to vector<8x1xf32>
    %399 = arith.divf %397, %398 : vector<8x1xf32>
    %400 = vector.broadcast %392 : vector<8x1xf32> to vector<8x32xf32>
    %401 = arith.subf %386, %400 : vector<8x32xf32>
    %cst_252 = arith.constant 9.99999974E-6 : f32
    %402 = vector.broadcast %cst_252 : f32 to vector<8x1xf32>
    %403 = arith.addf %399, %402 : vector<8x1xf32>
    %404 = math.rsqrt %403 : vector<8x1xf32>
    %405 = vector.broadcast %404 : vector<8x1xf32> to vector<8x32xf32>
    %406 = arith.mulf %401, %405 : vector<8x32xf32>
    %407 = vector.broadcast %387 : vector<1x32xf32> to vector<8x32xf32>
    %408 = arith.mulf %406, %407 : vector<8x32xf32>
    %409 = vector.broadcast %388 : vector<1x32xf32> to vector<8x32xf32>
    %410 = arith.addf %408, %409 : vector<8x32xf32>
    %411 = vector.shape_cast %410 : vector<8x32xf32> to vector<1x8x32xf32>
    %412 = vector.extract_strided_slice %411 {offsets = [0, 7, 0], sizes = [1, 1, 32], strides = [1, 1, 1]} : vector<1x8x32xf32> to vector<1x1x32xf32>
    %413 = vector.shape_cast %412 : vector<1x1x32xf32> to vector<1x32xf32>
    %414 = arith.truncf %413 : vector<1x32xf32> to vector<1x32xbf16>
    %c0_253 = arith.constant 0 : index
    %c0_254 = arith.constant 0 : index
    %415 = vector.load %arg21[%c0_253, %c0_254] : memref<32x4xbf16, #tpu.memory_space<vmem>>, vector<32x4xbf16>
    %cst_255 = arith.constant dense<0.000000e+00> : vector<1x4xf32>
    %416 = tpu.matmul %414, %415, %cst_255 {dimension_numbers = #tpu.dot_dimension_numbers<[1], [0], [0], [1], [0, 0, 1, 1], [], []>} : vector<1x32xbf16>, vector<32x4xbf16>, vector<1x4xf32> -> vector<1x4xf32>
    %c0_256 = arith.constant 0 : index
    %c0_257 = arith.constant 0 : index
    %417 = vector.load %arg22[%c0_256, %c0_257] : memref<1x4xf32, #tpu.memory_space<vmem>>, vector<1x4xf32>
    %418 = arith.addf %416, %417 : vector<1x4xf32>
    %419 = vector.shape_cast %418 : vector<1x4xf32> to vector<1x1x4xf32>
    %c0_258 = arith.constant 0 : index
    %c0_259 = arith.constant 0 : index
    %c0_260 = arith.constant 0 : index
    %420 = vector.load %arg23[%c0_258, %c0_259, %c0_260] : memref<1x1x4xf32, #tpu.memory_space<vmem>>, vector<1x1x4xf32>
    tpu.vector_store %arg23[%c0_258, %c0_259, %c0_260], %419 {strides = array<i32>} : memref<1x1x4xf32, #tpu.memory_space<vmem>>, vector<1x1x4xf32>,
    return
  }
  func.func @transform_0(%arg0: i32) -> (i32, i32, i32) {
    %c0_i32 = arith.constant 0 : i32
    %c0_i32_0 = arith.constant 0 : i32
    %c0_i32_1 = arith.constant 0 : i32
    return %arg0, %c0_i32, %c0_i32_0 : i32, i32, i32
  }
  func.func @transform_1(%arg0: i32) -> (i32, i32) {
    %c0_i32 = arith.constant 0 : i32
    %c0_i32_0 = arith.constant 0 : i32
    %c0_i32_1 = arith.constant 0 : i32
    return %c0_i32, %c0_i32_0 : i32, i32
  }
  func.func @transform_2(%arg0: i32) -> (i32, i32) {
    %c0_i32 = arith.constant 0 : i32
    %c0_i32_0 = arith.constant 0 : i32
    %c0_i32_1 = arith.constant 0 : i32
    return %c0_i32, %c0_i32_0 : i32, i32
  }
  func.func @transform_3(%arg0: i32) -> (i32, i32) {
    %c0_i32 = arith.constant 0 : i32
    %c0_i32_0 = arith.constant 0 : i32
    %c0_i32_1 = arith.constant 0 : i32
    return %c0_i32, %c0_i32_0 : i32, i32
  }
  func.func @transform_4(%arg0: i32) -> (i32, i32, i32) {
    %c0_i32 = arith.constant 0 : i32
    %c0_i32_0 = arith.constant 0 : i32
    %c0_i32_1 = arith.constant 0 : i32
    %c0_i32_2 = arith.constant 0 : i32
    return %c0_i32, %c0_i32_0, %c0_i32_1 : i32, i32, i32
  }
  func.func @transform_5(%arg0: i32) -> (i32, i32) {
    %c0_i32 = arith.constant 0 : i32
    %c0_i32_0 = arith.constant 0 : i32
    %c0_i32_1 = arith.constant 0 : i32
    return %c0_i32, %c0_i32_0 : i32, i32
  }
  func.func @transform_6(%arg0: i32) -> (i32, i32, i32) {
    %c0_i32 = arith.constant 0 : i32
    %c0_i32_0 = arith.constant 0 : i32
    %c0_i32_1 = arith.constant 0 : i32
    %c0_i32_2 = arith.constant 0 : i32
    return %c0_i32, %c0_i32_0, %c0_i32_1 : i32, i32, i32
  }
  func.func @transform_7(%arg0: i32) -> (i32, i32) {
    %c0_i32 = arith.constant 0 : i32
    %c0_i32_0 = arith.constant 0 : i32
    %c0_i32_1 = arith.constant 0 : i32
    return %c0_i32, %c0_i32_0 : i32, i32
  }
  func.func @transform_8(%arg0: i32) -> (i32, i32, i32) {
    %c0_i32 = arith.constant 0 : i32
    %c0_i32_0 = arith.constant 0 : i32
    %c0_i32_1 = arith.constant 0 : i32
    %c0_i32_2 = arith.constant 0 : i32
    return %c0_i32, %c0_i32_0, %c0_i32_1 : i32, i32, i32
  }
  func.func @transform_9(%arg0: i32) -> (i32, i32) {
    %c0_i32 = arith.constant 0 : i32
    %c0_i32_0 = arith.constant 0 : i32
    %c0_i32_1 = arith.constant 0 : i32
    return %c0_i32, %c0_i32_0 : i32, i32
  }
  func.func @transform_10(%arg0: i32) -> (i32, i32, i32) {
    %c0_i32 = arith.constant 0 : i32
    %c0_i32_0 = arith.constant 0 : i32
    %c0_i32_1 = arith.constant 0 : i32
    %c0_i32_2 = arith.constant 0 : i32
    return %c0_i32, %c0_i32_0, %c0_i32_1 : i32, i32, i32
  }
  func.func @transform_11(%arg0: i32) -> (i32, i32) {
    %c0_i32 = arith.constant 0 : i32
    %c0_i32_0 = arith.constant 0 : i32
    %c0_i32_1 = arith.constant 0 : i32
    return %c0_i32, %c0_i32_0 : i32, i32
  }
  func.func @transform_12(%arg0: i32) -> (i32, i32) {
    %c0_i32 = arith.constant 0 : i32
    %c0_i32_0 = arith.constant 0 : i32
    %c0_i32_1 = arith.constant 0 : i32
    return %c0_i32, %c0_i32_0 : i32, i32
  }
  func.func @transform_13(%arg0: i32) -> (i32, i32) {
    %c0_i32 = arith.constant 0 : i32
    %c0_i32_0 = arith.constant 0 : i32
    %c0_i32_1 = arith.constant 0 : i32
    return %c0_i32, %c0_i32_0 : i32, i32
  }
  func.func @transform_14(%arg0: i32) -> (i32, i32) {
    %c0_i32 = arith.constant 0 : i32
    %c0_i32_0 = arith.constant 0 : i32
    %c0_i32_1 = arith.constant 0 : i32
    return %c0_i32, %c0_i32_0 : i32, i32
  }
  func.func @transform_15(%arg0: i32) -> (i32, i32) {
    %c0_i32 = arith.constant 0 : i32
    %c0_i32_0 = arith.constant 0 : i32
    %c0_i32_1 = arith.constant 0 : i32
    return %c0_i32, %c0_i32_0 : i32, i32
  }
  func.func @transform_16(%arg0: i32) -> (i32, i32, i32) {
    %c0_i32 = arith.constant 0 : i32
    %c0_i32_0 = arith.constant 0 : i32
    %c0_i32_1 = arith.constant 0 : i32
    %c0_i32_2 = arith.constant 0 : i32
    return %c0_i32, %c0_i32_0, %c0_i32_1 : i32, i32, i32
  }
  func.func @transform_17(%arg0: i32) -> (i32, i32) {
    %c0_i32 = arith.constant 0 : i32
    %c0_i32_0 = arith.constant 0 : i32
    %c0_i32_1 = arith.constant 0 : i32
    return %c0_i32, %c0_i32_0 : i32, i32
  }
  func.func @transform_18(%arg0: i32) -> (i32, i32, i32) {
    %c0_i32 = arith.constant 0 : i32
    %c0_i32_0 = arith.constant 0 : i32
    %c0_i32_1 = arith.constant 0 : i32
    %c0_i32_2 = arith.constant 0 : i32
    return %c0_i32, %c0_i32_0, %c0_i32_1 : i32, i32, i32
  }
  func.func @transform_19(%arg0: i32) -> (i32, i32) {
    %c0_i32 = arith.constant 0 : i32
    %c0_i32_0 = arith.constant 0 : i32
    %c0_i32_1 = arith.constant 0 : i32
    return %c0_i32, %c0_i32_0 : i32, i32
  }
  func.func @transform_20(%arg0: i32) -> (i32, i32) {
    %c0_i32 = arith.constant 0 : i32
    %c0_i32_0 = arith.constant 0 : i32
    %c0_i32_1 = arith.constant 0 : i32
    return %c0_i32, %c0_i32_0 : i32, i32
  }
  func.func @transform_21(%arg0: i32) -> (i32, i32) {
    %c0_i32 = arith.constant 0 : i32
    %c0_i32_0 = arith.constant 0 : i32
    %c0_i32_1 = arith.constant 0 : i32
    return %c0_i32, %c0_i32_0 : i32, i32
  }
  func.func @transform_22(%arg0: i32) -> (i32, i32, i32) {
    %c0_i32 = arith.constant 0 : i32
    %c0_i32_0 = arith.constant 0 : i32
    %c0_i32_1 = arith.constant 0 : i32
    return %arg0, %c0_i32, %c0_i32_0 : i32, i32, i32
  }
}

</mosaic_0001>

<llo_original>
// kernel: tpu_custom_call.1
$region0: #{tpu_custom_call.1}
  #allocation0 [shape = 'u32[]', space=smem, size = 0x4, offset = 0x4, fixed_abs, tag = 'smem constant byte address 0x4 - core index']
  #allocation1 [shape = 'u32[144,128]{1,0:T(1,128)}', space=vmem, size = 0x12000, scoped, tag = 'internal scratch']
  %s0 = inlined_call_operand.vmem [shape: f32[2,8,16], index: 0, kind: input, shape index: {}]
  %s1 = inlined_call_operand.vmem [shape: bf16[16,32], index: 1, kind: input, shape index: {}]
  %s2 = inlined_call_operand.vmem [shape: f32[1,32], index: 2, kind: input, shape index: {}]
  %s3 = inlined_call_operand.vmem [shape: f32[8,32], index: 3, kind: input, shape index: {}]
  %s4 = inlined_call_operand.vmem [shape: bf16[8,32,8], index: 4, kind: input, shape index: {}]
  %s5 = inlined_call_operand.vmem [shape: f32[8,8], index: 5, kind: input, shape index: {}]
  %s6 = inlined_call_operand.vmem [shape: bf16[8,32,8], index: 6, kind: input, shape index: {}]
  %s7 = inlined_call_operand.vmem [shape: f32[8,8], index: 7, kind: input, shape index: {}]
  %s8 = inlined_call_operand.vmem [shape: bf16[8,32,8], index: 8, kind: input, shape index: {}]
  %s9 = inlined_call_operand.vmem [shape: f32[8,8], index: 9, kind: input, shape index: {}]
  %s10 = inlined_call_operand.vmem [shape: bf16[8,8,32], index: 10, kind: input, shape index: {}]
  %s11 = inlined_call_operand.vmem [shape: f32[2,32], index: 11, kind: input, shape index: {}]
  %s12 = inlined_call_operand.vmem [shape: f32[2,32], index: 12, kind: input, shape index: {}]
  %s13 = inlined_call_operand.vmem [shape: f32[2,32], index: 13, kind: input, shape index: {}]
  %s14 = inlined_call_operand.vmem [shape: f32[2,32], index: 14, kind: input, shape index: {}]
  %s15 = inlined_call_operand.vmem [shape: f32[2,32], index: 15, kind: input, shape index: {}]
  %s16 = inlined_call_operand.vmem [shape: bf16[2,32,2048], index: 16, kind: input, shape index: {}]
  %s17 = inlined_call_operand.vmem [shape: f32[2,2048], index: 17, kind: input, shape index: {}]
  %s18 = inlined_call_operand.vmem [shape: bf16[2,2048,32], index: 18, kind: input, shape index: {}]
  %s19 = inlined_call_operand.vmem [shape: f32[2,32], index: 19, kind: input, shape index: {}]
  %s20 = inlined_call_operand.vmem [shape: bf16[32,4], index: 20, kind: input, shape index: {}]
  %s21 = inlined_call_operand.vmem [shape: f32[1,4], index: 21, kind: input, shape index: {}]
  %s22 = inlined_call_operand.hbm [shape: f32[2,1,4], index: 22, kind: output, shape index: {}]
  %s23 = sld [smem:[#allocation0]]
  $region121: #{tpu_custom_call.1} parent=0
    _
  %s25 = ssub.s32 1, %s23
  %s26 = scalar_select 0, %s25, %s23
  $region1: #{tpu_custom_call.1} parent=0
    #allocation2 [shape = 'u8[1024]{0}', space=vmem, size = 0x400, scoped, tag = 'output window, operand 0']
    #allocation3 [shape = 's32[2]{0}', space=sflag, size = 0x8, scoped, tag = 'scoped memory for tpu_custom_call.1']
    %27 = vsyncpa [#allocation3], 0
    %s28 = scalar_lea.sflag [#allocation3], 1
    %29 = vsyncpa %s28, 0
    loop: start=0, step=1, limit=4
    $region2: #{tpu_custom_call.1} parent=1 // loop_pre_header
      _
    $region3: #{tpu_custom_call.1} parent=1 // loop_header
      %s31 = sphi 0, %s35
      %p32 = scmp.ge.s32.totalorder %s31, 4
      %s41 = sphi 0, %s43
      %s44 = sphi 0, %s41
      %s45 = sphi 0, %s44
      %s61 = sphi 0, %s45
      %s65 = sphi 0, %s65
      %s67 = sphi 0, %s65
      %s68 = sphi 0, %s67
      %s82 = sphi 0, %s68
      %s86 = sphi 0, %s86
      %s88 = sphi 0, %s86
      %s89 = sphi 0, %s88
      %s103 = sphi 0, %s89
      %s107 = sphi 0, %s107
      %s109 = sphi 0, %s107
      %s110 = sphi 0, %s109
      %s124 = sphi 0, %s110
      %s128 = sphi 0, %s128
      %s130 = sphi 0, %s128
      %s131 = sphi 0, %s130
      %s145 = sphi 0, %s131
      %s149 = sphi 0, %s149
      %s151 = sphi 0, %s149
      %s152 = sphi 0, %s151
      %s166 = sphi 0, %s152
      %s170 = sphi 0, %s170
      %s172 = sphi 0, %s170
      %s173 = sphi 0, %s172
      %s187 = sphi 0, %s173
      %s191 = sphi 0, %s191
      %s193 = sphi 0, %s191
      %s194 = sphi 0, %s193
      %s208 = sphi 0, %s194
      %s212 = sphi 0, %s212
      %s214 = sphi 0, %s212
      %s215 = sphi 0, %s214
      %s229 = sphi 0, %s215
      %s233 = sphi 0, %s233
      %s235 = sphi 0, %s233
      %s236 = sphi 0, %s235
      %s250 = sphi 0, %s236
      %s254 = sphi 0, %s254
      %s256 = sphi 0, %s254
      %s257 = sphi 0, %s256
      %s271 = sphi 0, %s257
      %s275 = sphi 0, %s275
      %s277 = sphi 0, %s275
      %s278 = sphi 0, %s277
      %s292 = sphi 0, %s278
      %s296 = sphi 0, %s296
      %s298 = sphi 0, %s296
      %s299 = sphi 0, %s298
      %s313 = sphi 0, %s299
      %s317 = sphi 0, %s317
      %s319 = sphi 0, %s317
      %s320 = sphi 0, %s319
      %s334 = sphi 0, %s320
      %s338 = sphi 0, %s338
      %s340 = sphi 0, %s338
      %s341 = sphi 0, %s340
      %s355 = sphi 0, %s341
      %s359 = sphi 0, %s359
      %s361 = sphi 0, %s359
      %s362 = sphi 0, %s361
      %s376 = sphi 0, %s362
      %s380 = sphi 0, %s380
      %s382 = sphi 0, %s380
      %s383 = sphi 0, %s382
      %s397 = sphi 0, %s383
      %s401 = sphi 0, %s401
      %s403 = sphi 0, %s401
      %s404 = sphi 0, %s403
      %s418 = sphi 0, %s404
      %s422 = sphi 0, %s422
      %s424 = sphi 0, %s422
      %s425 = sphi 0, %s424
      %s439 = sphi 0, %s425
      %s443 = sphi 0, %s443
      %s445 = sphi 0, %s443
      %s446 = sphi 0, %s445
      %s460 = sphi 0, %s446
      %s464 = sphi 0, %s464
      %s466 = sphi 0, %s464
      %s467 = sphi 0, %s466
      %s481 = sphi 0, %s467
      %s485 = sphi 0, %s485
      %s487 = sphi 0, %s485
      %s488 = sphi 0, %s487
      %s502 = sphi 0, %s488
      %s508 = sphi 0, %s510
      %s511 = sphi 0, %s508
      %s512 = sphi 0, %s511
      %s528 = sphi 0, %s512
    $region4: #{tpu_custom_call.1} parent=1 // loop_header_branch
      %34 = sbr.rel (%p32) target = $region8
    $region5: #{tpu_custom_call.1} parent=1 // loop_body
      %s36 = ssub.s32 %s31, 1
      %s37 = ssub.s32 %s31, 2
      %s38 = sadd.s32 %s31, 1
      %s39 = ssub.s32 %s31, %s38
      %p40 = scmp.eq.s32.totalorder %s39, 0
      %s42 = sadd.s32 %s41, 1
      %s43 = scalar_select %p40, %s41, %s42
      %p46 = pneg %p40
      %p47 = scmp.eq.s32.totalorder %s31, 1
      %p48 = por %p46, %p47
      %p49 = scmp.ne.s32.totalorder %s41, %s44
      %p50 = scmp.eq.s32.totalorder %s31, 0
      %p51 = por %p49, %p50
      %p52 = scmp.ne.s32.totalorder %s41, %s44
      %p53 = scmp.eq.s32.totalorder %s36, 1
      %p54 = por %p52, %p53
      %p55 = scmp.ne.s32.totalorder %s44, %s45
      %p56 = scmp.eq.s32.totalorder %s36, 0
      %p57 = por %p55, %p56
      %p58 = scmp.ne.s32.totalorder %s44, %s45
      %p59 = scmp.eq.s32.totalorder %s37, 1
      %p60 = por %p58, %p59
      %p62 = scmp.ne.s32.totalorder %s45, %s61
      %p63 = scmp.eq.s32.totalorder %s37, 0
      %p64 = por %p62, %p63
      %s66 = sadd.s32 %s65, 1
      %p69 = scmp.eq.s32.totalorder %s31, 1
      %p70 = scmp.ne.s32.totalorder %s65, %s67
      %p71 = scmp.eq.s32.totalorder %s31, 0
      %p72 = por %p70, %p71
      %p73 = scmp.ne.s32.totalorder %s65, %s67
      %p74 = scmp.eq.s32.totalorder %s36, 1
      %p75 = por %p73, %p74
      %p76 = scmp.ne.s32.totalorder %s67, %s68
      %p77 = scmp.eq.s32.totalorder %s36, 0
      %p78 = por %p76, %p77
      %p79 = scmp.ne.s32.totalorder %s67, %s68
      %p80 = scmp.eq.s32.totalorder %s37, 1
      %p81 = por %p79, %p80
      %p83 = scmp.ne.s32.totalorder %s68, %s82
      %p84 = scmp.eq.s32.totalorder %s37, 0
      %p85 = por %p83, %p84
      %s87 = sadd.s32 %s86, 1
      %p90 = scmp.eq.s32.totalorder %s31, 1
      %p91 = scmp.ne.s32.totalorder %s86, %s88
      %p92 = scmp.eq.s32.totalorder %s31, 0
      %p93 = por %p91, %p92
      %p94 = scmp.ne.s32.totalorder %s86, %s88
      %p95 = scmp.eq.s32.totalorder %s36, 1
      %p96 = por %p94, %p95
      %p97 = scmp.ne.s32.totalorder %s88, %s89
      %p98 = scmp.eq.s32.totalorder %s36, 0
      %p99 = por %p97, %p98
      %p100 = scmp.ne.s32.totalorder %s88, %s89
      %p101 = scmp.eq.s32.totalorder %s37, 1
      %p102 = por %p100, %p101
      %p104 = scmp.ne.s32.totalorder %s89, %s103
      %p105 = scmp.eq.s32.totalorder %s37, 0
      %p106 = por %p104, %p105
      %s108 = sadd.s32 %s107, 1
      %p111 = scmp.eq.s32.totalorder %s31, 1
      %p112 = scmp.ne.s32.totalorder %s107, %s109
      %p113 = scmp.eq.s32.totalorder %s31, 0
      %p114 = por %p112, %p113
      %p115 = scmp.ne.s32.totalorder %s107, %s109
      %p116 = scmp.eq.s32.totalorder %s36, 1
      %p117 = por %p115, %p116
      %p118 = scmp.ne.s32.totalorder %s109, %s110
      %p119 = scmp.eq.s32.totalorder %s36, 0
      %p120 = por %p118, %p119
      %p121 = scmp.ne.s32.totalorder %s109, %s110
      %p122 = scmp.eq.s32.totalorder %s37, 1
      %p123 = por %p121, %p122
      %p125 = scmp.ne.s32.totalorder %s110, %s124
      %p126 = scmp.eq.s32.totalorder %s37, 0
      %p127 = por %p125, %p126
      %s129 = sadd.s32 %s128, 1
      %p132 = scmp.eq.s32.totalorder %s31, 1
      %p133 = scmp.ne.s32.totalorder %s128, %s130
      %p134 = scmp.eq.s32.totalorder %s31, 0
      %p135 = por %p133, %p134
      %p136 = scmp.ne.s32.totalorder %s128, %s130
      %p137 = scmp.eq.s32.totalorder %s36, 1
      %p138 = por %p136, %p137
      %p139 = scmp.ne.s32.totalorder %s130, %s131
      %p140 = scmp.eq.s32.totalorder %s36, 0
      %p141 = por %p139, %p140
      %p142 = scmp.ne.s32.totalorder %s130, %s131
      %p143 = scmp.eq.s32.totalorder %s37, 1
      %p144 = por %p142, %p143
      %p146 = scmp.ne.s32.totalorder %s131, %s145
      %p147 = scmp.eq.s32.totalorder %s37, 0
      %p148 = por %p146, %p147
      %s150 = sadd.s32 %s149, 1
      %p153 = scmp.eq.s32.totalorder %s31, 1
      %p154 = scmp.ne.s32.totalorder %s149, %s151
      %p155 = scmp.eq.s32.totalorder %s31, 0
      %p156 = por %p154, %p155
      %p157 = scmp.ne.s32.totalorder %s149, %s151
      %p158 = scmp.eq.s32.totalorder %s36, 1
      %p159 = por %p157, %p158
      %p160 = scmp.ne.s32.totalorder %s151, %s152
      %p161 = scmp.eq.s32.totalorder %s36, 0
      %p162 = por %p160, %p161
      %p163 = scmp.ne.s32.totalorder %s151, %s152
      %p164 = scmp.eq.s32.totalorder %s37, 1
      %p165 = por %p163, %p164
      %p167 = scmp.ne.s32.totalorder %s152, %s166
      %p168 = scmp.eq.s32.totalorder %s37, 0
      %p169 = por %p167, %p168
      %s171 = sadd.s32 %s170, 1
      %p174 = scmp.eq.s32.totalorder %s31, 1
      %p175 = scmp.ne.s32.totalorder %s170, %s172
      %p176 = scmp.eq.s32.totalorder %s31, 0
      %p177 = por %p175, %p176
      %p178 = scmp.ne.s32.totalorder %s170, %s172
      %p179 = scmp.eq.s32.totalorder %s36, 1
      %p180 = por %p178, %p179
      %p181 = scmp.ne.s32.totalorder %s172, %s173
      %p182 = scmp.eq.s32.totalorder %s36, 0
      %p183 = por %p181, %p182
      %p184 = scmp.ne.s32.totalorder %s172, %s173
      %p185 = scmp.eq.s32.totalorder %s37, 1
      %p186 = por %p184, %p185
      %p188 = scmp.ne.s32.totalorder %s173, %s187
      %p189 = scmp.eq.s32.totalorder %s37, 0
      %p190 = por %p188, %p189
      %s192 = sadd.s32 %s191, 1
      %p195 = scmp.eq.s32.totalorder %s31, 1
      %p196 = scmp.ne.s32.totalorder %s191, %s193
      %p197 = scmp.eq.s32.totalorder %s31, 0
      %p198 = por %p196, %p197
      %p199 = scmp.ne.s32.totalorder %s191, %s193
      %p200 = scmp.eq.s32.totalorder %s36, 1
      %p201 = por %p199, %p200
      %p202 = scmp.ne.s32.totalorder %s193, %s194
      %p203 = scmp.eq.s32.totalorder %s36, 0
      %p204 = por %p202, %p203
      %p205 = scmp.ne.s32.totalorder %s193, %s194
      %p206 = scmp.eq.s32.totalorder %s37, 1
      %p207 = por %p205, %p206
      %p209 = scmp.ne.s32.totalorder %s194, %s208
      %p210 = scmp.eq.s32.totalorder %s37, 0
      %p211 = por %p209, %p210
      %s213 = sadd.s32 %s212, 1
      %p216 = scmp.eq.s32.totalorder %s31, 1
      %p217 = scmp.ne.s32.totalorder %s212, %s214
      %p218 = scmp.eq.s32.totalorder %s31, 0
      %p219 = por %p217, %p218
      %p220 = scmp.ne.s32.totalorder %s212, %s214
      %p221 = scmp.eq.s32.totalorder %s36, 1
      %p222 = por %p220, %p221
      %p223 = scmp.ne.s32.totalorder %s214, %s215
      %p224 = scmp.eq.s32.totalorder %s36, 0
      %p225 = por %p223, %p224
      %p226 = scmp.ne.s32.totalorder %s214, %s215
      %p227 = scmp.eq.s32.totalorder %s37, 1
      %p228 = por %p226, %p227
      %p230 = scmp.ne.s32.totalorder %s215, %s229
      %p231 = scmp.eq.s32.totalorder %s37, 0
      %p232 = por %p230, %p231
      %s234 = sadd.s32 %s233, 1
      %p237 = scmp.eq.s32.totalorder %s31, 1
      %p238 = scmp.ne.s32.totalorder %s233, %s235
      %p239 = scmp.eq.s32.totalorder %s31, 0
      %p240 = por %p238, %p239
      %p241 = scmp.ne.s32.totalorder %s233, %s235
      %p242 = scmp.eq.s32.totalorder %s36, 1
      %p243 = por %p241, %p242
      %p244 = scmp.ne.s32.totalorder %s235, %s236
      %p245 = scmp.eq.s32.totalorder %s36, 0
      %p246 = por %p244, %p245
      %p247 = scmp.ne.s32.totalorder %s235, %s236
      %p248 = scmp.eq.s32.totalorder %s37, 1
      %p249 = por %p247, %p248
      %p251 = scmp.ne.s32.totalorder %s236, %s250
      %p252 = scmp.eq.s32.totalorder %s37, 0
      %p253 = por %p251, %p252
      %s255 = sadd.s32 %s254, 1
      %p258 = scmp.eq.s32.totalorder %s31, 1
      %p259 = scmp.ne.s32.totalorder %s254, %s256
      %p260 = scmp.eq.s32.totalorder %s31, 0
      %p261 = por %p259, %p260
      %p262 = scmp.ne.s32.totalorder %s254, %s256
      %p263 = scmp.eq.s32.totalorder %s36, 1
      %p264 = por %p262, %p263
      %p265 = scmp.ne.s32.totalorder %s256, %s257
      %p266 = scmp.eq.s32.totalorder %s36, 0
      %p267 = por %p265, %p266
      %p268 = scmp.ne.s32.totalorder %s256, %s257
      %p269 = scmp.eq.s32.totalorder %s37, 1
      %p270 = por %p268, %p269
      %p272 = scmp.ne.s32.totalorder %s257, %s271
      %p273 = scmp.eq.s32.totalorder %s37, 0
      %p274 = por %p272, %p273
      %s276 = sadd.s32 %s275, 1
      %p279 = scmp.eq.s32.totalorder %s31, 1
      %p280 = scmp.ne.s32.totalorder %s275, %s277
      %p281 = scmp.eq.s32.totalorder %s31, 0
      %p282 = por %p280, %p281
      %p283 = scmp.ne.s32.totalorder %s275, %s277
      %p284 = scmp.eq.s32.totalorder %s36, 1
      %p285 = por %p283, %p284
      %p286 = scmp.ne.s32.totalorder %s277, %s278
      %p287 = scmp.eq.s32.totalorder %s36, 0
      %p288 = por %p286, %p287
      %p289 = scmp.ne.s32.totalorder %s277, %s278
      %p290 = scmp.eq.s32.totalorder %s37, 1
      %p291 = por %p289, %p290
      %p293 = scmp.ne.s32.totalorder %s278, %s292
      %p294 = scmp.eq.s32.totalorder %s37, 0
      %p295 = por %p293, %p294
      %s297 = sadd.s32 %s296, 1
      %p300 = scmp.eq.s32.totalorder %s31, 1
      %p301 = scmp.ne.s32.totalorder %s296, %s298
      %p302 = scmp.eq.s32.totalorder %s31, 0
      %p303 = por %p301, %p302
      %p304 = scmp.ne.s32.totalorder %s296, %s298
      %p305 = scmp.eq.s32.totalorder %s36, 1
      %p306 = por %p304, %p305
      %p307 = scmp.ne.s32.totalorder %s298, %s299
      %p308 = scmp.eq.s32.totalorder %s36, 0
      %p309 = por %p307, %p308
      %p310 = scmp.ne.s32.totalorder %s298, %s299
      %p311 = scmp.eq.s32.totalorder %s37, 1
      %p312 = por %p310, %p311
      %p314 = scmp.ne.s32.totalorder %s299, %s313
      %p315 = scmp.eq.s32.totalorder %s37, 0
      %p316 = por %p314, %p315
      %s318 = sadd.s32 %s317, 1
      %p321 = scmp.eq.s32.totalorder %s31, 1
      %p322 = scmp.ne.s32.totalorder %s317, %s319
      %p323 = scmp.eq.s32.totalorder %s31, 0
      %p324 = por %p322, %p323
      %p325 = scmp.ne.s32.totalorder %s317, %s319
      %p326 = scmp.eq.s32.totalorder %s36, 1
      %p327 = por %p325, %p326
      %p328 = scmp.ne.s32.totalorder %s319, %s320
      %p329 = scmp.eq.s32.totalorder %s36, 0
      %p330 = por %p328, %p329
      %p331 = scmp.ne.s32.totalorder %s319, %s320
      %p332 = scmp.eq.s32.totalorder %s37, 1
      %p333 = por %p331, %p332
      %p335 = scmp.ne.s32.totalorder %s320, %s334
      %p336 = scmp.eq.s32.totalorder %s37, 0
      %p337 = por %p335, %p336
      %s339 = sadd.s32 %s338, 1
      %p342 = scmp.eq.s32.totalorder %s31, 1
      %p343 = scmp.ne.s32.totalorder %s338, %s340
      %p344 = scmp.eq.s32.totalorder %s31, 0
      %p345 = por %p343, %p344
      %p346 = scmp.ne.s32.totalorder %s338, %s340
      %p347 = scmp.eq.s32.totalorder %s36, 1
      %p348 = por %p346, %p347
      %p349 = scmp.ne.s32.totalorder %s340, %s341
      %p350 = scmp.eq.s32.totalorder %s36, 0
      %p351 = por %p349, %p350
      %p352 = scmp.ne.s32.totalorder %s340, %s341
      %p353 = scmp.eq.s32.totalorder %s37, 1
      %p354 = por %p352, %p353
      %p356 = scmp.ne.s32.totalorder %s341, %s355
      %p357 = scmp.eq.s32.totalorder %s37, 0
      %p358 = por %p356, %p357
      %s360 = sadd.s32 %s359, 1
      %p363 = scmp.eq.s32.totalorder %s31, 1
      %p364 = scmp.ne.s32.totalorder %s359, %s361
      %p365 = scmp.eq.s32.totalorder %s31, 0
      %p366 = por %p364, %p365
      %p367 = scmp.ne.s32.totalorder %s359, %s361
      %p368 = scmp.eq.s32.totalorder %s36, 1
      %p369 = por %p367, %p368
      %p370 = scmp.ne.s32.totalorder %s361, %s362
      %p371 = scmp.eq.s32.totalorder %s36, 0
      %p372 = por %p370, %p371
      %p373 = scmp.ne.s32.totalorder %s361, %s362
      %p374 = scmp.eq.s32.totalorder %s37, 1
      %p375 = por %p373, %p374
      %p377 = scmp.ne.s32.totalorder %s362, %s376
      %p378 = scmp.eq.s32.totalorder %s37, 0
      %p379 = por %p377, %p378
      %s381 = sadd.s32 %s380, 1
      %p384 = scmp.eq.s32.totalorder %s31, 1
      %p385 = scmp.ne.s32.totalorder %s380, %s382
      %p386 = scmp.eq.s32.totalorder %s31, 0
      %p387 = por %p385, %p386
      %p388 = scmp.ne.s32.totalorder %s380, %s382
      %p389 = scmp.eq.s32.totalorder %s36, 1
      %p390 = por %p388, %p389
      %p391 = scmp.ne.s32.totalorder %s382, %s383
      %p392 = scmp.eq.s32.totalorder %s36, 0
      %p393 = por %p391, %p392
      %p394 = scmp.ne.s32.totalorder %s382, %s383
      %p395 = scmp.eq.s32.totalorder %s37, 1
      %p396 = por %p394, %p395
      %p398 = scmp.ne.s32.totalorder %s383, %s397
      %p399 = scmp.eq.s32.totalorder %s37, 0
      %p400 = por %p398, %p399
      %s402 = sadd.s32 %s401, 1
      %p405 = scmp.eq.s32.totalorder %s31, 1
      %p406 = scmp.ne.s32.totalorder %s401, %s403
      %p407 = scmp.eq.s32.totalorder %s31, 0
      %p408 = por %p406, %p407
      %p409 = scmp.ne.s32.totalorder %s401, %s403
      %p410 = scmp.eq.s32.totalorder %s36, 1
      %p411 = por %p409, %p410
      %p412 = scmp.ne.s32.totalorder %s403, %s404
      %p413 = scmp.eq.s32.totalorder %s36, 0
      %p414 = por %p412, %p413
      %p415 = scmp.ne.s32.totalorder %s403, %s404
      %p416 = scmp.eq.s32.totalorder %s37, 1
      %p417 = por %p415, %p416
      %p419 = scmp.ne.s32.totalorder %s404, %s418
      %p420 = scmp.eq.s32.totalorder %s37, 0
      %p421 = por %p419, %p420
      %s423 = sadd.s32 %s422, 1
      %p426 = scmp.eq.s32.totalorder %s31, 1
      %p427 = scmp.ne.s32.totalorder %s422, %s424
      %p428 = scmp.eq.s32.totalorder %s31, 0
      %p429 = por %p427, %p428
      %p430 = scmp.ne.s32.totalorder %s422, %s424
      %p431 = scmp.eq.s32.totalorder %s36, 1
      %p432 = por %p430, %p431
      %p433 = scmp.ne.s32.totalorder %s424, %s425
      %p434 = scmp.eq.s32.totalorder %s36, 0
      %p435 = por %p433, %p434
      %p436 = scmp.ne.s32.totalorder %s424, %s425
      %p437 = scmp.eq.s32.totalorder %s37, 1
      %p438 = por %p436, %p437
      %p440 = scmp.ne.s32.totalorder %s425, %s439
      %p441 = scmp.eq.s32.totalorder %s37, 0
      %p442 = por %p440, %p441
      %s444 = sadd.s32 %s443, 1
      %p447 = scmp.eq.s32.totalorder %s31, 1
      %p448 = scmp.ne.s32.totalorder %s443, %s445
      %p449 = scmp.eq.s32.totalorder %s31, 0
      %p450 = por %p448, %p449
      %p451 = scmp.ne.s32.totalorder %s443, %s445
      %p452 = scmp.eq.s32.totalorder %s36, 1
      %p453 = por %p451, %p452
      %p454 = scmp.ne.s32.totalorder %s445, %s446
      %p455 = scmp.eq.s32.totalorder %s36, 0
      %p456 = por %p454, %p455
      %p457 = scmp.ne.s32.totalorder %s445, %s446
      %p458 = scmp.eq.s32.totalorder %s37, 1
      %p459 = por %p457, %p458
      %p461 = scmp.ne.s32.totalorder %s446, %s460
      %p462 = scmp.eq.s32.totalorder %s37, 0
      %p463 = por %p461, %p462
      %s465 = sadd.s32 %s464, 1
      %p468 = scmp.eq.s32.totalorder %s31, 1
      %p469 = scmp.ne.s32.totalorder %s464, %s466
      %p470 = scmp.eq.s32.totalorder %s31, 0
      %p471 = por %p469, %p470
      %p472 = scmp.ne.s32.totalorder %s464, %s466
      %p473 = scmp.eq.s32.totalorder %s36, 1
      %p474 = por %p472, %p473
      %p475 = scmp.ne.s32.totalorder %s466, %s467
      %p476 = scmp.eq.s32.totalorder %s36, 0
      %p477 = por %p475, %p476
      %p478 = scmp.ne.s32.totalorder %s466, %s467
      %p479 = scmp.eq.s32.totalorder %s37, 1
      %p480 = por %p478, %p479
      %p482 = scmp.ne.s32.totalorder %s467, %s481
      %p483 = scmp.eq.s32.totalorder %s37, 0
      %p484 = por %p482, %p483
      %s486 = sadd.s32 %s485, 1
      %p489 = scmp.eq.s32.totalorder %s31, 1
      %p490 = scmp.ne.s32.totalorder %s485, %s487
      %p491 = scmp.eq.s32.totalorder %s31, 0
      %p492 = por %p490, %p491
      %p493 = scmp.ne.s32.totalorder %s485, %s487
      %p494 = scmp.eq.s32.totalorder %s36, 1
      %p495 = por %p493, %p494
      %p496 = scmp.ne.s32.totalorder %s487, %s488
      %p497 = scmp.eq.s32.totalorder %s36, 0
      %p498 = por %p496, %p497
      %p499 = scmp.ne.s32.totalorder %s487, %s488
      %p500 = scmp.eq.s32.totalorder %s37, 1
      %p501 = por %p499, %p500
      %p503 = scmp.ne.s32.totalorder %s488, %s502
      %p504 = scmp.eq.s32.totalorder %s37, 0
      %p505 = por %p503, %p504
      %s506 = ssub.s32 %s31, %s38
      %p507 = scmp.eq.s32.totalorder %s506, 0
      %s509 = sadd.s32 %s508, 1
      %s510 = scalar_select %p507, %s508, %s509
      %p513 = pneg %p507
      %p514 = scmp.eq.s32.totalorder %s31, 1
      %p515 = por %p513, %p514
      %p516 = scmp.ne.s32.totalorder %s508, %s511
      %p517 = scmp.eq.s32.totalorder %s31, 0
      %p518 = por %p516, %p517
      %p519 = scmp.ne.s32.totalorder %s508, %s511
      %p520 = scmp.eq.s32.totalorder %s36, 1
      %p521 = por %p519, %p520
      %p522 = scmp.ne.s32.totalorder %s511, %s512
      %p523 = scmp.eq.s32.totalorder %s36, 0
      %p524 = por %p522, %p523
      %p525 = scmp.ne.s32.totalorder %s511, %s512
      %p526 = scmp.eq.s32.totalorder %s37, 1
      %p527 = por %p525, %p526
      %p529 = scmp.ne.s32.totalorder %s512, %s528
      %p530 = scmp.eq.s32.totalorder %s37, 0
      %p531 = por %p529, %p530
      %p532 = scmp.le.s32.totalorder 1, %s31
      %p533 = scmp.lt.s32.totalorder %s31, 3
      %p534 = pnand %p532, %p533
      %p535 = pneg %p534
      // Predicated region
      $region9: #{tpu_custom_call.1} parent=5 // pred_check
        _
      $region10: #{tpu_custom_call.1} parent=5 // pred_check_branch
        %537 = sbr.rel (%p534) target = $region12
      $region11: #{tpu_custom_call.1} parent=5 // pred_region
        %s538 = ssub.s32 %s31, 1
        // Predicated region
        $region13: #{tpu_custom_call.1} parent=11 // pred_check
          %p539 = pneg %p78
        $region14: #{tpu_custom_call.1} parent=11 // pred_check_branch
          %541 = sbr.rel (%p539) target = $region16
        $region15: #{tpu_custom_call.1} parent=11 // pred_region
          _
        $region16: #{tpu_custom_call.1} parent=11 // pred_fallthru
          _
        // Predicated region
        $region17: #{tpu_custom_call.1} parent=11 // pred_check
          %p542 = pneg %p99
        $region18: #{tpu_custom_call.1} parent=11 // pred_check_branch
          %544 = sbr.rel (%p542) target = $region20
        $region19: #{tpu_custom_call.1} parent=11 // pred_region
          _
        $region20: #{tpu_custom_call.1} parent=11 // pred_fallthru
          _
        // Predicated region
        $region21: #{tpu_custom_call.1} parent=11 // pred_check
          %p545 = pneg %p120
        $region22: #{tpu_custom_call.1} parent=11 // pred_check_branch
          %547 = sbr.rel (%p545) target = $region24
        $region23: #{tpu_custom_call.1} parent=11 // pred_region
          _
        $region24: #{tpu_custom_call.1} parent=11 // pred_fallthru
          _
        // Predicated region
        $region25: #{tpu_custom_call.1} parent=11 // pred_check
          %p548 = pneg %p141
        $region26: #{tpu_custom_call.1} parent=11 // pred_check_branch
          %550 = sbr.rel (%p548) target = $region28
        $region27: #{tpu_custom_call.1} parent=11 // pred_region
          _
        $region28: #{tpu_custom_call.1} parent=11 // pred_fallthru
          _
        // Predicated region
        $region29: #{tpu_custom_call.1} parent=11 // pred_check
          %p551 = pneg %p162
        $region30: #{tpu_custom_call.1} parent=11 // pred_check_branch
          %553 = sbr.rel (%p551) target = $region32
        $region31: #{tpu_custom_call.1} parent=11 // pred_region
          _
        $region32: #{tpu_custom_call.1} parent=11 // pred_fallthru
          _
        // Predicated region
        $region33: #{tpu_custom_call.1} parent=11 // pred_check
          %p554 = pneg %p183
        $region34: #{tpu_custom_call.1} parent=11 // pred_check_branch
          %556 = sbr.rel (%p554) target = $region36
        $region35: #{tpu_custom_call.1} parent=11 // pred_region
          _
        $region36: #{tpu_custom_call.1} parent=11 // pred_fallthru
          _
        // Predicated region
        $region37: #{tpu_custom_call.1} parent=11 // pred_check
          %p557 = pneg %p204
        $region38: #{tpu_custom_call.1} parent=11 // pred_check_branch
          %559 = sbr.rel (%p557) target = $region40
        $region39: #{tpu_custom_call.1} parent=11 // pred_region
          _
        $region40: #{tpu_custom_call.1} parent=11 // pred_fallthru
          _
        // Predicated region
        $region41: #{tpu_custom_call.1} parent=11 // pred_check
          %p560 = pneg %p225
        $region42: #{tpu_custom_call.1} parent=11 // pred_check_branch
          %562 = sbr.rel (%p560) target = $region44
        $region43: #{tpu_custom_call.1} parent=11 // pred_region
          _
        $region44: #{tpu_custom_call.1} parent=11 // pred_fallthru
          _
        // Predicated region
        $region45: #{tpu_custom_call.1} parent=11 // pred_check
          %p563 = pneg %p246
        $region46: #{tpu_custom_call.1} parent=11 // pred_check_branch
          %565 = sbr.rel (%p563) target = $region48
        $region47: #{tpu_custom_call.1} parent=11 // pred_region
          _
        $region48: #{tpu_custom_call.1} parent=11 // pred_fallthru
          _
        // Predicated region
        $region49: #{tpu_custom_call.1} parent=11 // pred_check
          %p566 = pneg %p267
        $region50: #{tpu_custom_call.1} parent=11 // pred_check_branch
          %568 = sbr.rel (%p566) target = $region52
        $region51: #{tpu_custom_call.1} parent=11 // pred_region
          _
        $region52: #{tpu_custom_call.1} parent=11 // pred_fallthru
          _
        // Predicated region
        $region53: #{tpu_custom_call.1} parent=11 // pred_check
          %p569 = pneg %p288
        $region54: #{tpu_custom_call.1} parent=11 // pred_check_branch
          %571 = sbr.rel (%p569) target = $region56
        $region55: #{tpu_custom_call.1} parent=11 // pred_region
          _
        $region56: #{tpu_custom_call.1} parent=11 // pred_fallthru
          _
        // Predicated region
        $region57: #{tpu_custom_call.1} parent=11 // pred_check
          %p572 = pneg %p309
        $region58: #{tpu_custom_call.1} parent=11 // pred_check_branch
          %574 = sbr.rel (%p572) target = $region60
        $region59: #{tpu_custom_call.1} parent=11 // pred_region
          _
        $region60: #{tpu_custom_call.1} parent=11 // pred_fallthru
          _
        // Predicated region
        $region61: #{tpu_custom_call.1} parent=11 // pred_check
          %p575 = pneg %p330
        $region62: #{tpu_custom_call.1} parent=11 // pred_check_branch
          %577 = sbr.rel (%p575) target = $region64
        $region63: #{tpu_custom_call.1} parent=11 // pred_region
          _
        $region64: #{tpu_custom_call.1} parent=11 // pred_fallthru
          _
        // Predicated region
        $region65: #{tpu_custom_call.1} parent=11 // pred_check
          %p578 = pneg %p351
        $region66: #{tpu_custom_call.1} parent=11 // pred_check_branch
          %580 = sbr.rel (%p578) target = $region68
        $region67: #{tpu_custom_call.1} parent=11 // pred_region
          _
        $region68: #{tpu_custom_call.1} parent=11 // pred_fallthru
          _
        // Predicated region
        $region69: #{tpu_custom_call.1} parent=11 // pred_check
          %p581 = pneg %p372
        $region70: #{tpu_custom_call.1} parent=11 // pred_check_branch
          %583 = sbr.rel (%p581) target = $region72
        $region71: #{tpu_custom_call.1} parent=11 // pred_region
          _
        $region72: #{tpu_custom_call.1} parent=11 // pred_fallthru
          _
        // Predicated region
        $region73: #{tpu_custom_call.1} parent=11 // pred_check
          %p584 = pneg %p393
        $region74: #{tpu_custom_call.1} parent=11 // pred_check_branch
          %586 = sbr.rel (%p584) target = $region76
        $region75: #{tpu_custom_call.1} parent=11 // pred_region
          _
        $region76: #{tpu_custom_call.1} parent=11 // pred_fallthru
          _
        // Predicated region
        $region77: #{tpu_custom_call.1} parent=11 // pred_check
          %p587 = pneg %p414
        $region78: #{tpu_custom_call.1} parent=11 // pred_check_branch
          %589 = sbr.rel (%p587) target = $region80
        $region79: #{tpu_custom_call.1} parent=11 // pred_region
          _
        $region80: #{tpu_custom_call.1} parent=11 // pred_fallthru
          _
        // Predicated region
        $region81: #{tpu_custom_call.1} parent=11 // pred_check
          %p590 = pneg %p435
        $region82: #{tpu_custom_call.1} parent=11 // pred_check_branch
          %592 = sbr.rel (%p590) target = $region84
        $region83: #{tpu_custom_call.1} parent=11 // pred_region
          _
        $region84: #{tpu_custom_call.1} parent=11 // pred_fallthru
          _
        // Predicated region
        $region85: #{tpu_custom_call.1} parent=11 // pred_check
          %p593 = pneg %p456
        $region86: #{tpu_custom_call.1} parent=11 // pred_check_branch
          %595 = sbr.rel (%p593) target = $region88
        $region87: #{tpu_custom_call.1} parent=11 // pred_region
          _
        $region88: #{tpu_custom_call.1} parent=11 // pred_fallthru
          _
        // Predicated region
        $region89: #{tpu_custom_call.1} parent=11 // pred_check
          %p596 = pneg %p477
        $region90: #{tpu_custom_call.1} parent=11 // pred_check_branch
          %598 = sbr.rel (%p596) target = $region92
        $region91: #{tpu_custom_call.1} parent=11 // pred_region
          _
        $region92: #{tpu_custom_call.1} parent=11 // pred_fallthru
          _
        // Predicated region
        $region93: #{tpu_custom_call.1} parent=11 // pred_check
          %p599 = pneg %p498
        $region94: #{tpu_custom_call.1} parent=11 // pred_check_branch
          %601 = sbr.rel (%p599) target = $region96
        $region95: #{tpu_custom_call.1} parent=11 // pred_region
          _
        $region96: #{tpu_custom_call.1} parent=11 // pred_fallthru
          _
      $region12: #{tpu_custom_call.1} parent=5 // pred_fallthru
        _
      %p602 = scmp.lt.s32.totalorder %s31, 2
      // Predicated region
      $region97: #{tpu_custom_call.1} parent=5 // pred_check
        %p603 = pneg %p602
      $region98: #{tpu_custom_call.1} parent=5 // pred_check_branch
        %605 = sbr.rel (%p603) target = $region100
      $region99: #{tpu_custom_call.1} parent=5 // pred_region
        // Predicated region
        $region101: #{tpu_custom_call.1} parent=99 // pred_check
          %p606 = pneg %p51
        $region102: #{tpu_custom_call.1} parent=99 // pred_check_branch
          %608 = sbr.rel (%p606) target = $region104
        $region103: #{tpu_custom_call.1} parent=99 // pred_region
          %p609 = scmp.lt.s32.totalorder %s31, 1
          %s610 = scalar_select %p609, %s31, 1
          %s611 = smul.addr %s610, 8
          %s612 = scalar_lea.vmem %s0, %s611
        $region104: #{tpu_custom_call.1} parent=99 // pred_fallthru
          _
      $region100: #{tpu_custom_call.1} parent=5 // pred_fallthru
        _
      %p613 = scmp.le.s32.totalorder 1, %s31
      %p614 = scmp.lt.s32.totalorder %s31, 3
      %p615 = pnand %p613, %p614
      %p616 = pneg %p615
      // Predicated region
      $region105: #{tpu_custom_call.1} parent=5 // pred_check
        _
      $region106: #{tpu_custom_call.1} parent=5 // pred_check_branch
        %618 = sbr.rel (%p615) target = $region108
      $region107: #{tpu_custom_call.1} parent=5 // pred_region
        %s619 = ssub.s32 %s31, 1
        %p620 = scmp.lt.s32.totalorder %s36, 1
        %s621 = scalar_select %p620, %s36, 1
        %s622 = smul.addr %s621, 8
        %s623 = scalar_lea.vmem %s0, %s622
        %p624 = pneg %p57
        %p625 = pneg %p54
        %p626 = pneg %p78
        %p627 = pneg %p75
        %p628 = pneg %p99
        %p629 = pneg %p96
        %p630 = pneg %p120
        %p631 = pneg %p117
        %p632 = pneg %p141
        %p633 = pneg %p138
        %p634 = pneg %p162
        %p635 = pneg %p159
        %p636 = pneg %p183
        %p637 = pneg %p180
        %p638 = pneg %p204
        %p639 = pneg %p201
        %p640 = pneg %p225
        %p641 = pneg %p222
        %p642 = pneg %p246
        %p643 = pneg %p243
        %p644 = pneg %p267
        %p645 = pneg %p264
        %p646 = pneg %p288
        %p647 = pneg %p285
        %p648 = pneg %p309
        %p649 = pneg %p306
        %p650 = pneg %p330
        %p651 = pneg %p327
        %p652 = pneg %p351
        %p653 = pneg %p348
        %p654 = pneg %p372
        %p655 = pneg %p369
        %p656 = pneg %p393
        %p657 = pneg %p390
        %p658 = pneg %p414
        %p659 = pneg %p411
        %p660 = pneg %p435
        %p661 = pneg %p432
        %p662 = pneg %p456
        %p663 = pneg %p453
        %p664 = pneg %p477
        %p665 = pneg %p474
        %p666 = pneg %p498
        %p667 = pneg %p495
        %p668 = pneg %p524
        %p669 = pneg %p521
        %s670 = sand.u32 %s511, 1
        %s671 = scalar_lea.sflag [#allocation3], %s670
        %s672 = sand.u32 %s511, 1
        %s673 = scalar_lea.vmem [#allocation2], %s672
        %p674 = scmp.lt.s32.totalorder %s36, 1
        %s675 = scalar_select %p674, %s36, 1
        %s676 = smul.addr %s675, 8
        %s677 = scalar_lea.vmem %s0, %s676
        %v679 = vld [vmem:[%s677] sm:$0xff]
        %v680 = vpack.c.bf16 %v679, %v679
        %v681 = vld [vmem:[%s1] sm:$0xf]
        %v682 = vld [vmem:[%s1 + $0x4] sm:$0xf]
        %v683 = vld [vmem:[%s2] sm:$0x1]
        %v685 = vlaneseq
        %v686 = vshrl.u32 %v685, 7
        %v687 = vsub.s32 0, %v686
        %v688 = vrot.slane %v683, %v687
        %v692 = vunpack.c.l.b16 %v681
        %v693 = vunpack.c.l.b16 %v682
        %v694 = vpack.c.b16 %v693, %v692
        %vm696 = vcmask 130048
        %v698 = vsel %vm696, %v680, 0
        %700 = vmatprep.subr.bf16.mxu0 0
        %701 = vmatpush1.bf16.msra.mxu0 %v694
        %702 = vmatprep.subr.bf16.mxu0 0
        %703 = vmatpush1.bf16.msra.mxu0 0
        %704 = vmatprep.subr.bf16.mxu0 0
        %705 = vmatpush1.bf16.msra.mxu0 0
        %706 = vmatprep.subr.bf16.mxu0 0
        %707 = vmatpush1.bf16.msra.mxu0 0
        %708 = vmatprep.subr.bf16.mxu0 0
        %709 = vmatpush1.bf16.msra.mxu0 0
        %710 = vmatprep.subr.bf16.mxu0 0
        %711 = vmatpush1.bf16.msra.mxu0 0
        %712 = vmatprep.subr.bf16.mxu0 0
        %713 = vmatpush1.bf16.msra.mxu0 0
        %714 = vmatprep.subr.bf16.mxu0 0
        %715 = vmatpush1.bf16.msra.mxu0 0
        %716 = vmatprep.subr.bf16.mxu0 0
        %717 = vmatpush1.bf16.msra.mxu0 0
        %718 = vmatprep.subr.bf16.mxu0 0
        %719 = vmatpush1.bf16.msra.mxu0 0
        %720 = vmatprep.subr.bf16.mxu0 0
        %721 = vmatpush1.bf16.msra.mxu0 0
        %722 = vmatprep.subr.bf16.mxu0 0
        %723 = vmatpush1.bf16.msra.mxu0 0
        %724 = vmatprep.subr.bf16.mxu0 0
        %725 = vmatpush1.bf16.msra.mxu0 0
        %726 = vmatprep.subr.bf16.mxu0 0
        %727 = vmatpush1.bf16.msra.mxu0 0
        %728 = vmatprep.subr.bf16.mxu0 0
        %729 = vmatpush1.bf16.msra.mxu0 0
        %730 = vmatprep.subr.bf16.mxu0 0
        %731 = vmatpush1.bf16.msra.mxu0 0
        %732 = vmatprep.mubr.bf16.mxu0 0
        %733 = vmatmul.mubr.bf16.gmra.mrb[0].mxu0 %v698
        %v734 = vpop.f32.mrb[0].mxu0
        %v735 = vadd.f32 %v688, %v734
        %v736 = vpop.f32.mrb[0].mxu0
        %v737 = vpop.f32.mrb[0].mxu0
        %v738 = vpop.f32.mrb[0].mxu0
        %739 = vdwg.mxu0
        %v740 = vld [vmem:[%s3] sm:$0xff]
        %v741 = vadd.f32 %v735, %v740
        %v742 = vpack.c.bf16 %v741, %v741
        %v743 = vld [vmem:[%s4] sm:$0xf]
        %v744 = vld [vmem:[%s4 + $0x4] sm:$0xf]
        %v745 = vld [vmem:[%s4 + $0x8] sm:$0xf]
        %v746 = vld [vmem:[%s4 + $0xc] sm:$0xf]
        %v747 = vld [vmem:[%s5] sm:$0x1]
        %v748 = vlaneseq
        %v749 = vshrl.u32 %v748, 7
        %v750 = vsub.s32 0, %v749
        %v751 = vrot.slane %v747, %v750
        %v756 = vunpack.c.l.b16 %v743
        %v757 = vunpack.c.l.b16 %v744
        %v758 = vunpack.c.l.b16 %v745
        %v759 = vunpack.c.l.b16 %v746
        %v760 = vpack.c.b16 %v757, %v756
        %v761 = vpack.c.b16 %v759, %v758
        %vm764 = vcmask 261120
        %v766 = vsel %vm764, %v742, 0
        %768 = vmatprep.subr.bf16.mxu0 0
        %769 = vmatpush1.bf16.msra.mxu0 %v760
        %770 = vmatprep.subr.bf16.mxu0 0
        %771 = vmatpush1.bf16.msra.mxu0 %v761
        %772 = vmatprep.subr.bf16.mxu0 0
        %773 = vmatpush1.bf16.msra.mxu0 0
        %774 = vmatprep.subr.bf16.mxu0 0
        %775 = vmatpush1.bf16.msra.mxu0 0
        %776 = vmatprep.subr.bf16.mxu0 0
        %777 = vmatpush1.bf16.msra.mxu0 0
        %778 = vmatprep.subr.bf16.mxu0 0
        %779 = vmatpush1.bf16.msra.mxu0 0
        %780 = vmatprep.subr.bf16.mxu0 0
        %781 = vmatpush1.bf16.msra.mxu0 0
        %782 = vmatprep.subr.bf16.mxu0 0
        %783 = vmatpush1.bf16.msra.mxu0 0
        %784 = vmatprep.subr.bf16.mxu0 0
        %785 = vmatpush1.bf16.msra.mxu0 0
        %786 = vmatprep.subr.bf16.mxu0 0
        %787 = vmatpush1.bf16.msra.mxu0 0
        %788 = vmatprep.subr.bf16.mxu0 0
        %789 = vmatpush1.bf16.msra.mxu0 0
        %790 = vmatprep.subr.bf16.mxu0 0
        %791 = vmatpush1.bf16.msra.mxu0 0
        %792 = vmatprep.subr.bf16.mxu0 0
        %793 = vmatpush1.bf16.msra.mxu0 0
        %794 = vmatprep.subr.bf16.mxu0 0
        %795 = vmatpush1.bf16.msra.mxu0 0
        %796 = vmatprep.subr.bf16.mxu0 0
        %797 = vmatpush1.bf16.msra.mxu0 0
        %798 = vmatprep.subr.bf16.mxu0 0
        %799 = vmatpush1.bf16.msra.mxu0 0
        %800 = vmatprep.mubr.bf16.mxu0 0
        %801 = vmatmul.mubr.bf16.gmra.mrb[0].mxu0 %v766
        %v802 = vpop.f32.mrb[0].mxu0
        %v803 = vadd.f32 %v751, %v802
        %v804 = vpop.f32.mrb[0].mxu0
        %v805 = vpop.f32.mrb[0].mxu0
        %v806 = vpop.f32.mrb[0].mxu0
        %807 = vdwg.mxu0
        %v808 = vld [vmem:[%s6] sm:$0xf]
        %v809 = vld [vmem:[%s6 + $0x4] sm:$0xf]
        %v810 = vld [vmem:[%s6 + $0x8] sm:$0xf]
        %v811 = vld [vmem:[%s6 + $0xc] sm:$0xf]
        %v812 = vld [vmem:[%s7] sm:$0x1]
        %v813 = vlaneseq
        %v814 = vshrl.u32 %v813, 7
        %v815 = vsub.s32 0, %v814
        %v816 = vrot.slane %v812, %v815
        %v821 = vunpack.c.l.b16 %v808
        %v822 = vunpack.c.l.b16 %v809
        %v823 = vunpack.c.l.b16 %v810
        %v824 = vunpack.c.l.b16 %v811
        %v825 = vpack.c.b16 %v822, %v821
        %v826 = vpack.c.b16 %v824, %v823
        %829 = vmatprep.subr.bf16.mxu0 0
        %830 = vmatpush1.bf16.msra.mxu0 %v825
        %831 = vmatprep.subr.bf16.mxu0 0
        %832 = vmatpush1.bf16.msra.mxu0 %v826
        %833 = vmatprep.subr.bf16.mxu0 0
        %834 = vmatpush1.bf16.msra.mxu0 0
        %835 = vmatprep.subr.bf16.mxu0 0
        %836 = vmatpush1.bf16.msra.mxu0 0
        %837 = vmatprep.subr.bf16.mxu0 0
        %838 = vmatpush1.bf16.msra.mxu0 0
        %839 = vmatprep.subr.bf16.mxu0 0
        %840 = vmatpush1.bf16.msra.mxu0 0
        %841 = vmatprep.subr.bf16.mxu0 0
        %842 = vmatpush1.bf16.msra.mxu0 0
        %843 = vmatprep.subr.bf16.mxu0 0
        %844 = vmatpush1.bf16.msra.mxu0 0
        %845 = vmatprep.subr.bf16.mxu0 0
        %846 = vmatpush1.bf16.msra.mxu0 0
        %847 = vmatprep.subr.bf16.mxu0 0
        %848 = vmatpush1.bf16.msra.mxu0 0
        %849 = vmatprep.subr.bf16.mxu0 0
        %850 = vmatpush1.bf16.msra.mxu0 0
        %851 = vmatprep.subr.bf16.mxu0 0
        %852 = vmatpush1.bf16.msra.mxu0 0
        %853 = vmatprep.subr.bf16.mxu0 0
        %854 = vmatpush1.bf16.msra.mxu0 0
        %855 = vmatprep.subr.bf16.mxu0 0
        %856 = vmatpush1.bf16.msra.mxu0 0
        %857 = vmatprep.subr.bf16.mxu0 0
        %858 = vmatpush1.bf16.msra.mxu0 0
        %859 = vmatprep.subr.bf16.mxu0 0
        %860 = vmatpush1.bf16.msra.mxu0 0
        %861 = vmatprep.mubr.bf16.mxu0 0
        %862 = vmatmul.mubr.bf16.gmra.mrb[0].mxu0 %v766
        %v863 = vpop.f32.mrb[0].mxu0
        %v864 = vadd.f32 %v816, %v863
        %v865 = vpop.f32.mrb[0].mxu0
        %v866 = vpop.f32.mrb[0].mxu0
        %v867 = vpop.f32.mrb[0].mxu0
        %868 = vdwg.mxu0
        %v869 = vld [vmem:[%s8] sm:$0xf]
        %v870 = vld [vmem:[%s8 + $0x4] sm:$0xf]
        %v871 = vld [vmem:[%s8 + $0x8] sm:$0xf]
        %v872 = vld [vmem:[%s8 + $0xc] sm:$0xf]
        %v873 = vld [vmem:[%s9] sm:$0x1]
        %v874 = vlaneseq
        %v875 = vshrl.u32 %v874, 7
        %v876 = vsub.s32 0, %v875
        %v877 = vrot.slane %v873, %v876
        %v882 = vunpack.c.l.b16 %v869
        %v883 = vunpack.c.l.b16 %v870
        %v884 = vunpack.c.l.b16 %v871
        %v885 = vunpack.c.l.b16 %v872
        %v886 = vpack.c.b16 %v883, %v882
        %v887 = vpack.c.b16 %v885, %v884
        %890 = vmatprep.subr.bf16.mxu0 0
        %891 = vmatpush1.bf16.msra.mxu0 %v886
        %892 = vmatprep.subr.bf16.mxu0 0
        %893 = vmatpush1.bf16.msra.mxu0 %v887
        %894 = vmatprep.subr.bf16.mxu0 0
        %895 = vmatpush1.bf16.msra.mxu0 0
        %896 = vmatprep.subr.bf16.mxu0 0
        %897 = vmatpush1.bf16.msra.mxu0 0
        %898 = vmatprep.subr.bf16.mxu0 0
        %899 = vmatpush1.bf16.msra.mxu0 0
        %900 = vmatprep.subr.bf16.mxu0 0
        %901 = vmatpush1.bf16.msra.mxu0 0
        %902 = vmatprep.subr.bf16.mxu0 0
        %903 = vmatpush1.bf16.msra.mxu0 0
        %904 = vmatprep.subr.bf16.mxu0 0
        %905 = vmatpush1.bf16.msra.mxu0 0
        %906 = vmatprep.subr.bf16.mxu0 0
        %907 = vmatpush1.bf16.msra.mxu0 0
        %908 = vmatprep.subr.bf16.mxu0 0
        %909 = vmatpush1.bf16.msra.mxu0 0
        %910 = vmatprep.subr.bf16.mxu0 0
        %911 = vmatpush1.bf16.msra.mxu0 0
        %912 = vmatprep.subr.bf16.mxu0 0
        %913 = vmatpush1.bf16.msra.mxu0 0
        %914 = vmatprep.subr.bf16.mxu0 0
        %915 = vmatpush1.bf16.msra.mxu0 0
        %916 = vmatprep.subr.bf16.mxu0 0
        %917 = vmatpush1.bf16.msra.mxu0 0
        %918 = vmatprep.subr.bf16.mxu0 0
        %919 = vmatpush1.bf16.msra.mxu0 0
        %920 = vmatprep.subr.bf16.mxu0 0
        %921 = vmatpush1.bf16.msra.mxu0 0
        %922 = vmatprep.mubr.bf16.mxu0 0
        %923 = vmatmul.mubr.bf16.gmra.mrb[0].mxu0 %v766
        %v924 = vpop.f32.mrb[0].mxu0
        %v925 = vadd.f32 %v877, %v924
        %v926 = vpop.f32.mrb[0].mxu0
        %v927 = vpop.f32.mrb[0].mxu0
        %v928 = vpop.f32.mrb[0].mxu0
        %929 = vdwg.mxu0
        %s930 = scalar_lea.vmem %s4, 16
        %v931 = vld [vmem:[%s930] sm:$0xf]
        %v932 = vld [vmem:[%s930 + $0x4] sm:$0xf]
        %v933 = vld [vmem:[%s930 + $0x8] sm:$0xf]
        %v934 = vld [vmem:[%s930 + $0xc] sm:$0xf]
        %v935 = vld [vmem:[%s5 + $0x1] sm:$0x1]
        %v936 = vlaneseq
        %v937 = vshrl.u32 %v936, 7
        %v938 = vsub.s32 0, %v937
        %v939 = vrot.slane %v935, %v938
        %v944 = vunpack.c.l.b16 %v931
        %v945 = vunpack.c.l.b16 %v932
        %v946 = vunpack.c.l.b16 %v933
        %v947 = vunpack.c.l.b16 %v934
        %v948 = vpack.c.b16 %v945, %v944
        %v949 = vpack.c.b16 %v947, %v946
        %952 = vmatprep.subr.bf16.mxu0 0
        %953 = vmatpush1.bf16.msra.mxu0 %v948
        %954 = vmatprep.subr.bf16.mxu0 0
        %955 = vmatpush1.bf16.msra.mxu0 %v949
        %956 = vmatprep.subr.bf16.mxu0 0
        %957 = vmatpush1.bf16.msra.mxu0 0
        %958 = vmatprep.subr.bf16.mxu0 0
        %959 = vmatpush1.bf16.msra.mxu0 0
        %960 = vmatprep.subr.bf16.mxu0 0
        %961 = vmatpush1.bf16.msra.mxu0 0
        %962 = vmatprep.subr.bf16.mxu0 0
        %963 = vmatpush1.bf16.msra.mxu0 0
        %964 = vmatprep.subr.bf16.mxu0 0
        %965 = vmatpush1.bf16.msra.mxu0 0
        %966 = vmatprep.subr.bf16.mxu0 0
        %967 = vmatpush1.bf16.msra.mxu0 0
        %968 = vmatprep.subr.bf16.mxu0 0
        %969 = vmatpush1.bf16.msra.mxu0 0
        %970 = vmatprep.subr.bf16.mxu0 0
        %971 = vmatpush1.bf16.msra.mxu0 0
        %972 = vmatprep.subr.bf16.mxu0 0
        %973 = vmatpush1.bf16.msra.mxu0 0
        %974 = vmatprep.subr.bf16.mxu0 0
        %975 = vmatpush1.bf16.msra.mxu0 0
        %976 = vmatprep.subr.bf16.mxu0 0
        %977 = vmatpush1.bf16.msra.mxu0 0
        %978 = vmatprep.subr.bf16.mxu0 0
        %979 = vmatpush1.bf16.msra.mxu0 0
        %980 = vmatprep.subr.bf16.mxu0 0
        %981 = vmatpush1.bf16.msra.mxu0 0
        %982 = vmatprep.subr.bf16.mxu0 0
        %983 = vmatpush1.bf16.msra.mxu0 0
        %984 = vmatprep.mubr.bf16.mxu0 0
        %985 = vmatmul.mubr.bf16.gmra.mrb[0].mxu0 %v766
        %v986 = vpop.f32.mrb[0].mxu0
        %v987 = vadd.f32 %v939, %v986
        %v988 = vpop.f32.mrb[0].mxu0
        %v989 = vpop.f32.mrb[0].mxu0
        %v990 = vpop.f32.mrb[0].mxu0
        %991 = vdwg.mxu0
        %s992 = scalar_lea.vmem %s6, 16
        %v993 = vld [vmem:[%s992] sm:$0xf]
        %v994 = vld [vmem:[%s992 + $0x4] sm:$0xf]
        %v995 = vld [vmem:[%s992 + $0x8] sm:$0xf]
        %v996 = vld [vmem:[%s992 + $0xc] sm:$0xf]
        %v997 = vld [vmem:[%s7 + $0x1] sm:$0x1]
        %v998 = vlaneseq
        %v999 = vshrl.u32 %v998, 7
        %v1000 = vsub.s32 0, %v999
        %v1001 = vrot.slane %v997, %v1000
        %v1006 = vunpack.c.l.b16 %v993
        %v1007 = vunpack.c.l.b16 %v994
        %v1008 = vunpack.c.l.b16 %v995
        %v1009 = vunpack.c.l.b16 %v996
        %v1010 = vpack.c.b16 %v1007, %v1006
        %v1011 = vpack.c.b16 %v1009, %v1008
        %1014 = vmatprep.subr.bf16.mxu0 0
        %1015 = vmatpush1.bf16.msra.mxu0 %v1010
        %1016 = vmatprep.subr.bf16.mxu0 0
        %1017 = vmatpush1.bf16.msra.mxu0 %v1011
        %1018 = vmatprep.subr.bf16.mxu0 0
        %1019 = vmatpush1.bf16.msra.mxu0 0
        %1020 = vmatprep.subr.bf16.mxu0 0
        %1021 = vmatpush1.bf16.msra.mxu0 0
        %1022 = vmatprep.subr.bf16.mxu0 0
        %1023 = vmatpush1.bf16.msra.mxu0 0
        %1024 = vmatprep.subr.bf16.mxu0 0
        %1025 = vmatpush1.bf16.msra.mxu0 0
        %1026 = vmatprep.subr.bf16.mxu0 0
        %1027 = vmatpush1.bf16.msra.mxu0 0
        %1028 = vmatprep.subr.bf16.mxu0 0
        %1029 = vmatpush1.bf16.msra.mxu0 0
        %1030 = vmatprep.subr.bf16.mxu0 0
        %1031 = vmatpush1.bf16.msra.mxu0 0
        %1032 = vmatprep.subr.bf16.mxu0 0
        %1033 = vmatpush1.bf16.msra.mxu0 0
        %1034 = vmatprep.subr.bf16.mxu0 0
        %1035 = vmatpush1.bf16.msra.mxu0 0
        %1036 = vmatprep.subr.bf16.mxu0 0
        %1037 = vmatpush1.bf16.msra.mxu0 0
        %1038 = vmatprep.subr.bf16.mxu0 0
        %1039 = vmatpush1.bf16.msra.mxu0 0
        %1040 = vmatprep.subr.bf16.mxu0 0
        %1041 = vmatpush1.bf16.msra.mxu0 0
        %1042 = vmatprep.subr.bf16.mxu0 0
        %1043 = vmatpush1.bf16.msra.mxu0 0
        %1044 = vmatprep.subr.bf16.mxu0 0
        %1045 = vmatpush1.bf16.msra.mxu0 0
        %1046 = vmatprep.mubr.bf16.mxu0 0
        %1047 = vmatmul.mubr.bf16.gmra.mrb[0].mxu0 %v766
        %v1048 = vpop.f32.mrb[0].mxu0
        %v1049 = vadd.f32 %v1001, %v1048
        %v1050 = vpop.f32.mrb[0].mxu0
        %v1051 = vpop.f32.mrb[0].mxu0
        %v1052 = vpop.f32.mrb[0].mxu0
        %1053 = vdwg.mxu0
        %s1054 = scalar_lea.vmem %s8, 16
        %v1055 = vld [vmem:[%s1054] sm:$0xf]
        %v1056 = vld [vmem:[%s1054 + $0x4] sm:$0xf]
        %v1057 = vld [vmem:[%s1054 + $0x8] sm:$0xf]
        %v1058 = vld [vmem:[%s1054 + $0xc] sm:$0xf]
        %v1059 = vld [vmem:[%s9 + $0x1] sm:$0x1]
        %v1060 = vlaneseq
        %v1061 = vshrl.u32 %v1060, 7
        %v1062 = vsub.s32 0, %v1061
        %v1063 = vrot.slane %v1059, %v1062
        %v1068 = vunpack.c.l.b16 %v1055
        %v1069 = vunpack.c.l.b16 %v1056
        %v1070 = vunpack.c.l.b16 %v1057
        %v1071 = vunpack.c.l.b16 %v1058
        %v1072 = vpack.c.b16 %v1069, %v1068
        %v1073 = vpack.c.b16 %v1071, %v1070
        %1076 = vmatprep.subr.bf16.mxu0 0
        %1077 = vmatpush1.bf16.msra.mxu0 %v1072
        %1078 = vmatprep.subr.bf16.mxu0 0
        %1079 = vmatpush1.bf16.msra.mxu0 %v1073
        %1080 = vmatprep.subr.bf16.mxu0 0
        %1081 = vmatpush1.bf16.msra.mxu0 0
        %1082 = vmatprep.subr.bf16.mxu0 0
        %1083 = vmatpush1.bf16.msra.mxu0 0
        %1084 = vmatprep.subr.bf16.mxu0 0
        %1085 = vmatpush1.bf16.msra.mxu0 0
        %1086 = vmatprep.subr.bf16.mxu0 0
        %1087 = vmatpush1.bf16.msra.mxu0 0
        %1088 = vmatprep.subr.bf16.mxu0 0
        %1089 = vmatpush1.bf16.msra.mxu0 0
        %1090 = vmatprep.subr.bf16.mxu0 0
        %1091 = vmatpush1.bf16.msra.mxu0 0
        %1092 = vmatprep.subr.bf16.mxu0 0
        %1093 = vmatpush1.bf16.msra.mxu0 0
        %1094 = vmatprep.subr.bf16.mxu0 0
        %1095 = vmatpush1.bf16.msra.mxu0 0
        %1096 = vmatprep.subr.bf16.mxu0 0
        %1097 = vmatpush1.bf16.msra.mxu0 0
        %1098 = vmatprep.subr.bf16.mxu0 0
        %1099 = vmatpush1.bf16.msra.mxu0 0
        %1100 = vmatprep.subr.bf16.mxu0 0
        %1101 = vmatpush1.bf16.msra.mxu0 0
        %1102 = vmatprep.subr.bf16.mxu0 0
        %1103 = vmatpush1.bf16.msra.mxu0 0
        %1104 = vmatprep.subr.bf16.mxu0 0
        %1105 = vmatpush1.bf16.msra.mxu0 0
        %1106 = vmatprep.subr.bf16.mxu0 0
        %1107 = vmatpush1.bf16.msra.mxu0 0
        %1108 = vmatprep.mubr.bf16.mxu0 0
        %1109 = vmatmul.mubr.bf16.gmra.mrb[0].mxu0 %v766
        %v1110 = vpop.f32.mrb[0].mxu0
        %v1111 = vadd.f32 %v1063, %v1110
        %v1112 = vpop.f32.mrb[0].mxu0
        %v1113 = vpop.f32.mrb[0].mxu0
        %v1114 = vpop.f32.mrb[0].mxu0
        %1115 = vdwg.mxu0
        %s1116 = scalar_lea.vmem %s4, 32
        %v1117 = vld [vmem:[%s1116] sm:$0xf]
        %v1118 = vld [vmem:[%s1116 + $0x4] sm:$0xf]
        %v1119 = vld [vmem:[%s1116 + $0x8] sm:$0xf]
        %v1120 = vld [vmem:[%s1116 + $0xc] sm:$0xf]
        %v1121 = vld [vmem:[%s5 + $0x2] sm:$0x1]
        %v1122 = vlaneseq
        %v1123 = vshrl.u32 %v1122, 7
        %v1124 = vsub.s32 0, %v1123
        %v1125 = vrot.slane %v1121, %v1124
        %v1130 = vunpack.c.l.b16 %v1117
        %v1131 = vunpack.c.l.b16 %v1118
        %v1132 = vunpack.c.l.b16 %v1119
        %v1133 = vunpack.c.l.b16 %v1120
        %v1134 = vpack.c.b16 %v1131, %v1130
        %v1135 = vpack.c.b16 %v1133, %v1132
        %1138 = vmatprep.subr.bf16.mxu0 0
        %1139 = vmatpush1.bf16.msra.mxu0 %v1134
        %1140 = vmatprep.subr.bf16.mxu0 0
        %1141 = vmatpush1.bf16.msra.mxu0 %v1135
        %1142 = vmatprep.subr.bf16.mxu0 0
        %1143 = vmatpush1.bf16.msra.mxu0 0
        %1144 = vmatprep.subr.bf16.mxu0 0
        %1145 = vmatpush1.bf16.msra.mxu0 0
        %1146 = vmatprep.subr.bf16.mxu0 0
        %1147 = vmatpush1.bf16.msra.mxu0 0
        %1148 = vmatprep.subr.bf16.mxu0 0
        %1149 = vmatpush1.bf16.msra.mxu0 0
        %1150 = vmatprep.subr.bf16.mxu0 0
        %1151 = vmatpush1.bf16.msra.mxu0 0
        %1152 = vmatprep.subr.bf16.mxu0 0
        %1153 = vmatpush1.bf16.msra.mxu0 0
        %1154 = vmatprep.subr.bf16.mxu0 0
        %1155 = vmatpush1.bf16.msra.mxu0 0
        %1156 = vmatprep.subr.bf16.mxu0 0
        %1157 = vmatpush1.bf16.msra.mxu0 0
        %1158 = vmatprep.subr.bf16.mxu0 0
        %1159 = vmatpush1.bf16.msra.mxu0 0
        %1160 = vmatprep.subr.bf16.mxu0 0
        %1161 = vmatpush1.bf16.msra.mxu0 0
        %1162 = vmatprep.subr.bf16.mxu0 0
        %1163 = vmatpush1.bf16.msra.mxu0 0
        %1164 = vmatprep.subr.bf16.mxu0 0
        %1165 = vmatpush1.bf16.msra.mxu0 0
        %1166 = vmatprep.subr.bf16.mxu0 0
        %1167 = vmatpush1.bf16.msra.mxu0 0
        %1168 = vmatprep.subr.bf16.mxu0 0
        %1169 = vmatpush1.bf16.msra.mxu0 0
        %1170 = vmatprep.mubr.bf16.mxu0 0
        %1171 = vmatmul.mubr.bf16.gmra.mrb[0].mxu0 %v766
        %v1172 = vpop.f32.mrb[0].mxu0
        %v1173 = vadd.f32 %v1125, %v1172
        %v1174 = vpop.f32.mrb[0].mxu0
        %v1175 = vpop.f32.mrb[0].mxu0
        %v1176 = vpop.f32.mrb[0].mxu0
        %1177 = vdwg.mxu0
        %s1178 = scalar_lea.vmem %s6, 32
        %v1179 = vld [vmem:[%s1178] sm:$0xf]
        %v1180 = vld [vmem:[%s1178 + $0x4] sm:$0xf]
        %v1181 = vld [vmem:[%s1178 + $0x8] sm:$0xf]
        %v1182 = vld [vmem:[%s1178 + $0xc] sm:$0xf]
        %v1183 = vld [vmem:[%s7 + $0x2] sm:$0x1]
        %v1184 = vlaneseq
        %v1185 = vshrl.u32 %v1184, 7
        %v1186 = vsub.s32 0, %v1185
        %v1187 = vrot.slane %v1183, %v1186
        %v1192 = vunpack.c.l.b16 %v1179
        %v1193 = vunpack.c.l.b16 %v1180
        %v1194 = vunpack.c.l.b16 %v1181
        %v1195 = vunpack.c.l.b16 %v1182
        %v1196 = vpack.c.b16 %v1193, %v1192
        %v1197 = vpack.c.b16 %v1195, %v1194
        %1200 = vmatprep.subr.bf16.mxu0 0
        %1201 = vmatpush1.bf16.msra.mxu0 %v1196
        %1202 = vmatprep.subr.bf16.mxu0 0
        %1203 = vmatpush1.bf16.msra.mxu0 %v1197
        %1204 = vmatprep.subr.bf16.mxu0 0
        %1205 = vmatpush1.bf16.msra.mxu0 0
        %1206 = vmatprep.subr.bf16.mxu0 0
        %1207 = vmatpush1.bf16.msra.mxu0 0
        %1208 = vmatprep.subr.bf16.mxu0 0
        %1209 = vmatpush1.bf16.msra.mxu0 0
        %1210 = vmatprep.subr.bf16.mxu0 0
        %1211 = vmatpush1.bf16.msra.mxu0 0
        %1212 = vmatprep.subr.bf16.mxu0 0
        %1213 = vmatpush1.bf16.msra.mxu0 0
        %1214 = vmatprep.subr.bf16.mxu0 0
        %1215 = vmatpush1.bf16.msra.mxu0 0
        %1216 = vmatprep.subr.bf16.mxu0 0
        %1217 = vmatpush1.bf16.msra.mxu0 0
        %1218 = vmatprep.subr.bf16.mxu0 0
        %1219 = vmatpush1.bf16.msra.mxu0 0
        %1220 = vmatprep.subr.bf16.mxu0 0
        %1221 = vmatpush1.bf16.msra.mxu0 0
        %1222 = vmatprep.subr.bf16.mxu0 0
        %1223 = vmatpush1.bf16.msra.mxu0 0
        %1224 = vmatprep.subr.bf16.mxu0 0
        %1225 = vmatpush1.bf16.msra.mxu0 0
        %1226 = vmatprep.subr.bf16.mxu0 0
        %1227 = vmatpush1.bf16.msra.mxu0 0
        %1228 = vmatprep.subr.bf16.mxu0 0
        %1229 = vmatpush1.bf16.msra.mxu0 0
        %1230 = vmatprep.subr.bf16.mxu0 0
        %1231 = vmatpush1.bf16.msra.mxu0 0
        %1232 = vmatprep.mubr.bf16.mxu0 0
        %1233 = vmatmul.mubr.bf16.gmra.mrb[0].mxu0 %v766
        %v1234 = vpop.f32.mrb[0].mxu0
        %v1235 = vadd.f32 %v1187, %v1234
        %v1236 = vpop.f32.mrb[0].mxu0
        %v1237 = vpop.f32.mrb[0].mxu0
        %v1238 = vpop.f32.mrb[0].mxu0
        %1239 = vdwg.mxu0
        %s1240 = scalar_lea.vmem %s8, 32
        %v1241 = vld [vmem:[%s1240] sm:$0xf]
        %v1242 = vld [vmem:[%s1240 + $0x4] sm:$0xf]
        %v1243 = vld [vmem:[%s1240 + $0x8] sm:$0xf]
        %v1244 = vld [vmem:[%s1240 + $0xc] sm:$0xf]
        %v1245 = vld [vmem:[%s9 + $0x2] sm:$0x1]
        %v1246 = vlaneseq
        %v1247 = vshrl.u32 %v1246, 7
        %v1248 = vsub.s32 0, %v1247
        %v1249 = vrot.slane %v1245, %v1248
        %v1254 = vunpack.c.l.b16 %v1241
        %v1255 = vunpack.c.l.b16 %v1242
        %v1256 = vunpack.c.l.b16 %v1243
        %v1257 = vunpack.c.l.b16 %v1244
        %v1258 = vpack.c.b16 %v1255, %v1254
        %v1259 = vpack.c.b16 %v1257, %v1256
        %1262 = vmatprep.subr.bf16.mxu0 0
        %1263 = vmatpush1.bf16.msra.mxu0 %v1258
        %1264 = vmatprep.subr.bf16.mxu0 0
        %1265 = vmatpush1.bf16.msra.mxu0 %v1259
        %1266 = vmatprep.subr.bf16.mxu0 0
        %1267 = vmatpush1.bf16.msra.mxu0 0
        %1268 = vmatprep.subr.bf16.mxu0 0
        %1269 = vmatpush1.bf16.msra.mxu0 0
        %1270 = vmatprep.subr.bf16.mxu0 0
        %1271 = vmatpush1.bf16.msra.mxu0 0
        %1272 = vmatprep.subr.bf16.mxu0 0
        %1273 = vmatpush1.bf16.msra.mxu0 0
        %1274 = vmatprep.subr.bf16.mxu0 0
        %1275 = vmatpush1.bf16.msra.mxu0 0
        %1276 = vmatprep.subr.bf16.mxu0 0
        %1277 = vmatpush1.bf16.msra.mxu0 0
        %1278 = vmatprep.subr.bf16.mxu0 0
        %1279 = vmatpush1.bf16.msra.mxu0 0
        %1280 = vmatprep.subr.bf16.mxu0 0
        %1281 = vmatpush1.bf16.msra.mxu0 0
        %1282 = vmatprep.subr.bf16.mxu0 0
        %1283 = vmatpush1.bf16.msra.mxu0 0
        %1284 = vmatprep.subr.bf16.mxu0 0
        %1285 = vmatpush1.bf16.msra.mxu0 0
        %1286 = vmatprep.subr.bf16.mxu0 0
        %1287 = vmatpush1.bf16.msra.mxu0 0
        %1288 = vmatprep.subr.bf16.mxu0 0
        %1289 = vmatpush1.bf16.msra.mxu0 0
        %1290 = vmatprep.subr.bf16.mxu0 0
        %1291 = vmatpush1.bf16.msra.mxu0 0
        %1292 = vmatprep.subr.bf16.mxu0 0
        %1293 = vmatpush1.bf16.msra.mxu0 0
        %1294 = vmatprep.mubr.bf16.mxu0 0
        %1295 = vmatmul.mubr.bf16.gmra.mrb[0].mxu0 %v766
        %v1296 = vpop.f32.mrb[0].mxu0
        %v1297 = vadd.f32 %v1249, %v1296
        %v1298 = vpop.f32.mrb[0].mxu0
        %v1299 = vpop.f32.mrb[0].mxu0
        %v1300 = vpop.f32.mrb[0].mxu0
        %1301 = vdwg.mxu0
        %s1302 = scalar_lea.vmem %s4, 48
        %v1303 = vld [vmem:[%s1302] sm:$0xf]
        %v1304 = vld [vmem:[%s1302 + $0x4] sm:$0xf]
        %v1305 = vld [vmem:[%s1302 + $0x8] sm:$0xf]
        %v1306 = vld [vmem:[%s1302 + $0xc] sm:$0xf]
        %v1307 = vld [vmem:[%s5 + $0x3] sm:$0x1]
        %v1308 = vlaneseq
        %v1309 = vshrl.u32 %v1308, 7
        %v1310 = vsub.s32 0, %v1309
        %v1311 = vrot.slane %v1307, %v1310
        %v1316 = vunpack.c.l.b16 %v1303
        %v1317 = vunpack.c.l.b16 %v1304
        %v1318 = vunpack.c.l.b16 %v1305
        %v1319 = vunpack.c.l.b16 %v1306
        %v1320 = vpack.c.b16 %v1317, %v1316
        %v1321 = vpack.c.b16 %v1319, %v1318
        %1324 = vmatprep.subr.bf16.mxu0 0
        %1325 = vmatpush1.bf16.msra.mxu0 %v1320
        %1326 = vmatprep.subr.bf16.mxu0 0
        %1327 = vmatpush1.bf16.msra.mxu0 %v1321
        %1328 = vmatprep.subr.bf16.mxu0 0
        %1329 = vmatpush1.bf16.msra.mxu0 0
        %1330 = vmatprep.subr.bf16.mxu0 0
        %1331 = vmatpush1.bf16.msra.mxu0 0
        %1332 = vmatprep.subr.bf16.mxu0 0
        %1333 = vmatpush1.bf16.msra.mxu0 0
        %1334 = vmatprep.subr.bf16.mxu0 0
        %1335 = vmatpush1.bf16.msra.mxu0 0
        %1336 = vmatprep.subr.bf16.mxu0 0
        %1337 = vmatpush1.bf16.msra.mxu0 0
        %1338 = vmatprep.subr.bf16.mxu0 0
        %1339 = vmatpush1.bf16.msra.mxu0 0
        %1340 = vmatprep.subr.bf16.mxu0 0
        %1341 = vmatpush1.bf16.msra.mxu0 0
        %1342 = vmatprep.subr.bf16.mxu0 0
        %1343 = vmatpush1.bf16.msra.mxu0 0
        %1344 = vmatprep.subr.bf16.mxu0 0
        %1345 = vmatpush1.bf16.msra.mxu0 0
        %1346 = vmatprep.subr.bf16.mxu0 0
        %1347 = vmatpush1.bf16.msra.mxu0 0
        %1348 = vmatprep.subr.bf16.mxu0 0
        %1349 = vmatpush1.bf16.msra.mxu0 0
        %1350 = vmatprep.subr.bf16.mxu0 0
        %1351 = vmatpush1.bf16.msra.mxu0 0
        %1352 = vmatprep.subr.bf16.mxu0 0
        %1353 = vmatpush1.bf16.msra.mxu0 0
        %1354 = vmatprep.subr.bf16.mxu0 0
        %1355 = vmatpush1.bf16.msra.mxu0 0
        %1356 = vmatprep.mubr.bf16.mxu0 0
        %1357 = vmatmul.mubr.bf16.gmra.mrb[0].mxu0 %v766
        %v1358 = vpop.f32.mrb[0].mxu0
        %v1359 = vadd.f32 %v1311, %v1358
        %v1360 = vpop.f32.mrb[0].mxu0
        %v1361 = vpop.f32.mrb[0].mxu0
        %v1362 = vpop.f32.mrb[0].mxu0
        %1363 = vdwg.mxu0
        %s1364 = scalar_lea.vmem %s6, 48
        %v1365 = vld [vmem:[%s1364] sm:$0xf]
        %v1366 = vld [vmem:[%s1364 + $0x4] sm:$0xf]
        %v1367 = vld [vmem:[%s1364 + $0x8] sm:$0xf]
        %v1368 = vld [vmem:[%s1364 + $0xc] sm:$0xf]
        %v1369 = vld [vmem:[%s7 + $0x3] sm:$0x1]
        %v1370 = vlaneseq
        %v1371 = vshrl.u32 %v1370, 7
        %v1372 = vsub.s32 0, %v1371
        %v1373 = vrot.slane %v1369, %v1372
        %v1378 = vunpack.c.l.b16 %v1365
        %v1379 = vunpack.c.l.b16 %v1366
        %v1380 = vunpack.c.l.b16 %v1367
        %v1381 = vunpack.c.l.b16 %v1368
        %v1382 = vpack.c.b16 %v1379, %v1378
        %v1383 = vpack.c.b16 %v1381, %v1380
        %1386 = vmatprep.subr.bf16.mxu0 0
        %1387 = vmatpush1.bf16.msra.mxu0 %v1382
        %1388 = vmatprep.subr.bf16.mxu0 0
        %1389 = vmatpush1.bf16.msra.mxu0 %v1383
        %1390 = vmatprep.subr.bf16.mxu0 0
        %1391 = vmatpush1.bf16.msra.mxu0 0
        %1392 = vmatprep.subr.bf16.mxu0 0
        %1393 = vmatpush1.bf16.msra.mxu0 0
        %1394 = vmatprep.subr.bf16.mxu0 0
        %1395 = vmatpush1.bf16.msra.mxu0 0
        %1396 = vmatprep.subr.bf16.mxu0 0
        %1397 = vmatpush1.bf16.msra.mxu0 0
        %1398 = vmatprep.subr.bf16.mxu0 0
        %1399 = vmatpush1.bf16.msra.mxu0 0
        %1400 = vmatprep.subr.bf16.mxu0 0
        %1401 = vmatpush1.bf16.msra.mxu0 0
        %1402 = vmatprep.subr.bf16.mxu0 0
        %1403 = vmatpush1.bf16.msra.mxu0 0
        %1404 = vmatprep.subr.bf16.mxu0 0
        %1405 = vmatpush1.bf16.msra.mxu0 0
        %1406 = vmatprep.subr.bf16.mxu0 0
        %1407 = vmatpush1.bf16.msra.mxu0 0
        %1408 = vmatprep.subr.bf16.mxu0 0
        %1409 = vmatpush1.bf16.msra.mxu0 0
        %1410 = vmatprep.subr.bf16.mxu0 0
        %1411 = vmatpush1.bf16.msra.mxu0 0
        %1412 = vmatprep.subr.bf16.mxu0 0
        %1413 = vmatpush1.bf16.msra.mxu0 0
        %1414 = vmatprep.subr.bf16.mxu0 0
        %1415 = vmatpush1.bf16.msra.mxu0 0
        %1416 = vmatprep.subr.bf16.mxu0 0
        %1417 = vmatpush1.bf16.msra.mxu0 0
        %1418 = vmatprep.mubr.bf16.mxu0 0
        %1419 = vmatmul.mubr.bf16.gmra.mrb[0].mxu0 %v766
        %v1420 = vpop.f32.mrb[0].mxu0
        %v1421 = vadd.f32 %v1373, %v1420
        %v1422 = vpop.f32.mrb[0].mxu0
        %v1423 = vpop.f32.mrb[0].mxu0
        %v1424 = vpop.f32.mrb[0].mxu0
        %1425 = vdwg.mxu0
        %s1426 = scalar_lea.vmem %s8, 48
        %v1427 = vld [vmem:[%s1426] sm:$0xf]
        %v1428 = vld [vmem:[%s1426 + $0x4] sm:$0xf]
        %v1429 = vld [vmem:[%s1426 + $0x8] sm:$0xf]
        %v1430 = vld [vmem:[%s1426 + $0xc] sm:$0xf]
        %v1431 = vld [vmem:[%s9 + $0x3] sm:$0x1]
        %v1432 = vlaneseq
        %v1433 = vshrl.u32 %v1432, 7
        %v1434 = vsub.s32 0, %v1433
        %v1435 = vrot.slane %v1431, %v1434
        %v1440 = vunpack.c.l.b16 %v1427
        %v1441 = vunpack.c.l.b16 %v1428
        %v1442 = vunpack.c.l.b16 %v1429
        %v1443 = vunpack.c.l.b16 %v1430
        %v1444 = vpack.c.b16 %v1441, %v1440
        %v1445 = vpack.c.b16 %v1443, %v1442
        %1448 = vmatprep.subr.bf16.mxu0 0
        %1449 = vmatpush1.bf16.msra.mxu0 %v1444
        %1450 = vmatprep.subr.bf16.mxu0 0
        %1451 = vmatpush1.bf16.msra.mxu0 %v1445
        %1452 = vmatprep.subr.bf16.mxu0 0
        %1453 = vmatpush1.bf16.msra.mxu0 0
        %1454 = vmatprep.subr.bf16.mxu0 0
        %1455 = vmatpush1.bf16.msra.mxu0 0
        %1456 = vmatprep.subr.bf16.mxu0 0
        %1457 = vmatpush1.bf16.msra.mxu0 0
        %1458 = vmatprep.subr.bf16.mxu0 0
        %1459 = vmatpush1.bf16.msra.mxu0 0
        %1460 = vmatprep.subr.bf16.mxu0 0
        %1461 = vmatpush1.bf16.msra.mxu0 0
        %1462 = vmatprep.subr.bf16.mxu0 0
        %1463 = vmatpush1.bf16.msra.mxu0 0
        %1464 = vmatprep.subr.bf16.mxu0 0
        %1465 = vmatpush1.bf16.msra.mxu0 0
        %1466 = vmatprep.subr.bf16.mxu0 0
        %1467 = vmatpush1.bf16.msra.mxu0 0
        %1468 = vmatprep.subr.bf16.mxu0 0
        %1469 = vmatpush1.bf16.msra.mxu0 0
        %1470 = vmatprep.subr.bf16.mxu0 0
        %1471 = vmatpush1.bf16.msra.mxu0 0
        %1472 = vmatprep.subr.bf16.mxu0 0
        %1473 = vmatpush1.bf16.msra.mxu0 0
        %1474 = vmatprep.subr.bf16.mxu0 0
        %1475 = vmatpush1.bf16.msra.mxu0 0
        %1476 = vmatprep.subr.bf16.mxu0 0
        %1477 = vmatpush1.bf16.msra.mxu0 0
        %1478 = vmatprep.subr.bf16.mxu0 0
        %1479 = vmatpush1.bf16.msra.mxu0 0
        %1480 = vmatprep.mubr.bf16.mxu0 0
        %1481 = vmatmul.mubr.bf16.gmra.mrb[0].mxu0 %v766
        %v1482 = vpop.f32.mrb[0].mxu0
        %v1483 = vadd.f32 %v1435, %v1482
        %v1484 = vpop.f32.mrb[0].mxu0
        %v1485 = vpop.f32.mrb[0].mxu0
        %v1486 = vpop.f32.mrb[0].mxu0
        %1487 = vdwg.mxu0
        %v1488 = vpack.c.bf16 %v803, %v803
        %v1489 = vpack.c.bf16 %v987, %v987
        %v1490 = vpack.c.bf16 %v1173, %v1173
        %v1491 = vpack.c.bf16 %v1359, %v1359
        %v1492 = vpack.c.bf16 %v864, %v864
        %v1493 = vpack.c.bf16 %v1049, %v1049
        %v1494 = vpack.c.bf16 %v1235, %v1235
        %v1495 = vpack.c.bf16 %v1421, %v1421
        %v1496 = vpack.c.bf16 %v925, %v925
        %v1497 = vpack.c.bf16 %v1111, %v1111
        %v1498 = vpack.c.bf16 %v1297, %v1297
        %v1499 = vpack.c.bf16 %v1483, %v1483
        %vm1500 = vcmask 64512
        %v1502 = vsel %vm1500, %v1488, 0
        %v1505 = vsel %vm1500, %v1492, 0
        %1507 = vmatprep.subr.bf16.mxu0 0
        %1508 = vmatpush1.bf16.xpose.msra.mxu0 %v1505
        %1509 = vmatprep.subr.bf16.mxu0 0
        %1510 = vmatpush1.bf16.xpose.msra.mxu0 0
        %1511 = vmatprep.subr.bf16.mxu0 0
        %1512 = vmatpush1.bf16.xpose.msra.mxu0 0
        %1513 = vmatprep.subr.bf16.mxu0 0
        %1514 = vmatpush1.bf16.xpose.msra.mxu0 0
        %1515 = vmatprep.subr.bf16.mxu0 0
        %1516 = vmatpush1.bf16.xpose.msra.mxu0 0
        %1517 = vmatprep.subr.bf16.mxu0 0
        %1518 = vmatpush1.bf16.xpose.msra.mxu0 0
        %1519 = vmatprep.subr.bf16.mxu0 0
        %1520 = vmatpush1.bf16.xpose.msra.mxu0 0
        %1521 = vmatprep.subr.bf16.mxu0 0
        %1522 = vmatpush1.bf16.xpose.msra.mxu0 0
        %1523 = vmatprep.subr.bf16.mxu0 0
        %1524 = vmatpush1.bf16.xpose.msra.mxu0 0
        %1525 = vmatprep.subr.bf16.mxu0 0
        %1526 = vmatpush1.bf16.xpose.msra.mxu0 0
        %1527 = vmatprep.subr.bf16.mxu0 0
        %1528 = vmatpush1.bf16.xpose.msra.mxu0 0
        %1529 = vmatprep.subr.bf16.mxu0 0
        %1530 = vmatpush1.bf16.xpose.msra.mxu0 0
        %1531 = vmatprep.subr.bf16.mxu0 0
        %1532 = vmatpush1.bf16.xpose.msra.mxu0 0
        %1533 = vmatprep.subr.bf16.mxu0 0
        %1534 = vmatpush1.bf16.xpose.msra.mxu0 0
        %1535 = vmatprep.subr.bf16.mxu0 0
        %1536 = vmatpush1.bf16.xpose.msra.mxu0 0
        %1537 = vmatprep.subr.bf16.mxu0 0
        %1538 = vmatpush1.bf16.xpose.msra.mxu0 0
        %1539 = vmatprep.mubr.bf16.mxu0 0
        %1540 = vmatmul.mubr.bf16.gmra.mrb[0].mxu0 %v1502
        %v1541 = vpop.f32.mrb[0].mxu0
        %v1542 = vadd.f32 0.0, %v1541
        %v1543 = vpop.f32.mrb[0].mxu0
        %v1544 = vpop.f32.mrb[0].mxu0
        %v1545 = vpop.f32.mrb[0].mxu0
        %1546 = vdwg.mxu0
        %v1548 = vsel %vm1500, %v1489, 0
        %v1551 = vsel %vm1500, %v1493, 0
        %1553 = vmatprep.subr.bf16.mxu0 0
        %1554 = vmatpush1.bf16.xpose.msra.mxu0 %v1551
        %1555 = vmatprep.subr.bf16.mxu0 0
        %1556 = vmatpush1.bf16.xpose.msra.mxu0 0
        %1557 = vmatprep.subr.bf16.mxu0 0
        %1558 = vmatpush1.bf16.xpose.msra.mxu0 0
        %1559 = vmatprep.subr.bf16.mxu0 0
        %1560 = vmatpush1.bf16.xpose.msra.mxu0 0
        %1561 = vmatprep.subr.bf16.mxu0 0
        %1562 = vmatpush1.bf16.xpose.msra.mxu0 0
        %1563 = vmatprep.subr.bf16.mxu0 0
        %1564 = vmatpush1.bf16.xpose.msra.mxu0 0
        %1565 = vmatprep.subr.bf16.mxu0 0
        %1566 = vmatpush1.bf16.xpose.msra.mxu0 0
        %1567 = vmatprep.subr.bf16.mxu0 0
        %1568 = vmatpush1.bf16.xpose.msra.mxu0 0
        %1569 = vmatprep.subr.bf16.mxu0 0
        %1570 = vmatpush1.bf16.xpose.msra.mxu0 0
        %1571 = vmatprep.subr.bf16.mxu0 0
        %1572 = vmatpush1.bf16.xpose.msra.mxu0 0
        %1573 = vmatprep.subr.bf16.mxu0 0
        %1574 = vmatpush1.bf16.xpose.msra.mxu0 0
        %1575 = vmatprep.subr.bf16.mxu0 0
        %1576 = vmatpush1.bf16.xpose.msra.mxu0 0
        %1577 = vmatprep.subr.bf16.mxu0 0
        %1578 = vmatpush1.bf16.xpose.msra.mxu0 0
        %1579 = vmatprep.subr.bf16.mxu0 0
        %1580 = vmatpush1.bf16.xpose.msra.mxu0 0
        %1581 = vmatprep.subr.bf16.mxu0 0
        %1582 = vmatpush1.bf16.xpose.msra.mxu0 0
        %1583 = vmatprep.subr.bf16.mxu0 0
        %1584 = vmatpush1.bf16.xpose.msra.mxu0 0
        %1585 = vmatprep.mubr.bf16.mxu0 0
        %1586 = vmatmul.mubr.bf16.gmra.mrb[0].mxu0 %v1548
        %v1587 = vpop.f32.mrb[0].mxu0
        %v1588 = vadd.f32 0.0, %v1587
        %v1589 = vpop.f32.mrb[0].mxu0
        %v1590 = vpop.f32.mrb[0].mxu0
        %v1591 = vpop.f32.mrb[0].mxu0
        %1592 = vdwg.mxu0
        %v1594 = vsel %vm1500, %v1490, 0
        %v1597 = vsel %vm1500, %v1494, 0
        %1599 = vmatprep.subr.bf16.mxu0 0
        %1600 = vmatpush1.bf16.xpose.msra.mxu0 %v1597
        %1601 = vmatprep.subr.bf16.mxu0 0
        %1602 = vmatpush1.bf16.xpose.msra.mxu0 0
        %1603 = vmatprep.subr.bf16.mxu0 0
        %1604 = vmatpush1.bf16.xpose.msra.mxu0 0
        %1605 = vmatprep.subr.bf16.mxu0 0
        %1606 = vmatpush1.bf16.xpose.msra.mxu0 0
        %1607 = vmatprep.subr.bf16.mxu0 0
        %1608 = vmatpush1.bf16.xpose.msra.mxu0 0
        %1609 = vmatprep.subr.bf16.mxu0 0
        %1610 = vmatpush1.bf16.xpose.msra.mxu0 0
        %1611 = vmatprep.subr.bf16.mxu0 0
        %1612 = vmatpush1.bf16.xpose.msra.mxu0 0
        %1613 = vmatprep.subr.bf16.mxu0 0
        %1614 = vmatpush1.bf16.xpose.msra.mxu0 0
        %1615 = vmatprep.subr.bf16.mxu0 0
        %1616 = vmatpush1.bf16.xpose.msra.mxu0 0
        %1617 = vmatprep.subr.bf16.mxu0 0
        %1618 = vmatpush1.bf16.xpose.msra.mxu0 0
        %1619 = vmatprep.subr.bf16.mxu0 0
        %1620 = vmatpush1.bf16.xpose.msra.mxu0 0
        %1621 = vmatprep.subr.bf16.mxu0 0
        %1622 = vmatpush1.bf16.xpose.msra.mxu0 0
        %1623 = vmatprep.subr.bf16.mxu0 0
        %1624 = vmatpush1.bf16.xpose.msra.mxu0 0
        %1625 = vmatprep.subr.bf16.mxu0 0
        %1626 = vmatpush1.bf16.xpose.msra.mxu0 0
        %1627 = vmatprep.subr.bf16.mxu0 0
        %1628 = vmatpush1.bf16.xpose.msra.mxu0 0
        %1629 = vmatprep.subr.bf16.mxu0 0
        %1630 = vmatpush1.bf16.xpose.msra.mxu0 0
        %1631 = vmatprep.mubr.bf16.mxu0 0
        %1632 = vmatmul.mubr.bf16.gmra.mrb[0].mxu0 %v1594
        %v1633 = vpop.f32.mrb[0].mxu0
        %v1634 = vadd.f32 0.0, %v1633
        %v1635 = vpop.f32.mrb[0].mxu0
        %v1636 = vpop.f32.mrb[0].mxu0
        %v1637 = vpop.f32.mrb[0].mxu0
        %1638 = vdwg.mxu0
        %v1640 = vsel %vm1500, %v1491, 0
        %v1643 = vsel %vm1500, %v1495, 0
        %1645 = vmatprep.subr.bf16.mxu0 0
        %1646 = vmatpush1.bf16.xpose.msra.mxu0 %v1643
        %1647 = vmatprep.subr.bf16.mxu0 0
        %1648 = vmatpush1.bf16.xpose.msra.mxu0 0
        %1649 = vmatprep.subr.bf16.mxu0 0
        %1650 = vmatpush1.bf16.xpose.msra.mxu0 0
        %1651 = vmatprep.subr.bf16.mxu0 0
        %1652 = vmatpush1.bf16.xpose.msra.mxu0 0
        %1653 = vmatprep.subr.bf16.mxu0 0
        %1654 = vmatpush1.bf16.xpose.msra.mxu0 0
        %1655 = vmatprep.subr.bf16.mxu0 0
        %1656 = vmatpush1.bf16.xpose.msra.mxu0 0
        %1657 = vmatprep.subr.bf16.mxu0 0
        %1658 = vmatpush1.bf16.xpose.msra.mxu0 0
        %1659 = vmatprep.subr.bf16.mxu0 0
        %1660 = vmatpush1.bf16.xpose.msra.mxu0 0
        %1661 = vmatprep.subr.bf16.mxu0 0
        %1662 = vmatpush1.bf16.xpose.msra.mxu0 0
        %1663 = vmatprep.subr.bf16.mxu0 0
        %1664 = vmatpush1.bf16.xpose.msra.mxu0 0
        %1665 = vmatprep.subr.bf16.mxu0 0
        %1666 = vmatpush1.bf16.xpose.msra.mxu0 0
        %1667 = vmatprep.subr.bf16.mxu0 0
        %1668 = vmatpush1.bf16.xpose.msra.mxu0 0
        %1669 = vmatprep.subr.bf16.mxu0 0
        %1670 = vmatpush1.bf16.xpose.msra.mxu0 0
        %1671 = vmatprep.subr.bf16.mxu0 0
        %1672 = vmatpush1.bf16.xpose.msra.mxu0 0
        %1673 = vmatprep.subr.bf16.mxu0 0
        %1674 = vmatpush1.bf16.xpose.msra.mxu0 0
        %1675 = vmatprep.subr.bf16.mxu0 0
        %1676 = vmatpush1.bf16.xpose.msra.mxu0 0
        %1677 = vmatprep.mubr.bf16.mxu0 0
        %1678 = vmatmul.mubr.bf16.gmra.mrb[0].mxu0 %v1640
        %v1679 = vpop.f32.mrb[0].mxu0
        %v1680 = vadd.f32 0.0, %v1679
        %v1681 = vpop.f32.mrb[0].mxu0
        %v1682 = vpop.f32.mrb[0].mxu0
        %v1683 = vpop.f32.mrb[0].mxu0
        %1684 = vdwg.mxu0
        %v1685 = vmul.f32 %v1542, 0.35355338
        %v1686 = vmul.f32 %v1588, 0.35355338
        %v1687 = vmul.f32 %v1634, 0.35355338
        %v1688 = vmul.f32 %v1680, 0.35355338
        %v1689 = vsel %vm1500, %v1685, -inf
        %1690 = vmax.xlane.f32.xlu0 %v1689
        %v1691 = vpop.xlane.xlu0 %1690
        %v1692 = vsel %vm1500, %v1686, -inf
        %1693 = vmax.xlane.f32.xlu0 %v1692
        %v1694 = vpop.xlane.xlu0 %1693
        %v1695 = vsel %vm1500, %v1687, -inf
        %1696 = vmax.xlane.f32.xlu0 %v1695
        %v1697 = vpop.xlane.xlu0 %1696
        %v1698 = vsel %vm1500, %v1688, -inf
        %1699 = vmax.xlane.f32.xlu0 %v1698
        %v1700 = vpop.xlane.xlu0 %1699
        %v1701 = vsub.f32 %v1685, %v1691
        %v1702 = vsub.f32 %v1686, %v1694
        %v1703 = vsub.f32 %v1687, %v1697
        %v1704 = vsub.f32 %v1688, %v1700
        %v1705 = vmul.f32 %v1701, 1.442695
        %v1706 = vpow.pop %v1705
        %v1707 = vmul.f32 %v1702, 1.442695
        %v1708 = vpow.pop %v1707
        %v1709 = vmul.f32 %v1703, 1.442695
        %v1710 = vpow.pop %v1709
        %v1711 = vmul.f32 %v1704, 1.442695
        %v1712 = vpow.pop %v1711
        %v1713 = vsel %vm1500, %v1706, 0.0
        %1714 = vadd.xlane.f32.xlu0 %v1713
        %v1715 = vpop.xlane.xlu0 %1714
        %v1716 = vsel %vm1500, %v1708, 0.0
        %1717 = vadd.xlane.f32.xlu0 %v1716
        %v1718 = vpop.xlane.xlu0 %1717
        %v1719 = vsel %vm1500, %v1710, 0.0
        %1720 = vadd.xlane.f32.xlu0 %v1719
        %v1721 = vpop.xlane.xlu0 %1720
        %v1722 = vsel %vm1500, %v1712, 0.0
        %1723 = vadd.xlane.f32.xlu0 %v1722
        %v1724 = vpop.xlane.xlu0 %1723
        %v1725 = vrcp.pop %v1715
        %v1726 = vrcp.pop %v1718
        %v1727 = vrcp.pop %v1721
        %v1728 = vrcp.pop %v1724
        %v1729 = vmul.f32 %v1706, %v1725
        %v1730 = vmul.f32 %v1708, %v1726
        %v1731 = vmul.f32 %v1710, %v1727
        %v1732 = vmul.f32 %v1712, %v1728
        %v1733 = vpack.c.bf16 %v1729, %v1729
        %v1734 = vpack.c.bf16 %v1730, %v1730
        %v1735 = vpack.c.bf16 %v1731, %v1731
        %v1736 = vpack.c.bf16 %v1732, %v1732
        %v1738 = vsel %vm1500, %v1733, 0
        %vm1740 = vcmask 1043456
        %v1742 = vsel %vm1740, %v1496, 0
        %1744 = vmatprep.subr.bf16.mxu0 0
        %1745 = vmatpush1.bf16.msra.mxu0 %v1742
        %1746 = vmatprep.subr.bf16.mxu0 0
        %1747 = vmatpush1.bf16.msra.mxu0 0
        %1748 = vmatprep.subr.bf16.mxu0 0
        %1749 = vmatpush1.bf16.msra.mxu0 0
        %1750 = vmatprep.subr.bf16.mxu0 0
        %1751 = vmatpush1.bf16.msra.mxu0 0
        %1752 = vmatprep.subr.bf16.mxu0 0
        %1753 = vmatpush1.bf16.msra.mxu0 0
        %1754 = vmatprep.subr.bf16.mxu0 0
        %1755 = vmatpush1.bf16.msra.mxu0 0
        %1756 = vmatprep.subr.bf16.mxu0 0
        %1757 = vmatpush1.bf16.msra.mxu0 0
        %1758 = vmatprep.subr.bf16.mxu0 0
        %1759 = vmatpush1.bf16.msra.mxu0 0
        %1760 = vmatprep.subr.bf16.mxu0 0
        %1761 = vmatpush1.bf16.msra.mxu0 0
        %1762 = vmatprep.subr.bf16.mxu0 0
        %1763 = vmatpush1.bf16.msra.mxu0 0
        %1764 = vmatprep.subr.bf16.mxu0 0
        %1765 = vmatpush1.bf16.msra.mxu0 0
        %1766 = vmatprep.subr.bf16.mxu0 0
        %1767 = vmatpush1.bf16.msra.mxu0 0
        %1768 = vmatprep.subr.bf16.mxu0 0
        %1769 = vmatpush1.bf16.msra.mxu0 0
        %1770 = vmatprep.subr.bf16.mxu0 0
        %1771 = vmatpush1.bf16.msra.mxu0 0
        %1772 = vmatprep.subr.bf16.mxu0 0
        %1773 = vmatpush1.bf16.msra.mxu0 0
        %1774 = vmatprep.subr.bf16.mxu0 0
        %1775 = vmatpush1.bf16.msra.mxu0 0
        %1776 = vmatprep.mubr.bf16.mxu0 0
        %1777 = vmatmul.mubr.bf16.gmra.mrb[0].mxu0 %v1738
        %v1778 = vpop.f32.mrb[0].mxu0
        %v1779 = vadd.f32 0.0, %v1778
        %v1780 = vpop.f32.mrb[0].mxu0
        %v1781 = vpop.f32.mrb[0].mxu0
        %v1782 = vpop.f32.mrb[0].mxu0
        %1783 = vdwg.mxu0
        %v1785 = vsel %vm1500, %v1734, 0
        %v1788 = vsel %vm1740, %v1497, 0
        %1790 = vmatprep.subr.bf16.mxu0 0
        %1791 = vmatpush1.bf16.msra.mxu0 %v1788
        %1792 = vmatprep.subr.bf16.mxu0 0
        %1793 = vmatpush1.bf16.msra.mxu0 0
        %1794 = vmatprep.subr.bf16.mxu0 0
        %1795 = vmatpush1.bf16.msra.mxu0 0
        %1796 = vmatprep.subr.bf16.mxu0 0
        %1797 = vmatpush1.bf16.msra.mxu0 0
        %1798 = vmatprep.subr.bf16.mxu0 0
        %1799 = vmatpush1.bf16.msra.mxu0 0
        %1800 = vmatprep.subr.bf16.mxu0 0
        %1801 = vmatpush1.bf16.msra.mxu0 0
        %1802 = vmatprep.subr.bf16.mxu0 0
        %1803 = vmatpush1.bf16.msra.mxu0 0
        %1804 = vmatprep.subr.bf16.mxu0 0
        %1805 = vmatpush1.bf16.msra.mxu0 0
        %1806 = vmatprep.subr.bf16.mxu0 0
        %1807 = vmatpush1.bf16.msra.mxu0 0
        %1808 = vmatprep.subr.bf16.mxu0 0
        %1809 = vmatpush1.bf16.msra.mxu0 0
        %1810 = vmatprep.subr.bf16.mxu0 0
        %1811 = vmatpush1.bf16.msra.mxu0 0
        %1812 = vmatprep.subr.bf16.mxu0 0
        %1813 = vmatpush1.bf16.msra.mxu0 0
        %1814 = vmatprep.subr.bf16.mxu0 0
        %1815 = vmatpush1.bf16.msra.mxu0 0
        %1816 = vmatprep.subr.bf16.mxu0 0
        %1817 = vmatpush1.bf16.msra.mxu0 0
        %1818 = vmatprep.subr.bf16.mxu0 0
        %1819 = vmatpush1.bf16.msra.mxu0 0
        %1820 = vmatprep.subr.bf16.mxu0 0
        %1821 = vmatpush1.bf16.msra.mxu0 0
        %1822 = vmatprep.mubr.bf16.mxu0 0
        %1823 = vmatmul.mubr.bf16.gmra.mrb[0].mxu0 %v1785
        %v1824 = vpop.f32.mrb[0].mxu0
        %v1825 = vadd.f32 0.0, %v1824
        %v1826 = vpop.f32.mrb[0].mxu0
        %v1827 = vpop.f32.mrb[0].mxu0
        %v1828 = vpop.f32.mrb[0].mxu0
        %1829 = vdwg.mxu0
        %v1831 = vsel %vm1500, %v1735, 0
        %v1834 = vsel %vm1740, %v1498, 0
        %1836 = vmatprep.subr.bf16.mxu0 0
        %1837 = vmatpush1.bf16.msra.mxu0 %v1834
        %1838 = vmatprep.subr.bf16.mxu0 0
        %1839 = vmatpush1.bf16.msra.mxu0 0
        %1840 = vmatprep.subr.bf16.mxu0 0
        %1841 = vmatpush1.bf16.msra.mxu0 0
        %1842 = vmatprep.subr.bf16.mxu0 0
        %1843 = vmatpush1.bf16.msra.mxu0 0
        %1844 = vmatprep.subr.bf16.mxu0 0
        %1845 = vmatpush1.bf16.msra.mxu0 0
        %1846 = vmatprep.subr.bf16.mxu0 0
        %1847 = vmatpush1.bf16.msra.mxu0 0
        %1848 = vmatprep.subr.bf16.mxu0 0
        %1849 = vmatpush1.bf16.msra.mxu0 0
        %1850 = vmatprep.subr.bf16.mxu0 0
        %1851 = vmatpush1.bf16.msra.mxu0 0
        %1852 = vmatprep.subr.bf16.mxu0 0
        %1853 = vmatpush1.bf16.msra.mxu0 0
        %1854 = vmatprep.subr.bf16.mxu0 0
        %1855 = vmatpush1.bf16.msra.mxu0 0
        %1856 = vmatprep.subr.bf16.mxu0 0
        %1857 = vmatpush1.bf16.msra.mxu0 0
        %1858 = vmatprep.subr.bf16.mxu0 0
        %1859 = vmatpush1.bf16.msra.mxu0 0
        %1860 = vmatprep.subr.bf16.mxu0 0
        %1861 = vmatpush1.bf16.msra.mxu0 0
        %1862 = vmatprep.subr.bf16.mxu0 0
        %1863 = vmatpush1.bf16.msra.mxu0 0
        %1864 = vmatprep.subr.bf16.mxu0 0
        %1865 = vmatpush1.bf16.msra.mxu0 0
        %1866 = vmatprep.subr.bf16.mxu0 0
        %1867 = vmatpush1.bf16.msra.mxu0 0
        %1868 = vmatprep.mubr.bf16.mxu0 0
        %1869 = vmatmul.mubr.bf16.gmra.mrb[0].mxu0 %v1831
        %v1870 = vpop.f32.mrb[0].mxu0
        %v1871 = vadd.f32 0.0, %v1870
        %v1872 = vpop.f32.mrb[0].mxu0
        %v1873 = vpop.f32.mrb[0].mxu0
        %v1874 = vpop.f32.mrb[0].mxu0
        %1875 = vdwg.mxu0
        %v1877 = vsel %vm1500, %v1736, 0
        %v1880 = vsel %vm1740, %v1499, 0
        %1882 = vmatprep.subr.bf16.mxu0 0
        %1883 = vmatpush1.bf16.msra.mxu0 %v1880
        %1884 = vmatprep.subr.bf16.mxu0 0
        %1885 = vmatpush1.bf16.msra.mxu0 0
        %1886 = vmatprep.subr.bf16.mxu0 0
        %1887 = vmatpush1.bf16.msra.mxu0 0
        %1888 = vmatprep.subr.bf16.mxu0 0
        %1889 = vmatpush1.bf16.msra.mxu0 0
        %1890 = vmatprep.subr.bf16.mxu0 0
        %1891 = vmatpush1.bf16.msra.mxu0 0
        %1892 = vmatprep.subr.bf16.mxu0 0
        %1893 = vmatpush1.bf16.msra.mxu0 0
        %1894 = vmatprep.subr.bf16.mxu0 0
        %1895 = vmatpush1.bf16.msra.mxu0 0
        %1896 = vmatprep.subr.bf16.mxu0 0
        %1897 = vmatpush1.bf16.msra.mxu0 0
        %1898 = vmatprep.subr.bf16.mxu0 0
        %1899 = vmatpush1.bf16.msra.mxu0 0
        %1900 = vmatprep.subr.bf16.mxu0 0
        %1901 = vmatpush1.bf16.msra.mxu0 0
        %1902 = vmatprep.subr.bf16.mxu0 0
        %1903 = vmatpush1.bf16.msra.mxu0 0
        %1904 = vmatprep.subr.bf16.mxu0 0
        %1905 = vmatpush1.bf16.msra.mxu0 0
        %1906 = vmatprep.subr.bf16.mxu0 0
        %1907 = vmatpush1.bf16.msra.mxu0 0
        %1908 = vmatprep.subr.bf16.mxu0 0
        %1909 = vmatpush1.bf16.msra.mxu0 0
        %1910 = vmatprep.subr.bf16.mxu0 0
        %1911 = vmatpush1.bf16.msra.mxu0 0
        %1912 = vmatprep.subr.bf16.mxu0 0
        %1913 = vmatpush1.bf16.msra.mxu0 0
        %1914 = vmatprep.mubr.bf16.mxu0 0
        %1915 = vmatmul.mubr.bf16.gmra.mrb[0].mxu0 %v1877
        %v1916 = vpop.f32.mrb[0].mxu0
        %v1917 = vadd.f32 0.0, %v1916
        %v1918 = vpop.f32.mrb[0].mxu0
        %v1919 = vpop.f32.mrb[0].mxu0
        %v1920 = vpop.f32.mrb[0].mxu0
        %1921 = vdwg.mxu0
        %v1922 = vpack.c.bf16 %v1779, %v1779
        %v1923 = vpack.c.bf16 %v1825, %v1825
        %v1924 = vpack.c.bf16 %v1871, %v1871
        %v1925 = vpack.c.bf16 %v1917, %v1917
        %v1926 = vld [vmem:[%s10] sm:$0xf]
        %s1927 = scalar_lea.vmem %s10, 4
        %v1928 = vld [vmem:[%s1927] sm:$0xf]
        %v1930 = vsel %vm1500, %v1923, 0
        %v1933 = vsel %vm1740, %v1928, 0
        %1935 = vmatprep.subr.bf16.mxu0 0
        %1936 = vmatpush1.bf16.msra.mxu0 %v1933
        %1937 = vmatprep.subr.bf16.mxu0 0
        %1938 = vmatpush1.bf16.msra.mxu0 0
        %1939 = vmatprep.subr.bf16.mxu0 0
        %1940 = vmatpush1.bf16.msra.mxu0 0
        %1941 = vmatprep.subr.bf16.mxu0 0
        %1942 = vmatpush1.bf16.msra.mxu0 0
        %1943 = vmatprep.subr.bf16.mxu0 0
        %1944 = vmatpush1.bf16.msra.mxu0 0
        %1945 = vmatprep.subr.bf16.mxu0 0
        %1946 = vmatpush1.bf16.msra.mxu0 0
        %1947 = vmatprep.subr.bf16.mxu0 0
        %1948 = vmatpush1.bf16.msra.mxu0 0
        %1949 = vmatprep.subr.bf16.mxu0 0
        %1950 = vmatpush1.bf16.msra.mxu0 0
        %1951 = vmatprep.subr.bf16.mxu0 0
        %1952 = vmatpush1.bf16.msra.mxu0 0
        %1953 = vmatprep.subr.bf16.mxu0 0
        %1954 = vmatpush1.bf16.msra.mxu0 0
        %1955 = vmatprep.subr.bf16.mxu0 0
        %1956 = vmatpush1.bf16.msra.mxu0 0
        %1957 = vmatprep.subr.bf16.mxu0 0
        %1958 = vmatpush1.bf16.msra.mxu0 0
        %1959 = vmatprep.subr.bf16.mxu0 0
        %1960 = vmatpush1.bf16.msra.mxu0 0
        %1961 = vmatprep.subr.bf16.mxu0 0
        %1962 = vmatpush1.bf16.msra.mxu0 0
        %1963 = vmatprep.subr.bf16.mxu0 0
        %1964 = vmatpush1.bf16.msra.mxu0 0
        %1965 = vmatprep.subr.bf16.mxu0 0
        %1966 = vmatpush1.bf16.msra.mxu0 0
        %1967 = vmatprep.mubr.bf16.mxu0 0
        %1968 = vmatmul.mubr.bf16.gmra.mrb[0].mxu0 %v1930
        %v1969 = vpop.f32.mrb[0].mxu0
        %v1970 = vadd.f32 0.0, %v1969
        %v1971 = vpop.f32.mrb[0].mxu0
        %v1972 = vpop.f32.mrb[0].mxu0
        %v1973 = vpop.f32.mrb[0].mxu0
        %1974 = vdwg.mxu0
        %v1976 = vsel %vm1500, %v1922, 0
        %v1979 = vsel %vm1740, %v1926, 0
        %1981 = vmatprep.subr.bf16.mxu0 0
        %1982 = vmatpush1.bf16.msra.mxu0 %v1979
        %1983 = vmatprep.subr.bf16.mxu0 0
        %1984 = vmatpush1.bf16.msra.mxu0 0
        %1985 = vmatprep.subr.bf16.mxu0 0
        %1986 = vmatpush1.bf16.msra.mxu0 0
        %1987 = vmatprep.subr.bf16.mxu0 0
        %1988 = vmatpush1.bf16.msra.mxu0 0
        %1989 = vmatprep.subr.bf16.mxu0 0
        %1990 = vmatpush1.bf16.msra.mxu0 0
        %1991 = vmatprep.subr.bf16.mxu0 0
        %1992 = vmatpush1.bf16.msra.mxu0 0
        %1993 = vmatprep.subr.bf16.mxu0 0
        %1994 = vmatpush1.bf16.msra.mxu0 0
        %1995 = vmatprep.subr.bf16.mxu0 0
        %1996 = vmatpush1.bf16.msra.mxu0 0
        %1997 = vmatprep.subr.bf16.mxu0 0
        %1998 = vmatpush1.bf16.msra.mxu0 0
        %1999 = vmatprep.subr.bf16.mxu0 0
        %2000 = vmatpush1.bf16.msra.mxu0 0
        %2001 = vmatprep.subr.bf16.mxu0 0
        %2002 = vmatpush1.bf16.msra.mxu0 0
        %2003 = vmatprep.subr.bf16.mxu0 0
        %2004 = vmatpush1.bf16.msra.mxu0 0
        %2005 = vmatprep.subr.bf16.mxu0 0
        %2006 = vmatpush1.bf16.msra.mxu0 0
        %2007 = vmatprep.subr.bf16.mxu0 0
        %2008 = vmatpush1.bf16.msra.mxu0 0
        %2009 = vmatprep.subr.bf16.mxu0 0
        %2010 = vmatpush1.bf16.msra.mxu0 0
        %2011 = vmatprep.subr.bf16.mxu0 0
        %2012 = vmatpush1.bf16.msra.mxu0 0
        %2013 = vmatprep.mubr.bf16.mxu0 0
        %2014 = vmatmul.mubr.bf16.gmra.mrb[0].mxu0 %v1976
        %v2015 = vpop.f32.mrb[0].mxu0
        %v2016 = vadd.f32 %v1970, %v2015
        %v2017 = vpop.f32.mrb[0].mxu0
        %v2018 = vpop.f32.mrb[0].mxu0
        %v2019 = vpop.f32.mrb[0].mxu0
        %2020 = vdwg.mxu0
        %s2021 = scalar_lea.vmem %s10, 8
        %v2022 = vld [vmem:[%s2021] sm:$0xf]
        %v2024 = vsel %vm1500, %v1924, 0
        %v2027 = vsel %vm1740, %v2022, 0
        %2029 = vmatprep.subr.bf16.mxu0 0
        %2030 = vmatpush1.bf16.msra.mxu0 %v2027
        %2031 = vmatprep.subr.bf16.mxu0 0
        %2032 = vmatpush1.bf16.msra.mxu0 0
        %2033 = vmatprep.subr.bf16.mxu0 0
        %2034 = vmatpush1.bf16.msra.mxu0 0
        %2035 = vmatprep.subr.bf16.mxu0 0
        %2036 = vmatpush1.bf16.msra.mxu0 0
        %2037 = vmatprep.subr.bf16.mxu0 0
        %2038 = vmatpush1.bf16.msra.mxu0 0
        %2039 = vmatprep.subr.bf16.mxu0 0
        %2040 = vmatpush1.bf16.msra.mxu0 0
        %2041 = vmatprep.subr.bf16.mxu0 0
        %2042 = vmatpush1.bf16.msra.mxu0 0
        %2043 = vmatprep.subr.bf16.mxu0 0
        %2044 = vmatpush1.bf16.msra.mxu0 0
        %2045 = vmatprep.subr.bf16.mxu0 0
        %2046 = vmatpush1.bf16.msra.mxu0 0
        %2047 = vmatprep.subr.bf16.mxu0 0
        %2048 = vmatpush1.bf16.msra.mxu0 0
        %2049 = vmatprep.subr.bf16.mxu0 0
        %2050 = vmatpush1.bf16.msra.mxu0 0
        %2051 = vmatprep.subr.bf16.mxu0 0
        %2052 = vmatpush1.bf16.msra.mxu0 0
        %2053 = vmatprep.subr.bf16.mxu0 0
        %2054 = vmatpush1.bf16.msra.mxu0 0
        %2055 = vmatprep.subr.bf16.mxu0 0
        %2056 = vmatpush1.bf16.msra.mxu0 0
        %2057 = vmatprep.subr.bf16.mxu0 0
        %2058 = vmatpush1.bf16.msra.mxu0 0
        %2059 = vmatprep.subr.bf16.mxu0 0
        %2060 = vmatpush1.bf16.msra.mxu0 0
        %2061 = vmatprep.mubr.bf16.mxu0 0
        %2062 = vmatmul.mubr.bf16.gmra.mrb[0].mxu0 %v2024
        %v2063 = vpop.f32.mrb[0].mxu0
        %v2064 = vadd.f32 0.0, %v2063
        %v2065 = vpop.f32.mrb[0].mxu0
        %v2066 = vpop.f32.mrb[0].mxu0
        %v2067 = vpop.f32.mrb[0].mxu0
        %2068 = vdwg.mxu0
        %v2069 = vadd.f32 %v2016, %v2064
        %s2070 = scalar_lea.vmem %s10, 12
        %v2071 = vld [vmem:[%s2070] sm:$0xf]
        %v2073 = vsel %vm1500, %v1925, 0
        %v2076 = vsel %vm1740, %v2071, 0
        %2078 = vmatprep.subr.bf16.mxu0 0
        %2079 = vmatpush1.bf16.msra.mxu0 %v2076
        %2080 = vmatprep.subr.bf16.mxu0 0
        %2081 = vmatpush1.bf16.msra.mxu0 0
        %2082 = vmatprep.subr.bf16.mxu0 0
        %2083 = vmatpush1.bf16.msra.mxu0 0
        %2084 = vmatprep.subr.bf16.mxu0 0
        %2085 = vmatpush1.bf16.msra.mxu0 0
        %2086 = vmatprep.subr.bf16.mxu0 0
        %2087 = vmatpush1.bf16.msra.mxu0 0
        %2088 = vmatprep.subr.bf16.mxu0 0
        %2089 = vmatpush1.bf16.msra.mxu0 0
        %2090 = vmatprep.subr.bf16.mxu0 0
        %2091 = vmatpush1.bf16.msra.mxu0 0
        %2092 = vmatprep.subr.bf16.mxu0 0
        %2093 = vmatpush1.bf16.msra.mxu0 0
        %2094 = vmatprep.subr.bf16.mxu0 0
        %2095 = vmatpush1.bf16.msra.mxu0 0
        %2096 = vmatprep.subr.bf16.mxu0 0
        %2097 = vmatpush1.bf16.msra.mxu0 0
        %2098 = vmatprep.subr.bf16.mxu0 0
        %2099 = vmatpush1.bf16.msra.mxu0 0
        %2100 = vmatprep.subr.bf16.mxu0 0
        %2101 = vmatpush1.bf16.msra.mxu0 0
        %2102 = vmatprep.subr.bf16.mxu0 0
        %2103 = vmatpush1.bf16.msra.mxu0 0
        %2104 = vmatprep.subr.bf16.mxu0 0
        %2105 = vmatpush1.bf16.msra.mxu0 0
        %2106 = vmatprep.subr.bf16.mxu0 0
        %2107 = vmatpush1.bf16.msra.mxu0 0
        %2108 = vmatprep.subr.bf16.mxu0 0
        %2109 = vmatpush1.bf16.msra.mxu0 0
        %2110 = vmatprep.mubr.bf16.mxu0 0
        %2111 = vmatmul.mubr.bf16.gmra.mrb[0].mxu0 %v2073
        %v2112 = vpop.f32.mrb[0].mxu0
        %v2113 = vadd.f32 0.0, %v2112
        %v2114 = vpop.f32.mrb[0].mxu0
        %v2115 = vpop.f32.mrb[0].mxu0
        %v2116 = vpop.f32.mrb[0].mxu0
        %2117 = vdwg.mxu0
        %v2118 = vadd.f32 %v2069, %v2113
        %v2119 = vld [vmem:[%s11] sm:$0x1]
        %v2120 = vlaneseq
        %v2121 = vshrl.u32 %v2120, 7
        %v2122 = vsub.s32 0, %v2121
        %v2123 = vrot.slane %v2119, %v2122
        %v2124 = vadd.f32 %v2118, %v2123
        %v2125 = vadd.f32 %v741, %v2124
        %v2126 = vld [vmem:[%s12] sm:$0x1]
        %v2127 = vld [vmem:[%s13] sm:$0x1]
        %v2128 = vsel %vm764, %v2125, 0.0
        %2129 = vadd.xlane.f32.xlu0 %v2128
        %v2130 = vpop.xlane.xlu0 %2129
        %v2131 = vrcp.pop 32.0
        %v2132 = vmul.f32 %v2130, %v2131
        %v2133 = vsub.f32 %v2125, %v2132
        %v2134 = vmul.f32 %v2133, %v2133
        %v2135 = vsel %vm764, %v2134, 0.0
        %2136 = vadd.xlane.f32.xlu0 %v2135
        %v2137 = vpop.xlane.xlu0 %2136
        %v2138 = vmul.f32 %v2137, %v2131
        %v2139 = vadd.f32 %v2138, 1e-05
        %v2140 = vrsqrt.pop %v2139
        %v2141 = vmul.f32 %v2133, %v2140
        %v2142 = vlaneseq
        %v2143 = vshrl.u32 %v2142, 7
        %v2144 = vsub.s32 0, %v2143
        %v2145 = vrot.slane %v2126, %v2144
        %v2146 = vmul.f32 %v2141, %v2145
        %v2147 = vlaneseq
        %v2148 = vshrl.u32 %v2147, 7
        %v2149 = vsub.s32 0, %v2148
        %v2150 = vrot.slane %v2127, %v2149
        %v2151 = vadd.f32 %v2146, %v2150
        %v2152 = vpack.c.bf16 %v2151, %v2151
        %v2153 = vld [vmem:[%s16] sm:$0xff]
        %v2154 = vld [vmem:[%s16 + $0x8] sm:$0xff]
        %v2155 = vld [vmem:[%s16 + $0x10] sm:$0xff]
        %v2156 = vld [vmem:[%s16 + $0x18] sm:$0xff]
        %v2157 = vld [vmem:[%s16 + $0x20] sm:$0xff]
        %v2158 = vld [vmem:[%s16 + $0x28] sm:$0xff]
        %v2159 = vld [vmem:[%s16 + $0x30] sm:$0xff]
        %v2160 = vld [vmem:[%s16 + $0x38] sm:$0xff]
        %v2161 = vld [vmem:[%s16 + $0x40] sm:$0xff]
        %v2162 = vld [vmem:[%s16 + $0x48] sm:$0xff]
        %v2163 = vld [vmem:[%s16 + $0x50] sm:$0xff]
        %v2164 = vld [vmem:[%s16 + $0x58] sm:$0xff]
        %v2165 = vld [vmem:[%s16 + $0x60] sm:$0xff]
        %v2166 = vld [vmem:[%s16 + $0x68] sm:$0xff]
        %v2167 = vld [vmem:[%s16 + $0x70] sm:$0xff]
        %v2168 = vld [vmem:[%s16 + $0x78] sm:$0xff]
        %v2169 = vld [vmem:[%s16 + $0x80] sm:$0xff]
        %v2170 = vld [vmem:[%s16 + $0x88] sm:$0xff]
        %v2171 = vld [vmem:[%s16 + $0x90] sm:$0xff]
        %v2172 = vld [vmem:[%s16 + $0x98] sm:$0xff]
        %v2173 = vld [vmem:[%s16 + $0xa0] sm:$0xff]
        %v2174 = vld [vmem:[%s16 + $0xa8] sm:$0xff]
        %v2175 = vld [vmem:[%s16 + $0xb0] sm:$0xff]
        %v2176 = vld [vmem:[%s16 + $0xb8] sm:$0xff]
        %v2177 = vld [vmem:[%s16 + $0xc0] sm:$0xff]
        %v2178 = vld [vmem:[%s16 + $0xc8] sm:$0xff]
        %v2179 = vld [vmem:[%s16 + $0xd0] sm:$0xff]
        %v2180 = vld [vmem:[%s16 + $0xd8] sm:$0xff]
        %v2181 = vld [vmem:[%s16 + $0xe0] sm:$0xff]
        %v2182 = vld [vmem:[%s16 + $0xe8] sm:$0xff]
        %v2183 = vld [vmem:[%s16 + $0xf0] sm:$0xff]
        %v2184 = vld [vmem:[%s16 + $0xf8] sm:$0xff]
        %v2185 = vld [vmem:[%s17] ss:$2 sm:$0xff]
        %s2186 = scalar_lea.vmem %s17, 16
        %v2187 = vld [vmem:[%s2186] ss:$2 sm:$0xff]
        %v2190 = vlaneseq
        %v2191 = vshrl.u32 %v2190, 7
        %v2192 = vsub.s32 0, %v2191
        %v2193 = vrot.slane %v2185, %v2192
        %v2194 = vlaneseq
        %v2195 = vshrl.u32 %v2194, 7
        %v2196 = vsub.s32 1, %v2195
        %v2197 = vrot.slane %v2185, %v2196
        %v2198 = vlaneseq
        %v2199 = vshrl.u32 %v2198, 7
        %v2200 = vsub.s32 2, %v2199
        %v2201 = vrot.slane %v2185, %v2200
        %v2202 = vlaneseq
        %v2203 = vshrl.u32 %v2202, 7
        %v2204 = vsub.s32 3, %v2203
        %v2205 = vrot.slane %v2185, %v2204
        %v2206 = vlaneseq
        %v2207 = vshrl.u32 %v2206, 7
        %v2208 = vsub.s32 4, %v2207
        %v2209 = vrot.slane %v2185, %v2208
        %v2210 = vlaneseq
        %v2211 = vshrl.u32 %v2210, 7
        %v2212 = vsub.s32 5, %v2211
        %v2213 = vrot.slane %v2185, %v2212
        %v2214 = vlaneseq
        %v2215 = vshrl.u32 %v2214, 7
        %v2216 = vsub.s32 6, %v2215
        %v2217 = vrot.slane %v2185, %v2216
        %v2218 = vlaneseq
        %v2219 = vshrl.u32 %v2218, 7
        %v2220 = vsub.s32 7, %v2219
        %v2221 = vrot.slane %v2185, %v2220
        %v2222 = vlaneseq
        %v2223 = vshrl.u32 %v2222, 7
        %v2224 = vsub.s32 0, %v2223
        %v2225 = vrot.slane %v2187, %v2224
        %v2226 = vlaneseq
        %v2227 = vshrl.u32 %v2226, 7
        %v2228 = vsub.s32 1, %v2227
        %v2229 = vrot.slane %v2187, %v2228
        %v2230 = vlaneseq
        %v2231 = vshrl.u32 %v2230, 7
        %v2232 = vsub.s32 2, %v2231
        %v2233 = vrot.slane %v2187, %v2232
        %v2234 = vlaneseq
        %v2235 = vshrl.u32 %v2234, 7
        %v2236 = vsub.s32 3, %v2235
        %v2237 = vrot.slane %v2187, %v2236
        %v2238 = vlaneseq
        %v2239 = vshrl.u32 %v2238, 7
        %v2240 = vsub.s32 4, %v2239
        %v2241 = vrot.slane %v2187, %v2240
        %v2242 = vlaneseq
        %v2243 = vshrl.u32 %v2242, 7
        %v2244 = vsub.s32 5, %v2243
        %v2245 = vrot.slane %v2187, %v2244
        %v2246 = vlaneseq
        %v2247 = vshrl.u32 %v2246, 7
        %v2248 = vsub.s32 6, %v2247
        %v2249 = vrot.slane %v2187, %v2248
        %v2250 = vlaneseq
        %v2251 = vshrl.u32 %v2250, 7
        %v2252 = vsub.s32 7, %v2251
        %v2253 = vrot.slane %v2187, %v2252
        %v2302 = vunpack.c.l.b16 %v2153
        %v2303 = vunpack.c.h.b16 %v2153
        %v2304 = vunpack.c.l.b16 %v2154
        %v2305 = vunpack.c.h.b16 %v2154
        %v2306 = vunpack.c.l.b16 %v2155
        %v2307 = vunpack.c.h.b16 %v2155
        %v2308 = vunpack.c.l.b16 %v2156
        %v2309 = vunpack.c.h.b16 %v2156
        %v2310 = vunpack.c.l.b16 %v2157
        %v2311 = vunpack.c.h.b16 %v2157
        %v2312 = vunpack.c.l.b16 %v2158
        %v2313 = vunpack.c.h.b16 %v2158
        %v2314 = vunpack.c.l.b16 %v2159
        %v2315 = vunpack.c.h.b16 %v2159
        %v2316 = vunpack.c.l.b16 %v2160
        %v2317 = vunpack.c.h.b16 %v2160
        %v2318 = vunpack.c.l.b16 %v2161
        %v2319 = vunpack.c.h.b16 %v2161
        %v2320 = vunpack.c.l.b16 %v2162
        %v2321 = vunpack.c.h.b16 %v2162
        %v2322 = vunpack.c.l.b16 %v2163
        %v2323 = vunpack.c.h.b16 %v2163
        %v2324 = vunpack.c.l.b16 %v2164
        %v2325 = vunpack.c.h.b16 %v2164
        %v2326 = vunpack.c.l.b16 %v2165
        %v2327 = vunpack.c.h.b16 %v2165
        %v2328 = vunpack.c.l.b16 %v2166
        %v2329 = vunpack.c.h.b16 %v2166
        %v2330 = vunpack.c.l.b16 %v2167
        %v2331 = vunpack.c.h.b16 %v2167
        %v2332 = vunpack.c.l.b16 %v2168
        %v2333 = vunpack.c.h.b16 %v2168
        %v2334 = vunpack.c.l.b16 %v2169
        %v2335 = vunpack.c.h.b16 %v2169
        %v2336 = vunpack.c.l.b16 %v2170
        %v2337 = vunpack.c.h.b16 %v2170
        %v2338 = vunpack.c.l.b16 %v2171
        %v2339 = vunpack.c.h.b16 %v2171
        %v2340 = vunpack.c.l.b16 %v2172
        %v2341 = vunpack.c.h.b16 %v2172
        %v2342 = vunpack.c.l.b16 %v2173
        %v2343 = vunpack.c.h.b16 %v2173
        %v2344 = vunpack.c.l.b16 %v2174
        %v2345 = vunpack.c.h.b16 %v2174
        %v2346 = vunpack.c.l.b16 %v2175
        %v2347 = vunpack.c.h.b16 %v2175
        %v2348 = vunpack.c.l.b16 %v2176
        %v2349 = vunpack.c.h.b16 %v2176
        %v2350 = vunpack.c.l.b16 %v2177
        %v2351 = vunpack.c.h.b16 %v2177
        %v2352 = vunpack.c.l.b16 %v2178
        %v2353 = vunpack.c.h.b16 %v2178
        %v2354 = vunpack.c.l.b16 %v2179
        %v2355 = vunpack.c.h.b16 %v2179
        %v2356 = vunpack.c.l.b16 %v2180
        %v2357 = vunpack.c.h.b16 %v2180
        %v2358 = vunpack.c.l.b16 %v2181
        %v2359 = vunpack.c.h.b16 %v2181
        %v2360 = vunpack.c.l.b16 %v2182
        %v2361 = vunpack.c.h.b16 %v2182
        %v2362 = vunpack.c.l.b16 %v2183
        %v2363 = vunpack.c.h.b16 %v2183
        %v2364 = vunpack.c.l.b16 %v2184
        %v2365 = vunpack.c.h.b16 %v2184
        %v2366 = vpack.c.b16 %v2318, %v2302
        %v2367 = vpack.c.b16 %v2319, %v2303
        %v2368 = vpack.c.b16 %v2320, %v2304
        %v2369 = vpack.c.b16 %v2321, %v2305
        %v2370 = vpack.c.b16 %v2322, %v2306
        %v2371 = vpack.c.b16 %v2323, %v2307
        %v2372 = vpack.c.b16 %v2324, %v2308
        %v2373 = vpack.c.b16 %v2325, %v2309
        %v2374 = vpack.c.b16 %v2326, %v2310
        %v2375 = vpack.c.b16 %v2327, %v2311
        %v2376 = vpack.c.b16 %v2328, %v2312
        %v2377 = vpack.c.b16 %v2329, %v2313
        %v2378 = vpack.c.b16 %v2330, %v2314
        %v2379 = vpack.c.b16 %v2331, %v2315
        %v2380 = vpack.c.b16 %v2332, %v2316
        %v2381 = vpack.c.b16 %v2333, %v2317
        %v2382 = vpack.c.b16 %v2350, %v2334
        %v2383 = vpack.c.b16 %v2351, %v2335
        %v2384 = vpack.c.b16 %v2352, %v2336
        %v2385 = vpack.c.b16 %v2353, %v2337
        %v2386 = vpack.c.b16 %v2354, %v2338
        %v2387 = vpack.c.b16 %v2355, %v2339
        %v2388 = vpack.c.b16 %v2356, %v2340
        %v2389 = vpack.c.b16 %v2357, %v2341
        %v2390 = vpack.c.b16 %v2358, %v2342
        %v2391 = vpack.c.b16 %v2359, %v2343
        %v2392 = vpack.c.b16 %v2360, %v2344
        %v2393 = vpack.c.b16 %v2361, %v2345
        %v2394 = vpack.c.b16 %v2362, %v2346
        %v2395 = vpack.c.b16 %v2363, %v2347
        %v2396 = vpack.c.b16 %v2364, %v2348
        %v2397 = vpack.c.b16 %v2365, %v2349
        %v2431 = vsel %vm764, %v2152, 0
        %2433 = vmatprep.subr.bf16.mxu0 %v2367
        %2434 = vmatpush1.bf16.msra.mxu0 %v2366
        %2435 = vmatprep.subr.bf16.mxu0 %v2383
        %2436 = vmatpush1.bf16.msra.mxu0 %v2382
        %2437 = vmatprep.subr.bf16.mxu0 0
        %2438 = vmatpush1.bf16.msra.mxu0 0
        %2439 = vmatprep.subr.bf16.mxu0 0
        %2440 = vmatpush1.bf16.msra.mxu0 0
        %2441 = vmatprep.subr.bf16.mxu0 0
        %2442 = vmatpush1.bf16.msra.mxu0 0
        %2443 = vmatprep.subr.bf16.mxu0 0
        %2444 = vmatpush1.bf16.msra.mxu0 0
        %2445 = vmatprep.subr.bf16.mxu0 0
        %2446 = vmatpush1.bf16.msra.mxu0 0
        %2447 = vmatprep.subr.bf16.mxu0 0
        %2448 = vmatpush1.bf16.msra.mxu0 0
        %2449 = vmatprep.subr.bf16.mxu0 0
        %2450 = vmatpush1.bf16.msra.mxu0 0
        %2451 = vmatprep.subr.bf16.mxu0 0
        %2452 = vmatpush1.bf16.msra.mxu0 0
        %2453 = vmatprep.subr.bf16.mxu0 0
        %2454 = vmatpush1.bf16.msra.mxu0 0
        %2455 = vmatprep.subr.bf16.mxu0 0
        %2456 = vmatpush1.bf16.msra.mxu0 0
        %2457 = vmatprep.subr.bf16.mxu0 0
        %2458 = vmatpush1.bf16.msra.mxu0 0
        %2459 = vmatprep.subr.bf16.mxu0 0
        %2460 = vmatpush1.bf16.msra.mxu0 0
        %2461 = vmatprep.subr.bf16.mxu0 0
        %2462 = vmatpush1.bf16.msra.mxu0 0
        %2463 = vmatprep.subr.bf16.mxu0 0
        %2464 = vmatpush1.bf16.msra.mxu0 0
        %2465 = vmatprep.mubr.bf16.mxu0 0
        %2466 = vmatmul.mubr.bf16.gmra.mrb[0].mxu0 %v2431
        %v2467 = vpop.f32.mrb[0].mxu0
        %v2468 = vadd.f32 %v2193, %v2467
        %v2469 = vpop.f32.mrb[0].mxu0
        %v2470 = vadd.f32 %v2197, %v2469
        %v2471 = vpop.f32.mrb[0].mxu0
        %v2472 = vpop.f32.mrb[0].mxu0
        %2473 = vdwg.mxu0
        %2474 = vmatprep.subr.bf16.mxu0 %v2369
        %2475 = vmatpush1.bf16.msra.mxu0 %v2368
        %2476 = vmatprep.subr.bf16.mxu0 %v2385
        %2477 = vmatpush1.bf16.msra.mxu0 %v2384
        %2478 = vmatprep.subr.bf16.mxu0 0
        %2479 = vmatpush1.bf16.msra.mxu0 0
        %2480 = vmatprep.subr.bf16.mxu0 0
        %2481 = vmatpush1.bf16.msra.mxu0 0
        %2482 = vmatprep.subr.bf16.mxu0 0
        %2483 = vmatpush1.bf16.msra.mxu0 0
        %2484 = vmatprep.subr.bf16.mxu0 0
        %2485 = vmatpush1.bf16.msra.mxu0 0
        %2486 = vmatprep.subr.bf16.mxu0 0
        %2487 = vmatpush1.bf16.msra.mxu0 0
        %2488 = vmatprep.subr.bf16.mxu0 0
        %2489 = vmatpush1.bf16.msra.mxu0 0
        %2490 = vmatprep.subr.bf16.mxu0 0
        %2491 = vmatpush1.bf16.msra.mxu0 0
        %2492 = vmatprep.subr.bf16.mxu0 0
        %2493 = vmatpush1.bf16.msra.mxu0 0
        %2494 = vmatprep.subr.bf16.mxu0 0
        %2495 = vmatpush1.bf16.msra.mxu0 0
        %2496 = vmatprep.subr.bf16.mxu0 0
        %2497 = vmatpush1.bf16.msra.mxu0 0
        %2498 = vmatprep.subr.bf16.mxu0 0
        %2499 = vmatpush1.bf16.msra.mxu0 0
        %2500 = vmatprep.subr.bf16.mxu0 0
        %2501 = vmatpush1.bf16.msra.mxu0 0
        %2502 = vmatprep.subr.bf16.mxu0 0
        %2503 = vmatpush1.bf16.msra.mxu0 0
        %2504 = vmatprep.subr.bf16.mxu0 0
        %2505 = vmatpush1.bf16.msra.mxu0 0
        %2506 = vmatprep.mubr.bf16.mxu0 0
        %2507 = vmatmul.mubr.bf16.gmra.mrb[0].mxu0 %v2431
        %v2508 = vpop.f32.mrb[0].mxu0
        %v2509 = vadd.f32 %v2201, %v2508
        %v2510 = vpop.f32.mrb[0].mxu0
        %v2511 = vadd.f32 %v2205, %v2510
        %v2512 = vpop.f32.mrb[0].mxu0
        %v2513 = vpop.f32.mrb[0].mxu0
        %2514 = vdwg.mxu0
        %2515 = vmatprep.subr.bf16.mxu0 %v2371
        %2516 = vmatpush1.bf16.msra.mxu0 %v2370
        %2517 = vmatprep.subr.bf16.mxu0 %v2387
        %2518 = vmatpush1.bf16.msra.mxu0 %v2386
        %2519 = vmatprep.subr.bf16.mxu0 0
        %2520 = vmatpush1.bf16.msra.mxu0 0
        %2521 = vmatprep.subr.bf16.mxu0 0
        %2522 = vmatpush1.bf16.msra.mxu0 0
        %2523 = vmatprep.subr.bf16.mxu0 0
        %2524 = vmatpush1.bf16.msra.mxu0 0
        %2525 = vmatprep.subr.bf16.mxu0 0
        %2526 = vmatpush1.bf16.msra.mxu0 0
        %2527 = vmatprep.subr.bf16.mxu0 0
        %2528 = vmatpush1.bf16.msra.mxu0 0
        %2529 = vmatprep.subr.bf16.mxu0 0
        %2530 = vmatpush1.bf16.msra.mxu0 0
        %2531 = vmatprep.subr.bf16.mxu0 0
        %2532 = vmatpush1.bf16.msra.mxu0 0
        %2533 = vmatprep.subr.bf16.mxu0 0
        %2534 = vmatpush1.bf16.msra.mxu0 0
        %2535 = vmatprep.subr.bf16.mxu0 0
        %2536 = vmatpush1.bf16.msra.mxu0 0
        %2537 = vmatprep.subr.bf16.mxu0 0
        %2538 = vmatpush1.bf16.msra.mxu0 0
        %2539 = vmatprep.subr.bf16.mxu0 0
        %2540 = vmatpush1.bf16.msra.mxu0 0
        %2541 = vmatprep.subr.bf16.mxu0 0
        %2542 = vmatpush1.bf16.msra.mxu0 0
        %2543 = vmatprep.subr.bf16.mxu0 0
        %2544 = vmatpush1.bf16.msra.mxu0 0
        %2545 = vmatprep.subr.bf16.mxu0 0
        %2546 = vmatpush1.bf16.msra.mxu0 0
        %2547 = vmatprep.mubr.bf16.mxu0 0
        %2548 = vmatmul.mubr.bf16.gmra.mrb[0].mxu0 %v2431
        %v2549 = vpop.f32.mrb[0].mxu0
        %v2550 = vadd.f32 %v2209, %v2549
        %v2551 = vpop.f32.mrb[0].mxu0
        %v2552 = vadd.f32 %v2213, %v2551
        %v2553 = vpop.f32.mrb[0].mxu0
        %v2554 = vpop.f32.mrb[0].mxu0
        %2555 = vdwg.mxu0
        %2556 = vmatprep.subr.bf16.mxu0 %v2373
        %2557 = vmatpush1.bf16.msra.mxu0 %v2372
        %2558 = vmatprep.subr.bf16.mxu0 %v2389
        %2559 = vmatpush1.bf16.msra.mxu0 %v2388
        %2560 = vmatprep.subr.bf16.mxu0 0
        %2561 = vmatpush1.bf16.msra.mxu0 0
        %2562 = vmatprep.subr.bf16.mxu0 0
        %2563 = vmatpush1.bf16.msra.mxu0 0
        %2564 = vmatprep.subr.bf16.mxu0 0
        %2565 = vmatpush1.bf16.msra.mxu0 0
        %2566 = vmatprep.subr.bf16.mxu0 0
        %2567 = vmatpush1.bf16.msra.mxu0 0
        %2568 = vmatprep.subr.bf16.mxu0 0
        %2569 = vmatpush1.bf16.msra.mxu0 0
        %2570 = vmatprep.subr.bf16.mxu0 0
        %2571 = vmatpush1.bf16.msra.mxu0 0
        %2572 = vmatprep.subr.bf16.mxu0 0
        %2573 = vmatpush1.bf16.msra.mxu0 0
        %2574 = vmatprep.subr.bf16.mxu0 0
        %2575 = vmatpush1.bf16.msra.mxu0 0
        %2576 = vmatprep.subr.bf16.mxu0 0
        %2577 = vmatpush1.bf16.msra.mxu0 0
        %2578 = vmatprep.subr.bf16.mxu0 0
        %2579 = vmatpush1.bf16.msra.mxu0 0
        %2580 = vmatprep.subr.bf16.mxu0 0
        %2581 = vmatpush1.bf16.msra.mxu0 0
        %2582 = vmatprep.subr.bf16.mxu0 0
        %2583 = vmatpush1.bf16.msra.mxu0 0
        %2584 = vmatprep.subr.bf16.mxu0 0
        %2585 = vmatpush1.bf16.msra.mxu0 0
        %2586 = vmatprep.subr.bf16.mxu0 0
        %2587 = vmatpush1.bf16.msra.mxu0 0
        %2588 = vmatprep.mubr.bf16.mxu0 0
        %2589 = vmatmul.mubr.bf16.gmra.mrb[0].mxu0 %v2431
        %v2590 = vpop.f32.mrb[0].mxu0
        %v2591 = vadd.f32 %v2217, %v2590
        %v2592 = vpop.f32.mrb[0].mxu0
        %v2593 = vadd.f32 %v2221, %v2592
        %v2594 = vpop.f32.mrb[0].mxu0
        %v2595 = vpop.f32.mrb[0].mxu0
        %2596 = vdwg.mxu0
        %2597 = vmatprep.subr.bf16.mxu0 %v2375
        %2598 = vmatpush1.bf16.msra.mxu0 %v2374
        %2599 = vmatprep.subr.bf16.mxu0 %v2391
        %2600 = vmatpush1.bf16.msra.mxu0 %v2390
        %2601 = vmatprep.subr.bf16.mxu0 0
        %2602 = vmatpush1.bf16.msra.mxu0 0
        %2603 = vmatprep.subr.bf16.mxu0 0
        %2604 = vmatpush1.bf16.msra.mxu0 0
        %2605 = vmatprep.subr.bf16.mxu0 0
        %2606 = vmatpush1.bf16.msra.mxu0 0
        %2607 = vmatprep.subr.bf16.mxu0 0
        %2608 = vmatpush1.bf16.msra.mxu0 0
        %2609 = vmatprep.subr.bf16.mxu0 0
        %2610 = vmatpush1.bf16.msra.mxu0 0
        %2611 = vmatprep.subr.bf16.mxu0 0
        %2612 = vmatpush1.bf16.msra.mxu0 0
        %2613 = vmatprep.subr.bf16.mxu0 0
        %2614 = vmatpush1.bf16.msra.mxu0 0
        %2615 = vmatprep.subr.bf16.mxu0 0
        %2616 = vmatpush1.bf16.msra.mxu0 0
        %2617 = vmatprep.subr.bf16.mxu0 0
        %2618 = vmatpush1.bf16.msra.mxu0 0
        %2619 = vmatprep.subr.bf16.mxu0 0
        %2620 = vmatpush1.bf16.msra.mxu0 0
        %2621 = vmatprep.subr.bf16.mxu0 0
        %2622 = vmatpush1.bf16.msra.mxu0 0
        %2623 = vmatprep.subr.bf16.mxu0 0
        %2624 = vmatpush1.bf16.msra.mxu0 0
        %2625 = vmatprep.subr.bf16.mxu0 0
        %2626 = vmatpush1.bf16.msra.mxu0 0
        %2627 = vmatprep.subr.bf16.mxu0 0
        %2628 = vmatpush1.bf16.msra.mxu0 0
        %2629 = vmatprep.mubr.bf16.mxu0 0
        %2630 = vmatmul.mubr.bf16.gmra.mrb[0].mxu0 %v2431
        %v2631 = vpop.f32.mrb[0].mxu0
        %v2632 = vadd.f32 %v2225, %v2631
        %v2633 = vpop.f32.mrb[0].mxu0
        %v2634 = vadd.f32 %v2229, %v2633
        %v2635 = vpop.f32.mrb[0].mxu0
        %v2636 = vpop.f32.mrb[0].mxu0
        %2637 = vdwg.mxu0
        %2638 = vmatprep.subr.bf16.mxu0 %v2377
        %2639 = vmatpush1.bf16.msra.mxu0 %v2376
        %2640 = vmatprep.subr.bf16.mxu0 %v2393
        %2641 = vmatpush1.bf16.msra.mxu0 %v2392
        %2642 = vmatprep.subr.bf16.mxu0 0
        %2643 = vmatpush1.bf16.msra.mxu0 0
        %2644 = vmatprep.subr.bf16.mxu0 0
        %2645 = vmatpush1.bf16.msra.mxu0 0
        %2646 = vmatprep.subr.bf16.mxu0 0
        %2647 = vmatpush1.bf16.msra.mxu0 0
        %2648 = vmatprep.subr.bf16.mxu0 0
        %2649 = vmatpush1.bf16.msra.mxu0 0
        %2650 = vmatprep.subr.bf16.mxu0 0
        %2651 = vmatpush1.bf16.msra.mxu0 0
        %2652 = vmatprep.subr.bf16.mxu0 0
        %2653 = vmatpush1.bf16.msra.mxu0 0
        %2654 = vmatprep.subr.bf16.mxu0 0
        %2655 = vmatpush1.bf16.msra.mxu0 0
        %2656 = vmatprep.subr.bf16.mxu0 0
        %2657 = vmatpush1.bf16.msra.mxu0 0
        %2658 = vmatprep.subr.bf16.mxu0 0
        %2659 = vmatpush1.bf16.msra.mxu0 0
        %2660 = vmatprep.subr.bf16.mxu0 0
        %2661 = vmatpush1.bf16.msra.mxu0 0
        %2662 = vmatprep.subr.bf16.mxu0 0
        %2663 = vmatpush1.bf16.msra.mxu0 0
        %2664 = vmatprep.subr.bf16.mxu0 0
        %2665 = vmatpush1.bf16.msra.mxu0 0
        %2666 = vmatprep.subr.bf16.mxu0 0
        %2667 = vmatpush1.bf16.msra.mxu0 0
        %2668 = vmatprep.subr.bf16.mxu0 0
        %2669 = vmatpush1.bf16.msra.mxu0 0
        %2670 = vmatprep.mubr.bf16.mxu0 0
        %2671 = vmatmul.mubr.bf16.gmra.mrb[0].mxu0 %v2431
        %v2672 = vpop.f32.mrb[0].mxu0
        %v2673 = vadd.f32 %v2233, %v2672
        %v2674 = vpop.f32.mrb[0].mxu0
        %v2675 = vadd.f32 %v2237, %v2674
        %v2676 = vpop.f32.mrb[0].mxu0
        %v2677 = vpop.f32.mrb[0].mxu0
        %2678 = vdwg.mxu0
        %2679 = vmatprep.subr.bf16.mxu0 %v2379
        %2680 = vmatpush1.bf16.msra.mxu0 %v2378
        %2681 = vmatprep.subr.bf16.mxu0 %v2395
        %2682 = vmatpush1.bf16.msra.mxu0 %v2394
        %2683 = vmatprep.subr.bf16.mxu0 0
        %2684 = vmatpush1.bf16.msra.mxu0 0
        %2685 = vmatprep.subr.bf16.mxu0 0
        %2686 = vmatpush1.bf16.msra.mxu0 0
        %2687 = vmatprep.subr.bf16.mxu0 0
        %2688 = vmatpush1.bf16.msra.mxu0 0
        %2689 = vmatprep.subr.bf16.mxu0 0
        %2690 = vmatpush1.bf16.msra.mxu0 0
        %2691 = vmatprep.subr.bf16.mxu0 0
        %2692 = vmatpush1.bf16.msra.mxu0 0
        %2693 = vmatprep.subr.bf16.mxu0 0
        %2694 = vmatpush1.bf16.msra.mxu0 0
        %2695 = vmatprep.subr.bf16.mxu0 0
        %2696 = vmatpush1.bf16.msra.mxu0 0
        %2697 = vmatprep.subr.bf16.mxu0 0
        %2698 = vmatpush1.bf16.msra.mxu0 0
        %2699 = vmatprep.subr.bf16.mxu0 0
        %2700 = vmatpush1.bf16.msra.mxu0 0
        %2701 = vmatprep.subr.bf16.mxu0 0
        %2702 = vmatpush1.bf16.msra.mxu0 0
        %2703 = vmatprep.subr.bf16.mxu0 0
        %2704 = vmatpush1.bf16.msra.mxu0 0
        %2705 = vmatprep.subr.bf16.mxu0 0
        %2706 = vmatpush1.bf16.msra.mxu0 0
        %2707 = vmatprep.subr.bf16.mxu0 0
        %2708 = vmatpush1.bf16.msra.mxu0 0
        %2709 = vmatprep.subr.bf16.mxu0 0
        %2710 = vmatpush1.bf16.msra.mxu0 0
        %2711 = vmatprep.mubr.bf16.mxu0 0
        %2712 = vmatmul.mubr.bf16.gmra.mrb[0].mxu0 %v2431
        %v2713 = vpop.f32.mrb[0].mxu0
        %v2714 = vadd.f32 %v2241, %v2713
        %v2715 = vpop.f32.mrb[0].mxu0
        %v2716 = vadd.f32 %v2245, %v2715
        %v2717 = vpop.f32.mrb[0].mxu0
        %v2718 = vpop.f32.mrb[0].mxu0
        %2719 = vdwg.mxu0
        %2720 = vmatprep.subr.bf16.mxu0 %v2381
        %2721 = vmatpush1.bf16.msra.mxu0 %v2380
        %2722 = vmatprep.subr.bf16.mxu0 %v2397
        %2723 = vmatpush1.bf16.msra.mxu0 %v2396
        %2724 = vmatprep.subr.bf16.mxu0 0
        %2725 = vmatpush1.bf16.msra.mxu0 0
        %2726 = vmatprep.subr.bf16.mxu0 0
        %2727 = vmatpush1.bf16.msra.mxu0 0
        %2728 = vmatprep.subr.bf16.mxu0 0
        %2729 = vmatpush1.bf16.msra.mxu0 0
        %2730 = vmatprep.subr.bf16.mxu0 0
        %2731 = vmatpush1.bf16.msra.mxu0 0
        %2732 = vmatprep.subr.bf16.mxu0 0
        %2733 = vmatpush1.bf16.msra.mxu0 0
        %2734 = vmatprep.subr.bf16.mxu0 0
        %2735 = vmatpush1.bf16.msra.mxu0 0
        %2736 = vmatprep.subr.bf16.mxu0 0
        %2737 = vmatpush1.bf16.msra.mxu0 0
        %2738 = vmatprep.subr.bf16.mxu0 0
        %2739 = vmatpush1.bf16.msra.mxu0 0
        %2740 = vmatprep.subr.bf16.mxu0 0
        %2741 = vmatpush1.bf16.msra.mxu0 0
        %2742 = vmatprep.subr.bf16.mxu0 0
        %2743 = vmatpush1.bf16.msra.mxu0 0
        %2744 = vmatprep.subr.bf16.mxu0 0
        %2745 = vmatpush1.bf16.msra.mxu0 0
        %2746 = vmatprep.subr.bf16.mxu0 0
        %2747 = vmatpush1.bf16.msra.mxu0 0
        %2748 = vmatprep.subr.bf16.mxu0 0
        %2749 = vmatpush1.bf16.msra.mxu0 0
        %2750 = vmatprep.subr.bf16.mxu0 0
        %2751 = vmatpush1.bf16.msra.mxu0 0
        %2752 = vmatprep.mubr.bf16.mxu0 0
        %2753 = vmatmul.mubr.bf16.gmra.mrb[0].mxu0 %v2431
        %v2754 = vpop.f32.mrb[0].mxu0
        %v2755 = vadd.f32 %v2249, %v2754
        %v2756 = vpop.f32.mrb[0].mxu0
        %v2757 = vadd.f32 %v2253, %v2756
        %v2758 = vpop.f32.mrb[0].mxu0
        %v2759 = vpop.f32.mrb[0].mxu0
        %2760 = vdwg.mxu0
        %v2761 = vmax.f32 %v2468, 0.0
        %v2762 = vmax.f32 %v2470, 0.0
        %v2763 = vmax.f32 %v2509, 0.0
        %v2764 = vmax.f32 %v2511, 0.0
        %v2765 = vmax.f32 %v2550, 0.0
        %v2766 = vmax.f32 %v2552, 0.0
        %v2767 = vmax.f32 %v2591, 0.0
        %v2768 = vmax.f32 %v2593, 0.0
        %v2769 = vmax.f32 %v2632, 0.0
        %v2770 = vmax.f32 %v2634, 0.0
        %v2771 = vmax.f32 %v2673, 0.0
        %v2772 = vmax.f32 %v2675, 0.0
        %v2773 = vmax.f32 %v2714, 0.0
        %v2774 = vmax.f32 %v2716, 0.0
        %v2775 = vmax.f32 %v2755, 0.0
        %v2776 = vmax.f32 %v2757, 0.0
        %v2777 = vpack.c.bf16 %v2761, %v2761
        %v2778 = vpack.c.bf16 %v2762, %v2762
        %v2779 = vpack.c.bf16 %v2763, %v2763
        %v2780 = vpack.c.bf16 %v2764, %v2764
        %v2781 = vpack.c.bf16 %v2765, %v2765
        %v2782 = vpack.c.bf16 %v2766, %v2766
        %v2783 = vpack.c.bf16 %v2767, %v2767
        %v2784 = vpack.c.bf16 %v2768, %v2768
        %v2785 = vpack.c.bf16 %v2769, %v2769
        %v2786 = vpack.c.bf16 %v2770, %v2770
        %v2787 = vpack.c.bf16 %v2771, %v2771
        %v2788 = vpack.c.bf16 %v2772, %v2772
        %v2789 = vpack.c.bf16 %v2773, %v2773
        %v2790 = vpack.c.bf16 %v2774, %v2774
        %v2791 = vpack.c.bf16 %v2775, %v2775
        %v2792 = vpack.c.bf16 %v2776, %v2776
        %v2793 = vld [vmem:[%s18] sm:$0xf]
        %v2794 = vld [vmem:[%s18 + $0x4] sm:$0xf]
        %v2795 = vld [vmem:[%s18 + $0x8] sm:$0xf]
        %v2796 = vld [vmem:[%s18 + $0xc] sm:$0xf]
        %v2797 = vld [vmem:[%s18 + $0x10] sm:$0xf]
        %v2798 = vld [vmem:[%s18 + $0x14] sm:$0xf]
        %v2799 = vld [vmem:[%s18 + $0x18] sm:$0xf]
        %v2800 = vld [vmem:[%s18 + $0x1c] sm:$0xf]
        %v2801 = vld [vmem:[%s18 + $0x20] sm:$0xf]
        %v2802 = vld [vmem:[%s18 + $0x24] sm:$0xf]
        %v2803 = vld [vmem:[%s18 + $0x28] sm:$0xf]
        %v2804 = vld [vmem:[%s18 + $0x2c] sm:$0xf]
        %v2805 = vld [vmem:[%s18 + $0x30] sm:$0xf]
        %v2806 = vld [vmem:[%s18 + $0x34] sm:$0xf]
        %v2807 = vld [vmem:[%s18 + $0x38] sm:$0xf]
        %v2808 = vld [vmem:[%s18 + $0x3c] sm:$0xf]
        %v2809 = vld [vmem:[%s18 + $0x40] sm:$0xf]
        %v2810 = vld [vmem:[%s18 + $0x44] sm:$0xf]
        %v2811 = vld [vmem:[%s18 + $0x48] sm:$0xf]
        %v2812 = vld [vmem:[%s18 + $0x4c] sm:$0xf]
        %v2813 = vld [vmem:[%s18 + $0x50] sm:$0xf]
        %v2814 = vld [vmem:[%s18 + $0x54] sm:$0xf]
        %v2815 = vld [vmem:[%s18 + $0x58] sm:$0xf]
        %v2816 = vld [vmem:[%s18 + $0x5c] sm:$0xf]
        %v2817 = vld [vmem:[%s18 + $0x60] sm:$0xf]
        %v2818 = vld [vmem:[%s18 + $0x64] sm:$0xf]
        %v2819 = vld [vmem:[%s18 + $0x68] sm:$0xf]
        %v2820 = vld [vmem:[%s18 + $0x6c] sm:$0xf]
        %v2821 = vld [vmem:[%s18 + $0x70] sm:$0xf]
        %v2822 = vld [vmem:[%s18 + $0x74] sm:$0xf]
        %v2823 = vld [vmem:[%s18 + $0x78] sm:$0xf]
        %v2824 = vld [vmem:[%s18 + $0x7c] sm:$0xf]
        %v2825 = vld [vmem:[%s18 + $0x80] sm:$0xf]
        %v2826 = vld [vmem:[%s18 + $0x84] sm:$0xf]
        %v2827 = vld [vmem:[%s18 + $0x88] sm:$0xf]
        %v2828 = vld [vmem:[%s18 + $0x8c] sm:$0xf]
        %v2829 = vld [vmem:[%s18 + $0x90] sm:$0xf]
        %v2830 = vld [vmem:[%s18 + $0x94] sm:$0xf]
        %v2831 = vld [vmem:[%s18 + $0x98] sm:$0xf]
        %v2832 = vld [vmem:[%s18 + $0x9c] sm:$0xf]
        %v2833 = vld [vmem:[%s18 + $0xa0] sm:$0xf]
        %v2834 = vld [vmem:[%s18 + $0xa4] sm:$0xf]
        %v2835 = vld [vmem:[%s18 + $0xa8] sm:$0xf]
        %v2836 = vld [vmem:[%s18 + $0xac] sm:$0xf]
        %v2837 = vld [vmem:[%s18 + $0xb0] sm:$0xf]
        %v2838 = vld [vmem:[%s18 + $0xb4] sm:$0xf]
        %v2839 = vld [vmem:[%s18 + $0xb8] sm:$0xf]
        %v2840 = vld [vmem:[%s18 + $0xbc] sm:$0xf]
        %v2841 = vld [vmem:[%s18 + $0xc0] sm:$0xf]
        %v2842 = vld [vmem:[%s18 + $0xc4] sm:$0xf]
        %v2843 = vld [vmem:[%s18 + $0xc8] sm:$0xf]
        %v2844 = vld [vmem:[%s18 + $0xcc] sm:$0xf]
        %v2845 = vld [vmem:[%s18 + $0xd0] sm:$0xf]
        %v2846 = vld [vmem:[%s18 + $0xd4] sm:$0xf]
        %v2847 = vld [vmem:[%s18 + $0xd8] sm:$0xf]
        %v2848 = vld [vmem:[%s18 + $0xdc] sm:$0xf]
        %v2849 = vld [vmem:[%s18 + $0xe0] sm:$0xf]
        %v2850 = vld [vmem:[%s18 + $0xe4] sm:$0xf]
        %v2851 = vld [vmem:[%s18 + $0xe8] sm:$0xf]
        %v2852 = vld [vmem:[%s18 + $0xec] sm:$0xf]
        %v2853 = vld [vmem:[%s18 + $0xf0] sm:$0xf]
        %v2854 = vld [vmem:[%s18 + $0xf4] sm:$0xf]
        %v2855 = vld [vmem:[%s18 + $0xf8] sm:$0xf]
        %v2856 = vld [vmem:[%s18 + $0xfc] sm:$0xf]
        %v2857 = vld [vmem:[%s18 + $0x100] sm:$0xf]
        %v2858 = vld [vmem:[%s18 + $0x104] sm:$0xf]
        %v2859 = vld [vmem:[%s18 + $0x108] sm:$0xf]
        %v2860 = vld [vmem:[%s18 + $0x10c] sm:$0xf]
        %v2861 = vld [vmem:[%s18 + $0x110] sm:$0xf]
        %v2862 = vld [vmem:[%s18 + $0x114] sm:$0xf]
        %v2863 = vld [vmem:[%s18 + $0x118] sm:$0xf]
        %v2864 = vld [vmem:[%s18 + $0x11c] sm:$0xf]
        %v2865 = vld [vmem:[%s18 + $0x120] sm:$0xf]
        %v2866 = vld [vmem:[%s18 + $0x124] sm:$0xf]
        %v2867 = vld [vmem:[%s18 + $0x128] sm:$0xf]
        %v2868 = vld [vmem:[%s18 + $0x12c] sm:$0xf]
        %v2869 = vld [vmem:[%s18 + $0x130] sm:$0xf]
        %v2870 = vld [vmem:[%s18 + $0x134] sm:$0xf]
        %v2871 = vld [vmem:[%s18 + $0x138] sm:$0xf]
        %v2872 = vld [vmem:[%s18 + $0x13c] sm:$0xf]
        %v2873 = vld [vmem:[%s18 + $0x140] sm:$0xf]
        %v2874 = vld [vmem:[%s18 + $0x144] sm:$0xf]
        %v2875 = vld [vmem:[%s18 + $0x148] sm:$0xf]
        %v2876 = vld [vmem:[%s18 + $0x14c] sm:$0xf]
        %v2877 = vld [vmem:[%s18 + $0x150] sm:$0xf]
        %v2878 = vld [vmem:[%s18 + $0x154] sm:$0xf]
        %v2879 = vld [vmem:[%s18 + $0x158] sm:$0xf]
        %v2880 = vld [vmem:[%s18 + $0x15c] sm:$0xf]
        %v2881 = vld [vmem:[%s18 + $0x160] sm:$0xf]
        %v2882 = vld [vmem:[%s18 + $0x164] sm:$0xf]
        %v2883 = vld [vmem:[%s18 + $0x168] sm:$0xf]
        %v2884 = vld [vmem:[%s18 + $0x16c] sm:$0xf]
        %v2885 = vld [vmem:[%s18 + $0x170] sm:$0xf]
        %v2886 = vld [vmem:[%s18 + $0x174] sm:$0xf]
        %v2887 = vld [vmem:[%s18 + $0x178] sm:$0xf]
        %v2888 = vld [vmem:[%s18 + $0x17c] sm:$0xf]
        %v2889 = vld [vmem:[%s18 + $0x180] sm:$0xf]
        %v2890 = vld [vmem:[%s18 + $0x184] sm:$0xf]
        %v2891 = vld [vmem:[%s18 + $0x188] sm:$0xf]
        %v2892 = vld [vmem:[%s18 + $0x18c] sm:$0xf]
        %v2893 = vld [vmem:[%s18 + $0x190] sm:$0xf]
        %v2894 = vld [vmem:[%s18 + $0x194] sm:$0xf]
        %v2895 = vld [vmem:[%s18 + $0x198] sm:$0xf]
        %v2896 = vld [vmem:[%s18 + $0x19c] sm:$0xf]
        %v2897 = vld [vmem:[%s18 + $0x1a0] sm:$0xf]
        %v2898 = vld [vmem:[%s18 + $0x1a4] sm:$0xf]
        %v2899 = vld [vmem:[%s18 + $0x1a8] sm:$0xf]
        %v2900 = vld [vmem:[%s18 + $0x1ac] sm:$0xf]
        %v2901 = vld [vmem:[%s18 + $0x1b0] sm:$0xf]
        %v2902 = vld [vmem:[%s18 + $0x1b4] sm:$0xf]
        %v2903 = vld [vmem:[%s18 + $0x1b8] sm:$0xf]
        %v2904 = vld [vmem:[%s18 + $0x1bc] sm:$0xf]
        %v2905 = vld [vmem:[%s18 + $0x1c0] sm:$0xf]
        %v2906 = vld [vmem:[%s18 + $0x1c4] sm:$0xf]
        %v2907 = vld [vmem:[%s18 + $0x1c8] sm:$0xf]
        %v2908 = vld [vmem:[%s18 + $0x1cc] sm:$0xf]
        %v2909 = vld [vmem:[%s18 + $0x1d0] sm:$0xf]
        %v2910 = vld [vmem:[%s18 + $0x1d4] sm:$0xf]
        %v2911 = vld [vmem:[%s18 + $0x1d8] sm:$0xf]
        %v2912 = vld [vmem:[%s18 + $0x1dc] sm:$0xf]
        %v2913 = vld [vmem:[%s18 + $0x1e0] sm:$0xf]
        %v2914 = vld [vmem:[%s18 + $0x1e4] sm:$0xf]
        %v2915 = vld [vmem:[%s18 + $0x1e8] sm:$0xf]
        %v2916 = vld [vmem:[%s18 + $0x1ec] sm:$0xf]
        %v2917 = vld [vmem:[%s18 + $0x1f0] sm:$0xf]
        %v2918 = vld [vmem:[%s18 + $0x1f4] sm:$0xf]
        %v2919 = vld [vmem:[%s18 + $0x1f8] sm:$0xf]
        %v2920 = vld [vmem:[%s18 + $0x1fc] sm:$0xf]
        %v2921 = vld [vmem:[%s18 + $0x200] sm:$0xf]
        %v2922 = vld [vmem:[%s18 + $0x204] sm:$0xf]
        %v2923 = vld [vmem:[%s18 + $0x208] sm:$0xf]
        %v2924 = vld [vmem:[%s18 + $0x20c] sm:$0xf]
        %v2925 = vld [vmem:[%s18 + $0x210] sm:$0xf]
        %v2926 = vld [vmem:[%s18 + $0x214] sm:$0xf]
        %v2927 = vld [vmem:[%s18 + $0x218] sm:$0xf]
        %v2928 = vld [vmem:[%s18 + $0x21c] sm:$0xf]
        %v2929 = vld [vmem:[%s18 + $0x220] sm:$0xf]
        %v2930 = vld [vmem:[%s18 + $0x224] sm:$0xf]
        %v2931 = vld [vmem:[%s18 + $0x228] sm:$0xf]
        %v2932 = vld [vmem:[%s18 + $0x22c] sm:$0xf]
        %v2933 = vld [vmem:[%s18 + $0x230] sm:$0xf]
        %v2934 = vld [vmem:[%s18 + $0x234] sm:$0xf]
        %v2935 = vld [vmem:[%s18 + $0x238] sm:$0xf]
        %v2936 = vld [vmem:[%s18 + $0x23c] sm:$0xf]
        %v2937 = vld [vmem:[%s18 + $0x240] sm:$0xf]
        %v2938 = vld [vmem:[%s18 + $0x244] sm:$0xf]
        %v2939 = vld [vmem:[%s18 + $0x248] sm:$0xf]
        %v2940 = vld [vmem:[%s18 + $0x24c] sm:$0xf]
        %v2941 = vld [vmem:[%s18 + $0x250] sm:$0xf]
        %v2942 = vld [vmem:[%s18 + $0x254] sm:$0xf]
        %v2943 = vld [vmem:[%s18 + $0x258] sm:$0xf]
        %v2944 = vld [vmem:[%s18 + $0x25c] sm:$0xf]
        %v2945 = vld [vmem:[%s18 + $0x260] sm:$0xf]
        %v2946 = vld [vmem:[%s18 + $0x264] sm:$0xf]
        %v2947 = vld [vmem:[%s18 + $0x268] sm:$0xf]
        %v2948 = vld [vmem:[%s18 + $0x26c] sm:$0xf]
        %v2949 = vld [vmem:[%s18 + $0x270] sm:$0xf]
        %v2950 = vld [vmem:[%s18 + $0x274] sm:$0xf]
        %v2951 = vld [vmem:[%s18 + $0x278] sm:$0xf]
        %v2952 = vld [vmem:[%s18 + $0x27c] sm:$0xf]
        %v2953 = vld [vmem:[%s18 + $0x280] sm:$0xf]
        %v2954 = vld [vmem:[%s18 + $0x284] sm:$0xf]
        %v2955 = vld [vmem:[%s18 + $0x288] sm:$0xf]
        %v2956 = vld [vmem:[%s18 + $0x28c] sm:$0xf]
        %v2957 = vld [vmem:[%s18 + $0x290] sm:$0xf]
        %v2958 = vld [vmem:[%s18 + $0x294] sm:$0xf]
        %v2959 = vld [vmem:[%s18 + $0x298] sm:$0xf]
        %v2960 = vld [vmem:[%s18 + $0x29c] sm:$0xf]
        %v2961 = vld [vmem:[%s18 + $0x2a0] sm:$0xf]
        %v2962 = vld [vmem:[%s18 + $0x2a4] sm:$0xf]
        %v2963 = vld [vmem:[%s18 + $0x2a8] sm:$0xf]
        %v2964 = vld [vmem:[%s18 + $0x2ac] sm:$0xf]
        %v2965 = vld [vmem:[%s18 + $0x2b0] sm:$0xf]
        %v2966 = vld [vmem:[%s18 + $0x2b4] sm:$0xf]
        %v2967 = vld [vmem:[%s18 + $0x2b8] sm:$0xf]
        %v2968 = vld [vmem:[%s18 + $0x2bc] sm:$0xf]
        %v2969 = vld [vmem:[%s18 + $0x2c0] sm:$0xf]
        %v2970 = vld [vmem:[%s18 + $0x2c4] sm:$0xf]
        %v2971 = vld [vmem:[%s18 + $0x2c8] sm:$0xf]
        %v2972 = vld [vmem:[%s18 + $0x2cc] sm:$0xf]
        %v2973 = vld [vmem:[%s18 + $0x2d0] sm:$0xf]
        %v2974 = vld [vmem:[%s18 + $0x2d4] sm:$0xf]
        %v2975 = vld [vmem:[%s18 + $0x2d8] sm:$0xf]
        %v2976 = vld [vmem:[%s18 + $0x2dc] sm:$0xf]
        %v2977 = vld [vmem:[%s18 + $0x2e0] sm:$0xf]
        %v2978 = vld [vmem:[%s18 + $0x2e4] sm:$0xf]
        %v2979 = vld [vmem:[%s18 + $0x2e8] sm:$0xf]
        %v2980 = vld [vmem:[%s18 + $0x2ec] sm:$0xf]
        %v2981 = vld [vmem:[%s18 + $0x2f0] sm:$0xf]
        %v2982 = vld [vmem:[%s18 + $0x2f4] sm:$0xf]
        %v2983 = vld [vmem:[%s18 + $0x2f8] sm:$0xf]
        %v2984 = vld [vmem:[%s18 + $0x2fc] sm:$0xf]
        %v2985 = vld [vmem:[%s18 + $0x300] sm:$0xf]
        %v2986 = vld [vmem:[%s18 + $0x304] sm:$0xf]
        %v2987 = vld [vmem:[%s18 + $0x308] sm:$0xf]
        %v2988 = vld [vmem:[%s18 + $0x30c] sm:$0xf]
        %v2989 = vld [vmem:[%s18 + $0x310] sm:$0xf]
        %v2990 = vld [vmem:[%s18 + $0x314] sm:$0xf]
        %v2991 = vld [vmem:[%s18 + $0x318] sm:$0xf]
        %v2992 = vld [vmem:[%s18 + $0x31c] sm:$0xf]
        %v2993 = vld [vmem:[%s18 + $0x320] sm:$0xf]
        %v2994 = vld [vmem:[%s18 + $0x324] sm:$0xf]
        %v2995 = vld [vmem:[%s18 + $0x328] sm:$0xf]
        %v2996 = vld [vmem:[%s18 + $0x32c] sm:$0xf]
        %v2997 = vld [vmem:[%s18 + $0x330] sm:$0xf]
        %v2998 = vld [vmem:[%s18 + $0x334] sm:$0xf]
        %v2999 = vld [vmem:[%s18 + $0x338] sm:$0xf]
        %v3000 = vld [vmem:[%s18 + $0x33c] sm:$0xf]
        %v3001 = vld [vmem:[%s18 + $0x340] sm:$0xf]
        %v3002 = vld [vmem:[%s18 + $0x344] sm:$0xf]
        %v3003 = vld [vmem:[%s18 + $0x348] sm:$0xf]
        %v3004 = vld [vmem:[%s18 + $0x34c] sm:$0xf]
        %v3005 = vld [vmem:[%s18 + $0x350] sm:$0xf]
        %v3006 = vld [vmem:[%s18 + $0x354] sm:$0xf]
        %v3007 = vld [vmem:[%s18 + $0x358] sm:$0xf]
        %v3008 = vld [vmem:[%s18 + $0x35c] sm:$0xf]
        %v3009 = vld [vmem:[%s18 + $0x360] sm:$0xf]
        %v3010 = vld [vmem:[%s18 + $0x364] sm:$0xf]
        %v3011 = vld [vmem:[%s18 + $0x368] sm:$0xf]
        %v3012 = vld [vmem:[%s18 + $0x36c] sm:$0xf]
        %v3013 = vld [vmem:[%s18 + $0x370] sm:$0xf]
        %v3014 = vld [vmem:[%s18 + $0x374] sm:$0xf]
        %v3015 = vld [vmem:[%s18 + $0x378] sm:$0xf]
        %v3016 = vld [vmem:[%s18 + $0x37c] sm:$0xf]
        %v3017 = vld [vmem:[%s18 + $0x380] sm:$0xf]
        %v3018 = vld [vmem:[%s18 + $0x384] sm:$0xf]
        %v3019 = vld [vmem:[%s18 + $0x388] sm:$0xf]
        %v3020 = vld [vmem:[%s18 + $0x38c] sm:$0xf]
        %v3021 = vld [vmem:[%s18 + $0x390] sm:$0xf]
        %v3022 = vld [vmem:[%s18 + $0x394] sm:$0xf]
        %v3023 = vld [vmem:[%s18 + $0x398] sm:$0xf]
        %v3024 = vld [vmem:[%s18 + $0x39c] sm:$0xf]
        %v3025 = vld [vmem:[%s18 + $0x3a0] sm:$0xf]
        %v3026 = vld [vmem:[%s18 + $0x3a4] sm:$0xf]
        %v3027 = vld [vmem:[%s18 + $0x3a8] sm:$0xf]
        %v3028 = vld [vmem:[%s18 + $0x3ac] sm:$0xf]
        %v3029 = vld [vmem:[%s18 + $0x3b0] sm:$0xf]
        %v3030 = vld [vmem:[%s18 + $0x3b4] sm:$0xf]
        %v3031 = vld [vmem:[%s18 + $0x3b8] sm:$0xf]
        %v3032 = vld [vmem:[%s18 + $0x3bc] sm:$0xf]
        %v3033 = vld [vmem:[%s18 + $0x3c0] sm:$0xf]
        %v3034 = vld [vmem:[%s18 + $0x3c4] sm:$0xf]
        %v3035 = vld [vmem:[%s18 + $0x3c8] sm:$0xf]
        %v3036 = vld [vmem:[%s18 + $0x3cc] sm:$0xf]
        %v3037 = vld [vmem:[%s18 + $0x3d0] sm:$0xf]
        %v3038 = vld [vmem:[%s18 + $0x3d4] sm:$0xf]
        %v3039 = vld [vmem:[%s18 + $0x3d8] sm:$0xf]
        %v3040 = vld [vmem:[%s18 + $0x3dc] sm:$0xf]
        %v3041 = vld [vmem:[%s18 + $0x3e0] sm:$0xf]
        %v3042 = vld [vmem:[%s18 + $0x3e4] sm:$0xf]
        %v3043 = vld [vmem:[%s18 + $0x3e8] sm:$0xf]
        %v3044 = vld [vmem:[%s18 + $0x3ec] sm:$0xf]
        %v3045 = vld [vmem:[%s18 + $0x3f0] sm:$0xf]
        %v3046 = vld [vmem:[%s18 + $0x3f4] sm:$0xf]
        %v3047 = vld [vmem:[%s18 + $0x3f8] sm:$0xf]
        %v3048 = vld [vmem:[%s18 + $0x3fc] sm:$0xf]
        %v3049 = vld [vmem:[%s19] sm:$0x1]
        %v3050 = vlaneseq
        %v3051 = vshrl.u32 %v3050, 7
        %v3052 = vsub.s32 0, %v3051
        %v3053 = vrot.slane %v3049, %v3052
        %v3310 = vunpack.c.l.b16 %v2793
        %v3311 = vunpack.c.l.b16 %v2794
        %v3312 = vunpack.c.l.b16 %v2795
        %v3313 = vunpack.c.l.b16 %v2796
        %v3314 = vunpack.c.l.b16 %v2797
        %v3315 = vunpack.c.l.b16 %v2798
        %v3316 = vunpack.c.l.b16 %v2799
        %v3317 = vunpack.c.l.b16 %v2800
        %v3318 = vunpack.c.l.b16 %v2801
        %v3319 = vunpack.c.l.b16 %v2802
        %v3320 = vunpack.c.l.b16 %v2803
        %v3321 = vunpack.c.l.b16 %v2804
        %v3322 = vunpack.c.l.b16 %v2805
        %v3323 = vunpack.c.l.b16 %v2806
        %v3324 = vunpack.c.l.b16 %v2807
        %v3325 = vunpack.c.l.b16 %v2808
        %v3326 = vunpack.c.l.b16 %v2809
        %v3327 = vunpack.c.l.b16 %v2810
        %v3328 = vunpack.c.l.b16 %v2811
        %v3329 = vunpack.c.l.b16 %v2812
        %v3330 = vunpack.c.l.b16 %v2813
        %v3331 = vunpack.c.l.b16 %v2814
        %v3332 = vunpack.c.l.b16 %v2815
        %v3333 = vunpack.c.l.b16 %v2816
        %v3334 = vunpack.c.l.b16 %v2817
        %v3335 = vunpack.c.l.b16 %v2818
        %v3336 = vunpack.c.l.b16 %v2819
        %v3337 = vunpack.c.l.b16 %v2820
        %v3338 = vunpack.c.l.b16 %v2821
        %v3339 = vunpack.c.l.b16 %v2822
        %v3340 = vunpack.c.l.b16 %v2823
        %v3341 = vunpack.c.l.b16 %v2824
        %v3342 = vunpack.c.l.b16 %v2825
        %v3343 = vunpack.c.l.b16 %v2826
        %v3344 = vunpack.c.l.b16 %v2827
        %v3345 = vunpack.c.l.b16 %v2828
        %v3346 = vunpack.c.l.b16 %v2829
        %v3347 = vunpack.c.l.b16 %v2830
        %v3348 = vunpack.c.l.b16 %v2831
        %v3349 = vunpack.c.l.b16 %v2832
        %v3350 = vunpack.c.l.b16 %v2833
        %v3351 = vunpack.c.l.b16 %v2834
        %v3352 = vunpack.c.l.b16 %v2835
        %v3353 = vunpack.c.l.b16 %v2836
        %v3354 = vunpack.c.l.b16 %v2837
        %v3355 = vunpack.c.l.b16 %v2838
        %v3356 = vunpack.c.l.b16 %v2839
        %v3357 = vunpack.c.l.b16 %v2840
        %v3358 = vunpack.c.l.b16 %v2841
        %v3359 = vunpack.c.l.b16 %v2842
        %v3360 = vunpack.c.l.b16 %v2843
        %v3361 = vunpack.c.l.b16 %v2844
        %v3362 = vunpack.c.l.b16 %v2845
        %v3363 = vunpack.c.l.b16 %v2846
        %v3364 = vunpack.c.l.b16 %v2847
        %v3365 = vunpack.c.l.b16 %v2848
        %v3366 = vunpack.c.l.b16 %v2849
        %v3367 = vunpack.c.l.b16 %v2850
        %v3368 = vunpack.c.l.b16 %v2851
        %v3369 = vunpack.c.l.b16 %v2852
        %v3370 = vunpack.c.l.b16 %v2853
        %v3371 = vunpack.c.l.b16 %v2854
        %v3372 = vunpack.c.l.b16 %v2855
        %v3373 = vunpack.c.l.b16 %v2856
        %v3374 = vunpack.c.l.b16 %v2857
        %v3375 = vunpack.c.l.b16 %v2858
        %v3376 = vunpack.c.l.b16 %v2859
        %v3377 = vunpack.c.l.b16 %v2860
        %v3378 = vunpack.c.l.b16 %v2861
        %v3379 = vunpack.c.l.b16 %v2862
        %v3380 = vunpack.c.l.b16 %v2863
        %v3381 = vunpack.c.l.b16 %v2864
        %v3382 = vunpack.c.l.b16 %v2865
        %v3383 = vunpack.c.l.b16 %v2866
        %v3384 = vunpack.c.l.b16 %v2867
        %v3385 = vunpack.c.l.b16 %v2868
        %v3386 = vunpack.c.l.b16 %v2869
        %v3387 = vunpack.c.l.b16 %v2870
        %v3388 = vunpack.c.l.b16 %v2871
        %v3389 = vunpack.c.l.b16 %v2872
        %v3390 = vunpack.c.l.b16 %v2873
        %v3391 = vunpack.c.l.b16 %v2874
        %v3392 = vunpack.c.l.b16 %v2875
        %v3393 = vunpack.c.l.b16 %v2876
        %v3394 = vunpack.c.l.b16 %v2877
        %v3395 = vunpack.c.l.b16 %v2878
        %v3396 = vunpack.c.l.b16 %v2879
        %v3397 = vunpack.c.l.b16 %v2880
        %v3398 = vunpack.c.l.b16 %v2881
        %v3399 = vunpack.c.l.b16 %v2882
        %v3400 = vunpack.c.l.b16 %v2883
        %v3401 = vunpack.c.l.b16 %v2884
        %v3402 = vunpack.c.l.b16 %v2885
        %v3403 = vunpack.c.l.b16 %v2886
        %v3404 = vunpack.c.l.b16 %v2887
        %v3405 = vunpack.c.l.b16 %v2888
        %v3406 = vunpack.c.l.b16 %v2889
        %v3407 = vunpack.c.l.b16 %v2890
        %v3408 = vunpack.c.l.b16 %v2891
        %v3409 = vunpack.c.l.b16 %v2892
        %v3410 = vunpack.c.l.b16 %v2893
        %v3411 = vunpack.c.l.b16 %v2894
        %v3412 = vunpack.c.l.b16 %v2895
        %v3413 = vunpack.c.l.b16 %v2896
        %v3414 = vunpack.c.l.b16 %v2897
        %v3415 = vunpack.c.l.b16 %v2898
        %v3416 = vunpack.c.l.b16 %v2899
        %v3417 = vunpack.c.l.b16 %v2900
        %v3418 = vunpack.c.l.b16 %v2901
        %v3419 = vunpack.c.l.b16 %v2902
        %v3420 = vunpack.c.l.b16 %v2903
        %v3421 = vunpack.c.l.b16 %v2904
        %v3422 = vunpack.c.l.b16 %v2905
        %v3423 = vunpack.c.l.b16 %v2906
        %v3424 = vunpack.c.l.b16 %v2907
        %v3425 = vunpack.c.l.b16 %v2908
        %v3426 = vunpack.c.l.b16 %v2909
        %v3427 = vunpack.c.l.b16 %v2910
        %v3428 = vunpack.c.l.b16 %v2911
        %v3429 = vunpack.c.l.b16 %v2912
        %v3430 = vunpack.c.l.b16 %v2913
        %v3431 = vunpack.c.l.b16 %v2914
        %v3432 = vunpack.c.l.b16 %v2915
        %v3433 = vunpack.c.l.b16 %v2916
        %v3434 = vunpack.c.l.b16 %v2917
        %v3435 = vunpack.c.l.b16 %v2918
        %v3436 = vunpack.c.l.b16 %v2919
        %v3437 = vunpack.c.l.b16 %v2920
        %v3438 = vunpack.c.l.b16 %v2921
        %v3439 = vunpack.c.l.b16 %v2922
        %v3440 = vunpack.c.l.b16 %v2923
        %v3441 = vunpack.c.l.b16 %v2924
        %v3442 = vunpack.c.l.b16 %v2925
        %v3443 = vunpack.c.l.b16 %v2926
        %v3444 = vunpack.c.l.b16 %v2927
        %v3445 = vunpack.c.l.b16 %v2928
        %v3446 = vunpack.c.l.b16 %v2929
        %v3447 = vunpack.c.l.b16 %v2930
        %v3448 = vunpack.c.l.b16 %v2931
        %v3449 = vunpack.c.l.b16 %v2932
        %v3450 = vunpack.c.l.b16 %v2933
        %v3451 = vunpack.c.l.b16 %v2934
        %v3452 = vunpack.c.l.b16 %v2935
        %v3453 = vunpack.c.l.b16 %v2936
        %v3454 = vunpack.c.l.b16 %v2937
        %v3455 = vunpack.c.l.b16 %v2938
        %v3456 = vunpack.c.l.b16 %v2939
        %v3457 = vunpack.c.l.b16 %v2940
        %v3458 = vunpack.c.l.b16 %v2941
        %v3459 = vunpack.c.l.b16 %v2942
        %v3460 = vunpack.c.l.b16 %v2943
        %v3461 = vunpack.c.l.b16 %v2944
        %v3462 = vunpack.c.l.b16 %v2945
        %v3463 = vunpack.c.l.b16 %v2946
        %v3464 = vunpack.c.l.b16 %v2947
        %v3465 = vunpack.c.l.b16 %v2948
        %v3466 = vunpack.c.l.b16 %v2949
        %v3467 = vunpack.c.l.b16 %v2950
        %v3468 = vunpack.c.l.b16 %v2951
        %v3469 = vunpack.c.l.b16 %v2952
        %v3470 = vunpack.c.l.b16 %v2953
        %v3471 = vunpack.c.l.b16 %v2954
        %v3472 = vunpack.c.l.b16 %v2955
        %v3473 = vunpack.c.l.b16 %v2956
        %v3474 = vunpack.c.l.b16 %v2957
        %v3475 = vunpack.c.l.b16 %v2958
        %v3476 = vunpack.c.l.b16 %v2959
        %v3477 = vunpack.c.l.b16 %v2960
        %v3478 = vunpack.c.l.b16 %v2961
        %v3479 = vunpack.c.l.b16 %v2962
        %v3480 = vunpack.c.l.b16 %v2963
        %v3481 = vunpack.c.l.b16 %v2964
        %v3482 = vunpack.c.l.b16 %v2965
        %v3483 = vunpack.c.l.b16 %v2966
        %v3484 = vunpack.c.l.b16 %v2967
        %v3485 = vunpack.c.l.b16 %v2968
        %v3486 = vunpack.c.l.b16 %v2969
        %v3487 = vunpack.c.l.b16 %v2970
        %v3488 = vunpack.c.l.b16 %v2971
        %v3489 = vunpack.c.l.b16 %v2972
        %v3490 = vunpack.c.l.b16 %v2973
        %v3491 = vunpack.c.l.b16 %v2974
        %v3492 = vunpack.c.l.b16 %v2975
        %v3493 = vunpack.c.l.b16 %v2976
        %v3494 = vunpack.c.l.b16 %v2977
        %v3495 = vunpack.c.l.b16 %v2978
        %v3496 = vunpack.c.l.b16 %v2979
        %v3497 = vunpack.c.l.b16 %v2980
        %v3498 = vunpack.c.l.b16 %v2981
        %v3499 = vunpack.c.l.b16 %v2982
        %v3500 = vunpack.c.l.b16 %v2983
        %v3501 = vunpack.c.l.b16 %v2984
        %v3502 = vunpack.c.l.b16 %v2985
        %v3503 = vunpack.c.l.b16 %v2986
        %v3504 = vunpack.c.l.b16 %v2987
        %v3505 = vunpack.c.l.b16 %v2988
        %v3506 = vunpack.c.l.b16 %v2989
        %v3507 = vunpack.c.l.b16 %v2990
        %v3508 = vunpack.c.l.b16 %v2991
        %v3509 = vunpack.c.l.b16 %v2992
        %v3510 = vunpack.c.l.b16 %v2993
        %v3511 = vunpack.c.l.b16 %v2994
        %v3512 = vunpack.c.l.b16 %v2995
        %v3513 = vunpack.c.l.b16 %v2996
        %v3514 = vunpack.c.l.b16 %v2997
        %v3515 = vunpack.c.l.b16 %v2998
        %v3516 = vunpack.c.l.b16 %v2999
        %v3517 = vunpack.c.l.b16 %v3000
        %v3518 = vunpack.c.l.b16 %v3001
        %v3519 = vunpack.c.l.b16 %v3002
        %v3520 = vunpack.c.l.b16 %v3003
        %v3521 = vunpack.c.l.b16 %v3004
        %v3522 = vunpack.c.l.b16 %v3005
        %v3523 = vunpack.c.l.b16 %v3006
        %v3524 = vunpack.c.l.b16 %v3007
        %v3525 = vunpack.c.l.b16 %v3008
        %v3526 = vunpack.c.l.b16 %v3009
        %v3527 = vunpack.c.l.b16 %v3010
        %v3528 = vunpack.c.l.b16 %v3011
        %v3529 = vunpack.c.l.b16 %v3012
        %v3530 = vunpack.c.l.b16 %v3013
        %v3531 = vunpack.c.l.b16 %v3014
        %v3532 = vunpack.c.l.b16 %v3015
        %v3533 = vunpack.c.l.b16 %v3016
        %v3534 = vunpack.c.l.b16 %v3017
        %v3535 = vunpack.c.l.b16 %v3018
        %v3536 = vunpack.c.l.b16 %v3019
        %v3537 = vunpack.c.l.b16 %v3020
        %v3538 = vunpack.c.l.b16 %v3021
        %v3539 = vunpack.c.l.b16 %v3022
        %v3540 = vunpack.c.l.b16 %v3023
        %v3541 = vunpack.c.l.b16 %v3024
        %v3542 = vunpack.c.l.b16 %v3025
        %v3543 = vunpack.c.l.b16 %v3026
        %v3544 = vunpack.c.l.b16 %v3027
        %v3545 = vunpack.c.l.b16 %v3028
        %v3546 = vunpack.c.l.b16 %v3029
        %v3547 = vunpack.c.l.b16 %v3030
        %v3548 = vunpack.c.l.b16 %v3031
        %v3549 = vunpack.c.l.b16 %v3032
        %v3550 = vunpack.c.l.b16 %v3033
        %v3551 = vunpack.c.l.b16 %v3034
        %v3552 = vunpack.c.l.b16 %v3035
        %v3553 = vunpack.c.l.b16 %v3036
        %v3554 = vunpack.c.l.b16 %v3037
        %v3555 = vunpack.c.l.b16 %v3038
        %v3556 = vunpack.c.l.b16 %v3039
        %v3557 = vunpack.c.l.b16 %v3040
        %v3558 = vunpack.c.l.b16 %v3041
        %v3559 = vunpack.c.l.b16 %v3042
        %v3560 = vunpack.c.l.b16 %v3043
        %v3561 = vunpack.c.l.b16 %v3044
        %v3562 = vunpack.c.l.b16 %v3045
        %v3563 = vunpack.c.l.b16 %v3046
        %v3564 = vunpack.c.l.b16 %v3047
        %v3565 = vunpack.c.l.b16 %v3048
        %v3566 = vpack.c.b16 %v3311, %v3310
        %v3567 = vpack.c.b16 %v3313, %v3312
        %v3568 = vpack.c.b16 %v3315, %v3314
        %v3569 = vpack.c.b16 %v3317, %v3316
        %v3570 = vpack.c.b16 %v3319, %v3318
        %v3571 = vpack.c.b16 %v3321, %v3320
        %v3572 = vpack.c.b16 %v3323, %v3322
        %v3573 = vpack.c.b16 %v3325, %v3324
        %v3574 = vpack.c.b16 %v3327, %v3326
        %v3575 = vpack.c.b16 %v3329, %v3328
        %v3576 = vpack.c.b16 %v3331, %v3330
        %v3577 = vpack.c.b16 %v3333, %v3332
        %v3578 = vpack.c.b16 %v3335, %v3334
        %v3579 = vpack.c.b16 %v3337, %v3336
        %v3580 = vpack.c.b16 %v3339, %v3338
        %v3581 = vpack.c.b16 %v3341, %v3340
        %v3582 = vpack.c.b16 %v3343, %v3342
        %v3583 = vpack.c.b16 %v3345, %v3344
        %v3584 = vpack.c.b16 %v3347, %v3346
        %v3585 = vpack.c.b16 %v3349, %v3348
        %v3586 = vpack.c.b16 %v3351, %v3350
        %v3587 = vpack.c.b16 %v3353, %v3352
        %v3588 = vpack.c.b16 %v3355, %v3354
        %v3589 = vpack.c.b16 %v3357, %v3356
        %v3590 = vpack.c.b16 %v3359, %v3358
        %v3591 = vpack.c.b16 %v3361, %v3360
        %v3592 = vpack.c.b16 %v3363, %v3362
        %v3593 = vpack.c.b16 %v3365, %v3364
        %v3594 = vpack.c.b16 %v3367, %v3366
        %v3595 = vpack.c.b16 %v3369, %v3368
        %v3596 = vpack.c.b16 %v3371, %v3370
        %v3597 = vpack.c.b16 %v3373, %v3372
        %v3598 = vpack.c.b16 %v3375, %v3374
        %v3599 = vpack.c.b16 %v3377, %v3376
        %v3600 = vpack.c.b16 %v3379, %v3378
        %v3601 = vpack.c.b16 %v3381, %v3380
        %v3602 = vpack.c.b16 %v3383, %v3382
        %v3603 = vpack.c.b16 %v3385, %v3384
        %v3604 = vpack.c.b16 %v3387, %v3386
        %v3605 = vpack.c.b16 %v3389, %v3388
        %v3606 = vpack.c.b16 %v3391, %v3390
        %v3607 = vpack.c.b16 %v3393, %v3392
        %v3608 = vpack.c.b16 %v3395, %v3394
        %v3609 = vpack.c.b16 %v3397, %v3396
        %v3610 = vpack.c.b16 %v3399, %v3398
        %v3611 = vpack.c.b16 %v3401, %v3400
        %v3612 = vpack.c.b16 %v3403, %v3402
        %v3613 = vpack.c.b16 %v3405, %v3404
        %v3614 = vpack.c.b16 %v3407, %v3406
        %v3615 = vpack.c.b16 %v3409, %v3408
        %v3616 = vpack.c.b16 %v3411, %v3410
        %v3617 = vpack.c.b16 %v3413, %v3412
        %v3618 = vpack.c.b16 %v3415, %v3414
        %v3619 = vpack.c.b16 %v3417, %v3416
        %v3620 = vpack.c.b16 %v3419, %v3418
        %v3621 = vpack.c.b16 %v3421, %v3420
        %v3622 = vpack.c.b16 %v3423, %v3422
        %v3623 = vpack.c.b16 %v3425, %v3424
        %v3624 = vpack.c.b16 %v3427, %v3426
        %v3625 = vpack.c.b16 %v3429, %v3428
        %v3626 = vpack.c.b16 %v3431, %v3430
        %v3627 = vpack.c.b16 %v3433, %v3432
        %v3628 = vpack.c.b16 %v3435, %v3434
        %v3629 = vpack.c.b16 %v3437, %v3436
        %v3630 = vpack.c.b16 %v3439, %v3438
        %v3631 = vpack.c.b16 %v3441, %v3440
        %v3632 = vpack.c.b16 %v3443, %v3442
        %v3633 = vpack.c.b16 %v3445, %v3444
        %v3634 = vpack.c.b16 %v3447, %v3446
        %v3635 = vpack.c.b16 %v3449, %v3448
        %v3636 = vpack.c.b16 %v3451, %v3450
        %v3637 = vpack.c.b16 %v3453, %v3452
        %v3638 = vpack.c.b16 %v3455, %v3454
        %v3639 = vpack.c.b16 %v3457, %v3456
        %v3640 = vpack.c.b16 %v3459, %v3458
        %v3641 = vpack.c.b16 %v3461, %v3460
        %v3642 = vpack.c.b16 %v3463, %v3462
        %v3643 = vpack.c.b16 %v3465, %v3464
        %v3644 = vpack.c.b16 %v3467, %v3466
        %v3645 = vpack.c.b16 %v3469, %v3468
        %v3646 = vpack.c.b16 %v3471, %v3470
        %v3647 = vpack.c.b16 %v3473, %v3472
        %v3648 = vpack.c.b16 %v3475, %v3474
        %v3649 = vpack.c.b16 %v3477, %v3476
        %v3650 = vpack.c.b16 %v3479, %v3478
        %v3651 = vpack.c.b16 %v3481, %v3480
        %v3652 = vpack.c.b16 %v3483, %v3482
        %v3653 = vpack.c.b16 %v3485, %v3484
        %v3654 = vpack.c.b16 %v3487, %v3486
        %v3655 = vpack.c.b16 %v3489, %v3488
        %v3656 = vpack.c.b16 %v3491, %v3490
        %v3657 = vpack.c.b16 %v3493, %v3492
        %v3658 = vpack.c.b16 %v3495, %v3494
        %v3659 = vpack.c.b16 %v3497, %v3496
        %v3660 = vpack.c.b16 %v3499, %v3498
        %v3661 = vpack.c.b16 %v3501, %v3500
        %v3662 = vpack.c.b16 %v3503, %v3502
        %v3663 = vpack.c.b16 %v3505, %v3504
        %v3664 = vpack.c.b16 %v3507, %v3506
        %v3665 = vpack.c.b16 %v3509, %v3508
        %v3666 = vpack.c.b16 %v3511, %v3510
        %v3667 = vpack.c.b16 %v3513, %v3512
        %v3668 = vpack.c.b16 %v3515, %v3514
        %v3669 = vpack.c.b16 %v3517, %v3516
        %v3670 = vpack.c.b16 %v3519, %v3518
        %v3671 = vpack.c.b16 %v3521, %v3520
        %v3672 = vpack.c.b16 %v3523, %v3522
        %v3673 = vpack.c.b16 %v3525, %v3524
        %v3674 = vpack.c.b16 %v3527, %v3526
        %v3675 = vpack.c.b16 %v3529, %v3528
        %v3676 = vpack.c.b16 %v3531, %v3530
        %v3677 = vpack.c.b16 %v3533, %v3532
        %v3678 = vpack.c.b16 %v3535, %v3534
        %v3679 = vpack.c.b16 %v3537, %v3536
        %v3680 = vpack.c.b16 %v3539, %v3538
        %v3681 = vpack.c.b16 %v3541, %v3540
        %v3682 = vpack.c.b16 %v3543, %v3542
        %v3683 = vpack.c.b16 %v3545, %v3544
        %v3684 = vpack.c.b16 %v3547, %v3546
        %v3685 = vpack.c.b16 %v3549, %v3548
        %v3686 = vpack.c.b16 %v3551, %v3550
        %v3687 = vpack.c.b16 %v3553, %v3552
        %v3688 = vpack.c.b16 %v3555, %v3554
        %v3689 = vpack.c.b16 %v3557, %v3556
        %v3690 = vpack.c.b16 %v3559, %v3558
        %v3691 = vpack.c.b16 %v3561, %v3560
        %v3692 = vpack.c.b16 %v3563, %v3562
        %v3693 = vpack.c.b16 %v3565, %v3564
        %3822 = vmatprep.subr.bf16.mxu0 0
        %3823 = vmatpush1.bf16.msra.mxu0 %v3566
        %3824 = vmatprep.subr.bf16.mxu0 0
        %3825 = vmatpush1.bf16.msra.mxu0 %v3567
        %3826 = vmatprep.subr.bf16.mxu0 0
        %3827 = vmatpush1.bf16.msra.mxu0 %v3568
        %3828 = vmatprep.subr.bf16.mxu0 0
        %3829 = vmatpush1.bf16.msra.mxu0 %v3569
        %3830 = vmatprep.subr.bf16.mxu0 0
        %3831 = vmatpush1.bf16.msra.mxu0 %v3570
        %3832 = vmatprep.subr.bf16.mxu0 0
        %3833 = vmatpush1.bf16.msra.mxu0 %v3571
        %3834 = vmatprep.subr.bf16.mxu0 0
        %3835 = vmatpush1.bf16.msra.mxu0 %v3572
        %3836 = vmatprep.subr.bf16.mxu0 0
        %3837 = vmatpush1.bf16.msra.mxu0 %v3573
        %3838 = vmatprep.subr.bf16.mxu0 0
        %3839 = vmatpush1.bf16.msra.mxu0 %v3574
        %3840 = vmatprep.subr.bf16.mxu0 0
        %3841 = vmatpush1.bf16.msra.mxu0 %v3575
        %3842 = vmatprep.subr.bf16.mxu0 0
        %3843 = vmatpush1.bf16.msra.mxu0 %v3576
        %3844 = vmatprep.subr.bf16.mxu0 0
        %3845 = vmatpush1.bf16.msra.mxu0 %v3577
        %3846 = vmatprep.subr.bf16.mxu0 0
        %3847 = vmatpush1.bf16.msra.mxu0 %v3578
        %3848 = vmatprep.subr.bf16.mxu0 0
        %3849 = vmatpush1.bf16.msra.mxu0 %v3579
        %3850 = vmatprep.subr.bf16.mxu0 0
        %3851 = vmatpush1.bf16.msra.mxu0 %v3580
        %3852 = vmatprep.subr.bf16.mxu0 0
        %3853 = vmatpush1.bf16.msra.mxu0 %v3581
        %3854 = vmatprep.mubr.bf16.mxu0 %v2778
        %3855 = vmatmul.mubr.bf16.gmra.mrb[0].mxu0 %v2777
        %v3856 = vpop.f32.mrb[0].mxu0
        %v3857 = vadd.f32 %v3053, %v3856
        %v3858 = vpop.f32.mrb[0].mxu0
        %v3859 = vpop.f32.mrb[0].mxu0
        %v3860 = vpop.f32.mrb[0].mxu0
        %3861 = vdwg.mxu0
        %3862 = vmatprep.subr.bf16.mxu0 0
        %3863 = vmatpush1.bf16.msra.mxu0 %v3582
        %3864 = vmatprep.subr.bf16.mxu0 0
        %3865 = vmatpush1.bf16.msra.mxu0 %v3583
        %3866 = vmatprep.subr.bf16.mxu0 0
        %3867 = vmatpush1.bf16.msra.mxu0 %v3584
        %3868 = vmatprep.subr.bf16.mxu0 0
        %3869 = vmatpush1.bf16.msra.mxu0 %v3585
        %3870 = vmatprep.subr.bf16.mxu0 0
        %3871 = vmatpush1.bf16.msra.mxu0 %v3586
        %3872 = vmatprep.subr.bf16.mxu0 0
        %3873 = vmatpush1.bf16.msra.mxu0 %v3587
        %3874 = vmatprep.subr.bf16.mxu0 0
        %3875 = vmatpush1.bf16.msra.mxu0 %v3588
        %3876 = vmatprep.subr.bf16.mxu0 0
        %3877 = vmatpush1.bf16.msra.mxu0 %v3589
        %3878 = vmatprep.subr.bf16.mxu0 0
        %3879 = vmatpush1.bf16.msra.mxu0 %v3590
        %3880 = vmatprep.subr.bf16.mxu0 0
        %3881 = vmatpush1.bf16.msra.mxu0 %v3591
        %3882 = vmatprep.subr.bf16.mxu0 0
        %3883 = vmatpush1.bf16.msra.mxu0 %v3592
        %3884 = vmatprep.subr.bf16.mxu0 0
        %3885 = vmatpush1.bf16.msra.mxu0 %v3593
        %3886 = vmatprep.subr.bf16.mxu0 0
        %3887 = vmatpush1.bf16.msra.mxu0 %v3594
        %3888 = vmatprep.subr.bf16.mxu0 0
        %3889 = vmatpush1.bf16.msra.mxu0 %v3595
        %3890 = vmatprep.subr.bf16.mxu0 0
        %3891 = vmatpush1.bf16.msra.mxu0 %v3596
        %3892 = vmatprep.subr.bf16.mxu0 0
        %3893 = vmatpush1.bf16.msra.mxu0 %v3597
        %3894 = vmatprep.mubr.bf16.mxu0 %v2780
        %3895 = vmatmul.mubr.bf16.gmra.mrb[0].mxu0 %v2779
        %v3896 = vpop.f32.mrb[0].mxu0
        %v3897 = vadd.f32 %v3857, %v3896
        %v3898 = vpop.f32.mrb[0].mxu0
        %v3899 = vpop.f32.mrb[0].mxu0
        %v3900 = vpop.f32.mrb[0].mxu0
        %3901 = vdwg.mxu0
        %3902 = vmatprep.subr.bf16.mxu0 0
        %3903 = vmatpush1.bf16.msra.mxu0 %v3598
        %3904 = vmatprep.subr.bf16.mxu0 0
        %3905 = vmatpush1.bf16.msra.mxu0 %v3599
        %3906 = vmatprep.subr.bf16.mxu0 0
        %3907 = vmatpush1.bf16.msra.mxu0 %v3600
        %3908 = vmatprep.subr.bf16.mxu0 0
        %3909 = vmatpush1.bf16.msra.mxu0 %v3601
        %3910 = vmatprep.subr.bf16.mxu0 0
        %3911 = vmatpush1.bf16.msra.mxu0 %v3602
        %3912 = vmatprep.subr.bf16.mxu0 0
        %3913 = vmatpush1.bf16.msra.mxu0 %v3603
        %3914 = vmatprep.subr.bf16.mxu0 0
        %3915 = vmatpush1.bf16.msra.mxu0 %v3604
        %3916 = vmatprep.subr.bf16.mxu0 0
        %3917 = vmatpush1.bf16.msra.mxu0 %v3605
        %3918 = vmatprep.subr.bf16.mxu0 0
        %3919 = vmatpush1.bf16.msra.mxu0 %v3606
        %3920 = vmatprep.subr.bf16.mxu0 0
        %3921 = vmatpush1.bf16.msra.mxu0 %v3607
        %3922 = vmatprep.subr.bf16.mxu0 0
        %3923 = vmatpush1.bf16.msra.mxu0 %v3608
        %3924 = vmatprep.subr.bf16.mxu0 0
        %3925 = vmatpush1.bf16.msra.mxu0 %v3609
        %3926 = vmatprep.subr.bf16.mxu0 0
        %3927 = vmatpush1.bf16.msra.mxu0 %v3610
        %3928 = vmatprep.subr.bf16.mxu0 0
        %3929 = vmatpush1.bf16.msra.mxu0 %v3611
        %3930 = vmatprep.subr.bf16.mxu0 0
        %3931 = vmatpush1.bf16.msra.mxu0 %v3612
        %3932 = vmatprep.subr.bf16.mxu0 0
        %3933 = vmatpush1.bf16.msra.mxu0 %v3613
        %3934 = vmatprep.mubr.bf16.mxu0 %v2782
        %3935 = vmatmul.mubr.bf16.gmra.mrb[0].mxu0 %v2781
        %v3936 = vpop.f32.mrb[0].mxu0
        %v3937 = vadd.f32 %v3897, %v3936
        %v3938 = vpop.f32.mrb[0].mxu0
        %v3939 = vpop.f32.mrb[0].mxu0
        %v3940 = vpop.f32.mrb[0].mxu0
        %3941 = vdwg.mxu0
        %3942 = vmatprep.subr.bf16.mxu0 0
        %3943 = vmatpush1.bf16.msra.mxu0 %v3614
        %3944 = vmatprep.subr.bf16.mxu0 0
        %3945 = vmatpush1.bf16.msra.mxu0 %v3615
        %3946 = vmatprep.subr.bf16.mxu0 0
        %3947 = vmatpush1.bf16.msra.mxu0 %v3616
        %3948 = vmatprep.subr.bf16.mxu0 0
        %3949 = vmatpush1.bf16.msra.mxu0 %v3617
        %3950 = vmatprep.subr.bf16.mxu0 0
        %3951 = vmatpush1.bf16.msra.mxu0 %v3618
        %3952 = vmatprep.subr.bf16.mxu0 0
        %3953 = vmatpush1.bf16.msra.mxu0 %v3619
        %3954 = vmatprep.subr.bf16.mxu0 0
        %3955 = vmatpush1.bf16.msra.mxu0 %v3620
        %3956 = vmatprep.subr.bf16.mxu0 0
        %3957 = vmatpush1.bf16.msra.mxu0 %v3621
        %3958 = vmatprep.subr.bf16.mxu0 0
        %3959 = vmatpush1.bf16.msra.mxu0 %v3622
        %3960 = vmatprep.subr.bf16.mxu0 0
        %3961 = vmatpush1.bf16.msra.mxu0 %v3623
        %3962 = vmatprep.subr.bf16.mxu0 0
        %3963 = vmatpush1.bf16.msra.mxu0 %v3624
        %3964 = vmatprep.subr.bf16.mxu0 0
        %3965 = vmatpush1.bf16.msra.mxu0 %v3625
        %3966 = vmatprep.subr.bf16.mxu0 0
        %3967 = vmatpush1.bf16.msra.mxu0 %v3626
        %3968 = vmatprep.subr.bf16.mxu0 0
        %3969 = vmatpush1.bf16.msra.mxu0 %v3627
        %3970 = vmatprep.subr.bf16.mxu0 0
        %3971 = vmatpush1.bf16.msra.mxu0 %v3628
        %3972 = vmatprep.subr.bf16.mxu0 0
        %3973 = vmatpush1.bf16.msra.mxu0 %v3629
        %3974 = vmatprep.mubr.bf16.mxu0 %v2784
        %3975 = vmatmul.mubr.bf16.gmra.mrb[0].mxu0 %v2783
        %v3976 = vpop.f32.mrb[0].mxu0
        %v3977 = vadd.f32 %v3937, %v3976
        %v3978 = vpop.f32.mrb[0].mxu0
        %v3979 = vpop.f32.mrb[0].mxu0
        %v3980 = vpop.f32.mrb[0].mxu0
        %3981 = vdwg.mxu0
        %3982 = vmatprep.subr.bf16.mxu0 0
        %3983 = vmatpush1.bf16.msra.mxu0 %v3630
        %3984 = vmatprep.subr.bf16.mxu0 0
        %3985 = vmatpush1.bf16.msra.mxu0 %v3631
        %3986 = vmatprep.subr.bf16.mxu0 0
        %3987 = vmatpush1.bf16.msra.mxu0 %v3632
        %3988 = vmatprep.subr.bf16.mxu0 0
        %3989 = vmatpush1.bf16.msra.mxu0 %v3633
        %3990 = vmatprep.subr.bf16.mxu0 0
        %3991 = vmatpush1.bf16.msra.mxu0 %v3634
        %3992 = vmatprep.subr.bf16.mxu0 0
        %3993 = vmatpush1.bf16.msra.mxu0 %v3635
        %3994 = vmatprep.subr.bf16.mxu0 0
        %3995 = vmatpush1.bf16.msra.mxu0 %v3636
        %3996 = vmatprep.subr.bf16.mxu0 0
        %3997 = vmatpush1.bf16.msra.mxu0 %v3637
        %3998 = vmatprep.subr.bf16.mxu0 0
        %3999 = vmatpush1.bf16.msra.mxu0 %v3638
        %4000 = vmatprep.subr.bf16.mxu0 0
        %4001 = vmatpush1.bf16.msra.mxu0 %v3639
        %4002 = vmatprep.subr.bf16.mxu0 0
        %4003 = vmatpush1.bf16.msra.mxu0 %v3640
        %4004 = vmatprep.subr.bf16.mxu0 0
        %4005 = vmatpush1.bf16.msra.mxu0 %v3641
        %4006 = vmatprep.subr.bf16.mxu0 0
        %4007 = vmatpush1.bf16.msra.mxu0 %v3642
        %4008 = vmatprep.subr.bf16.mxu0 0
        %4009 = vmatpush1.bf16.msra.mxu0 %v3643
        %4010 = vmatprep.subr.bf16.mxu0 0
        %4011 = vmatpush1.bf16.msra.mxu0 %v3644
        %4012 = vmatprep.subr.bf16.mxu0 0
        %4013 = vmatpush1.bf16.msra.mxu0 %v3645
        %4014 = vmatprep.mubr.bf16.mxu0 %v2786
        %4015 = vmatmul.mubr.bf16.gmra.mrb[0].mxu0 %v2785
        %v4016 = vpop.f32.mrb[0].mxu0
        %v4017 = vadd.f32 %v3977, %v4016
        %v4018 = vpop.f32.mrb[0].mxu0
        %v4019 = vpop.f32.mrb[0].mxu0
        %v4020 = vpop.f32.mrb[0].mxu0
        %4021 = vdwg.mxu0
        %4022 = vmatprep.subr.bf16.mxu0 0
        %4023 = vmatpush1.bf16.msra.mxu0 %v3646
        %4024 = vmatprep.subr.bf16.mxu0 0
        %4025 = vmatpush1.bf16.msra.mxu0 %v3647
        %4026 = vmatprep.subr.bf16.mxu0 0
        %4027 = vmatpush1.bf16.msra.mxu0 %v3648
        %4028 = vmatprep.subr.bf16.mxu0 0
        %4029 = vmatpush1.bf16.msra.mxu0 %v3649
        %4030 = vmatprep.subr.bf16.mxu0 0
        %4031 = vmatpush1.bf16.msra.mxu0 %v3650
        %4032 = vmatprep.subr.bf16.mxu0 0
        %4033 = vmatpush1.bf16.msra.mxu0 %v3651
        %4034 = vmatprep.subr.bf16.mxu0 0
        %4035 = vmatpush1.bf16.msra.mxu0 %v3652
        %4036 = vmatprep.subr.bf16.mxu0 0
        %4037 = vmatpush1.bf16.msra.mxu0 %v3653
        %4038 = vmatprep.subr.bf16.mxu0 0
        %4039 = vmatpush1.bf16.msra.mxu0 %v3654
        %4040 = vmatprep.subr.bf16.mxu0 0
        %4041 = vmatpush1.bf16.msra.mxu0 %v3655
        %4042 = vmatprep.subr.bf16.mxu0 0
        %4043 = vmatpush1.bf16.msra.mxu0 %v3656
        %4044 = vmatprep.subr.bf16.mxu0 0
        %4045 = vmatpush1.bf16.msra.mxu0 %v3657
        %4046 = vmatprep.subr.bf16.mxu0 0
        %4047 = vmatpush1.bf16.msra.mxu0 %v3658
        %4048 = vmatprep.subr.bf16.mxu0 0
        %4049 = vmatpush1.bf16.msra.mxu0 %v3659
        %4050 = vmatprep.subr.bf16.mxu0 0
        %4051 = vmatpush1.bf16.msra.mxu0 %v3660
        %4052 = vmatprep.subr.bf16.mxu0 0
        %4053 = vmatpush1.bf16.msra.mxu0 %v3661
        %4054 = vmatprep.mubr.bf16.mxu0 %v2788
        %4055 = vmatmul.mubr.bf16.gmra.mrb[0].mxu0 %v2787
        %v4056 = vpop.f32.mrb[0].mxu0
        %v4057 = vadd.f32 %v4017, %v4056
        %v4058 = vpop.f32.mrb[0].mxu0
        %v4059 = vpop.f32.mrb[0].mxu0
        %v4060 = vpop.f32.mrb[0].mxu0
        %4061 = vdwg.mxu0
        %4062 = vmatprep.subr.bf16.mxu0 0
        %4063 = vmatpush1.bf16.msra.mxu0 %v3662
        %4064 = vmatprep.subr.bf16.mxu0 0
        %4065 = vmatpush1.bf16.msra.mxu0 %v3663
        %4066 = vmatprep.subr.bf16.mxu0 0
        %4067 = vmatpush1.bf16.msra.mxu0 %v3664
        %4068 = vmatprep.subr.bf16.mxu0 0
        %4069 = vmatpush1.bf16.msra.mxu0 %v3665
        %4070 = vmatprep.subr.bf16.mxu0 0
        %4071 = vmatpush1.bf16.msra.mxu0 %v3666
        %4072 = vmatprep.subr.bf16.mxu0 0
        %4073 = vmatpush1.bf16.msra.mxu0 %v3667
        %4074 = vmatprep.subr.bf16.mxu0 0
        %4075 = vmatpush1.bf16.msra.mxu0 %v3668
        %4076 = vmatprep.subr.bf16.mxu0 0
        %4077 = vmatpush1.bf16.msra.mxu0 %v3669
        %4078 = vmatprep.subr.bf16.mxu0 0
        %4079 = vmatpush1.bf16.msra.mxu0 %v3670
        %4080 = vmatprep.subr.bf16.mxu0 0
        %4081 = vmatpush1.bf16.msra.mxu0 %v3671
        %4082 = vmatprep.subr.bf16.mxu0 0
        %4083 = vmatpush1.bf16.msra.mxu0 %v3672
        %4084 = vmatprep.subr.bf16.mxu0 0
        %4085 = vmatpush1.bf16.msra.mxu0 %v3673
        %4086 = vmatprep.subr.bf16.mxu0 0
        %4087 = vmatpush1.bf16.msra.mxu0 %v3674
        %4088 = vmatprep.subr.bf16.mxu0 0
        %4089 = vmatpush1.bf16.msra.mxu0 %v3675
        %4090 = vmatprep.subr.bf16.mxu0 0
        %4091 = vmatpush1.bf16.msra.mxu0 %v3676
        %4092 = vmatprep.subr.bf16.mxu0 0
        %4093 = vmatpush1.bf16.msra.mxu0 %v3677
        %4094 = vmatprep.mubr.bf16.mxu0 %v2790
        %4095 = vmatmul.mubr.bf16.gmra.mrb[0].mxu0 %v2789
        %v4096 = vpop.f32.mrb[0].mxu0
        %v4097 = vadd.f32 %v4057, %v4096
        %v4098 = vpop.f32.mrb[0].mxu0
        %v4099 = vpop.f32.mrb[0].mxu0
        %v4100 = vpop.f32.mrb[0].mxu0
        %4101 = vdwg.mxu0
        %4102 = vmatprep.subr.bf16.mxu0 0
        %4103 = vmatpush1.bf16.msra.mxu0 %v3678
        %4104 = vmatprep.subr.bf16.mxu0 0
        %4105 = vmatpush1.bf16.msra.mxu0 %v3679
        %4106 = vmatprep.subr.bf16.mxu0 0
        %4107 = vmatpush1.bf16.msra.mxu0 %v3680
        %4108 = vmatprep.subr.bf16.mxu0 0
        %4109 = vmatpush1.bf16.msra.mxu0 %v3681
        %4110 = vmatprep.subr.bf16.mxu0 0
        %4111 = vmatpush1.bf16.msra.mxu0 %v3682
        %4112 = vmatprep.subr.bf16.mxu0 0
        %4113 = vmatpush1.bf16.msra.mxu0 %v3683
        %4114 = vmatprep.subr.bf16.mxu0 0
        %4115 = vmatpush1.bf16.msra.mxu0 %v3684
        %4116 = vmatprep.subr.bf16.mxu0 0
        %4117 = vmatpush1.bf16.msra.mxu0 %v3685
        %4118 = vmatprep.subr.bf16.mxu0 0
        %4119 = vmatpush1.bf16.msra.mxu0 %v3686
        %4120 = vmatprep.subr.bf16.mxu0 0
        %4121 = vmatpush1.bf16.msra.mxu0 %v3687
        %4122 = vmatprep.subr.bf16.mxu0 0
        %4123 = vmatpush1.bf16.msra.mxu0 %v3688
        %4124 = vmatprep.subr.bf16.mxu0 0
        %4125 = vmatpush1.bf16.msra.mxu0 %v3689
        %4126 = vmatprep.subr.bf16.mxu0 0
        %4127 = vmatpush1.bf16.msra.mxu0 %v3690
        %4128 = vmatprep.subr.bf16.mxu0 0
        %4129 = vmatpush1.bf16.msra.mxu0 %v3691
        %4130 = vmatprep.subr.bf16.mxu0 0
        %4131 = vmatpush1.bf16.msra.mxu0 %v3692
        %4132 = vmatprep.subr.bf16.mxu0 0
        %4133 = vmatpush1.bf16.msra.mxu0 %v3693
        %4134 = vmatprep.mubr.bf16.mxu0 %v2792
        %4135 = vmatmul.mubr.bf16.gmra.mrb[0].mxu0 %v2791
        %v4136 = vpop.f32.mrb[0].mxu0
        %v4137 = vadd.f32 %v4097, %v4136
        %v4138 = vpop.f32.mrb[0].mxu0
        %v4139 = vpop.f32.mrb[0].mxu0
        %v4140 = vpop.f32.mrb[0].mxu0
        %4141 = vdwg.mxu0
        %v4142 = vadd.f32 %v2151, %v4137
        %v4143 = vld [vmem:[%s14] sm:$0x1]
        %v4144 = vld [vmem:[%s15] sm:$0x1]
        %v4145 = vsel %vm764, %v4142, 0.0
        %4146 = vadd.xlane.f32.xlu0 %v4145
        %v4147 = vpop.xlane.xlu0 %4146
        %v4148 = vmul.f32 %v4147, %v2131
        %v4149 = vsub.f32 %v4142, %v4148
        %v4150 = vmul.f32 %v4149, %v4149
        %v4151 = vsel %vm764, %v4150, 0.0
        %4152 = vadd.xlane.f32.xlu0 %v4151
        %v4153 = vpop.xlane.xlu0 %4152
        %v4154 = vmul.f32 %v4153, %v2131
        %v4155 = vadd.f32 %v4154, 1e-05
        %v4156 = vrsqrt.pop %v4155
        %v4157 = vmul.f32 %v4149, %v4156
        %v4158 = vlaneseq
        %v4159 = vshrl.u32 %v4158, 7
        %v4160 = vsub.s32 0, %v4159
        %v4161 = vrot.slane %v4143, %v4160
        %v4162 = vmul.f32 %v4157, %v4161
        %v4163 = vlaneseq
        %v4164 = vshrl.u32 %v4163, 7
        %v4165 = vsub.s32 0, %v4164
        %v4166 = vrot.slane %v4144, %v4165
        %v4167 = vadd.f32 %v4162, %v4166
        %v4168 = vpack.c.bf16 %v4167, %v4167
        %s4169 = scalar_lea.vmem %s4, 64
        %v4170 = vld [vmem:[%s4169] sm:$0xf]
        %v4171 = vld [vmem:[%s4169 + $0x4] sm:$0xf]
        %v4172 = vld [vmem:[%s4169 + $0x8] sm:$0xf]
        %v4173 = vld [vmem:[%s4169 + $0xc] sm:$0xf]
        %v4174 = vld [vmem:[%s5 + $0x4] sm:$0x1]
        %v4175 = vlaneseq
        %v4176 = vshrl.u32 %v4175, 7
        %v4177 = vsub.s32 0, %v4176
        %v4178 = vrot.slane %v4174, %v4177
        %v4183 = vunpack.c.l.b16 %v4170
        %v4184 = vunpack.c.l.b16 %v4171
        %v4185 = vunpack.c.l.b16 %v4172
        %v4186 = vunpack.c.l.b16 %v4173
        %v4187 = vpack.c.b16 %v4184, %v4183
        %v4188 = vpack.c.b16 %v4186, %v4185
        %v4192 = vsel %vm764, %v4168, 0
        %4194 = vmatprep.subr.bf16.mxu0 0
        %4195 = vmatpush1.bf16.msra.mxu0 %v4187
        %4196 = vmatprep.subr.bf16.mxu0 0
        %4197 = vmatpush1.bf16.msra.mxu0 %v4188
        %4198 = vmatprep.subr.bf16.mxu0 0
        %4199 = vmatpush1.bf16.msra.mxu0 0
        %4200 = vmatprep.subr.bf16.mxu0 0
        %4201 = vmatpush1.bf16.msra.mxu0 0
        %4202 = vmatprep.subr.bf16.mxu0 0
        %4203 = vmatpush1.bf16.msra.mxu0 0
        %4204 = vmatprep.subr.bf16.mxu0 0
        %4205 = vmatpush1.bf16.msra.mxu0 0
        %4206 = vmatprep.subr.bf16.mxu0 0
        %4207 = vmatpush1.bf16.msra.mxu0 0
        %4208 = vmatprep.subr.bf16.mxu0 0
        %4209 = vmatpush1.bf16.msra.mxu0 0
        %4210 = vmatprep.subr.bf16.mxu0 0
        %4211 = vmatpush1.bf16.msra.mxu0 0
        %4212 = vmatprep.subr.bf16.mxu0 0
        %4213 = vmatpush1.bf16.msra.mxu0 0
        %4214 = vmatprep.subr.bf16.mxu0 0
        %4215 = vmatpush1.bf16.msra.mxu0 0
        %4216 = vmatprep.subr.bf16.mxu0 0
        %4217 = vmatpush1.bf16.msra.mxu0 0
        %4218 = vmatprep.subr.bf16.mxu0 0
        %4219 = vmatpush1.bf16.msra.mxu0 0
        %4220 = vmatprep.subr.bf16.mxu0 0
        %4221 = vmatpush1.bf16.msra.mxu0 0
        %4222 = vmatprep.subr.bf16.mxu0 0
        %4223 = vmatpush1.bf16.msra.mxu0 0
        %4224 = vmatprep.subr.bf16.mxu0 0
        %4225 = vmatpush1.bf16.msra.mxu0 0
        %4226 = vmatprep.mubr.bf16.mxu0 0
        %4227 = vmatmul.mubr.bf16.gmra.mrb[0].mxu0 %v4192
        %v4228 = vpop.f32.mrb[0].mxu0
        %v4229 = vadd.f32 %v4178, %v4228
        %v4230 = vpop.f32.mrb[0].mxu0
        %v4231 = vpop.f32.mrb[0].mxu0
        %v4232 = vpop.f32.mrb[0].mxu0
        %4233 = vdwg.mxu0
        %s4234 = scalar_lea.vmem %s6, 64
        %v4235 = vld [vmem:[%s4234] sm:$0xf]
        %v4236 = vld [vmem:[%s4234 + $0x4] sm:$0xf]
        %v4237 = vld [vmem:[%s4234 + $0x8] sm:$0xf]
        %v4238 = vld [vmem:[%s4234 + $0xc] sm:$0xf]
        %v4239 = vld [vmem:[%s7 + $0x4] sm:$0x1]
        %v4240 = vlaneseq
        %v4241 = vshrl.u32 %v4240, 7
        %v4242 = vsub.s32 0, %v4241
        %v4243 = vrot.slane %v4239, %v4242
        %v4248 = vunpack.c.l.b16 %v4235
        %v4249 = vunpack.c.l.b16 %v4236
        %v4250 = vunpack.c.l.b16 %v4237
        %v4251 = vunpack.c.l.b16 %v4238
        %v4252 = vpack.c.b16 %v4249, %v4248
        %v4253 = vpack.c.b16 %v4251, %v4250
        %4256 = vmatprep.subr.bf16.mxu0 0
        %4257 = vmatpush1.bf16.msra.mxu0 %v4252
        %4258 = vmatprep.subr.bf16.mxu0 0
        %4259 = vmatpush1.bf16.msra.mxu0 %v4253
        %4260 = vmatprep.subr.bf16.mxu0 0
        %4261 = vmatpush1.bf16.msra.mxu0 0
        %4262 = vmatprep.subr.bf16.mxu0 0
        %4263 = vmatpush1.bf16.msra.mxu0 0
        %4264 = vmatprep.subr.bf16.mxu0 0
        %4265 = vmatpush1.bf16.msra.mxu0 0
        %4266 = vmatprep.subr.bf16.mxu0 0
        %4267 = vmatpush1.bf16.msra.mxu0 0
        %4268 = vmatprep.subr.bf16.mxu0 0
        %4269 = vmatpush1.bf16.msra.mxu0 0
        %4270 = vmatprep.subr.bf16.mxu0 0
        %4271 = vmatpush1.bf16.msra.mxu0 0
        %4272 = vmatprep.subr.bf16.mxu0 0
        %4273 = vmatpush1.bf16.msra.mxu0 0
        %4274 = vmatprep.subr.bf16.mxu0 0
        %4275 = vmatpush1.bf16.msra.mxu0 0
        %4276 = vmatprep.subr.bf16.mxu0 0
        %4277 = vmatpush1.bf16.msra.mxu0 0
        %4278 = vmatprep.subr.bf16.mxu0 0
        %4279 = vmatpush1.bf16.msra.mxu0 0
        %4280 = vmatprep.subr.bf16.mxu0 0
        %4281 = vmatpush1.bf16.msra.mxu0 0
        %4282 = vmatprep.subr.bf16.mxu0 0
        %4283 = vmatpush1.bf16.msra.mxu0 0
        %4284 = vmatprep.subr.bf16.mxu0 0
        %4285 = vmatpush1.bf16.msra.mxu0 0
        %4286 = vmatprep.subr.bf16.mxu0 0
        %4287 = vmatpush1.bf16.msra.mxu0 0
        %4288 = vmatprep.mubr.bf16.mxu0 0
        %4289 = vmatmul.mubr.bf16.gmra.mrb[0].mxu0 %v4192
        %v4290 = vpop.f32.mrb[0].mxu0
        %v4291 = vadd.f32 %v4243, %v4290
        %v4292 = vpop.f32.mrb[0].mxu0
        %v4293 = vpop.f32.mrb[0].mxu0
        %v4294 = vpop.f32.mrb[0].mxu0
        %4295 = vdwg.mxu0
        %s4296 = scalar_lea.vmem %s8, 64
        %v4297 = vld [vmem:[%s4296] sm:$0xf]
        %v4298 = vld [vmem:[%s4296 + $0x4] sm:$0xf]
        %v4299 = vld [vmem:[%s4296 + $0x8] sm:$0xf]
        %v4300 = vld [vmem:[%s4296 + $0xc] sm:$0xf]
        %v4301 = vld [vmem:[%s9 + $0x4] sm:$0x1]
        %v4302 = vlaneseq
        %v4303 = vshrl.u32 %v4302, 7
        %v4304 = vsub.s32 0, %v4303
        %v4305 = vrot.slane %v4301, %v4304
        %v4310 = vunpack.c.l.b16 %v4297
        %v4311 = vunpack.c.l.b16 %v4298
        %v4312 = vunpack.c.l.b16 %v4299
        %v4313 = vunpack.c.l.b16 %v4300
        %v4314 = vpack.c.b16 %v4311, %v4310
        %v4315 = vpack.c.b16 %v4313, %v4312
        %4318 = vmatprep.subr.bf16.mxu0 0
        %4319 = vmatpush1.bf16.msra.mxu0 %v4314
        %4320 = vmatprep.subr.bf16.mxu0 0
        %4321 = vmatpush1.bf16.msra.mxu0 %v4315
        %4322 = vmatprep.subr.bf16.mxu0 0
        %4323 = vmatpush1.bf16.msra.mxu0 0
        %4324 = vmatprep.subr.bf16.mxu0 0
        %4325 = vmatpush1.bf16.msra.mxu0 0
        %4326 = vmatprep.subr.bf16.mxu0 0
        %4327 = vmatpush1.bf16.msra.mxu0 0
        %4328 = vmatprep.subr.bf16.mxu0 0
        %4329 = vmatpush1.bf16.msra.mxu0 0
        %4330 = vmatprep.subr.bf16.mxu0 0
        %4331 = vmatpush1.bf16.msra.mxu0 0
        %4332 = vmatprep.subr.bf16.mxu0 0
        %4333 = vmatpush1.bf16.msra.mxu0 0
        %4334 = vmatprep.subr.bf16.mxu0 0
        %4335 = vmatpush1.bf16.msra.mxu0 0
        %4336 = vmatprep.subr.bf16.mxu0 0
        %4337 = vmatpush1.bf16.msra.mxu0 0
        %4338 = vmatprep.subr.bf16.mxu0 0
        %4339 = vmatpush1.bf16.msra.mxu0 0
        %4340 = vmatprep.subr.bf16.mxu0 0
        %4341 = vmatpush1.bf16.msra.mxu0 0
        %4342 = vmatprep.subr.bf16.mxu0 0
        %4343 = vmatpush1.bf16.msra.mxu0 0
        %4344 = vmatprep.subr.bf16.mxu0 0
        %4345 = vmatpush1.bf16.msra.mxu0 0
        %4346 = vmatprep.subr.bf16.mxu0 0
        %4347 = vmatpush1.bf16.msra.mxu0 0
        %4348 = vmatprep.subr.bf16.mxu0 0
        %4349 = vmatpush1.bf16.msra.mxu0 0
        %4350 = vmatprep.mubr.bf16.mxu0 0
        %4351 = vmatmul.mubr.bf16.gmra.mrb[0].mxu0 %v4192
        %v4352 = vpop.f32.mrb[0].mxu0
        %v4353 = vadd.f32 %v4305, %v4352
        %v4354 = vpop.f32.mrb[0].mxu0
        %v4355 = vpop.f32.mrb[0].mxu0
        %v4356 = vpop.f32.mrb[0].mxu0
        %4357 = vdwg.mxu0
        %s4358 = scalar_lea.vmem %s4, 80
        %v4359 = vld [vmem:[%s4358] sm:$0xf]
        %v4360 = vld [vmem:[%s4358 + $0x4] sm:$0xf]
        %v4361 = vld [vmem:[%s4358 + $0x8] sm:$0xf]
        %v4362 = vld [vmem:[%s4358 + $0xc] sm:$0xf]
        %v4363 = vld [vmem:[%s5 + $0x5] sm:$0x1]
        %v4364 = vlaneseq
        %v4365 = vshrl.u32 %v4364, 7
        %v4366 = vsub.s32 0, %v4365
        %v4367 = vrot.slane %v4363, %v4366
        %v4372 = vunpack.c.l.b16 %v4359
        %v4373 = vunpack.c.l.b16 %v4360
        %v4374 = vunpack.c.l.b16 %v4361
        %v4375 = vunpack.c.l.b16 %v4362
        %v4376 = vpack.c.b16 %v4373, %v4372
        %v4377 = vpack.c.b16 %v4375, %v4374
        %4380 = vmatprep.subr.bf16.mxu0 0
        %4381 = vmatpush1.bf16.msra.mxu0 %v4376
        %4382 = vmatprep.subr.bf16.mxu0 0
        %4383 = vmatpush1.bf16.msra.mxu0 %v4377
        %4384 = vmatprep.subr.bf16.mxu0 0
        %4385 = vmatpush1.bf16.msra.mxu0 0
        %4386 = vmatprep.subr.bf16.mxu0 0
        %4387 = vmatpush1.bf16.msra.mxu0 0
        %4388 = vmatprep.subr.bf16.mxu0 0
        %4389 = vmatpush1.bf16.msra.mxu0 0
        %4390 = vmatprep.subr.bf16.mxu0 0
        %4391 = vmatpush1.bf16.msra.mxu0 0
        %4392 = vmatprep.subr.bf16.mxu0 0
        %4393 = vmatpush1.bf16.msra.mxu0 0
        %4394 = vmatprep.subr.bf16.mxu0 0
        %4395 = vmatpush1.bf16.msra.mxu0 0
        %4396 = vmatprep.subr.bf16.mxu0 0
        %4397 = vmatpush1.bf16.msra.mxu0 0
        %4398 = vmatprep.subr.bf16.mxu0 0
        %4399 = vmatpush1.bf16.msra.mxu0 0
        %4400 = vmatprep.subr.bf16.mxu0 0
        %4401 = vmatpush1.bf16.msra.mxu0 0
        %4402 = vmatprep.subr.bf16.mxu0 0
        %4403 = vmatpush1.bf16.msra.mxu0 0
        %4404 = vmatprep.subr.bf16.mxu0 0
        %4405 = vmatpush1.bf16.msra.mxu0 0
        %4406 = vmatprep.subr.bf16.mxu0 0
        %4407 = vmatpush1.bf16.msra.mxu0 0
        %4408 = vmatprep.subr.bf16.mxu0 0
        %4409 = vmatpush1.bf16.msra.mxu0 0
        %4410 = vmatprep.subr.bf16.mxu0 0
        %4411 = vmatpush1.bf16.msra.mxu0 0
        %4412 = vmatprep.mubr.bf16.mxu0 0
        %4413 = vmatmul.mubr.bf16.gmra.mrb[0].mxu0 %v4192
        %v4414 = vpop.f32.mrb[0].mxu0
        %v4415 = vadd.f32 %v4367, %v4414
        %v4416 = vpop.f32.mrb[0].mxu0
        %v4417 = vpop.f32.mrb[0].mxu0
        %v4418 = vpop.f32.mrb[0].mxu0
        %4419 = vdwg.mxu0
        %s4420 = scalar_lea.vmem %s6, 80
        %v4421 = vld [vmem:[%s4420] sm:$0xf]
        %v4422 = vld [vmem:[%s4420 + $0x4] sm:$0xf]
        %v4423 = vld [vmem:[%s4420 + $0x8] sm:$0xf]
        %v4424 = vld [vmem:[%s4420 + $0xc] sm:$0xf]
        %v4425 = vld [vmem:[%s7 + $0x5] sm:$0x1]
        %v4426 = vlaneseq
        %v4427 = vshrl.u32 %v4426, 7
        %v4428 = vsub.s32 0, %v4427
        %v4429 = vrot.slane %v4425, %v4428
        %v4434 = vunpack.c.l.b16 %v4421
        %v4435 = vunpack.c.l.b16 %v4422
        %v4436 = vunpack.c.l.b16 %v4423
        %v4437 = vunpack.c.l.b16 %v4424
        %v4438 = vpack.c.b16 %v4435, %v4434
        %v4439 = vpack.c.b16 %v4437, %v4436
        %4442 = vmatprep.subr.bf16.mxu0 0
        %4443 = vmatpush1.bf16.msra.mxu0 %v4438
        %4444 = vmatprep.subr.bf16.mxu0 0
        %4445 = vmatpush1.bf16.msra.mxu0 %v4439
        %4446 = vmatprep.subr.bf16.mxu0 0
        %4447 = vmatpush1.bf16.msra.mxu0 0
        %4448 = vmatprep.subr.bf16.mxu0 0
        %4449 = vmatpush1.bf16.msra.mxu0 0
        %4450 = vmatprep.subr.bf16.mxu0 0
        %4451 = vmatpush1.bf16.msra.mxu0 0
        %4452 = vmatprep.subr.bf16.mxu0 0
        %4453 = vmatpush1.bf16.msra.mxu0 0
        %4454 = vmatprep.subr.bf16.mxu0 0
        %4455 = vmatpush1.bf16.msra.mxu0 0
        %4456 = vmatprep.subr.bf16.mxu0 0
        %4457 = vmatpush1.bf16.msra.mxu0 0
        %4458 = vmatprep.subr.bf16.mxu0 0
        %4459 = vmatpush1.bf16.msra.mxu0 0
        %4460 = vmatprep.subr.bf16.mxu0 0
        %4461 = vmatpush1.bf16.msra.mxu0 0
        %4462 = vmatprep.subr.bf16.mxu0 0
        %4463 = vmatpush1.bf16.msra.mxu0 0
        %4464 = vmatprep.subr.bf16.mxu0 0
        %4465 = vmatpush1.bf16.msra.mxu0 0
        %4466 = vmatprep.subr.bf16.mxu0 0
        %4467 = vmatpush1.bf16.msra.mxu0 0
        %4468 = vmatprep.subr.bf16.mxu0 0
        %4469 = vmatpush1.bf16.msra.mxu0 0
        %4470 = vmatprep.subr.bf16.mxu0 0
        %4471 = vmatpush1.bf16.msra.mxu0 0
        %4472 = vmatprep.subr.bf16.mxu0 0
        %4473 = vmatpush1.bf16.msra.mxu0 0
        %4474 = vmatprep.mubr.bf16.mxu0 0
        %4475 = vmatmul.mubr.bf16.gmra.mrb[0].mxu0 %v4192
        %v4476 = vpop.f32.mrb[0].mxu0
        %v4477 = vadd.f32 %v4429, %v4476
        %v4478 = vpop.f32.mrb[0].mxu0
        %v4479 = vpop.f32.mrb[0].mxu0
        %v4480 = vpop.f32.mrb[0].mxu0
        %4481 = vdwg.mxu0
        %s4482 = scalar_lea.vmem %s8, 80
        %v4483 = vld [vmem:[%s4482] sm:$0xf]
        %v4484 = vld [vmem:[%s4482 + $0x4] sm:$0xf]
        %v4485 = vld [vmem:[%s4482 + $0x8] sm:$0xf]
        %v4486 = vld [vmem:[%s4482 + $0xc] sm:$0xf]
        %v4487 = vld [vmem:[%s9 + $0x5] sm:$0x1]
        %v4488 = vlaneseq
        %v4489 = vshrl.u32 %v4488, 7
        %v4490 = vsub.s32 0, %v4489
        %v4491 = vrot.slane %v4487, %v4490
        %v4496 = vunpack.c.l.b16 %v4483
        %v4497 = vunpack.c.l.b16 %v4484
        %v4498 = vunpack.c.l.b16 %v4485
        %v4499 = vunpack.c.l.b16 %v4486
        %v4500 = vpack.c.b16 %v4497, %v4496
        %v4501 = vpack.c.b16 %v4499, %v4498
        %4504 = vmatprep.subr.bf16.mxu0 0
        %4505 = vmatpush1.bf16.msra.mxu0 %v4500
        %4506 = vmatprep.subr.bf16.mxu0 0
        %4507 = vmatpush1.bf16.msra.mxu0 %v4501
        %4508 = vmatprep.subr.bf16.mxu0 0
        %4509 = vmatpush1.bf16.msra.mxu0 0
        %4510 = vmatprep.subr.bf16.mxu0 0
        %4511 = vmatpush1.bf16.msra.mxu0 0
        %4512 = vmatprep.subr.bf16.mxu0 0
        %4513 = vmatpush1.bf16.msra.mxu0 0
        %4514 = vmatprep.subr.bf16.mxu0 0
        %4515 = vmatpush1.bf16.msra.mxu0 0
        %4516 = vmatprep.subr.bf16.mxu0 0
        %4517 = vmatpush1.bf16.msra.mxu0 0
        %4518 = vmatprep.subr.bf16.mxu0 0
        %4519 = vmatpush1.bf16.msra.mxu0 0
        %4520 = vmatprep.subr.bf16.mxu0 0
        %4521 = vmatpush1.bf16.msra.mxu0 0
        %4522 = vmatprep.subr.bf16.mxu0 0
        %4523 = vmatpush1.bf16.msra.mxu0 0
        %4524 = vmatprep.subr.bf16.mxu0 0
        %4525 = vmatpush1.bf16.msra.mxu0 0
        %4526 = vmatprep.subr.bf16.mxu0 0
        %4527 = vmatpush1.bf16.msra.mxu0 0
        %4528 = vmatprep.subr.bf16.mxu0 0
        %4529 = vmatpush1.bf16.msra.mxu0 0
        %4530 = vmatprep.subr.bf16.mxu0 0
        %4531 = vmatpush1.bf16.msra.mxu0 0
        %4532 = vmatprep.subr.bf16.mxu0 0
        %4533 = vmatpush1.bf16.msra.mxu0 0
        %4534 = vmatprep.subr.bf16.mxu0 0
        %4535 = vmatpush1.bf16.msra.mxu0 0
        %4536 = vmatprep.mubr.bf16.mxu0 0
        %4537 = vmatmul.mubr.bf16.gmra.mrb[0].mxu0 %v4192
        %v4538 = vpop.f32.mrb[0].mxu0
        %v4539 = vadd.f32 %v4491, %v4538
        %v4540 = vpop.f32.mrb[0].mxu0
        %v4541 = vpop.f32.mrb[0].mxu0
        %v4542 = vpop.f32.mrb[0].mxu0
        %4543 = vdwg.mxu0
        %s4544 = scalar_lea.vmem %s4, 96
        %v4545 = vld [vmem:[%s4544] sm:$0xf]
        %v4546 = vld [vmem:[%s4544 + $0x4] sm:$0xf]
        %v4547 = vld [vmem:[%s4544 + $0x8] sm:$0xf]
        %v4548 = vld [vmem:[%s4544 + $0xc] sm:$0xf]
        %v4549 = vld [vmem:[%s5 + $0x6] sm:$0x1]
        %v4550 = vlaneseq
        %v4551 = vshrl.u32 %v4550, 7
        %v4552 = vsub.s32 0, %v4551
        %v4553 = vrot.slane %v4549, %v4552
        %v4558 = vunpack.c.l.b16 %v4545
        %v4559 = vunpack.c.l.b16 %v4546
        %v4560 = vunpack.c.l.b16 %v4547
        %v4561 = vunpack.c.l.b16 %v4548
        %v4562 = vpack.c.b16 %v4559, %v4558
        %v4563 = vpack.c.b16 %v4561, %v4560
        %4566 = vmatprep.subr.bf16.mxu0 0
        %4567 = vmatpush1.bf16.msra.mxu0 %v4562
        %4568 = vmatprep.subr.bf16.mxu0 0
        %4569 = vmatpush1.bf16.msra.mxu0 %v4563
        %4570 = vmatprep.subr.bf16.mxu0 0
        %4571 = vmatpush1.bf16.msra.mxu0 0
        %4572 = vmatprep.subr.bf16.mxu0 0
        %4573 = vmatpush1.bf16.msra.mxu0 0
        %4574 = vmatprep.subr.bf16.mxu0 0
        %4575 = vmatpush1.bf16.msra.mxu0 0
        %4576 = vmatprep.subr.bf16.mxu0 0
        %4577 = vmatpush1.bf16.msra.mxu0 0
        %4578 = vmatprep.subr.bf16.mxu0 0
        %4579 = vmatpush1.bf16.msra.mxu0 0
        %4580 = vmatprep.subr.bf16.mxu0 0
        %4581 = vmatpush1.bf16.msra.mxu0 0
        %4582 = vmatprep.subr.bf16.mxu0 0
        %4583 = vmatpush1.bf16.msra.mxu0 0
        %4584 = vmatprep.subr.bf16.mxu0 0
        %4585 = vmatpush1.bf16.msra.mxu0 0
        %4586 = vmatprep.subr.bf16.mxu0 0
        %4587 = vmatpush1.bf16.msra.mxu0 0
        %4588 = vmatprep.subr.bf16.mxu0 0
        %4589 = vmatpush1.bf16.msra.mxu0 0
        %4590 = vmatprep.subr.bf16.mxu0 0
        %4591 = vmatpush1.bf16.msra.mxu0 0
        %4592 = vmatprep.subr.bf16.mxu0 0
        %4593 = vmatpush1.bf16.msra.mxu0 0
        %4594 = vmatprep.subr.bf16.mxu0 0
        %4595 = vmatpush1.bf16.msra.mxu0 0
        %4596 = vmatprep.subr.bf16.mxu0 0
        %4597 = vmatpush1.bf16.msra.mxu0 0
        %4598 = vmatprep.mubr.bf16.mxu0 0
        %4599 = vmatmul.mubr.bf16.gmra.mrb[0].mxu0 %v4192
        %v4600 = vpop.f32.mrb[0].mxu0
        %v4601 = vadd.f32 %v4553, %v4600
        %v4602 = vpop.f32.mrb[0].mxu0
        %v4603 = vpop.f32.mrb[0].mxu0
        %v4604 = vpop.f32.mrb[0].mxu0
        %4605 = vdwg.mxu0
        %s4606 = scalar_lea.vmem %s6, 96
        %v4607 = vld [vmem:[%s4606] sm:$0xf]
        %v4608 = vld [vmem:[%s4606 + $0x4] sm:$0xf]
        %v4609 = vld [vmem:[%s4606 + $0x8] sm:$0xf]
        %v4610 = vld [vmem:[%s4606 + $0xc] sm:$0xf]
        %v4611 = vld [vmem:[%s7 + $0x6] sm:$0x1]
        %v4612 = vlaneseq
        %v4613 = vshrl.u32 %v4612, 7
        %v4614 = vsub.s32 0, %v4613
        %v4615 = vrot.slane %v4611, %v4614
        %v4620 = vunpack.c.l.b16 %v4607
        %v4621 = vunpack.c.l.b16 %v4608
        %v4622 = vunpack.c.l.b16 %v4609
        %v4623 = vunpack.c.l.b16 %v4610
        %v4624 = vpack.c.b16 %v4621, %v4620
        %v4625 = vpack.c.b16 %v4623, %v4622
        %4628 = vmatprep.subr.bf16.mxu0 0
        %4629 = vmatpush1.bf16.msra.mxu0 %v4624
        %4630 = vmatprep.subr.bf16.mxu0 0
        %4631 = vmatpush1.bf16.msra.mxu0 %v4625
        %4632 = vmatprep.subr.bf16.mxu0 0
        %4633 = vmatpush1.bf16.msra.mxu0 0
        %4634 = vmatprep.subr.bf16.mxu0 0
        %4635 = vmatpush1.bf16.msra.mxu0 0
        %4636 = vmatprep.subr.bf16.mxu0 0
        %4637 = vmatpush1.bf16.msra.mxu0 0
        %4638 = vmatprep.subr.bf16.mxu0 0
        %4639 = vmatpush1.bf16.msra.mxu0 0
        %4640 = vmatprep.subr.bf16.mxu0 0
        %4641 = vmatpush1.bf16.msra.mxu0 0
        %4642 = vmatprep.subr.bf16.mxu0 0
        %4643 = vmatpush1.bf16.msra.mxu0 0
        %4644 = vmatprep.subr.bf16.mxu0 0
        %4645 = vmatpush1.bf16.msra.mxu0 0
        %4646 = vmatprep.subr.bf16.mxu0 0
        %4647 = vmatpush1.bf16.msra.mxu0 0
        %4648 = vmatprep.subr.bf16.mxu0 0
        %4649 = vmatpush1.bf16.msra.mxu0 0
        %4650 = vmatprep.subr.bf16.mxu0 0
        %4651 = vmatpush1.bf16.msra.mxu0 0
        %4652 = vmatprep.subr.bf16.mxu0 0
        %4653 = vmatpush1.bf16.msra.mxu0 0
        %4654 = vmatprep.subr.bf16.mxu0 0
        %4655 = vmatpush1.bf16.msra.mxu0 0
        %4656 = vmatprep.subr.bf16.mxu0 0
        %4657 = vmatpush1.bf16.msra.mxu0 0
        %4658 = vmatprep.subr.bf16.mxu0 0
        %4659 = vmatpush1.bf16.msra.mxu0 0
        %4660 = vmatprep.mubr.bf16.mxu0 0
        %4661 = vmatmul.mubr.bf16.gmra.mrb[0].mxu0 %v4192
        %v4662 = vpop.f32.mrb[0].mxu0
        %v4663 = vadd.f32 %v4615, %v4662
        %v4664 = vpop.f32.mrb[0].mxu0
        %v4665 = vpop.f32.mrb[0].mxu0
        %v4666 = vpop.f32.mrb[0].mxu0
        %4667 = vdwg.mxu0
        %s4668 = scalar_lea.vmem %s8, 96
        %v4669 = vld [vmem:[%s4668] sm:$0xf]
        %v4670 = vld [vmem:[%s4668 + $0x4] sm:$0xf]
        %v4671 = vld [vmem:[%s4668 + $0x8] sm:$0xf]
        %v4672 = vld [vmem:[%s4668 + $0xc] sm:$0xf]
        %v4673 = vld [vmem:[%s9 + $0x6] sm:$0x1]
        %v4674 = vlaneseq
        %v4675 = vshrl.u32 %v4674, 7
        %v4676 = vsub.s32 0, %v4675
        %v4677 = vrot.slane %v4673, %v4676
        %v4682 = vunpack.c.l.b16 %v4669
        %v4683 = vunpack.c.l.b16 %v4670
        %v4684 = vunpack.c.l.b16 %v4671
        %v4685 = vunpack.c.l.b16 %v4672
        %v4686 = vpack.c.b16 %v4683, %v4682
        %v4687 = vpack.c.b16 %v4685, %v4684
        %4690 = vmatprep.subr.bf16.mxu0 0
        %4691 = vmatpush1.bf16.msra.mxu0 %v4686
        %4692 = vmatprep.subr.bf16.mxu0 0
        %4693 = vmatpush1.bf16.msra.mxu0 %v4687
        %4694 = vmatprep.subr.bf16.mxu0 0
        %4695 = vmatpush1.bf16.msra.mxu0 0
        %4696 = vmatprep.subr.bf16.mxu0 0
        %4697 = vmatpush1.bf16.msra.mxu0 0
        %4698 = vmatprep.subr.bf16.mxu0 0
        %4699 = vmatpush1.bf16.msra.mxu0 0
        %4700 = vmatprep.subr.bf16.mxu0 0
        %4701 = vmatpush1.bf16.msra.mxu0 0
        %4702 = vmatprep.subr.bf16.mxu0 0
        %4703 = vmatpush1.bf16.msra.mxu0 0
        %4704 = vmatprep.subr.bf16.mxu0 0
        %4705 = vmatpush1.bf16.msra.mxu0 0
        %4706 = vmatprep.subr.bf16.mxu0 0
        %4707 = vmatpush1.bf16.msra.mxu0 0
        %4708 = vmatprep.subr.bf16.mxu0 0
        %4709 = vmatpush1.bf16.msra.mxu0 0
        %4710 = vmatprep.subr.bf16.mxu0 0
        %4711 = vmatpush1.bf16.msra.mxu0 0
        %4712 = vmatprep.subr.bf16.mxu0 0
        %4713 = vmatpush1.bf16.msra.mxu0 0
        %4714 = vmatprep.subr.bf16.mxu0 0
        %4715 = vmatpush1.bf16.msra.mxu0 0
        %4716 = vmatprep.subr.bf16.mxu0 0
        %4717 = vmatpush1.bf16.msra.mxu0 0
        %4718 = vmatprep.subr.bf16.mxu0 0
        %4719 = vmatpush1.bf16.msra.mxu0 0
        %4720 = vmatprep.subr.bf16.mxu0 0
        %4721 = vmatpush1.bf16.msra.mxu0 0
        %4722 = vmatprep.mubr.bf16.mxu0 0
        %4723 = vmatmul.mubr.bf16.gmra.mrb[0].mxu0 %v4192
        %v4724 = vpop.f32.mrb[0].mxu0
        %v4725 = vadd.f32 %v4677, %v4724
        %v4726 = vpop.f32.mrb[0].mxu0
        %v4727 = vpop.f32.mrb[0].mxu0
        %v4728 = vpop.f32.mrb[0].mxu0
        %4729 = vdwg.mxu0
        %s4730 = scalar_lea.vmem %s4, 112
        %v4731 = vld [vmem:[%s4730] sm:$0xf]
        %v4732 = vld [vmem:[%s4730 + $0x4] sm:$0xf]
        %v4733 = vld [vmem:[%s4730 + $0x8] sm:$0xf]
        %v4734 = vld [vmem:[%s4730 + $0xc] sm:$0xf]
        %v4735 = vld [vmem:[%s5 + $0x7] sm:$0x1]
        %v4736 = vlaneseq
        %v4737 = vshrl.u32 %v4736, 7
        %v4738 = vsub.s32 0, %v4737
        %v4739 = vrot.slane %v4735, %v4738
        %v4744 = vunpack.c.l.b16 %v4731
        %v4745 = vunpack.c.l.b16 %v4732
        %v4746 = vunpack.c.l.b16 %v4733
        %v4747 = vunpack.c.l.b16 %v4734
        %v4748 = vpack.c.b16 %v4745, %v4744
        %v4749 = vpack.c.b16 %v4747, %v4746
        %4752 = vmatprep.subr.bf16.mxu0 0
        %4753 = vmatpush1.bf16.msra.mxu0 %v4748
        %4754 = vmatprep.subr.bf16.mxu0 0
        %4755 = vmatpush1.bf16.msra.mxu0 %v4749
        %4756 = vmatprep.subr.bf16.mxu0 0
        %4757 = vmatpush1.bf16.msra.mxu0 0
        %4758 = vmatprep.subr.bf16.mxu0 0
        %4759 = vmatpush1.bf16.msra.mxu0 0
        %4760 = vmatprep.subr.bf16.mxu0 0
        %4761 = vmatpush1.bf16.msra.mxu0 0
        %4762 = vmatprep.subr.bf16.mxu0 0
        %4763 = vmatpush1.bf16.msra.mxu0 0
        %4764 = vmatprep.subr.bf16.mxu0 0
        %4765 = vmatpush1.bf16.msra.mxu0 0
        %4766 = vmatprep.subr.bf16.mxu0 0
        %4767 = vmatpush1.bf16.msra.mxu0 0
        %4768 = vmatprep.subr.bf16.mxu0 0
        %4769 = vmatpush1.bf16.msra.mxu0 0
        %4770 = vmatprep.subr.bf16.mxu0 0
        %4771 = vmatpush1.bf16.msra.mxu0 0
        %4772 = vmatprep.subr.bf16.mxu0 0
        %4773 = vmatpush1.bf16.msra.mxu0 0
        %4774 = vmatprep.subr.bf16.mxu0 0
        %4775 = vmatpush1.bf16.msra.mxu0 0
        %4776 = vmatprep.subr.bf16.mxu0 0
        %4777 = vmatpush1.bf16.msra.mxu0 0
        %4778 = vmatprep.subr.bf16.mxu0 0
        %4779 = vmatpush1.bf16.msra.mxu0 0
        %4780 = vmatprep.subr.bf16.mxu0 0
        %4781 = vmatpush1.bf16.msra.mxu0 0
        %4782 = vmatprep.subr.bf16.mxu0 0
        %4783 = vmatpush1.bf16.msra.mxu0 0
        %4784 = vmatprep.mubr.bf16.mxu0 0
        %4785 = vmatmul.mubr.bf16.gmra.mrb[0].mxu0 %v4192
        %v4786 = vpop.f32.mrb[0].mxu0
        %v4787 = vadd.f32 %v4739, %v4786
        %v4788 = vpop.f32.mrb[0].mxu0
        %v4789 = vpop.f32.mrb[0].mxu0
        %v4790 = vpop.f32.mrb[0].mxu0
        %4791 = vdwg.mxu0
        %s4792 = scalar_lea.vmem %s6, 112
        %v4793 = vld [vmem:[%s4792] sm:$0xf]
        %v4794 = vld [vmem:[%s4792 + $0x4] sm:$0xf]
        %v4795 = vld [vmem:[%s4792 + $0x8] sm:$0xf]
        %v4796 = vld [vmem:[%s4792 + $0xc] sm:$0xf]
        %v4797 = vld [vmem:[%s7 + $0x7] sm:$0x1]
        %v4798 = vlaneseq
        %v4799 = vshrl.u32 %v4798, 7
        %v4800 = vsub.s32 0, %v4799
        %v4801 = vrot.slane %v4797, %v4800
        %v4806 = vunpack.c.l.b16 %v4793
        %v4807 = vunpack.c.l.b16 %v4794
        %v4808 = vunpack.c.l.b16 %v4795
        %v4809 = vunpack.c.l.b16 %v4796
        %v4810 = vpack.c.b16 %v4807, %v4806
        %v4811 = vpack.c.b16 %v4809, %v4808
        %4814 = vmatprep.subr.bf16.mxu0 0
        %4815 = vmatpush1.bf16.msra.mxu0 %v4810
        %4816 = vmatprep.subr.bf16.mxu0 0
        %4817 = vmatpush1.bf16.msra.mxu0 %v4811
        %4818 = vmatprep.subr.bf16.mxu0 0
        %4819 = vmatpush1.bf16.msra.mxu0 0
        %4820 = vmatprep.subr.bf16.mxu0 0
        %4821 = vmatpush1.bf16.msra.mxu0 0
        %4822 = vmatprep.subr.bf16.mxu0 0
        %4823 = vmatpush1.bf16.msra.mxu0 0
        %4824 = vmatprep.subr.bf16.mxu0 0
        %4825 = vmatpush1.bf16.msra.mxu0 0
        %4826 = vmatprep.subr.bf16.mxu0 0
        %4827 = vmatpush1.bf16.msra.mxu0 0
        %4828 = vmatprep.subr.bf16.mxu0 0
        %4829 = vmatpush1.bf16.msra.mxu0 0
        %4830 = vmatprep.subr.bf16.mxu0 0
        %4831 = vmatpush1.bf16.msra.mxu0 0
        %4832 = vmatprep.subr.bf16.mxu0 0
        %4833 = vmatpush1.bf16.msra.mxu0 0
        %4834 = vmatprep.subr.bf16.mxu0 0
        %4835 = vmatpush1.bf16.msra.mxu0 0
        %4836 = vmatprep.subr.bf16.mxu0 0
        %4837 = vmatpush1.bf16.msra.mxu0 0
        %4838 = vmatprep.subr.bf16.mxu0 0
        %4839 = vmatpush1.bf16.msra.mxu0 0
        %4840 = vmatprep.subr.bf16.mxu0 0
        %4841 = vmatpush1.bf16.msra.mxu0 0
        %4842 = vmatprep.subr.bf16.mxu0 0
        %4843 = vmatpush1.bf16.msra.mxu0 0
        %4844 = vmatprep.subr.bf16.mxu0 0
        %4845 = vmatpush1.bf16.msra.mxu0 0
        %4846 = vmatprep.mubr.bf16.mxu0 0
        %4847 = vmatmul.mubr.bf16.gmra.mrb[0].mxu0 %v4192
        %v4848 = vpop.f32.mrb[0].mxu0
        %v4849 = vadd.f32 %v4801, %v4848
        %v4850 = vpop.f32.mrb[0].mxu0
        %v4851 = vpop.f32.mrb[0].mxu0
        %v4852 = vpop.f32.mrb[0].mxu0
        %4853 = vdwg.mxu0
        %s4854 = scalar_lea.vmem %s8, 112
        %v4855 = vld [vmem:[%s4854] sm:$0xf]
        %v4856 = vld [vmem:[%s4854 + $0x4] sm:$0xf]
        %v4857 = vld [vmem:[%s4854 + $0x8] sm:$0xf]
        %v4858 = vld [vmem:[%s4854 + $0xc] sm:$0xf]
        %v4859 = vld [vmem:[%s9 + $0x7] sm:$0x1]
        %v4860 = vlaneseq
        %v4861 = vshrl.u32 %v4860, 7
        %v4862 = vsub.s32 0, %v4861
        %v4863 = vrot.slane %v4859, %v4862
        %v4868 = vunpack.c.l.b16 %v4855
        %v4869 = vunpack.c.l.b16 %v4856
        %v4870 = vunpack.c.l.b16 %v4857
        %v4871 = vunpack.c.l.b16 %v4858
        %v4872 = vpack.c.b16 %v4869, %v4868
        %v4873 = vpack.c.b16 %v4871, %v4870
        %4876 = vmatprep.subr.bf16.mxu0 0
        %4877 = vmatpush1.bf16.msra.mxu0 %v4872
        %4878 = vmatprep.subr.bf16.mxu0 0
        %4879 = vmatpush1.bf16.msra.mxu0 %v4873
        %4880 = vmatprep.subr.bf16.mxu0 0
        %4881 = vmatpush1.bf16.msra.mxu0 0
        %4882 = vmatprep.subr.bf16.mxu0 0
        %4883 = vmatpush1.bf16.msra.mxu0 0
        %4884 = vmatprep.subr.bf16.mxu0 0
        %4885 = vmatpush1.bf16.msra.mxu0 0
        %4886 = vmatprep.subr.bf16.mxu0 0
        %4887 = vmatpush1.bf16.msra.mxu0 0
        %4888 = vmatprep.subr.bf16.mxu0 0
        %4889 = vmatpush1.bf16.msra.mxu0 0
        %4890 = vmatprep.subr.bf16.mxu0 0
        %4891 = vmatpush1.bf16.msra.mxu0 0
        %4892 = vmatprep.subr.bf16.mxu0 0
        %4893 = vmatpush1.bf16.msra.mxu0 0
        %4894 = vmatprep.subr.bf16.mxu0 0
        %4895 = vmatpush1.bf16.msra.mxu0 0
        %4896 = vmatprep.subr.bf16.mxu0 0
        %4897 = vmatpush1.bf16.msra.mxu0 0
        %4898 = vmatprep.subr.bf16.mxu0 0
        %4899 = vmatpush1.bf16.msra.mxu0 0
        %4900 = vmatprep.subr.bf16.mxu0 0
        %4901 = vmatpush1.bf16.msra.mxu0 0
        %4902 = vmatprep.subr.bf16.mxu0 0
        %4903 = vmatpush1.bf16.msra.mxu0 0
        %4904 = vmatprep.subr.bf16.mxu0 0
        %4905 = vmatpush1.bf16.msra.mxu0 0
        %4906 = vmatprep.subr.bf16.mxu0 0
        %4907 = vmatpush1.bf16.msra.mxu0 0
        %4908 = vmatprep.mubr.bf16.mxu0 0
        %4909 = vmatmul.mubr.bf16.gmra.mrb[0].mxu0 %v4192
        %v4910 = vpop.f32.mrb[0].mxu0
        %v4911 = vadd.f32 %v4863, %v4910
        %v4912 = vpop.f32.mrb[0].mxu0
        %v4913 = vpop.f32.mrb[0].mxu0
        %v4914 = vpop.f32.mrb[0].mxu0
        %4915 = vdwg.mxu0
        %v4916 = vpack.c.bf16 %v4229, %v4229
        %v4917 = vpack.c.bf16 %v4415, %v4415
        %v4918 = vpack.c.bf16 %v4601, %v4601
        %v4919 = vpack.c.bf16 %v4787, %v4787
        %v4920 = vpack.c.bf16 %v4291, %v4291
        %v4921 = vpack.c.bf16 %v4477, %v4477
        %v4922 = vpack.c.bf16 %v4663, %v4663
        %v4923 = vpack.c.bf16 %v4849, %v4849
        %v4924 = vpack.c.bf16 %v4353, %v4353
        %v4925 = vpack.c.bf16 %v4539, %v4539
        %v4926 = vpack.c.bf16 %v4725, %v4725
        %v4927 = vpack.c.bf16 %v4911, %v4911
        %v4929 = vsel %vm1500, %v4916, 0
        %v4932 = vsel %vm1500, %v4920, 0
        %4934 = vmatprep.subr.bf16.mxu0 0
        %4935 = vmatpush1.bf16.xpose.msra.mxu0 %v4932
        %4936 = vmatprep.subr.bf16.mxu0 0
        %4937 = vmatpush1.bf16.xpose.msra.mxu0 0
        %4938 = vmatprep.subr.bf16.mxu0 0
        %4939 = vmatpush1.bf16.xpose.msra.mxu0 0
        %4940 = vmatprep.subr.bf16.mxu0 0
        %4941 = vmatpush1.bf16.xpose.msra.mxu0 0
        %4942 = vmatprep.subr.bf16.mxu0 0
        %4943 = vmatpush1.bf16.xpose.msra.mxu0 0
        %4944 = vmatprep.subr.bf16.mxu0 0
        %4945 = vmatpush1.bf16.xpose.msra.mxu0 0
        %4946 = vmatprep.subr.bf16.mxu0 0
        %4947 = vmatpush1.bf16.xpose.msra.mxu0 0
        %4948 = vmatprep.subr.bf16.mxu0 0
        %4949 = vmatpush1.bf16.xpose.msra.mxu0 0
        %4950 = vmatprep.subr.bf16.mxu0 0
        %4951 = vmatpush1.bf16.xpose.msra.mxu0 0
        %4952 = vmatprep.subr.bf16.mxu0 0
        %4953 = vmatpush1.bf16.xpose.msra.mxu0 0
        %4954 = vmatprep.subr.bf16.mxu0 0
        %4955 = vmatpush1.bf16.xpose.msra.mxu0 0
        %4956 = vmatprep.subr.bf16.mxu0 0
        %4957 = vmatpush1.bf16.xpose.msra.mxu0 0
        %4958 = vmatprep.subr.bf16.mxu0 0
        %4959 = vmatpush1.bf16.xpose.msra.mxu0 0
        %4960 = vmatprep.subr.bf16.mxu0 0
        %4961 = vmatpush1.bf16.xpose.msra.mxu0 0
        %4962 = vmatprep.subr.bf16.mxu0 0
        %4963 = vmatpush1.bf16.xpose.msra.mxu0 0
        %4964 = vmatprep.subr.bf16.mxu0 0
        %4965 = vmatpush1.bf16.xpose.msra.mxu0 0
        %4966 = vmatprep.mubr.bf16.mxu0 0
        %4967 = vmatmul.mubr.bf16.gmra.mrb[0].mxu0 %v4929
        %v4968 = vpop.f32.mrb[0].mxu0
        %v4969 = vadd.f32 0.0, %v4968
        %v4970 = vpop.f32.mrb[0].mxu0
        %v4971 = vpop.f32.mrb[0].mxu0
        %v4972 = vpop.f32.mrb[0].mxu0
        %4973 = vdwg.mxu0
        %v4975 = vsel %vm1500, %v4917, 0
        %v4978 = vsel %vm1500, %v4921, 0
        %4980 = vmatprep.subr.bf16.mxu0 0
        %4981 = vmatpush1.bf16.xpose.msra.mxu0 %v4978
        %4982 = vmatprep.subr.bf16.mxu0 0
        %4983 = vmatpush1.bf16.xpose.msra.mxu0 0
        %4984 = vmatprep.subr.bf16.mxu0 0
        %4985 = vmatpush1.bf16.xpose.msra.mxu0 0
        %4986 = vmatprep.subr.bf16.mxu0 0
        %4987 = vmatpush1.bf16.xpose.msra.mxu0 0
        %4988 = vmatprep.subr.bf16.mxu0 0
        %4989 = vmatpush1.bf16.xpose.msra.mxu0 0
        %4990 = vmatprep.subr.bf16.mxu0 0
        %4991 = vmatpush1.bf16.xpose.msra.mxu0 0
        %4992 = vmatprep.subr.bf16.mxu0 0
        %4993 = vmatpush1.bf16.xpose.msra.mxu0 0
        %4994 = vmatprep.subr.bf16.mxu0 0
        %4995 = vmatpush1.bf16.xpose.msra.mxu0 0
        %4996 = vmatprep.subr.bf16.mxu0 0
        %4997 = vmatpush1.bf16.xpose.msra.mxu0 0
        %4998 = vmatprep.subr.bf16.mxu0 0
        %4999 = vmatpush1.bf16.xpose.msra.mxu0 0
        %5000 = vmatprep.subr.bf16.mxu0 0
        %5001 = vmatpush1.bf16.xpose.msra.mxu0 0
        %5002 = vmatprep.subr.bf16.mxu0 0
        %5003 = vmatpush1.bf16.xpose.msra.mxu0 0
        %5004 = vmatprep.subr.bf16.mxu0 0
        %5005 = vmatpush1.bf16.xpose.msra.mxu0 0
        %5006 = vmatprep.subr.bf16.mxu0 0
        %5007 = vmatpush1.bf16.xpose.msra.mxu0 0
        %5008 = vmatprep.subr.bf16.mxu0 0
        %5009 = vmatpush1.bf16.xpose.msra.mxu0 0
        %5010 = vmatprep.subr.bf16.mxu0 0
        %5011 = vmatpush1.bf16.xpose.msra.mxu0 0
        %5012 = vmatprep.mubr.bf16.mxu0 0
        %5013 = vmatmul.mubr.bf16.gmra.mrb[0].mxu0 %v4975
        %v5014 = vpop.f32.mrb[0].mxu0
        %v5015 = vadd.f32 0.0, %v5014
        %v5016 = vpop.f32.mrb[0].mxu0
        %v5017 = vpop.f32.mrb[0].mxu0
        %v5018 = vpop.f32.mrb[0].mxu0
        %5019 = vdwg.mxu0
        %v5021 = vsel %vm1500, %v4918, 0
        %v5024 = vsel %vm1500, %v4922, 0
        %5026 = vmatprep.subr.bf16.mxu0 0
        %5027 = vmatpush1.bf16.xpose.msra.mxu0 %v5024
        %5028 = vmatprep.subr.bf16.mxu0 0
        %5029 = vmatpush1.bf16.xpose.msra.mxu0 0
        %5030 = vmatprep.subr.bf16.mxu0 0
        %5031 = vmatpush1.bf16.xpose.msra.mxu0 0
        %5032 = vmatprep.subr.bf16.mxu0 0
        %5033 = vmatpush1.bf16.xpose.msra.mxu0 0
        %5034 = vmatprep.subr.bf16.mxu0 0
        %5035 = vmatpush1.bf16.xpose.msra.mxu0 0
        %5036 = vmatprep.subr.bf16.mxu0 0
        %5037 = vmatpush1.bf16.xpose.msra.mxu0 0
        %5038 = vmatprep.subr.bf16.mxu0 0
        %5039 = vmatpush1.bf16.xpose.msra.mxu0 0
        %5040 = vmatprep.subr.bf16.mxu0 0
        %5041 = vmatpush1.bf16.xpose.msra.mxu0 0
        %5042 = vmatprep.subr.bf16.mxu0 0
        %5043 = vmatpush1.bf16.xpose.msra.mxu0 0
        %5044 = vmatprep.subr.bf16.mxu0 0
        %5045 = vmatpush1.bf16.xpose.msra.mxu0 0
        %5046 = vmatprep.subr.bf16.mxu0 0
        %5047 = vmatpush1.bf16.xpose.msra.mxu0 0
        %5048 = vmatprep.subr.bf16.mxu0 0
        %5049 = vmatpush1.bf16.xpose.msra.mxu0 0
        %5050 = vmatprep.subr.bf16.mxu0 0
        %5051 = vmatpush1.bf16.xpose.msra.mxu0 0
        %5052 = vmatprep.subr.bf16.mxu0 0
        %5053 = vmatpush1.bf16.xpose.msra.mxu0 0
        %5054 = vmatprep.subr.bf16.mxu0 0
        %5055 = vmatpush1.bf16.xpose.msra.mxu0 0
        %5056 = vmatprep.subr.bf16.mxu0 0
        %5057 = vmatpush1.bf16.xpose.msra.mxu0 0
        %5058 = vmatprep.mubr.bf16.mxu0 0
        %5059 = vmatmul.mubr.bf16.gmra.mrb[0].mxu0 %v5021
        %v5060 = vpop.f32.mrb[0].mxu0
        %v5061 = vadd.f32 0.0, %v5060
        %v5062 = vpop.f32.mrb[0].mxu0
        %v5063 = vpop.f32.mrb[0].mxu0
        %v5064 = vpop.f32.mrb[0].mxu0
        %5065 = vdwg.mxu0
        %v5067 = vsel %vm1500, %v4919, 0
        %v5070 = vsel %vm1500, %v4923, 0
        %5072 = vmatprep.subr.bf16.mxu0 0
        %5073 = vmatpush1.bf16.xpose.msra.mxu0 %v5070
        %5074 = vmatprep.subr.bf16.mxu0 0
        %5075 = vmatpush1.bf16.xpose.msra.mxu0 0
        %5076 = vmatprep.subr.bf16.mxu0 0
        %5077 = vmatpush1.bf16.xpose.msra.mxu0 0
        %5078 = vmatprep.subr.bf16.mxu0 0
        %5079 = vmatpush1.bf16.xpose.msra.mxu0 0
        %5080 = vmatprep.subr.bf16.mxu0 0
        %5081 = vmatpush1.bf16.xpose.msra.mxu0 0
        %5082 = vmatprep.subr.bf16.mxu0 0
        %5083 = vmatpush1.bf16.xpose.msra.mxu0 0
        %5084 = vmatprep.subr.bf16.mxu0 0
        %5085 = vmatpush1.bf16.xpose.msra.mxu0 0
        %5086 = vmatprep.subr.bf16.mxu0 0
        %5087 = vmatpush1.bf16.xpose.msra.mxu0 0
        %5088 = vmatprep.subr.bf16.mxu0 0
        %5089 = vmatpush1.bf16.xpose.msra.mxu0 0
        %5090 = vmatprep.subr.bf16.mxu0 0
        %5091 = vmatpush1.bf16.xpose.msra.mxu0 0
        %5092 = vmatprep.subr.bf16.mxu0 0
        %5093 = vmatpush1.bf16.xpose.msra.mxu0 0
        %5094 = vmatprep.subr.bf16.mxu0 0
        %5095 = vmatpush1.bf16.xpose.msra.mxu0 0
        %5096 = vmatprep.subr.bf16.mxu0 0
        %5097 = vmatpush1.bf16.xpose.msra.mxu0 0
        %5098 = vmatprep.subr.bf16.mxu0 0
        %5099 = vmatpush1.bf16.xpose.msra.mxu0 0
        %5100 = vmatprep.subr.bf16.mxu0 0
        %5101 = vmatpush1.bf16.xpose.msra.mxu0 0
        %5102 = vmatprep.subr.bf16.mxu0 0
        %5103 = vmatpush1.bf16.xpose.msra.mxu0 0
        %5104 = vmatprep.mubr.bf16.mxu0 0
        %5105 = vmatmul.mubr.bf16.gmra.mrb[0].mxu0 %v5067
        %v5106 = vpop.f32.mrb[0].mxu0
        %v5107 = vadd.f32 0.0, %v5106
        %v5108 = vpop.f32.mrb[0].mxu0
        %v5109 = vpop.f32.mrb[0].mxu0
        %v5110 = vpop.f32.mrb[0].mxu0
        %5111 = vdwg.mxu0
        %v5112 = vmul.f32 %v4969, 0.35355338
        %v5113 = vmul.f32 %v5015, 0.35355338
        %v5114 = vmul.f32 %v5061, 0.35355338
        %v5115 = vmul.f32 %v5107, 0.35355338
        %v5116 = vsel %vm1500, %v5112, -inf
        %5117 = vmax.xlane.f32.xlu0 %v5116
        %v5118 = vpop.xlane.xlu0 %5117
        %v5119 = vsel %vm1500, %v5113, -inf
        %5120 = vmax.xlane.f32.xlu0 %v5119
        %v5121 = vpop.xlane.xlu0 %5120
        %v5122 = vsel %vm1500, %v5114, -inf
        %5123 = vmax.xlane.f32.xlu0 %v5122
        %v5124 = vpop.xlane.xlu0 %5123
        %v5125 = vsel %vm1500, %v5115, -inf
        %5126 = vmax.xlane.f32.xlu0 %v5125
        %v5127 = vpop.xlane.xlu0 %5126
        %v5128 = vsub.f32 %v5112, %v5118
        %v5129 = vsub.f32 %v5113, %v5121
        %v5130 = vsub.f32 %v5114, %v5124
        %v5131 = vsub.f32 %v5115, %v5127
        %v5132 = vmul.f32 %v5128, 1.442695
        %v5133 = vpow.pop %v5132
        %v5134 = vmul.f32 %v5129, 1.442695
        %v5135 = vpow.pop %v5134
        %v5136 = vmul.f32 %v5130, 1.442695
        %v5137 = vpow.pop %v5136
        %v5138 = vmul.f32 %v5131, 1.442695
        %v5139 = vpow.pop %v5138
        %v5140 = vsel %vm1500, %v5133, 0.0
        %5141 = vadd.xlane.f32.xlu0 %v5140
        %v5142 = vpop.xlane.xlu0 %5141
        %v5143 = vsel %vm1500, %v5135, 0.0
        %5144 = vadd.xlane.f32.xlu0 %v5143
        %v5145 = vpop.xlane.xlu0 %5144
        %v5146 = vsel %vm1500, %v5137, 0.0
        %5147 = vadd.xlane.f32.xlu0 %v5146
        %v5148 = vpop.xlane.xlu0 %5147
        %v5149 = vsel %vm1500, %v5139, 0.0
        %5150 = vadd.xlane.f32.xlu0 %v5149
        %v5151 = vpop.xlane.xlu0 %5150
        %v5152 = vrcp.pop %v5142
        %v5153 = vrcp.pop %v5145
        %v5154 = vrcp.pop %v5148
        %v5155 = vrcp.pop %v5151
        %v5156 = vmul.f32 %v5133, %v5152
        %v5157 = vmul.f32 %v5135, %v5153
        %v5158 = vmul.f32 %v5137, %v5154
        %v5159 = vmul.f32 %v5139, %v5155
        %v5160 = vpack.c.bf16 %v5156, %v5156
        %v5161 = vpack.c.bf16 %v5157, %v5157
        %v5162 = vpack.c.bf16 %v5158, %v5158
        %v5163 = vpack.c.bf16 %v5159, %v5159
        %v5165 = vsel %vm1500, %v5160, 0
        %v5168 = vsel %vm1740, %v4924, 0
        %5170 = vmatprep.subr.bf16.mxu0 0
        %5171 = vmatpush1.bf16.msra.mxu0 %v5168
        %5172 = vmatprep.subr.bf16.mxu0 0
        %5173 = vmatpush1.bf16.msra.mxu0 0
        %5174 = vmatprep.subr.bf16.mxu0 0
        %5175 = vmatpush1.bf16.msra.mxu0 0
        %5176 = vmatprep.subr.bf16.mxu0 0
        %5177 = vmatpush1.bf16.msra.mxu0 0
        %5178 = vmatprep.subr.bf16.mxu0 0
        %5179 = vmatpush1.bf16.msra.mxu0 0
        %5180 = vmatprep.subr.bf16.mxu0 0
        %5181 = vmatpush1.bf16.msra.mxu0 0
        %5182 = vmatprep.subr.bf16.mxu0 0
        %5183 = vmatpush1.bf16.msra.mxu0 0
        %5184 = vmatprep.subr.bf16.mxu0 0
        %5185 = vmatpush1.bf16.msra.mxu0 0
        %5186 = vmatprep.subr.bf16.mxu0 0
        %5187 = vmatpush1.bf16.msra.mxu0 0
        %5188 = vmatprep.subr.bf16.mxu0 0
        %5189 = vmatpush1.bf16.msra.mxu0 0
        %5190 = vmatprep.subr.bf16.mxu0 0
        %5191 = vmatpush1.bf16.msra.mxu0 0
        %5192 = vmatprep.subr.bf16.mxu0 0
        %5193 = vmatpush1.bf16.msra.mxu0 0
        %5194 = vmatprep.subr.bf16.mxu0 0
        %5195 = vmatpush1.bf16.msra.mxu0 0
        %5196 = vmatprep.subr.bf16.mxu0 0
        %5197 = vmatpush1.bf16.msra.mxu0 0
        %5198 = vmatprep.subr.bf16.mxu0 0
        %5199 = vmatpush1.bf16.msra.mxu0 0
        %5200 = vmatprep.subr.bf16.mxu0 0
        %5201 = vmatpush1.bf16.msra.mxu0 0
        %5202 = vmatprep.mubr.bf16.mxu0 0
        %5203 = vmatmul.mubr.bf16.gmra.mrb[0].mxu0 %v5165
        %v5204 = vpop.f32.mrb[0].mxu0
        %v5205 = vadd.f32 0.0, %v5204
        %v5206 = vpop.f32.mrb[0].mxu0
        %v5207 = vpop.f32.mrb[0].mxu0
        %v5208 = vpop.f32.mrb[0].mxu0
        %5209 = vdwg.mxu0
        %v5211 = vsel %vm1500, %v5161, 0
        %v5214 = vsel %vm1740, %v4925, 0
        %5216 = vmatprep.subr.bf16.mxu0 0
        %5217 = vmatpush1.bf16.msra.mxu0 %v5214
        %5218 = vmatprep.subr.bf16.mxu0 0
        %5219 = vmatpush1.bf16.msra.mxu0 0
        %5220 = vmatprep.subr.bf16.mxu0 0
        %5221 = vmatpush1.bf16.msra.mxu0 0
        %5222 = vmatprep.subr.bf16.mxu0 0
        %5223 = vmatpush1.bf16.msra.mxu0 0
        %5224 = vmatprep.subr.bf16.mxu0 0
        %5225 = vmatpush1.bf16.msra.mxu0 0
        %5226 = vmatprep.subr.bf16.mxu0 0
        %5227 = vmatpush1.bf16.msra.mxu0 0
        %5228 = vmatprep.subr.bf16.mxu0 0
        %5229 = vmatpush1.bf16.msra.mxu0 0
        %5230 = vmatprep.subr.bf16.mxu0 0
        %5231 = vmatpush1.bf16.msra.mxu0 0
        %5232 = vmatprep.subr.bf16.mxu0 0
        %5233 = vmatpush1.bf16.msra.mxu0 0
        %5234 = vmatprep.subr.bf16.mxu0 0
        %5235 = vmatpush1.bf16.msra.mxu0 0
        %5236 = vmatprep.subr.bf16.mxu0 0
        %5237 = vmatpush1.bf16.msra.mxu0 0
        %5238 = vmatprep.subr.bf16.mxu0 0
        %5239 = vmatpush1.bf16.msra.mxu0 0
        %5240 = vmatprep.subr.bf16.mxu0 0
        %5241 = vmatpush1.bf16.msra.mxu0 0
        %5242 = vmatprep.subr.bf16.mxu0 0
        %5243 = vmatpush1.bf16.msra.mxu0 0
        %5244 = vmatprep.subr.bf16.mxu0 0
        %5245 = vmatpush1.bf16.msra.mxu0 0
        %5246 = vmatprep.subr.bf16.mxu0 0
        %5247 = vmatpush1.bf16.msra.mxu0 0
        %5248 = vmatprep.mubr.bf16.mxu0 0
        %5249 = vmatmul.mubr.bf16.gmra.mrb[0].mxu0 %v5211
        %v5250 = vpop.f32.mrb[0].mxu0
        %v5251 = vadd.f32 0.0, %v5250
        %v5252 = vpop.f32.mrb[0].mxu0
        %v5253 = vpop.f32.mrb[0].mxu0
        %v5254 = vpop.f32.mrb[0].mxu0
        %5255 = vdwg.mxu0
        %v5257 = vsel %vm1500, %v5162, 0
        %v5260 = vsel %vm1740, %v4926, 0
        %5262 = vmatprep.subr.bf16.mxu0 0
        %5263 = vmatpush1.bf16.msra.mxu0 %v5260
        %5264 = vmatprep.subr.bf16.mxu0 0
        %5265 = vmatpush1.bf16.msra.mxu0 0
        %5266 = vmatprep.subr.bf16.mxu0 0
        %5267 = vmatpush1.bf16.msra.mxu0 0
        %5268 = vmatprep.subr.bf16.mxu0 0
        %5269 = vmatpush1.bf16.msra.mxu0 0
        %5270 = vmatprep.subr.bf16.mxu0 0
        %5271 = vmatpush1.bf16.msra.mxu0 0
        %5272 = vmatprep.subr.bf16.mxu0 0
        %5273 = vmatpush1.bf16.msra.mxu0 0
        %5274 = vmatprep.subr.bf16.mxu0 0
        %5275 = vmatpush1.bf16.msra.mxu0 0
        %5276 = vmatprep.subr.bf16.mxu0 0
        %5277 = vmatpush1.bf16.msra.mxu0 0
        %5278 = vmatprep.subr.bf16.mxu0 0
        %5279 = vmatpush1.bf16.msra.mxu0 0
        %5280 = vmatprep.subr.bf16.mxu0 0
        %5281 = vmatpush1.bf16.msra.mxu0 0
        %5282 = vmatprep.subr.bf16.mxu0 0
        %5283 = vmatpush1.bf16.msra.mxu0 0
        %5284 = vmatprep.subr.bf16.mxu0 0
        %5285 = vmatpush1.bf16.msra.mxu0 0
        %5286 = vmatprep.subr.bf16.mxu0 0
        %5287 = vmatpush1.bf16.msra.mxu0 0
        %5288 = vmatprep.subr.bf16.mxu0 0
        %5289 = vmatpush1.bf16.msra.mxu0 0
        %5290 = vmatprep.subr.bf16.mxu0 0
        %5291 = vmatpush1.bf16.msra.mxu0 0
        %5292 = vmatprep.subr.bf16.mxu0 0
        %5293 = vmatpush1.bf16.msra.mxu0 0
        %5294 = vmatprep.mubr.bf16.mxu0 0
        %5295 = vmatmul.mubr.bf16.gmra.mrb[0].mxu0 %v5257
        %v5296 = vpop.f32.mrb[0].mxu0
        %v5297 = vadd.f32 0.0, %v5296
        %v5298 = vpop.f32.mrb[0].mxu0
        %v5299 = vpop.f32.mrb[0].mxu0
        %v5300 = vpop.f32.mrb[0].mxu0
        %5301 = vdwg.mxu0
        %v5303 = vsel %vm1500, %v5163, 0
        %v5306 = vsel %vm1740, %v4927, 0
        %5308 = vmatprep.subr.bf16.mxu0 0
        %5309 = vmatpush1.bf16.msra.mxu0 %v5306
        %5310 = vmatprep.subr.bf16.mxu0 0
        %5311 = vmatpush1.bf16.msra.mxu0 0
        %5312 = vmatprep.subr.bf16.mxu0 0
        %5313 = vmatpush1.bf16.msra.mxu0 0
        %5314 = vmatprep.subr.bf16.mxu0 0
        %5315 = vmatpush1.bf16.msra.mxu0 0
        %5316 = vmatprep.subr.bf16.mxu0 0
        %5317 = vmatpush1.bf16.msra.mxu0 0
        %5318 = vmatprep.subr.bf16.mxu0 0
        %5319 = vmatpush1.bf16.msra.mxu0 0
        %5320 = vmatprep.subr.bf16.mxu0 0
        %5321 = vmatpush1.bf16.msra.mxu0 0
        %5322 = vmatprep.subr.bf16.mxu0 0
        %5323 = vmatpush1.bf16.msra.mxu0 0
        %5324 = vmatprep.subr.bf16.mxu0 0
        %5325 = vmatpush1.bf16.msra.mxu0 0
        %5326 = vmatprep.subr.bf16.mxu0 0
        %5327 = vmatpush1.bf16.msra.mxu0 0
        %5328 = vmatprep.subr.bf16.mxu0 0
        %5329 = vmatpush1.bf16.msra.mxu0 0
        %5330 = vmatprep.subr.bf16.mxu0 0
        %5331 = vmatpush1.bf16.msra.mxu0 0
        %5332 = vmatprep.subr.bf16.mxu0 0
        %5333 = vmatpush1.bf16.msra.mxu0 0
        %5334 = vmatprep.subr.bf16.mxu0 0
        %5335 = vmatpush1.bf16.msra.mxu0 0
        %5336 = vmatprep.subr.bf16.mxu0 0
        %5337 = vmatpush1.bf16.msra.mxu0 0
        %5338 = vmatprep.subr.bf16.mxu0 0
        %5339 = vmatpush1.bf16.msra.mxu0 0
        %5340 = vmatprep.mubr.bf16.mxu0 0
        %5341 = vmatmul.mubr.bf16.gmra.mrb[0].mxu0 %v5303
        %v5342 = vpop.f32.mrb[0].mxu0
        %v5343 = vadd.f32 0.0, %v5342
        %v5344 = vpop.f32.mrb[0].mxu0
        %v5345 = vpop.f32.mrb[0].mxu0
        %v5346 = vpop.f32.mrb[0].mxu0
        %5347 = vdwg.mxu0
        %v5348 = vpack.c.bf16 %v5205, %v5205
        %v5349 = vpack.c.bf16 %v5251, %v5251
        %v5350 = vpack.c.bf16 %v5297, %v5297
        %v5351 = vpack.c.bf16 %v5343, %v5343
        %s5352 = scalar_lea.vmem %s10, 16
        %v5353 = vld [vmem:[%s5352] sm:$0xf]
        %s5354 = scalar_lea.vmem %s10, 20
        %v5355 = vld [vmem:[%s5354] sm:$0xf]
        %v5357 = vsel %vm1500, %v5349, 0
        %v5360 = vsel %vm1740, %v5355, 0
        %5362 = vmatprep.subr.bf16.mxu0 0
        %5363 = vmatpush1.bf16.msra.mxu0 %v5360
        %5364 = vmatprep.subr.bf16.mxu0 0
        %5365 = vmatpush1.bf16.msra.mxu0 0
        %5366 = vmatprep.subr.bf16.mxu0 0
        %5367 = vmatpush1.bf16.msra.mxu0 0
        %5368 = vmatprep.subr.bf16.mxu0 0
        %5369 = vmatpush1.bf16.msra.mxu0 0
        %5370 = vmatprep.subr.bf16.mxu0 0
        %5371 = vmatpush1.bf16.msra.mxu0 0
        %5372 = vmatprep.subr.bf16.mxu0 0
        %5373 = vmatpush1.bf16.msra.mxu0 0
        %5374 = vmatprep.subr.bf16.mxu0 0
        %5375 = vmatpush1.bf16.msra.mxu0 0
        %5376 = vmatprep.subr.bf16.mxu0 0
        %5377 = vmatpush1.bf16.msra.mxu0 0
        %5378 = vmatprep.subr.bf16.mxu0 0
        %5379 = vmatpush1.bf16.msra.mxu0 0
        %5380 = vmatprep.subr.bf16.mxu0 0
        %5381 = vmatpush1.bf16.msra.mxu0 0
        %5382 = vmatprep.subr.bf16.mxu0 0
        %5383 = vmatpush1.bf16.msra.mxu0 0
        %5384 = vmatprep.subr.bf16.mxu0 0
        %5385 = vmatpush1.bf16.msra.mxu0 0
        %5386 = vmatprep.subr.bf16.mxu0 0
        %5387 = vmatpush1.bf16.msra.mxu0 0
        %5388 = vmatprep.subr.bf16.mxu0 0
        %5389 = vmatpush1.bf16.msra.mxu0 0
        %5390 = vmatprep.subr.bf16.mxu0 0
        %5391 = vmatpush1.bf16.msra.mxu0 0
        %5392 = vmatprep.subr.bf16.mxu0 0
        %5393 = vmatpush1.bf16.msra.mxu0 0
        %5394 = vmatprep.mubr.bf16.mxu0 0
        %5395 = vmatmul.mubr.bf16.gmra.mrb[0].mxu0 %v5357
        %v5396 = vpop.f32.mrb[0].mxu0
        %v5397 = vadd.f32 0.0, %v5396
        %v5398 = vpop.f32.mrb[0].mxu0
        %v5399 = vpop.f32.mrb[0].mxu0
        %v5400 = vpop.f32.mrb[0].mxu0
        %5401 = vdwg.mxu0
        %v5403 = vsel %vm1500, %v5348, 0
        %v5406 = vsel %vm1740, %v5353, 0
        %5408 = vmatprep.subr.bf16.mxu0 0
        %5409 = vmatpush1.bf16.msra.mxu0 %v5406
        %5410 = vmatprep.subr.bf16.mxu0 0
        %5411 = vmatpush1.bf16.msra.mxu0 0
        %5412 = vmatprep.subr.bf16.mxu0 0
        %5413 = vmatpush1.bf16.msra.mxu0 0
        %5414 = vmatprep.subr.bf16.mxu0 0
        %5415 = vmatpush1.bf16.msra.mxu0 0
        %5416 = vmatprep.subr.bf16.mxu0 0
        %5417 = vmatpush1.bf16.msra.mxu0 0
        %5418 = vmatprep.subr.bf16.mxu0 0
        %5419 = vmatpush1.bf16.msra.mxu0 0
        %5420 = vmatprep.subr.bf16.mxu0 0
        %5421 = vmatpush1.bf16.msra.mxu0 0
        %5422 = vmatprep.subr.bf16.mxu0 0
        %5423 = vmatpush1.bf16.msra.mxu0 0
        %5424 = vmatprep.subr.bf16.mxu0 0
        %5425 = vmatpush1.bf16.msra.mxu0 0
        %5426 = vmatprep.subr.bf16.mxu0 0
        %5427 = vmatpush1.bf16.msra.mxu0 0
        %5428 = vmatprep.subr.bf16.mxu0 0
        %5429 = vmatpush1.bf16.msra.mxu0 0
        %5430 = vmatprep.subr.bf16.mxu0 0
        %5431 = vmatpush1.bf16.msra.mxu0 0
        %5432 = vmatprep.subr.bf16.mxu0 0
        %5433 = vmatpush1.bf16.msra.mxu0 0
        %5434 = vmatprep.subr.bf16.mxu0 0
        %5435 = vmatpush1.bf16.msra.mxu0 0
        %5436 = vmatprep.subr.bf16.mxu0 0
        %5437 = vmatpush1.bf16.msra.mxu0 0
        %5438 = vmatprep.subr.bf16.mxu0 0
        %5439 = vmatpush1.bf16.msra.mxu0 0
        %5440 = vmatprep.mubr.bf16.mxu0 0
        %5441 = vmatmul.mubr.bf16.gmra.mrb[0].mxu0 %v5403
        %v5442 = vpop.f32.mrb[0].mxu0
        %v5443 = vadd.f32 %v5397, %v5442
        %v5444 = vpop.f32.mrb[0].mxu0
        %v5445 = vpop.f32.mrb[0].mxu0
        %v5446 = vpop.f32.mrb[0].mxu0
        %5447 = vdwg.mxu0
        %s5448 = scalar_lea.vmem %s10, 24
        %v5449 = vld [vmem:[%s5448] sm:$0xf]
        %v5451 = vsel %vm1500, %v5350, 0
        %v5454 = vsel %vm1740, %v5449, 0
        %5456 = vmatprep.subr.bf16.mxu0 0
        %5457 = vmatpush1.bf16.msra.mxu0 %v5454
        %5458 = vmatprep.subr.bf16.mxu0 0
        %5459 = vmatpush1.bf16.msra.mxu0 0
        %5460 = vmatprep.subr.bf16.mxu0 0
        %5461 = vmatpush1.bf16.msra.mxu0 0
        %5462 = vmatprep.subr.bf16.mxu0 0
        %5463 = vmatpush1.bf16.msra.mxu0 0
        %5464 = vmatprep.subr.bf16.mxu0 0
        %5465 = vmatpush1.bf16.msra.mxu0 0
        %5466 = vmatprep.subr.bf16.mxu0 0
        %5467 = vmatpush1.bf16.msra.mxu0 0
        %5468 = vmatprep.subr.bf16.mxu0 0
        %5469 = vmatpush1.bf16.msra.mxu0 0
        %5470 = vmatprep.subr.bf16.mxu0 0
        %5471 = vmatpush1.bf16.msra.mxu0 0
        %5472 = vmatprep.subr.bf16.mxu0 0
        %5473 = vmatpush1.bf16.msra.mxu0 0
        %5474 = vmatprep.subr.bf16.mxu0 0
        %5475 = vmatpush1.bf16.msra.mxu0 0
        %5476 = vmatprep.subr.bf16.mxu0 0
        %5477 = vmatpush1.bf16.msra.mxu0 0
        %5478 = vmatprep.subr.bf16.mxu0 0
        %5479 = vmatpush1.bf16.msra.mxu0 0
        %5480 = vmatprep.subr.bf16.mxu0 0
        %5481 = vmatpush1.bf16.msra.mxu0 0
        %5482 = vmatprep.subr.bf16.mxu0 0
        %5483 = vmatpush1.bf16.msra.mxu0 0
        %5484 = vmatprep.subr.bf16.mxu0 0
        %5485 = vmatpush1.bf16.msra.mxu0 0
        %5486 = vmatprep.subr.bf16.mxu0 0
        %5487 = vmatpush1.bf16.msra.mxu0 0
        %5488 = vmatprep.mubr.bf16.mxu0 0
        %5489 = vmatmul.mubr.bf16.gmra.mrb[0].mxu0 %v5451
        %v5490 = vpop.f32.mrb[0].mxu0
        %v5491 = vadd.f32 0.0, %v5490
        %v5492 = vpop.f32.mrb[0].mxu0
        %v5493 = vpop.f32.mrb[0].mxu0
        %v5494 = vpop.f32.mrb[0].mxu0
        %5495 = vdwg.mxu0
        %v5496 = vadd.f32 %v5443, %v5491
        %s5497 = scalar_lea.vmem %s10, 28
        %v5498 = vld [vmem:[%s5497] sm:$0xf]
        %v5500 = vsel %vm1500, %v5351, 0
        %v5503 = vsel %vm1740, %v5498, 0
        %5505 = vmatprep.subr.bf16.mxu0 0
        %5506 = vmatpush1.bf16.msra.mxu0 %v5503
        %5507 = vmatprep.subr.bf16.mxu0 0
        %5508 = vmatpush1.bf16.msra.mxu0 0
        %5509 = vmatprep.subr.bf16.mxu0 0
        %5510 = vmatpush1.bf16.msra.mxu0 0
        %5511 = vmatprep.subr.bf16.mxu0 0
        %5512 = vmatpush1.bf16.msra.mxu0 0
        %5513 = vmatprep.subr.bf16.mxu0 0
        %5514 = vmatpush1.bf16.msra.mxu0 0
        %5515 = vmatprep.subr.bf16.mxu0 0
        %5516 = vmatpush1.bf16.msra.mxu0 0
        %5517 = vmatprep.subr.bf16.mxu0 0
        %5518 = vmatpush1.bf16.msra.mxu0 0
        %5519 = vmatprep.subr.bf16.mxu0 0
        %5520 = vmatpush1.bf16.msra.mxu0 0
        %5521 = vmatprep.subr.bf16.mxu0 0
        %5522 = vmatpush1.bf16.msra.mxu0 0
        %5523 = vmatprep.subr.bf16.mxu0 0
        %5524 = vmatpush1.bf16.msra.mxu0 0
        %5525 = vmatprep.subr.bf16.mxu0 0
        %5526 = vmatpush1.bf16.msra.mxu0 0
        %5527 = vmatprep.subr.bf16.mxu0 0
        %5528 = vmatpush1.bf16.msra.mxu0 0
        %5529 = vmatprep.subr.bf16.mxu0 0
        %5530 = vmatpush1.bf16.msra.mxu0 0
        %5531 = vmatprep.subr.bf16.mxu0 0
        %5532 = vmatpush1.bf16.msra.mxu0 0
        %5533 = vmatprep.subr.bf16.mxu0 0
        %5534 = vmatpush1.bf16.msra.mxu0 0
        %5535 = vmatprep.subr.bf16.mxu0 0
        %5536 = vmatpush1.bf16.msra.mxu0 0
        %5537 = vmatprep.mubr.bf16.mxu0 0
        %5538 = vmatmul.mubr.bf16.gmra.mrb[0].mxu0 %v5500
        %v5539 = vpop.f32.mrb[0].mxu0
        %v5540 = vadd.f32 0.0, %v5539
        %v5541 = vpop.f32.mrb[0].mxu0
        %v5542 = vpop.f32.mrb[0].mxu0
        %v5543 = vpop.f32.mrb[0].mxu0
        %5544 = vdwg.mxu0
        %v5545 = vadd.f32 %v5496, %v5540
        %v5546 = vld [vmem:[%s11 + $0x1] sm:$0x1]
        %v5547 = vlaneseq
        %v5548 = vshrl.u32 %v5547, 7
        %v5549 = vsub.s32 0, %v5548
        %v5550 = vrot.slane %v5546, %v5549
        %v5551 = vadd.f32 %v5545, %v5550
        %v5552 = vadd.f32 %v4167, %v5551
        %v5553 = vld [vmem:[%s12 + $0x1] sm:$0x1]
        %v5554 = vld [vmem:[%s13 + $0x1] sm:$0x1]
        %v5555 = vsel %vm764, %v5552, 0.0
        %5556 = vadd.xlane.f32.xlu0 %v5555
        %v5557 = vpop.xlane.xlu0 %5556
        %v5558 = vmul.f32 %v5557, %v2131
        %v5559 = vsub.f32 %v5552, %v5558
        %v5560 = vmul.f32 %v5559, %v5559
        %v5561 = vsel %vm764, %v5560, 0.0
        %5562 = vadd.xlane.f32.xlu0 %v5561
        %v5563 = vpop.xlane.xlu0 %5562
        %v5564 = vmul.f32 %v5563, %v2131
        %v5565 = vadd.f32 %v5564, 1e-05
        %v5566 = vrsqrt.pop %v5565
        %v5567 = vmul.f32 %v5559, %v5566
        %v5568 = vlaneseq
        %v5569 = vshrl.u32 %v5568, 7
        %v5570 = vsub.s32 0, %v5569
        %v5571 = vrot.slane %v5553, %v5570
        %v5572 = vmul.f32 %v5567, %v5571
        %v5573 = vlaneseq
        %v5574 = vshrl.u32 %v5573, 7
        %v5575 = vsub.s32 0, %v5574
        %v5576 = vrot.slane %v5554, %v5575
        %v5577 = vadd.f32 %v5572, %v5576
        %v5578 = vpack.c.bf16 %v5577, %v5577
        %s5579 = scalar_lea.vmem %s16, 256
        %v5580 = vld [vmem:[%s5579] sm:$0xff]
        %v5581 = vld [vmem:[%s5579 + $0x8] sm:$0xff]
        %v5582 = vld [vmem:[%s5579 + $0x10] sm:$0xff]
        %v5583 = vld [vmem:[%s5579 + $0x18] sm:$0xff]
        %v5584 = vld [vmem:[%s5579 + $0x20] sm:$0xff]
        %v5585 = vld [vmem:[%s5579 + $0x28] sm:$0xff]
        %v5586 = vld [vmem:[%s5579 + $0x30] sm:$0xff]
        %v5587 = vld [vmem:[%s5579 + $0x38] sm:$0xff]
        %v5588 = vld [vmem:[%s5579 + $0x40] sm:$0xff]
        %v5589 = vld [vmem:[%s5579 + $0x48] sm:$0xff]
        %v5590 = vld [vmem:[%s5579 + $0x50] sm:$0xff]
        %v5591 = vld [vmem:[%s5579 + $0x58] sm:$0xff]
        %v5592 = vld [vmem:[%s5579 + $0x60] sm:$0xff]
        %v5593 = vld [vmem:[%s5579 + $0x68] sm:$0xff]
        %v5594 = vld [vmem:[%s5579 + $0x70] sm:$0xff]
        %v5595 = vld [vmem:[%s5579 + $0x78] sm:$0xff]
        %v5596 = vld [vmem:[%s5579 + $0x80] sm:$0xff]
        %v5597 = vld [vmem:[%s5579 + $0x88] sm:$0xff]
        %v5598 = vld [vmem:[%s5579 + $0x90] sm:$0xff]
        %v5599 = vld [vmem:[%s5579 + $0x98] sm:$0xff]
        %v5600 = vld [vmem:[%s5579 + $0xa0] sm:$0xff]
        %v5601 = vld [vmem:[%s5579 + $0xa8] sm:$0xff]
        %v5602 = vld [vmem:[%s5579 + $0xb0] sm:$0xff]
        %v5603 = vld [vmem:[%s5579 + $0xb8] sm:$0xff]
        %v5604 = vld [vmem:[%s5579 + $0xc0] sm:$0xff]
        %v5605 = vld [vmem:[%s5579 + $0xc8] sm:$0xff]
        %v5606 = vld [vmem:[%s5579 + $0xd0] sm:$0xff]
        %v5607 = vld [vmem:[%s5579 + $0xd8] sm:$0xff]
        %v5608 = vld [vmem:[%s5579 + $0xe0] sm:$0xff]
        %v5609 = vld [vmem:[%s5579 + $0xe8] sm:$0xff]
        %v5610 = vld [vmem:[%s5579 + $0xf0] sm:$0xff]
        %v5611 = vld [vmem:[%s5579 + $0xf8] sm:$0xff]
        %s5612 = scalar_lea.vmem %s17, 1
        %v5613 = vld [vmem:[%s5612] ss:$2 sm:$0xff]
        %s5614 = scalar_lea.vmem %s17, 17
        %v5615 = vld [vmem:[%s5614] ss:$2 sm:$0xff]
        %v5618 = vlaneseq
        %v5619 = vshrl.u32 %v5618, 7
        %v5620 = vsub.s32 0, %v5619
        %v5621 = vrot.slane %v5613, %v5620
        %v5622 = vlaneseq
        %v5623 = vshrl.u32 %v5622, 7
        %v5624 = vsub.s32 1, %v5623
        %v5625 = vrot.slane %v5613, %v5624
        %v5626 = vlaneseq
        %v5627 = vshrl.u32 %v5626, 7
        %v5628 = vsub.s32 2, %v5627
        %v5629 = vrot.slane %v5613, %v5628
        %v5630 = vlaneseq
        %v5631 = vshrl.u32 %v5630, 7
        %v5632 = vsub.s32 3, %v5631
        %v5633 = vrot.slane %v5613, %v5632
        %v5634 = vlaneseq
        %v5635 = vshrl.u32 %v5634, 7
        %v5636 = vsub.s32 4, %v5635
        %v5637 = vrot.slane %v5613, %v5636
        %v5638 = vlaneseq
        %v5639 = vshrl.u32 %v5638, 7
        %v5640 = vsub.s32 5, %v5639
        %v5641 = vrot.slane %v5613, %v5640
        %v5642 = vlaneseq
        %v5643 = vshrl.u32 %v5642, 7
        %v5644 = vsub.s32 6, %v5643
        %v5645 = vrot.slane %v5613, %v5644
        %v5646 = vlaneseq
        %v5647 = vshrl.u32 %v5646, 7
        %v5648 = vsub.s32 7, %v5647
        %v5649 = vrot.slane %v5613, %v5648
        %v5650 = vlaneseq
        %v5651 = vshrl.u32 %v5650, 7
        %v5652 = vsub.s32 0, %v5651
        %v5653 = vrot.slane %v5615, %v5652
        %v5654 = vlaneseq
        %v5655 = vshrl.u32 %v5654, 7
        %v5656 = vsub.s32 1, %v5655
        %v5657 = vrot.slane %v5615, %v5656
        %v5658 = vlaneseq
        %v5659 = vshrl.u32 %v5658, 7
        %v5660 = vsub.s32 2, %v5659
        %v5661 = vrot.slane %v5615, %v5660
        %v5662 = vlaneseq
        %v5663 = vshrl.u32 %v5662, 7
        %v5664 = vsub.s32 3, %v5663
        %v5665 = vrot.slane %v5615, %v5664
        %v5666 = vlaneseq
        %v5667 = vshrl.u32 %v5666, 7
        %v5668 = vsub.s32 4, %v5667
        %v5669 = vrot.slane %v5615, %v5668
        %v5670 = vlaneseq
        %v5671 = vshrl.u32 %v5670, 7
        %v5672 = vsub.s32 5, %v5671
        %v5673 = vrot.slane %v5615, %v5672
        %v5674 = vlaneseq
        %v5675 = vshrl.u32 %v5674, 7
        %v5676 = vsub.s32 6, %v5675
        %v5677 = vrot.slane %v5615, %v5676
        %v5678 = vlaneseq
        %v5679 = vshrl.u32 %v5678, 7
        %v5680 = vsub.s32 7, %v5679
        %v5681 = vrot.slane %v5615, %v5680
        %v5730 = vunpack.c.l.b16 %v5580
        %v5731 = vunpack.c.h.b16 %v5580
        %v5732 = vunpack.c.l.b16 %v5581
        %v5733 = vunpack.c.h.b16 %v5581
        %v5734 = vunpack.c.l.b16 %v5582
        %v5735 = vunpack.c.h.b16 %v5582
        %v5736 = vunpack.c.l.b16 %v5583
        %v5737 = vunpack.c.h.b16 %v5583
        %v5738 = vunpack.c.l.b16 %v5584
        %v5739 = vunpack.c.h.b16 %v5584
        %v5740 = vunpack.c.l.b16 %v5585
        %v5741 = vunpack.c.h.b16 %v5585
        %v5742 = vunpack.c.l.b16 %v5586
        %v5743 = vunpack.c.h.b16 %v5586
        %v5744 = vunpack.c.l.b16 %v5587
        %v5745 = vunpack.c.h.b16 %v5587
        %v5746 = vunpack.c.l.b16 %v5588
        %v5747 = vunpack.c.h.b16 %v5588
        %v5748 = vunpack.c.l.b16 %v5589
        %v5749 = vunpack.c.h.b16 %v5589
        %v5750 = vunpack.c.l.b16 %v5590
        %v5751 = vunpack.c.h.b16 %v5590
        %v5752 = vunpack.c.l.b16 %v5591
        %v5753 = vunpack.c.h.b16 %v5591
        %v5754 = vunpack.c.l.b16 %v5592
        %v5755 = vunpack.c.h.b16 %v5592
        %v5756 = vunpack.c.l.b16 %v5593
        %v5757 = vunpack.c.h.b16 %v5593
        %v5758 = vunpack.c.l.b16 %v5594
        %v5759 = vunpack.c.h.b16 %v5594
        %v5760 = vunpack.c.l.b16 %v5595
        %v5761 = vunpack.c.h.b16 %v5595
        %v5762 = vunpack.c.l.b16 %v5596
        %v5763 = vunpack.c.h.b16 %v5596
        %v5764 = vunpack.c.l.b16 %v5597
        %v5765 = vunpack.c.h.b16 %v5597
        %v5766 = vunpack.c.l.b16 %v5598
        %v5767 = vunpack.c.h.b16 %v5598
        %v5768 = vunpack.c.l.b16 %v5599
        %v5769 = vunpack.c.h.b16 %v5599
        %v5770 = vunpack.c.l.b16 %v5600
        %v5771 = vunpack.c.h.b16 %v5600
        %v5772 = vunpack.c.l.b16 %v5601
        %v5773 = vunpack.c.h.b16 %v5601
        %v5774 = vunpack.c.l.b16 %v5602
        %v5775 = vunpack.c.h.b16 %v5602
        %v5776 = vunpack.c.l.b16 %v5603
        %v5777 = vunpack.c.h.b16 %v5603
        %v5778 = vunpack.c.l.b16 %v5604
        %v5779 = vunpack.c.h.b16 %v5604
        %v5780 = vunpack.c.l.b16 %v5605
        %v5781 = vunpack.c.h.b16 %v5605
        %v5782 = vunpack.c.l.b16 %v5606
        %v5783 = vunpack.c.h.b16 %v5606
        %v5784 = vunpack.c.l.b16 %v5607
        %v5785 = vunpack.c.h.b16 %v5607
        %v5786 = vunpack.c.l.b16 %v5608
        %v5787 = vunpack.c.h.b16 %v5608
        %v5788 = vunpack.c.l.b16 %v5609
        %v5789 = vunpack.c.h.b16 %v5609
        %v5790 = vunpack.c.l.b16 %v5610
        %v5791 = vunpack.c.h.b16 %v5610
        %v5792 = vunpack.c.l.b16 %v5611
        %v5793 = vunpack.c.h.b16 %v5611
        %v5794 = vpack.c.b16 %v5746, %v5730
        %v5795 = vpack.c.b16 %v5747, %v5731
        %v5796 = vpack.c.b16 %v5748, %v5732
        %v5797 = vpack.c.b16 %v5749, %v5733
        %v5798 = vpack.c.b16 %v5750, %v5734
        %v5799 = vpack.c.b16 %v5751, %v5735
        %v5800 = vpack.c.b16 %v5752, %v5736
        %v5801 = vpack.c.b16 %v5753, %v5737
        %v5802 = vpack.c.b16 %v5754, %v5738
        %v5803 = vpack.c.b16 %v5755, %v5739
        %v5804 = vpack.c.b16 %v5756, %v5740
        %v5805 = vpack.c.b16 %v5757, %v5741
        %v5806 = vpack.c.b16 %v5758, %v5742
        %v5807 = vpack.c.b16 %v5759, %v5743
        %v5808 = vpack.c.b16 %v5760, %v5744
        %v5809 = vpack.c.b16 %v5761, %v5745
        %v5810 = vpack.c.b16 %v5778, %v5762
        %v5811 = vpack.c.b16 %v5779, %v5763
        %v5812 = vpack.c.b16 %v5780, %v5764
        %v5813 = vpack.c.b16 %v5781, %v5765
        %v5814 = vpack.c.b16 %v5782, %v5766
        %v5815 = vpack.c.b16 %v5783, %v5767
        %v5816 = vpack.c.b16 %v5784, %v5768
        %v5817 = vpack.c.b16 %v5785, %v5769
        %v5818 = vpack.c.b16 %v5786, %v5770
        %v5819 = vpack.c.b16 %v5787, %v5771
        %v5820 = vpack.c.b16 %v5788, %v5772
        %v5821 = vpack.c.b16 %v5789, %v5773
        %v5822 = vpack.c.b16 %v5790, %v5774
        %v5823 = vpack.c.b16 %v5791, %v5775
        %v5824 = vpack.c.b16 %v5792, %v5776
        %v5825 = vpack.c.b16 %v5793, %v5777
        %v5859 = vsel %vm764, %v5578, 0
        %5861 = vmatprep.subr.bf16.mxu0 %v5795
        %5862 = vmatpush1.bf16.msra.mxu0 %v5794
        %5863 = vmatprep.subr.bf16.mxu0 %v5811
        %5864 = vmatpush1.bf16.msra.mxu0 %v5810
        %5865 = vmatprep.subr.bf16.mxu0 0
        %5866 = vmatpush1.bf16.msra.mxu0 0
        %5867 = vmatprep.subr.bf16.mxu0 0
        %5868 = vmatpush1.bf16.msra.mxu0 0
        %5869 = vmatprep.subr.bf16.mxu0 0
        %5870 = vmatpush1.bf16.msra.mxu0 0
        %5871 = vmatprep.subr.bf16.mxu0 0
        %5872 = vmatpush1.bf16.msra.mxu0 0
        %5873 = vmatprep.subr.bf16.mxu0 0
        %5874 = vmatpush1.bf16.msra.mxu0 0
        %5875 = vmatprep.subr.bf16.mxu0 0
        %5876 = vmatpush1.bf16.msra.mxu0 0
        %5877 = vmatprep.subr.bf16.mxu0 0
        %5878 = vmatpush1.bf16.msra.mxu0 0
        %5879 = vmatprep.subr.bf16.mxu0 0
        %5880 = vmatpush1.bf16.msra.mxu0 0
        %5881 = vmatprep.subr.bf16.mxu0 0
        %5882 = vmatpush1.bf16.msra.mxu0 0
        %5883 = vmatprep.subr.bf16.mxu0 0
        %5884 = vmatpush1.bf16.msra.mxu0 0
        %5885 = vmatprep.subr.bf16.mxu0 0
        %5886 = vmatpush1.bf16.msra.mxu0 0
        %5887 = vmatprep.subr.bf16.mxu0 0
        %5888 = vmatpush1.bf16.msra.mxu0 0
        %5889 = vmatprep.subr.bf16.mxu0 0
        %5890 = vmatpush1.bf16.msra.mxu0 0
        %5891 = vmatprep.subr.bf16.mxu0 0
        %5892 = vmatpush1.bf16.msra.mxu0 0
        %5893 = vmatprep.mubr.bf16.mxu0 0
        %5894 = vmatmul.mubr.bf16.gmra.mrb[0].mxu0 %v5859
        %v5895 = vpop.f32.mrb[0].mxu0
        %v5896 = vadd.f32 %v5621, %v5895
        %v5897 = vpop.f32.mrb[0].mxu0
        %v5898 = vadd.f32 %v5625, %v5897
        %v5899 = vpop.f32.mrb[0].mxu0
        %v5900 = vpop.f32.mrb[0].mxu0
        %5901 = vdwg.mxu0
        %5902 = vmatprep.subr.bf16.mxu0 %v5797
        %5903 = vmatpush1.bf16.msra.mxu0 %v5796
        %5904 = vmatprep.subr.bf16.mxu0 %v5813
        %5905 = vmatpush1.bf16.msra.mxu0 %v5812
        %5906 = vmatprep.subr.bf16.mxu0 0
        %5907 = vmatpush1.bf16.msra.mxu0 0
        %5908 = vmatprep.subr.bf16.mxu0 0
        %5909 = vmatpush1.bf16.msra.mxu0 0
        %5910 = vmatprep.subr.bf16.mxu0 0
        %5911 = vmatpush1.bf16.msra.mxu0 0
        %5912 = vmatprep.subr.bf16.mxu0 0
        %5913 = vmatpush1.bf16.msra.mxu0 0
        %5914 = vmatprep.subr.bf16.mxu0 0
        %5915 = vmatpush1.bf16.msra.mxu0 0
        %5916 = vmatprep.subr.bf16.mxu0 0
        %5917 = vmatpush1.bf16.msra.mxu0 0
        %5918 = vmatprep.subr.bf16.mxu0 0
        %5919 = vmatpush1.bf16.msra.mxu0 0
        %5920 = vmatprep.subr.bf16.mxu0 0
        %5921 = vmatpush1.bf16.msra.mxu0 0
        %5922 = vmatprep.subr.bf16.mxu0 0
        %5923 = vmatpush1.bf16.msra.mxu0 0
        %5924 = vmatprep.subr.bf16.mxu0 0
        %5925 = vmatpush1.bf16.msra.mxu0 0
        %5926 = vmatprep.subr.bf16.mxu0 0
        %5927 = vmatpush1.bf16.msra.mxu0 0
        %5928 = vmatprep.subr.bf16.mxu0 0
        %5929 = vmatpush1.bf16.msra.mxu0 0
        %5930 = vmatprep.subr.bf16.mxu0 0
        %5931 = vmatpush1.bf16.msra.mxu0 0
        %5932 = vmatprep.subr.bf16.mxu0 0
        %5933 = vmatpush1.bf16.msra.mxu0 0
        %5934 = vmatprep.mubr.bf16.mxu0 0
        %5935 = vmatmul.mubr.bf16.gmra.mrb[0].mxu0 %v5859
        %v5936 = vpop.f32.mrb[0].mxu0
        %v5937 = vadd.f32 %v5629, %v5936
        %v5938 = vpop.f32.mrb[0].mxu0
        %v5939 = vadd.f32 %v5633, %v5938
        %v5940 = vpop.f32.mrb[0].mxu0
        %v5941 = vpop.f32.mrb[0].mxu0
        %5942 = vdwg.mxu0
        %5943 = vmatprep.subr.bf16.mxu0 %v5799
        %5944 = vmatpush1.bf16.msra.mxu0 %v5798
        %5945 = vmatprep.subr.bf16.mxu0 %v5815
        %5946 = vmatpush1.bf16.msra.mxu0 %v5814
        %5947 = vmatprep.subr.bf16.mxu0 0
        %5948 = vmatpush1.bf16.msra.mxu0 0
        %5949 = vmatprep.subr.bf16.mxu0 0
        %5950 = vmatpush1.bf16.msra.mxu0 0
        %5951 = vmatprep.subr.bf16.mxu0 0
        %5952 = vmatpush1.bf16.msra.mxu0 0
        %5953 = vmatprep.subr.bf16.mxu0 0
        %5954 = vmatpush1.bf16.msra.mxu0 0
        %5955 = vmatprep.subr.bf16.mxu0 0
        %5956 = vmatpush1.bf16.msra.mxu0 0
        %5957 = vmatprep.subr.bf16.mxu0 0
        %5958 = vmatpush1.bf16.msra.mxu0 0
        %5959 = vmatprep.subr.bf16.mxu0 0
        %5960 = vmatpush1.bf16.msra.mxu0 0
        %5961 = vmatprep.subr.bf16.mxu0 0
        %5962 = vmatpush1.bf16.msra.mxu0 0
        %5963 = vmatprep.subr.bf16.mxu0 0
        %5964 = vmatpush1.bf16.msra.mxu0 0
        %5965 = vmatprep.subr.bf16.mxu0 0
        %5966 = vmatpush1.bf16.msra.mxu0 0
        %5967 = vmatprep.subr.bf16.mxu0 0
        %5968 = vmatpush1.bf16.msra.mxu0 0
        %5969 = vmatprep.subr.bf16.mxu0 0
        %5970 = vmatpush1.bf16.msra.mxu0 0
        %5971 = vmatprep.subr.bf16.mxu0 0
        %5972 = vmatpush1.bf16.msra.mxu0 0
        %5973 = vmatprep.subr.bf16.mxu0 0
        %5974 = vmatpush1.bf16.msra.mxu0 0
        %5975 = vmatprep.mubr.bf16.mxu0 0
        %5976 = vmatmul.mubr.bf16.gmra.mrb[0].mxu0 %v5859
        %v5977 = vpop.f32.mrb[0].mxu0
        %v5978 = vadd.f32 %v5637, %v5977
        %v5979 = vpop.f32.mrb[0].mxu0
        %v5980 = vadd.f32 %v5641, %v5979
        %v5981 = vpop.f32.mrb[0].mxu0
        %v5982 = vpop.f32.mrb[0].mxu0
        %5983 = vdwg.mxu0
        %5984 = vmatprep.subr.bf16.mxu0 %v5801
        %5985 = vmatpush1.bf16.msra.mxu0 %v5800
        %5986 = vmatprep.subr.bf16.mxu0 %v5817
        %5987 = vmatpush1.bf16.msra.mxu0 %v5816
        %5988 = vmatprep.subr.bf16.mxu0 0
        %5989 = vmatpush1.bf16.msra.mxu0 0
        %5990 = vmatprep.subr.bf16.mxu0 0
        %5991 = vmatpush1.bf16.msra.mxu0 0
        %5992 = vmatprep.subr.bf16.mxu0 0
        %5993 = vmatpush1.bf16.msra.mxu0 0
        %5994 = vmatprep.subr.bf16.mxu0 0
        %5995 = vmatpush1.bf16.msra.mxu0 0
        %5996 = vmatprep.subr.bf16.mxu0 0
        %5997 = vmatpush1.bf16.msra.mxu0 0
        %5998 = vmatprep.subr.bf16.mxu0 0
        %5999 = vmatpush1.bf16.msra.mxu0 0
        %6000 = vmatprep.subr.bf16.mxu0 0
        %6001 = vmatpush1.bf16.msra.mxu0 0
        %6002 = vmatprep.subr.bf16.mxu0 0
        %6003 = vmatpush1.bf16.msra.mxu0 0
        %6004 = vmatprep.subr.bf16.mxu0 0
        %6005 = vmatpush1.bf16.msra.mxu0 0
        %6006 = vmatprep.subr.bf16.mxu0 0
        %6007 = vmatpush1.bf16.msra.mxu0 0
        %6008 = vmatprep.subr.bf16.mxu0 0
        %6009 = vmatpush1.bf16.msra.mxu0 0
        %6010 = vmatprep.subr.bf16.mxu0 0
        %6011 = vmatpush1.bf16.msra.mxu0 0
        %6012 = vmatprep.subr.bf16.mxu0 0
        %6013 = vmatpush1.bf16.msra.mxu0 0
        %6014 = vmatprep.subr.bf16.mxu0 0
        %6015 = vmatpush1.bf16.msra.mxu0 0
        %6016 = vmatprep.mubr.bf16.mxu0 0
        %6017 = vmatmul.mubr.bf16.gmra.mrb[0].mxu0 %v5859
        %v6018 = vpop.f32.mrb[0].mxu0
        %v6019 = vadd.f32 %v5645, %v6018
        %v6020 = vpop.f32.mrb[0].mxu0
        %v6021 = vadd.f32 %v5649, %v6020
        %v6022 = vpop.f32.mrb[0].mxu0
        %v6023 = vpop.f32.mrb[0].mxu0
        %6024 = vdwg.mxu0
        %6025 = vmatprep.subr.bf16.mxu0 %v5803
        %6026 = vmatpush1.bf16.msra.mxu0 %v5802
        %6027 = vmatprep.subr.bf16.mxu0 %v5819
        %6028 = vmatpush1.bf16.msra.mxu0 %v5818
        %6029 = vmatprep.subr.bf16.mxu0 0
        %6030 = vmatpush1.bf16.msra.mxu0 0
        %6031 = vmatprep.subr.bf16.mxu0 0
        %6032 = vmatpush1.bf16.msra.mxu0 0
        %6033 = vmatprep.subr.bf16.mxu0 0
        %6034 = vmatpush1.bf16.msra.mxu0 0
        %6035 = vmatprep.subr.bf16.mxu0 0
        %6036 = vmatpush1.bf16.msra.mxu0 0
        %6037 = vmatprep.subr.bf16.mxu0 0
        %6038 = vmatpush1.bf16.msra.mxu0 0
        %6039 = vmatprep.subr.bf16.mxu0 0
        %6040 = vmatpush1.bf16.msra.mxu0 0
        %6041 = vmatprep.subr.bf16.mxu0 0
        %6042 = vmatpush1.bf16.msra.mxu0 0
        %6043 = vmatprep.subr.bf16.mxu0 0
        %6044 = vmatpush1.bf16.msra.mxu0 0
        %6045 = vmatprep.subr.bf16.mxu0 0
        %6046 = vmatpush1.bf16.msra.mxu0 0
        %6047 = vmatprep.subr.bf16.mxu0 0
        %6048 = vmatpush1.bf16.msra.mxu0 0
        %6049 = vmatprep.subr.bf16.mxu0 0
        %6050 = vmatpush1.bf16.msra.mxu0 0
        %6051 = vmatprep.subr.bf16.mxu0 0
        %6052 = vmatpush1.bf16.msra.mxu0 0
        %6053 = vmatprep.subr.bf16.mxu0 0
        %6054 = vmatpush1.bf16.msra.mxu0 0
        %6055 = vmatprep.subr.bf16.mxu0 0
        %6056 = vmatpush1.bf16.msra.mxu0 0
        %6057 = vmatprep.mubr.bf16.mxu0 0
        %6058 = vmatmul.mubr.bf16.gmra.mrb[0].mxu0 %v5859
        %v6059 = vpop.f32.mrb[0].mxu0
        %v6060 = vadd.f32 %v5653, %v6059
        %v6061 = vpop.f32.mrb[0].mxu0
        %v6062 = vadd.f32 %v5657, %v6061
        %v6063 = vpop.f32.mrb[0].mxu0
        %v6064 = vpop.f32.mrb[0].mxu0
        %6065 = vdwg.mxu0
        %6066 = vmatprep.subr.bf16.mxu0 %v5805
        %6067 = vmatpush1.bf16.msra.mxu0 %v5804
        %6068 = vmatprep.subr.bf16.mxu0 %v5821
        %6069 = vmatpush1.bf16.msra.mxu0 %v5820
        %6070 = vmatprep.subr.bf16.mxu0 0
        %6071 = vmatpush1.bf16.msra.mxu0 0
        %6072 = vmatprep.subr.bf16.mxu0 0
        %6073 = vmatpush1.bf16.msra.mxu0 0
        %6074 = vmatprep.subr.bf16.mxu0 0
        %6075 = vmatpush1.bf16.msra.mxu0 0
        %6076 = vmatprep.subr.bf16.mxu0 0
        %6077 = vmatpush1.bf16.msra.mxu0 0
        %6078 = vmatprep.subr.bf16.mxu0 0
        %6079 = vmatpush1.bf16.msra.mxu0 0
        %6080 = vmatprep.subr.bf16.mxu0 0
        %6081 = vmatpush1.bf16.msra.mxu0 0
        %6082 = vmatprep.subr.bf16.mxu0 0
        %6083 = vmatpush1.bf16.msra.mxu0 0
        %6084 = vmatprep.subr.bf16.mxu0 0
        %6085 = vmatpush1.bf16.msra.mxu0 0
        %6086 = vmatprep.subr.bf16.mxu0 0
        %6087 = vmatpush1.bf16.msra.mxu0 0
        %6088 = vmatprep.subr.bf16.mxu0 0
        %6089 = vmatpush1.bf16.msra.mxu0 0
        %6090 = vmatprep.subr.bf16.mxu0 0
        %6091 = vmatpush1.bf16.msra.mxu0 0
        %6092 = vmatprep.subr.bf16.mxu0 0
        %6093 = vmatpush1.bf16.msra.mxu0 0
        %6094 = vmatprep.subr.bf16.mxu0 0
        %6095 = vmatpush1.bf16.msra.mxu0 0
        %6096 = vmatprep.subr.bf16.mxu0 0
        %6097 = vmatpush1.bf16.msra.mxu0 0
        %6098 = vmatprep.mubr.bf16.mxu0 0
        %6099 = vmatmul.mubr.bf16.gmra.mrb[0].mxu0 %v5859
        %v6100 = vpop.f32.mrb[0].mxu0
        %v6101 = vadd.f32 %v5661, %v6100
        %v6102 = vpop.f32.mrb[0].mxu0
        %v6103 = vadd.f32 %v5665, %v6102
        %v6104 = vpop.f32.mrb[0].mxu0
        %v6105 = vpop.f32.mrb[0].mxu0
        %6106 = vdwg.mxu0
        %6107 = vmatprep.subr.bf16.mxu0 %v5807
        %6108 = vmatpush1.bf16.msra.mxu0 %v5806
        %6109 = vmatprep.subr.bf16.mxu0 %v5823
        %6110 = vmatpush1.bf16.msra.mxu0 %v5822
        %6111 = vmatprep.subr.bf16.mxu0 0
        %6112 = vmatpush1.bf16.msra.mxu0 0
        %6113 = vmatprep.subr.bf16.mxu0 0
        %6114 = vmatpush1.bf16.msra.mxu0 0
        %6115 = vmatprep.subr.bf16.mxu0 0
        %6116 = vmatpush1.bf16.msra.mxu0 0
        %6117 = vmatprep.subr.bf16.mxu0 0
        %6118 = vmatpush1.bf16.msra.mxu0 0
        %6119 = vmatprep.subr.bf16.mxu0 0
        %6120 = vmatpush1.bf16.msra.mxu0 0
        %6121 = vmatprep.subr.bf16.mxu0 0
        %6122 = vmatpush1.bf16.msra.mxu0 0
        %6123 = vmatprep.subr.bf16.mxu0 0
        %6124 = vmatpush1.bf16.msra.mxu0 0
        %6125 = vmatprep.subr.bf16.mxu0 0
        %6126 = vmatpush1.bf16.msra.mxu0 0
        %6127 = vmatprep.subr.bf16.mxu0 0
        %6128 = vmatpush1.bf16.msra.mxu0 0
        %6129 = vmatprep.subr.bf16.mxu0 0
        %6130 = vmatpush1.bf16.msra.mxu0 0
        %6131 = vmatprep.subr.bf16.mxu0 0
        %6132 = vmatpush1.bf16.msra.mxu0 0
        %6133 = vmatprep.subr.bf16.mxu0 0
        %6134 = vmatpush1.bf16.msra.mxu0 0
        %6135 = vmatprep.subr.bf16.mxu0 0
        %6136 = vmatpush1.bf16.msra.mxu0 0
        %6137 = vmatprep.subr.bf16.mxu0 0
        %6138 = vmatpush1.bf16.msra.mxu0 0
        %6139 = vmatprep.mubr.bf16.mxu0 0
        %6140 = vmatmul.mubr.bf16.gmra.mrb[0].mxu0 %v5859
        %v6141 = vpop.f32.mrb[0].mxu0
        %v6142 = vadd.f32 %v5669, %v6141
        %v6143 = vpop.f32.mrb[0].mxu0
        %v6144 = vadd.f32 %v5673, %v6143
        %v6145 = vpop.f32.mrb[0].mxu0
        %v6146 = vpop.f32.mrb[0].mxu0
        %6147 = vdwg.mxu0
        %6148 = vmatprep.subr.bf16.mxu0 %v5809
        %6149 = vmatpush1.bf16.msra.mxu0 %v5808
        %6150 = vmatprep.subr.bf16.mxu0 %v5825
        %6151 = vmatpush1.bf16.msra.mxu0 %v5824
        %6152 = vmatprep.subr.bf16.mxu0 0
        %6153 = vmatpush1.bf16.msra.mxu0 0
        %6154 = vmatprep.subr.bf16.mxu0 0
        %6155 = vmatpush1.bf16.msra.mxu0 0
        %6156 = vmatprep.subr.bf16.mxu0 0
        %6157 = vmatpush1.bf16.msra.mxu0 0
        %6158 = vmatprep.subr.bf16.mxu0 0
        %6159 = vmatpush1.bf16.msra.mxu0 0
        %6160 = vmatprep.subr.bf16.mxu0 0
        %6161 = vmatpush1.bf16.msra.mxu0 0
        %6162 = vmatprep.subr.bf16.mxu0 0
        %6163 = vmatpush1.bf16.msra.mxu0 0
        %6164 = vmatprep.subr.bf16.mxu0 0
        %6165 = vmatpush1.bf16.msra.mxu0 0
        %6166 = vmatprep.subr.bf16.mxu0 0
        %6167 = vmatpush1.bf16.msra.mxu0 0
        %6168 = vmatprep.subr.bf16.mxu0 0
        %6169 = vmatpush1.bf16.msra.mxu0 0
        %6170 = vmatprep.subr.bf16.mxu0 0
        %6171 = vmatpush1.bf16.msra.mxu0 0
        %6172 = vmatprep.subr.bf16.mxu0 0
        %6173 = vmatpush1.bf16.msra.mxu0 0
        %6174 = vmatprep.subr.bf16.mxu0 0
        %6175 = vmatpush1.bf16.msra.mxu0 0
        %6176 = vmatprep.subr.bf16.mxu0 0
        %6177 = vmatpush1.bf16.msra.mxu0 0
        %6178 = vmatprep.subr.bf16.mxu0 0
        %6179 = vmatpush1.bf16.msra.mxu0 0
        %6180 = vmatprep.mubr.bf16.mxu0 0
        %6181 = vmatmul.mubr.bf16.gmra.mrb[0].mxu0 %v5859
        %v6182 = vpop.f32.mrb[0].mxu0
        %v6183 = vadd.f32 %v5677, %v6182
        %v6184 = vpop.f32.mrb[0].mxu0
        %v6185 = vadd.f32 %v5681, %v6184
        %v6186 = vpop.f32.mrb[0].mxu0
        %v6187 = vpop.f32.mrb[0].mxu0
        %6188 = vdwg.mxu0
        %v6189 = vmax.f32 %v5896, 0.0
        %v6190 = vmax.f32 %v5898, 0.0
        %v6191 = vmax.f32 %v5937, 0.0
        %v6192 = vmax.f32 %v5939, 0.0
        %v6193 = vmax.f32 %v5978, 0.0
        %v6194 = vmax.f32 %v5980, 0.0
        %v6195 = vmax.f32 %v6019, 0.0
        %v6196 = vmax.f32 %v6021, 0.0
        %v6197 = vmax.f32 %v6060, 0.0
        %v6198 = vmax.f32 %v6062, 0.0
        %v6199 = vmax.f32 %v6101, 0.0
        %v6200 = vmax.f32 %v6103, 0.0
        %v6201 = vmax.f32 %v6142, 0.0
        %v6202 = vmax.f32 %v6144, 0.0
        %v6203 = vmax.f32 %v6183, 0.0
        %v6204 = vmax.f32 %v6185, 0.0
        %v6205 = vpack.c.bf16 %v6189, %v6189
        %v6206 = vpack.c.bf16 %v6190, %v6190
        %v6207 = vpack.c.bf16 %v6191, %v6191
        %v6208 = vpack.c.bf16 %v6192, %v6192
        %v6209 = vpack.c.bf16 %v6193, %v6193
        %v6210 = vpack.c.bf16 %v6194, %v6194
        %v6211 = vpack.c.bf16 %v6195, %v6195
        %v6212 = vpack.c.bf16 %v6196, %v6196
        %v6213 = vpack.c.bf16 %v6197, %v6197
        %v6214 = vpack.c.bf16 %v6198, %v6198
        %v6215 = vpack.c.bf16 %v6199, %v6199
        %v6216 = vpack.c.bf16 %v6200, %v6200
        %v6217 = vpack.c.bf16 %v6201, %v6201
        %v6218 = vpack.c.bf16 %v6202, %v6202
        %v6219 = vpack.c.bf16 %v6203, %v6203
        %v6220 = vpack.c.bf16 %v6204, %v6204
        %s6221 = scalar_lea.vmem %s18, 1024
        %v6222 = vld [vmem:[%s6221] sm:$0xf]
        %v6223 = vld [vmem:[%s6221 + $0x4] sm:$0xf]
        %v6224 = vld [vmem:[%s6221 + $0x8] sm:$0xf]
        %v6225 = vld [vmem:[%s6221 + $0xc] sm:$0xf]
        %v6226 = vld [vmem:[%s6221 + $0x10] sm:$0xf]
        %v6227 = vld [vmem:[%s6221 + $0x14] sm:$0xf]
        %v6228 = vld [vmem:[%s6221 + $0x18] sm:$0xf]
        %v6229 = vld [vmem:[%s6221 + $0x1c] sm:$0xf]
        %v6230 = vld [vmem:[%s6221 + $0x20] sm:$0xf]
        %v6231 = vld [vmem:[%s6221 + $0x24] sm:$0xf]
        %v6232 = vld [vmem:[%s6221 + $0x28] sm:$0xf]
        %v6233 = vld [vmem:[%s6221 + $0x2c] sm:$0xf]
        %v6234 = vld [vmem:[%s6221 + $0x30] sm:$0xf]
        %v6235 = vld [vmem:[%s6221 + $0x34] sm:$0xf]
        %v6236 = vld [vmem:[%s6221 + $0x38] sm:$0xf]
        %v6237 = vld [vmem:[%s6221 + $0x3c] sm:$0xf]
        %v6238 = vld [vmem:[%s6221 + $0x40] sm:$0xf]
        %v6239 = vld [vmem:[%s6221 + $0x44] sm:$0xf]
        %v6240 = vld [vmem:[%s6221 + $0x48] sm:$0xf]
        %v6241 = vld [vmem:[%s6221 + $0x4c] sm:$0xf]
        %v6242 = vld [vmem:[%s6221 + $0x50] sm:$0xf]
        %v6243 = vld [vmem:[%s6221 + $0x54] sm:$0xf]
        %v6244 = vld [vmem:[%s6221 + $0x58] sm:$0xf]
        %v6245 = vld [vmem:[%s6221 + $0x5c] sm:$0xf]
        %v6246 = vld [vmem:[%s6221 + $0x60] sm:$0xf]
        %v6247 = vld [vmem:[%s6221 + $0x64] sm:$0xf]
        %v6248 = vld [vmem:[%s6221 + $0x68] sm:$0xf]
        %v6249 = vld [vmem:[%s6221 + $0x6c] sm:$0xf]
        %v6250 = vld [vmem:[%s6221 + $0x70] sm:$0xf]
        %v6251 = vld [vmem:[%s6221 + $0x74] sm:$0xf]
        %v6252 = vld [vmem:[%s6221 + $0x78] sm:$0xf]
        %v6253 = vld [vmem:[%s6221 + $0x7c] sm:$0xf]
        %v6254 = vld [vmem:[%s6221 + $0x80] sm:$0xf]
        %v6255 = vld [vmem:[%s6221 + $0x84] sm:$0xf]
        %v6256 = vld [vmem:[%s6221 + $0x88] sm:$0xf]
        %v6257 = vld [vmem:[%s6221 + $0x8c] sm:$0xf]
        %v6258 = vld [vmem:[%s6221 + $0x90] sm:$0xf]
        %v6259 = vld [vmem:[%s6221 + $0x94] sm:$0xf]
        %v6260 = vld [vmem:[%s6221 + $0x98] sm:$0xf]
        %v6261 = vld [vmem:[%s6221 + $0x9c] sm:$0xf]
        %v6262 = vld [vmem:[%s6221 + $0xa0] sm:$0xf]
        %v6263 = vld [vmem:[%s6221 + $0xa4] sm:$0xf]
        %v6264 = vld [vmem:[%s6221 + $0xa8] sm:$0xf]
        %v6265 = vld [vmem:[%s6221 + $0xac] sm:$0xf]
        %v6266 = vld [vmem:[%s6221 + $0xb0] sm:$0xf]
        %v6267 = vld [vmem:[%s6221 + $0xb4] sm:$0xf]
        %v6268 = vld [vmem:[%s6221 + $0xb8] sm:$0xf]
        %v6269 = vld [vmem:[%s6221 + $0xbc] sm:$0xf]
        %v6270 = vld [vmem:[%s6221 + $0xc0] sm:$0xf]
        %v6271 = vld [vmem:[%s6221 + $0xc4] sm:$0xf]
        %v6272 = vld [vmem:[%s6221 + $0xc8] sm:$0xf]
        %v6273 = vld [vmem:[%s6221 + $0xcc] sm:$0xf]
        %v6274 = vld [vmem:[%s6221 + $0xd0] sm:$0xf]
        %v6275 = vld [vmem:[%s6221 + $0xd4] sm:$0xf]
        %v6276 = vld [vmem:[%s6221 + $0xd8] sm:$0xf]
        %v6277 = vld [vmem:[%s6221 + $0xdc] sm:$0xf]
        %v6278 = vld [vmem:[%s6221 + $0xe0] sm:$0xf]
        %v6279 = vld [vmem:[%s6221 + $0xe4] sm:$0xf]
        %v6280 = vld [vmem:[%s6221 + $0xe8] sm:$0xf]
        %v6281 = vld [vmem:[%s6221 + $0xec] sm:$0xf]
        %v6282 = vld [vmem:[%s6221 + $0xf0] sm:$0xf]
        %v6283 = vld [vmem:[%s6221 + $0xf4] sm:$0xf]
        %v6284 = vld [vmem:[%s6221 + $0xf8] sm:$0xf]
        %v6285 = vld [vmem:[%s6221 + $0xfc] sm:$0xf]
        %v6286 = vld [vmem:[%s6221 + $0x100] sm:$0xf]
        %v6287 = vld [vmem:[%s6221 + $0x104] sm:$0xf]
        %v6288 = vld [vmem:[%s6221 + $0x108] sm:$0xf]
        %v6289 = vld [vmem:[%s6221 + $0x10c] sm:$0xf]
        %v6290 = vld [vmem:[%s6221 + $0x110] sm:$0xf]
        %v6291 = vld [vmem:[%s6221 + $0x114] sm:$0xf]
        %v6292 = vld [vmem:[%s6221 + $0x118] sm:$0xf]
        %v6293 = vld [vmem:[%s6221 + $0x11c] sm:$0xf]
        %v6294 = vld [vmem:[%s6221 + $0x120] sm:$0xf]
        %v6295 = vld [vmem:[%s6221 + $0x124] sm:$0xf]
        %v6296 = vld [vmem:[%s6221 + $0x128] sm:$0xf]
        %v6297 = vld [vmem:[%s6221 + $0x12c] sm:$0xf]
        %v6298 = vld [vmem:[%s6221 + $0x130] sm:$0xf]
        %v6299 = vld [vmem:[%s6221 + $0x134] sm:$0xf]
        %v6300 = vld [vmem:[%s6221 + $0x138] sm:$0xf]
        %v6301 = vld [vmem:[%s6221 + $0x13c] sm:$0xf]
        %v6302 = vld [vmem:[%s6221 + $0x140] sm:$0xf]
        %v6303 = vld [vmem:[%s6221 + $0x144] sm:$0xf]
        %v6304 = vld [vmem:[%s6221 + $0x148] sm:$0xf]
        %v6305 = vld [vmem:[%s6221 + $0x14c] sm:$0xf]
        %v6306 = vld [vmem:[%s6221 + $0x150] sm:$0xf]
        %v6307 = vld [vmem:[%s6221 + $0x154] sm:$0xf]
        %v6308 = vld [vmem:[%s6221 + $0x158] sm:$0xf]
        %v6309 = vld [vmem:[%s6221 + $0x15c] sm:$0xf]
        %v6310 = vld [vmem:[%s6221 + $0x160] sm:$0xf]
        %v6311 = vld [vmem:[%s6221 + $0x164] sm:$0xf]
        %v6312 = vld [vmem:[%s6221 + $0x168] sm:$0xf]
        %v6313 = vld [vmem:[%s6221 + $0x16c] sm:$0xf]
        %v6314 = vld [vmem:[%s6221 + $0x170] sm:$0xf]
        %v6315 = vld [vmem:[%s6221 + $0x174] sm:$0xf]
        %v6316 = vld [vmem:[%s6221 + $0x178] sm:$0xf]
        %v6317 = vld [vmem:[%s6221 + $0x17c] sm:$0xf]
        %v6318 = vld [vmem:[%s6221 + $0x180] sm:$0xf]
        %v6319 = vld [vmem:[%s6221 + $0x184] sm:$0xf]
        %v6320 = vld [vmem:[%s6221 + $0x188] sm:$0xf]
        %v6321 = vld [vmem:[%s6221 + $0x18c] sm:$0xf]
        %v6322 = vld [vmem:[%s6221 + $0x190] sm:$0xf]
        %v6323 = vld [vmem:[%s6221 + $0x194] sm:$0xf]
        %v6324 = vld [vmem:[%s6221 + $0x198] sm:$0xf]
        %v6325 = vld [vmem:[%s6221 + $0x19c] sm:$0xf]
        %v6326 = vld [vmem:[%s6221 + $0x1a0] sm:$0xf]
        %v6327 = vld [vmem:[%s6221 + $0x1a4] sm:$0xf]
        %v6328 = vld [vmem:[%s6221 + $0x1a8] sm:$0xf]
        %v6329 = vld [vmem:[%s6221 + $0x1ac] sm:$0xf]
        %v6330 = vld [vmem:[%s6221 + $0x1b0] sm:$0xf]
        %v6331 = vld [vmem:[%s6221 + $0x1b4] sm:$0xf]
        %v6332 = vld [vmem:[%s6221 + $0x1b8] sm:$0xf]
        %v6333 = vld [vmem:[%s6221 + $0x1bc] sm:$0xf]
        %v6334 = vld [vmem:[%s6221 + $0x1c0] sm:$0xf]
        %v6335 = vld [vmem:[%s6221 + $0x1c4] sm:$0xf]
        %v6336 = vld [vmem:[%s6221 + $0x1c8] sm:$0xf]
        %v6337 = vld [vmem:[%s6221 + $0x1cc] sm:$0xf]
        %v6338 = vld [vmem:[%s6221 + $0x1d0] sm:$0xf]
        %v6339 = vld [vmem:[%s6221 + $0x1d4] sm:$0xf]
        %v6340 = vld [vmem:[%s6221 + $0x1d8] sm:$0xf]
        %v6341 = vld [vmem:[%s6221 + $0x1dc] sm:$0xf]
        %v6342 = vld [vmem:[%s6221 + $0x1e0] sm:$0xf]
        %v6343 = vld [vmem:[%s6221 + $0x1e4] sm:$0xf]
        %v6344 = vld [vmem:[%s6221 + $0x1e8] sm:$0xf]
        %v6345 = vld [vmem:[%s6221 + $0x1ec] sm:$0xf]
        %v6346 = vld [vmem:[%s6221 + $0x1f0] sm:$0xf]
        %v6347 = vld [vmem:[%s6221 + $0x1f4] sm:$0xf]
        %v6348 = vld [vmem:[%s6221 + $0x1f8] sm:$0xf]
        %v6349 = vld [vmem:[%s6221 + $0x1fc] sm:$0xf]
        %v6350 = vld [vmem:[%s6221 + $0x200] sm:$0xf]
        %v6351 = vld [vmem:[%s6221 + $0x204] sm:$0xf]
        %v6352 = vld [vmem:[%s6221 + $0x208] sm:$0xf]
        %v6353 = vld [vmem:[%s6221 + $0x20c] sm:$0xf]
        %v6354 = vld [vmem:[%s6221 + $0x210] sm:$0xf]
        %v6355 = vld [vmem:[%s6221 + $0x214] sm:$0xf]
        %v6356 = vld [vmem:[%s6221 + $0x218] sm:$0xf]
        %v6357 = vld [vmem:[%s6221 + $0x21c] sm:$0xf]
        %v6358 = vld [vmem:[%s6221 + $0x220] sm:$0xf]
        %v6359 = vld [vmem:[%s6221 + $0x224] sm:$0xf]
        %v6360 = vld [vmem:[%s6221 + $0x228] sm:$0xf]
        %v6361 = vld [vmem:[%s6221 + $0x22c] sm:$0xf]
        %v6362 = vld [vmem:[%s6221 + $0x230] sm:$0xf]
        %v6363 = vld [vmem:[%s6221 + $0x234] sm:$0xf]
        %v6364 = vld [vmem:[%s6221 + $0x238] sm:$0xf]
        %v6365 = vld [vmem:[%s6221 + $0x23c] sm:$0xf]
        %v6366 = vld [vmem:[%s6221 + $0x240] sm:$0xf]
        %v6367 = vld [vmem:[%s6221 + $0x244] sm:$0xf]
        %v6368 = vld [vmem:[%s6221 + $0x248] sm:$0xf]
        %v6369 = vld [vmem:[%s6221 + $0x24c] sm:$0xf]
        %v6370 = vld [vmem:[%s6221 + $0x250] sm:$0xf]
        %v6371 = vld [vmem:[%s6221 + $0x254] sm:$0xf]
        %v6372 = vld [vmem:[%s6221 + $0x258] sm:$0xf]
        %v6373 = vld [vmem:[%s6221 + $0x25c] sm:$0xf]
        %v6374 = vld [vmem:[%s6221 + $0x260] sm:$0xf]
        %v6375 = vld [vmem:[%s6221 + $0x264] sm:$0xf]
        %v6376 = vld [vmem:[%s6221 + $0x268] sm:$0xf]
        %v6377 = vld [vmem:[%s6221 + $0x26c] sm:$0xf]
        %v6378 = vld [vmem:[%s6221 + $0x270] sm:$0xf]
        %v6379 = vld [vmem:[%s6221 + $0x274] sm:$0xf]
        %v6380 = vld [vmem:[%s6221 + $0x278] sm:$0xf]
        %v6381 = vld [vmem:[%s6221 + $0x27c] sm:$0xf]
        %v6382 = vld [vmem:[%s6221 + $0x280] sm:$0xf]
        %v6383 = vld [vmem:[%s6221 + $0x284] sm:$0xf]
        %v6384 = vld [vmem:[%s6221 + $0x288] sm:$0xf]
        %v6385 = vld [vmem:[%s6221 + $0x28c] sm:$0xf]
        %v6386 = vld [vmem:[%s6221 + $0x290] sm:$0xf]
        %v6387 = vld [vmem:[%s6221 + $0x294] sm:$0xf]
        %v6388 = vld [vmem:[%s6221 + $0x298] sm:$0xf]
        %v6389 = vld [vmem:[%s6221 + $0x29c] sm:$0xf]
        %v6390 = vld [vmem:[%s6221 + $0x2a0] sm:$0xf]
        %v6391 = vld [vmem:[%s6221 + $0x2a4] sm:$0xf]
        %v6392 = vld [vmem:[%s6221 + $0x2a8] sm:$0xf]
        %v6393 = vld [vmem:[%s6221 + $0x2ac] sm:$0xf]
        %v6394 = vld [vmem:[%s6221 + $0x2b0] sm:$0xf]
        %v6395 = vld [vmem:[%s6221 + $0x2b4] sm:$0xf]
        %v6396 = vld [vmem:[%s6221 + $0x2b8] sm:$0xf]
        %v6397 = vld [vmem:[%s6221 + $0x2bc] sm:$0xf]
        %v6398 = vld [vmem:[%s6221 + $0x2c0] sm:$0xf]
        %v6399 = vld [vmem:[%s6221 + $0x2c4] sm:$0xf]
        %v6400 = vld [vmem:[%s6221 + $0x2c8] sm:$0xf]
        %v6401 = vld [vmem:[%s6221 + $0x2cc] sm:$0xf]
        %v6402 = vld [vmem:[%s6221 + $0x2d0] sm:$0xf]
        %v6403 = vld [vmem:[%s6221 + $0x2d4] sm:$0xf]
        %v6404 = vld [vmem:[%s6221 + $0x2d8] sm:$0xf]
        %v6405 = vld [vmem:[%s6221 + $0x2dc] sm:$0xf]
        %v6406 = vld [vmem:[%s6221 + $0x2e0] sm:$0xf]
        %v6407 = vld [vmem:[%s6221 + $0x2e4] sm:$0xf]
        %v6408 = vld [vmem:[%s6221 + $0x2e8] sm:$0xf]
        %v6409 = vld [vmem:[%s6221 + $0x2ec] sm:$0xf]
        %v6410 = vld [vmem:[%s6221 + $0x2f0] sm:$0xf]
        %v6411 = vld [vmem:[%s6221 + $0x2f4] sm:$0xf]
        %v6412 = vld [vmem:[%s6221 + $0x2f8] sm:$0xf]
        %v6413 = vld [vmem:[%s6221 + $0x2fc] sm:$0xf]
        %v6414 = vld [vmem:[%s6221 + $0x300] sm:$0xf]
        %v6415 = vld [vmem:[%s6221 + $0x304] sm:$0xf]
        %v6416 = vld [vmem:[%s6221 + $0x308] sm:$0xf]
        %v6417 = vld [vmem:[%s6221 + $0x30c] sm:$0xf]
        %v6418 = vld [vmem:[%s6221 + $0x310] sm:$0xf]
        %v6419 = vld [vmem:[%s6221 + $0x314] sm:$0xf]
        %v6420 = vld [vmem:[%s6221 + $0x318] sm:$0xf]
        %v6421 = vld [vmem:[%s6221 + $0x31c] sm:$0xf]
        %v6422 = vld [vmem:[%s6221 + $0x320] sm:$0xf]
        %v6423 = vld [vmem:[%s6221 + $0x324] sm:$0xf]
        %v6424 = vld [vmem:[%s6221 + $0x328] sm:$0xf]
        %v6425 = vld [vmem:[%s6221 + $0x32c] sm:$0xf]
        %v6426 = vld [vmem:[%s6221 + $0x330] sm:$0xf]
        %v6427 = vld [vmem:[%s6221 + $0x334] sm:$0xf]
        %v6428 = vld [vmem:[%s6221 + $0x338] sm:$0xf]
        %v6429 = vld [vmem:[%s6221 + $0x33c] sm:$0xf]
        %v6430 = vld [vmem:[%s6221 + $0x340] sm:$0xf]
        %v6431 = vld [vmem:[%s6221 + $0x344] sm:$0xf]
        %v6432 = vld [vmem:[%s6221 + $0x348] sm:$0xf]
        %v6433 = vld [vmem:[%s6221 + $0x34c] sm:$0xf]
        %v6434 = vld [vmem:[%s6221 + $0x350] sm:$0xf]
        %v6435 = vld [vmem:[%s6221 + $0x354] sm:$0xf]
        %v6436 = vld [vmem:[%s6221 + $0x358] sm:$0xf]
        %v6437 = vld [vmem:[%s6221 + $0x35c] sm:$0xf]
        %v6438 = vld [vmem:[%s6221 + $0x360] sm:$0xf]
        %v6439 = vld [vmem:[%s6221 + $0x364] sm:$0xf]
        %v6440 = vld [vmem:[%s6221 + $0x368] sm:$0xf]
        %v6441 = vld [vmem:[%s6221 + $0x36c] sm:$0xf]
        %v6442 = vld [vmem:[%s6221 + $0x370] sm:$0xf]
        %v6443 = vld [vmem:[%s6221 + $0x374] sm:$0xf]
        %v6444 = vld [vmem:[%s6221 + $0x378] sm:$0xf]
        %v6445 = vld [vmem:[%s6221 + $0x37c] sm:$0xf]
        %v6446 = vld [vmem:[%s6221 + $0x380] sm:$0xf]
        %v6447 = vld [vmem:[%s6221 + $0x384] sm:$0xf]
        %v6448 = vld [vmem:[%s6221 + $0x388] sm:$0xf]
        %v6449 = vld [vmem:[%s6221 + $0x38c] sm:$0xf]
        %v6450 = vld [vmem:[%s6221 + $0x390] sm:$0xf]
        %v6451 = vld [vmem:[%s6221 + $0x394] sm:$0xf]
        %v6452 = vld [vmem:[%s6221 + $0x398] sm:$0xf]
        %v6453 = vld [vmem:[%s6221 + $0x39c] sm:$0xf]
        %v6454 = vld [vmem:[%s6221 + $0x3a0] sm:$0xf]
        %v6455 = vld [vmem:[%s6221 + $0x3a4] sm:$0xf]
        %v6456 = vld [vmem:[%s6221 + $0x3a8] sm:$0xf]
        %v6457 = vld [vmem:[%s6221 + $0x3ac] sm:$0xf]
        %v6458 = vld [vmem:[%s6221 + $0x3b0] sm:$0xf]
        %v6459 = vld [vmem:[%s6221 + $0x3b4] sm:$0xf]
        %v6460 = vld [vmem:[%s6221 + $0x3b8] sm:$0xf]
        %v6461 = vld [vmem:[%s6221 + $0x3bc] sm:$0xf]
        %v6462 = vld [vmem:[%s6221 + $0x3c0] sm:$0xf]
        %v6463 = vld [vmem:[%s6221 + $0x3c4] sm:$0xf]
        %v6464 = vld [vmem:[%s6221 + $0x3c8] sm:$0xf]
        %v6465 = vld [vmem:[%s6221 + $0x3cc] sm:$0xf]
        %v6466 = vld [vmem:[%s6221 + $0x3d0] sm:$0xf]
        %v6467 = vld [vmem:[%s6221 + $0x3d4] sm:$0xf]
        %v6468 = vld [vmem:[%s6221 + $0x3d8] sm:$0xf]
        %v6469 = vld [vmem:[%s6221 + $0x3dc] sm:$0xf]
        %v6470 = vld [vmem:[%s6221 + $0x3e0] sm:$0xf]
        %v6471 = vld [vmem:[%s6221 + $0x3e4] sm:$0xf]
        %v6472 = vld [vmem:[%s6221 + $0x3e8] sm:$0xf]
        %v6473 = vld [vmem:[%s6221 + $0x3ec] sm:$0xf]
        %v6474 = vld [vmem:[%s6221 + $0x3f0] sm:$0xf]
        %v6475 = vld [vmem:[%s6221 + $0x3f4] sm:$0xf]
        %v6476 = vld [vmem:[%s6221 + $0x3f8] sm:$0xf]
        %v6477 = vld [vmem:[%s6221 + $0x3fc] sm:$0xf]
        %v6478 = vld [vmem:[%s19 + $0x1] sm:$0x1]
        %v6479 = vlaneseq
        %v6480 = vshrl.u32 %v6479, 7
        %v6481 = vsub.s32 0, %v6480
        %v6482 = vrot.slane %v6478, %v6481
        %v6739 = vunpack.c.l.b16 %v6222
        %v6740 = vunpack.c.l.b16 %v6223
        %v6741 = vunpack.c.l.b16 %v6224
        %v6742 = vunpack.c.l.b16 %v6225
        %v6743 = vunpack.c.l.b16 %v6226
        %v6744 = vunpack.c.l.b16 %v6227
        %v6745 = vunpack.c.l.b16 %v6228
        %v6746 = vunpack.c.l.b16 %v6229
        %v6747 = vunpack.c.l.b16 %v6230
        %v6748 = vunpack.c.l.b16 %v6231
        %v6749 = vunpack.c.l.b16 %v6232
        %v6750 = vunpack.c.l.b16 %v6233
        %v6751 = vunpack.c.l.b16 %v6234
        %v6752 = vunpack.c.l.b16 %v6235
        %v6753 = vunpack.c.l.b16 %v6236
        %v6754 = vunpack.c.l.b16 %v6237
        %v6755 = vunpack.c.l.b16 %v6238
        %v6756 = vunpack.c.l.b16 %v6239
        %v6757 = vunpack.c.l.b16 %v6240
        %v6758 = vunpack.c.l.b16 %v6241
        %v6759 = vunpack.c.l.b16 %v6242
        %v6760 = vunpack.c.l.b16 %v6243
        %v6761 = vunpack.c.l.b16 %v6244
        %v6762 = vunpack.c.l.b16 %v6245
        %v6763 = vunpack.c.l.b16 %v6246
        %v6764 = vunpack.c.l.b16 %v6247
        %v6765 = vunpack.c.l.b16 %v6248
        %v6766 = vunpack.c.l.b16 %v6249
        %v6767 = vunpack.c.l.b16 %v6250
        %v6768 = vunpack.c.l.b16 %v6251
        %v6769 = vunpack.c.l.b16 %v6252
        %v6770 = vunpack.c.l.b16 %v6253
        %v6771 = vunpack.c.l.b16 %v6254
        %v6772 = vunpack.c.l.b16 %v6255
        %v6773 = vunpack.c.l.b16 %v6256
        %v6774 = vunpack.c.l.b16 %v6257
        %v6775 = vunpack.c.l.b16 %v6258
        %v6776 = vunpack.c.l.b16 %v6259
        %v6777 = vunpack.c.l.b16 %v6260
        %v6778 = vunpack.c.l.b16 %v6261
        %v6779 = vunpack.c.l.b16 %v6262
        %v6780 = vunpack.c.l.b16 %v6263
        %v6781 = vunpack.c.l.b16 %v6264
        %v6782 = vunpack.c.l.b16 %v6265
        %v6783 = vunpack.c.l.b16 %v6266
        %v6784 = vunpack.c.l.b16 %v6267
        %v6785 = vunpack.c.l.b16 %v6268
        %v6786 = vunpack.c.l.b16 %v6269
        %v6787 = vunpack.c.l.b16 %v6270
        %v6788 = vunpack.c.l.b16 %v6271
        %v6789 = vunpack.c.l.b16 %v6272
        %v6790 = vunpack.c.l.b16 %v6273
        %v6791 = vunpack.c.l.b16 %v6274
        %v6792 = vunpack.c.l.b16 %v6275
        %v6793 = vunpack.c.l.b16 %v6276
        %v6794 = vunpack.c.l.b16 %v6277
        %v6795 = vunpack.c.l.b16 %v6278
        %v6796 = vunpack.c.l.b16 %v6279
        %v6797 = vunpack.c.l.b16 %v6280
        %v6798 = vunpack.c.l.b16 %v6281
        %v6799 = vunpack.c.l.b16 %v6282
        %v6800 = vunpack.c.l.b16 %v6283
        %v6801 = vunpack.c.l.b16 %v6284
        %v6802 = vunpack.c.l.b16 %v6285
        %v6803 = vunpack.c.l.b16 %v6286
        %v6804 = vunpack.c.l.b16 %v6287
        %v6805 = vunpack.c.l.b16 %v6288
        %v6806 = vunpack.c.l.b16 %v6289
        %v6807 = vunpack.c.l.b16 %v6290
        %v6808 = vunpack.c.l.b16 %v6291
        %v6809 = vunpack.c.l.b16 %v6292
        %v6810 = vunpack.c.l.b16 %v6293
        %v6811 = vunpack.c.l.b16 %v6294
        %v6812 = vunpack.c.l.b16 %v6295
        %v6813 = vunpack.c.l.b16 %v6296
        %v6814 = vunpack.c.l.b16 %v6297
        %v6815 = vunpack.c.l.b16 %v6298
        %v6816 = vunpack.c.l.b16 %v6299
        %v6817 = vunpack.c.l.b16 %v6300
        %v6818 = vunpack.c.l.b16 %v6301
        %v6819 = vunpack.c.l.b16 %v6302
        %v6820 = vunpack.c.l.b16 %v6303
        %v6821 = vunpack.c.l.b16 %v6304
        %v6822 = vunpack.c.l.b16 %v6305
        %v6823 = vunpack.c.l.b16 %v6306
        %v6824 = vunpack.c.l.b16 %v6307
        %v6825 = vunpack.c.l.b16 %v6308
        %v6826 = vunpack.c.l.b16 %v6309
        %v6827 = vunpack.c.l.b16 %v6310
        %v6828 = vunpack.c.l.b16 %v6311
        %v6829 = vunpack.c.l.b16 %v6312
        %v6830 = vunpack.c.l.b16 %v6313
        %v6831 = vunpack.c.l.b16 %v6314
        %v6832 = vunpack.c.l.b16 %v6315
        %v6833 = vunpack.c.l.b16 %v6316
        %v6834 = vunpack.c.l.b16 %v6317
        %v6835 = vunpack.c.l.b16 %v6318
        %v6836 = vunpack.c.l.b16 %v6319
        %v6837 = vunpack.c.l.b16 %v6320
        %v6838 = vunpack.c.l.b16 %v6321
        %v6839 = vunpack.c.l.b16 %v6322
        %v6840 = vunpack.c.l.b16 %v6323
        %v6841 = vunpack.c.l.b16 %v6324
        %v6842 = vunpack.c.l.b16 %v6325
        %v6843 = vunpack.c.l.b16 %v6326
        %v6844 = vunpack.c.l.b16 %v6327
        %v6845 = vunpack.c.l.b16 %v6328
        %v6846 = vunpack.c.l.b16 %v6329
        %v6847 = vunpack.c.l.b16 %v6330
        %v6848 = vunpack.c.l.b16 %v6331
        %v6849 = vunpack.c.l.b16 %v6332
        %v6850 = vunpack.c.l.b16 %v6333
        %v6851 = vunpack.c.l.b16 %v6334
        %v6852 = vunpack.c.l.b16 %v6335
        %v6853 = vunpack.c.l.b16 %v6336
        %v6854 = vunpack.c.l.b16 %v6337
        %v6855 = vunpack.c.l.b16 %v6338
        %v6856 = vunpack.c.l.b16 %v6339
        %v6857 = vunpack.c.l.b16 %v6340
        %v6858 = vunpack.c.l.b16 %v6341
        %v6859 = vunpack.c.l.b16 %v6342
        %v6860 = vunpack.c.l.b16 %v6343
        %v6861 = vunpack.c.l.b16 %v6344
        %v6862 = vunpack.c.l.b16 %v6345
        %v6863 = vunpack.c.l.b16 %v6346
        %v6864 = vunpack.c.l.b16 %v6347
        %v6865 = vunpack.c.l.b16 %v6348
        %v6866 = vunpack.c.l.b16 %v6349
        %v6867 = vunpack.c.l.b16 %v6350
        %v6868 = vunpack.c.l.b16 %v6351
        %v6869 = vunpack.c.l.b16 %v6352
        %v6870 = vunpack.c.l.b16 %v6353
        %v6871 = vunpack.c.l.b16 %v6354
        %v6872 = vunpack.c.l.b16 %v6355
        %v6873 = vunpack.c.l.b16 %v6356
        %v6874 = vunpack.c.l.b16 %v6357
        %v6875 = vunpack.c.l.b16 %v6358
        %v6876 = vunpack.c.l.b16 %v6359
        %v6877 = vunpack.c.l.b16 %v6360
        %v6878 = vunpack.c.l.b16 %v6361
        %v6879 = vunpack.c.l.b16 %v6362
        %v6880 = vunpack.c.l.b16 %v6363
        %v6881 = vunpack.c.l.b16 %v6364
        %v6882 = vunpack.c.l.b16 %v6365
        %v6883 = vunpack.c.l.b16 %v6366
        %v6884 = vunpack.c.l.b16 %v6367
        %v6885 = vunpack.c.l.b16 %v6368
        %v6886 = vunpack.c.l.b16 %v6369
        %v6887 = vunpack.c.l.b16 %v6370
        %v6888 = vunpack.c.l.b16 %v6371
        %v6889 = vunpack.c.l.b16 %v6372
        %v6890 = vunpack.c.l.b16 %v6373
        %v6891 = vunpack.c.l.b16 %v6374
        %v6892 = vunpack.c.l.b16 %v6375
        %v6893 = vunpack.c.l.b16 %v6376
        %v6894 = vunpack.c.l.b16 %v6377
        %v6895 = vunpack.c.l.b16 %v6378
        %v6896 = vunpack.c.l.b16 %v6379
        %v6897 = vunpack.c.l.b16 %v6380
        %v6898 = vunpack.c.l.b16 %v6381
        %v6899 = vunpack.c.l.b16 %v6382
        %v6900 = vunpack.c.l.b16 %v6383
        %v6901 = vunpack.c.l.b16 %v6384
        %v6902 = vunpack.c.l.b16 %v6385
        %v6903 = vunpack.c.l.b16 %v6386
        %v6904 = vunpack.c.l.b16 %v6387
        %v6905 = vunpack.c.l.b16 %v6388
        %v6906 = vunpack.c.l.b16 %v6389
        %v6907 = vunpack.c.l.b16 %v6390
        %v6908 = vunpack.c.l.b16 %v6391
        %v6909 = vunpack.c.l.b16 %v6392
        %v6910 = vunpack.c.l.b16 %v6393
        %v6911 = vunpack.c.l.b16 %v6394
        %v6912 = vunpack.c.l.b16 %v6395
        %v6913 = vunpack.c.l.b16 %v6396
        %v6914 = vunpack.c.l.b16 %v6397
        %v6915 = vunpack.c.l.b16 %v6398
        %v6916 = vunpack.c.l.b16 %v6399
        %v6917 = vunpack.c.l.b16 %v6400
        %v6918 = vunpack.c.l.b16 %v6401
        %v6919 = vunpack.c.l.b16 %v6402
        %v6920 = vunpack.c.l.b16 %v6403
        %v6921 = vunpack.c.l.b16 %v6404
        %v6922 = vunpack.c.l.b16 %v6405
        %v6923 = vunpack.c.l.b16 %v6406
        %v6924 = vunpack.c.l.b16 %v6407
        %v6925 = vunpack.c.l.b16 %v6408
        %v6926 = vunpack.c.l.b16 %v6409
        %v6927 = vunpack.c.l.b16 %v6410
        %v6928 = vunpack.c.l.b16 %v6411
        %v6929 = vunpack.c.l.b16 %v6412
        %v6930 = vunpack.c.l.b16 %v6413
        %v6931 = vunpack.c.l.b16 %v6414
        %v6932 = vunpack.c.l.b16 %v6415
        %v6933 = vunpack.c.l.b16 %v6416
        %v6934 = vunpack.c.l.b16 %v6417
        %v6935 = vunpack.c.l.b16 %v6418
        %v6936 = vunpack.c.l.b16 %v6419
        %v6937 = vunpack.c.l.b16 %v6420
        %v6938 = vunpack.c.l.b16 %v6421
        %v6939 = vunpack.c.l.b16 %v6422
        %v6940 = vunpack.c.l.b16 %v6423
        %v6941 = vunpack.c.l.b16 %v6424
        %v6942 = vunpack.c.l.b16 %v6425
        %v6943 = vunpack.c.l.b16 %v6426
        %v6944 = vunpack.c.l.b16 %v6427
        %v6945 = vunpack.c.l.b16 %v6428
        %v6946 = vunpack.c.l.b16 %v6429
        %v6947 = vunpack.c.l.b16 %v6430
        %v6948 = vunpack.c.l.b16 %v6431
        %v6949 = vunpack.c.l.b16 %v6432
        %v6950 = vunpack.c.l.b16 %v6433
        %v6951 = vunpack.c.l.b16 %v6434
        %v6952 = vunpack.c.l.b16 %v6435
        %v6953 = vunpack.c.l.b16 %v6436
        %v6954 = vunpack.c.l.b16 %v6437
        %v6955 = vunpack.c.l.b16 %v6438
        %v6956 = vunpack.c.l.b16 %v6439
        %v6957 = vunpack.c.l.b16 %v6440
        %v6958 = vunpack.c.l.b16 %v6441
        %v6959 = vunpack.c.l.b16 %v6442
        %v6960 = vunpack.c.l.b16 %v6443
        %v6961 = vunpack.c.l.b16 %v6444
        %v6962 = vunpack.c.l.b16 %v6445
        %v6963 = vunpack.c.l.b16 %v6446
        %v6964 = vunpack.c.l.b16 %v6447
        %v6965 = vunpack.c.l.b16 %v6448
        %v6966 = vunpack.c.l.b16 %v6449
        %v6967 = vunpack.c.l.b16 %v6450
        %v6968 = vunpack.c.l.b16 %v6451
        %v6969 = vunpack.c.l.b16 %v6452
        %v6970 = vunpack.c.l.b16 %v6453
        %v6971 = vunpack.c.l.b16 %v6454
        %v6972 = vunpack.c.l.b16 %v6455
        %v6973 = vunpack.c.l.b16 %v6456
        %v6974 = vunpack.c.l.b16 %v6457
        %v6975 = vunpack.c.l.b16 %v6458
        %v6976 = vunpack.c.l.b16 %v6459
        %v6977 = vunpack.c.l.b16 %v6460
        %v6978 = vunpack.c.l.b16 %v6461
        %v6979 = vunpack.c.l.b16 %v6462
        %v6980 = vunpack.c.l.b16 %v6463
        %v6981 = vunpack.c.l.b16 %v6464
        %v6982 = vunpack.c.l.b16 %v6465
        %v6983 = vunpack.c.l.b16 %v6466
        %v6984 = vunpack.c.l.b16 %v6467
        %v6985 = vunpack.c.l.b16 %v6468
        %v6986 = vunpack.c.l.b16 %v6469
        %v6987 = vunpack.c.l.b16 %v6470
        %v6988 = vunpack.c.l.b16 %v6471
        %v6989 = vunpack.c.l.b16 %v6472
        %v6990 = vunpack.c.l.b16 %v6473
        %v6991 = vunpack.c.l.b16 %v6474
        %v6992 = vunpack.c.l.b16 %v6475
        %v6993 = vunpack.c.l.b16 %v6476
        %v6994 = vunpack.c.l.b16 %v6477
        %v6995 = vpack.c.b16 %v6740, %v6739
        %v6996 = vpack.c.b16 %v6742, %v6741
        %v6997 = vpack.c.b16 %v6744, %v6743
        %v6998 = vpack.c.b16 %v6746, %v6745
        %v6999 = vpack.c.b16 %v6748, %v6747
        %v7000 = vpack.c.b16 %v6750, %v6749
        %v7001 = vpack.c.b16 %v6752, %v6751
        %v7002 = vpack.c.b16 %v6754, %v6753
        %v7003 = vpack.c.b16 %v6756, %v6755
        %v7004 = vpack.c.b16 %v6758, %v6757
        %v7005 = vpack.c.b16 %v6760, %v6759
        %v7006 = vpack.c.b16 %v6762, %v6761
        %v7007 = vpack.c.b16 %v6764, %v6763
        %v7008 = vpack.c.b16 %v6766, %v6765
        %v7009 = vpack.c.b16 %v6768, %v6767
        %v7010 = vpack.c.b16 %v6770, %v6769
        %v7011 = vpack.c.b16 %v6772, %v6771
        %v7012 = vpack.c.b16 %v6774, %v6773
        %v7013 = vpack.c.b16 %v6776, %v6775
        %v7014 = vpack.c.b16 %v6778, %v6777
        %v7015 = vpack.c.b16 %v6780, %v6779
        %v7016 = vpack.c.b16 %v6782, %v6781
        %v7017 = vpack.c.b16 %v6784, %v6783
        %v7018 = vpack.c.b16 %v6786, %v6785
        %v7019 = vpack.c.b16 %v6788, %v6787
        %v7020 = vpack.c.b16 %v6790, %v6789
        %v7021 = vpack.c.b16 %v6792, %v6791
        %v7022 = vpack.c.b16 %v6794, %v6793
        %v7023 = vpack.c.b16 %v6796, %v6795
        %v7024 = vpack.c.b16 %v6798, %v6797
        %v7025 = vpack.c.b16 %v6800, %v6799
        %v7026 = vpack.c.b16 %v6802, %v6801
        %v7027 = vpack.c.b16 %v6804, %v6803
        %v7028 = vpack.c.b16 %v6806, %v6805
        %v7029 = vpack.c.b16 %v6808, %v6807
        %v7030 = vpack.c.b16 %v6810, %v6809
        %v7031 = vpack.c.b16 %v6812, %v6811
        %v7032 = vpack.c.b16 %v6814, %v6813
        %v7033 = vpack.c.b16 %v6816, %v6815
        %v7034 = vpack.c.b16 %v6818, %v6817
        %v7035 = vpack.c.b16 %v6820, %v6819
        %v7036 = vpack.c.b16 %v6822, %v6821
        %v7037 = vpack.c.b16 %v6824, %v6823
        %v7038 = vpack.c.b16 %v6826, %v6825
        %v7039 = vpack.c.b16 %v6828, %v6827
        %v7040 = vpack.c.b16 %v6830, %v6829
        %v7041 = vpack.c.b16 %v6832, %v6831
        %v7042 = vpack.c.b16 %v6834, %v6833
        %v7043 = vpack.c.b16 %v6836, %v6835
        %v7044 = vpack.c.b16 %v6838, %v6837
        %v7045 = vpack.c.b16 %v6840, %v6839
        %v7046 = vpack.c.b16 %v6842, %v6841
        %v7047 = vpack.c.b16 %v6844, %v6843
        %v7048 = vpack.c.b16 %v6846, %v6845
        %v7049 = vpack.c.b16 %v6848, %v6847
        %v7050 = vpack.c.b16 %v6850, %v6849
        %v7051 = vpack.c.b16 %v6852, %v6851
        %v7052 = vpack.c.b16 %v6854, %v6853
        %v7053 = vpack.c.b16 %v6856, %v6855
        %v7054 = vpack.c.b16 %v6858, %v6857
        %v7055 = vpack.c.b16 %v6860, %v6859
        %v7056 = vpack.c.b16 %v6862, %v6861
        %v7057 = vpack.c.b16 %v6864, %v6863
        %v7058 = vpack.c.b16 %v6866, %v6865
        %v7059 = vpack.c.b16 %v6868, %v6867
        %v7060 = vpack.c.b16 %v6870, %v6869
        %v7061 = vpack.c.b16 %v6872, %v6871
        %v7062 = vpack.c.b16 %v6874, %v6873
        %v7063 = vpack.c.b16 %v6876, %v6875
        %v7064 = vpack.c.b16 %v6878, %v6877
        %v7065 = vpack.c.b16 %v6880, %v6879
        %v7066 = vpack.c.b16 %v6882, %v6881
        %v7067 = vpack.c.b16 %v6884, %v6883
        %v7068 = vpack.c.b16 %v6886, %v6885
        %v7069 = vpack.c.b16 %v6888, %v6887
        %v7070 = vpack.c.b16 %v6890, %v6889
        %v7071 = vpack.c.b16 %v6892, %v6891
        %v7072 = vpack.c.b16 %v6894, %v6893
        %v7073 = vpack.c.b16 %v6896, %v6895
        %v7074 = vpack.c.b16 %v6898, %v6897
        %v7075 = vpack.c.b16 %v6900, %v6899
        %v7076 = vpack.c.b16 %v6902, %v6901
        %v7077 = vpack.c.b16 %v6904, %v6903
        %v7078 = vpack.c.b16 %v6906, %v6905
        %v7079 = vpack.c.b16 %v6908, %v6907
        %v7080 = vpack.c.b16 %v6910, %v6909
        %v7081 = vpack.c.b16 %v6912, %v6911
        %v7082 = vpack.c.b16 %v6914, %v6913
        %v7083 = vpack.c.b16 %v6916, %v6915
        %v7084 = vpack.c.b16 %v6918, %v6917
        %v7085 = vpack.c.b16 %v6920, %v6919
        %v7086 = vpack.c.b16 %v6922, %v6921
        %v7087 = vpack.c.b16 %v6924, %v6923
        %v7088 = vpack.c.b16 %v6926, %v6925
        %v7089 = vpack.c.b16 %v6928, %v6927
        %v7090 = vpack.c.b16 %v6930, %v6929
        %v7091 = vpack.c.b16 %v6932, %v6931
        %v7092 = vpack.c.b16 %v6934, %v6933
        %v7093 = vpack.c.b16 %v6936, %v6935
        %v7094 = vpack.c.b16 %v6938, %v6937
        %v7095 = vpack.c.b16 %v6940, %v6939
        %v7096 = vpack.c.b16 %v6942, %v6941
        %v7097 = vpack.c.b16 %v6944, %v6943
        %v7098 = vpack.c.b16 %v6946, %v6945
        %v7099 = vpack.c.b16 %v6948, %v6947
        %v7100 = vpack.c.b16 %v6950, %v6949
        %v7101 = vpack.c.b16 %v6952, %v6951
        %v7102 = vpack.c.b16 %v6954, %v6953
        %v7103 = vpack.c.b16 %v6956, %v6955
        %v7104 = vpack.c.b16 %v6958, %v6957
        %v7105 = vpack.c.b16 %v6960, %v6959
        %v7106 = vpack.c.b16 %v6962, %v6961
        %v7107 = vpack.c.b16 %v6964, %v6963
        %v7108 = vpack.c.b16 %v6966, %v6965
        %v7109 = vpack.c.b16 %v6968, %v6967
        %v7110 = vpack.c.b16 %v6970, %v6969
        %v7111 = vpack.c.b16 %v6972, %v6971
        %v7112 = vpack.c.b16 %v6974, %v6973
        %v7113 = vpack.c.b16 %v6976, %v6975
        %v7114 = vpack.c.b16 %v6978, %v6977
        %v7115 = vpack.c.b16 %v6980, %v6979
        %v7116 = vpack.c.b16 %v6982, %v6981
        %v7117 = vpack.c.b16 %v6984, %v6983
        %v7118 = vpack.c.b16 %v6986, %v6985
        %v7119 = vpack.c.b16 %v6988, %v6987
        %v7120 = vpack.c.b16 %v6990, %v6989
        %v7121 = vpack.c.b16 %v6992, %v6991
        %v7122 = vpack.c.b16 %v6994, %v6993
        %7251 = vmatprep.subr.bf16.mxu0 0
        %7252 = vmatpush1.bf16.msra.mxu0 %v6995
        %7253 = vmatprep.subr.bf16.mxu0 0
        %7254 = vmatpush1.bf16.msra.mxu0 %v6996
        %7255 = vmatprep.subr.bf16.mxu0 0
        %7256 = vmatpush1.bf16.msra.mxu0 %v6997
        %7257 = vmatprep.subr.bf16.mxu0 0
        %7258 = vmatpush1.bf16.msra.mxu0 %v6998
        %7259 = vmatprep.subr.bf16.mxu0 0
        %7260 = vmatpush1.bf16.msra.mxu0 %v6999
        %7261 = vmatprep.subr.bf16.mxu0 0
        %7262 = vmatpush1.bf16.msra.mxu0 %v7000
        %7263 = vmatprep.subr.bf16.mxu0 0
        %7264 = vmatpush1.bf16.msra.mxu0 %v7001
        %7265 = vmatprep.subr.bf16.mxu0 0
        %7266 = vmatpush1.bf16.msra.mxu0 %v7002
        %7267 = vmatprep.subr.bf16.mxu0 0
        %7268 = vmatpush1.bf16.msra.mxu0 %v7003
        %7269 = vmatprep.subr.bf16.mxu0 0
        %7270 = vmatpush1.bf16.msra.mxu0 %v7004
        %7271 = vmatprep.subr.bf16.mxu0 0
        %7272 = vmatpush1.bf16.msra.mxu0 %v7005
        %7273 = vmatprep.subr.bf16.mxu0 0
        %7274 = vmatpush1.bf16.msra.mxu0 %v7006
        %7275 = vmatprep.subr.bf16.mxu0 0
        %7276 = vmatpush1.bf16.msra.mxu0 %v7007
        %7277 = vmatprep.subr.bf16.mxu0 0
        %7278 = vmatpush1.bf16.msra.mxu0 %v7008
        %7279 = vmatprep.subr.bf16.mxu0 0
        %7280 = vmatpush1.bf16.msra.mxu0 %v7009
        %7281 = vmatprep.subr.bf16.mxu0 0
        %7282 = vmatpush1.bf16.msra.mxu0 %v7010
        %7283 = vmatprep.mubr.bf16.mxu0 %v6206
        %7284 = vmatmul.mubr.bf16.gmra.mrb[0].mxu0 %v6205
        %v7285 = vpop.f32.mrb[0].mxu0
        %v7286 = vadd.f32 %v6482, %v7285
        %v7287 = vpop.f32.mrb[0].mxu0
        %v7288 = vpop.f32.mrb[0].mxu0
        %v7289 = vpop.f32.mrb[0].mxu0
        %7290 = vdwg.mxu0
        %7291 = vmatprep.subr.bf16.mxu0 0
        %7292 = vmatpush1.bf16.msra.mxu0 %v7011
        %7293 = vmatprep.subr.bf16.mxu0 0
        %7294 = vmatpush1.bf16.msra.mxu0 %v7012
        %7295 = vmatprep.subr.bf16.mxu0 0
        %7296 = vmatpush1.bf16.msra.mxu0 %v7013
        %7297 = vmatprep.subr.bf16.mxu0 0
        %7298 = vmatpush1.bf16.msra.mxu0 %v7014
        %7299 = vmatprep.subr.bf16.mxu0 0
        %7300 = vmatpush1.bf16.msra.mxu0 %v7015
        %7301 = vmatprep.subr.bf16.mxu0 0
        %7302 = vmatpush1.bf16.msra.mxu0 %v7016
        %7303 = vmatprep.subr.bf16.mxu0 0
        %7304 = vmatpush1.bf16.msra.mxu0 %v7017
        %7305 = vmatprep.subr.bf16.mxu0 0
        %7306 = vmatpush1.bf16.msra.mxu0 %v7018
        %7307 = vmatprep.subr.bf16.mxu0 0
        %7308 = vmatpush1.bf16.msra.mxu0 %v7019
        %7309 = vmatprep.subr.bf16.mxu0 0
        %7310 = vmatpush1.bf16.msra.mxu0 %v7020
        %7311 = vmatprep.subr.bf16.mxu0 0
        %7312 = vmatpush1.bf16.msra.mxu0 %v7021
        %7313 = vmatprep.subr.bf16.mxu0 0
        %7314 = vmatpush1.bf16.msra.mxu0 %v7022
        %7315 = vmatprep.subr.bf16.mxu0 0
        %7316 = vmatpush1.bf16.msra.mxu0 %v7023
        %7317 = vmatprep.subr.bf16.mxu0 0
        %7318 = vmatpush1.bf16.msra.mxu0 %v7024
        %7319 = vmatprep.subr.bf16.mxu0 0
        %7320 = vmatpush1.bf16.msra.mxu0 %v7025
        %7321 = vmatprep.subr.bf16.mxu0 0
        %7322 = vmatpush1.bf16.msra.mxu0 %v7026
        %7323 = vmatprep.mubr.bf16.mxu0 %v6208
        %7324 = vmatmul.mubr.bf16.gmra.mrb[0].mxu0 %v6207
        %v7325 = vpop.f32.mrb[0].mxu0
        %v7326 = vadd.f32 %v7286, %v7325
        %v7327 = vpop.f32.mrb[0].mxu0
        %v7328 = vpop.f32.mrb[0].mxu0
        %v7329 = vpop.f32.mrb[0].mxu0
        %7330 = vdwg.mxu0
        %7331 = vmatprep.subr.bf16.mxu0 0
        %7332 = vmatpush1.bf16.msra.mxu0 %v7027
        %7333 = vmatprep.subr.bf16.mxu0 0
        %7334 = vmatpush1.bf16.msra.mxu0 %v7028
        %7335 = vmatprep.subr.bf16.mxu0 0
        %7336 = vmatpush1.bf16.msra.mxu0 %v7029
        %7337 = vmatprep.subr.bf16.mxu0 0
        %7338 = vmatpush1.bf16.msra.mxu0 %v7030
        %7339 = vmatprep.subr.bf16.mxu0 0
        %7340 = vmatpush1.bf16.msra.mxu0 %v7031
        %7341 = vmatprep.subr.bf16.mxu0 0
        %7342 = vmatpush1.bf16.msra.mxu0 %v7032
        %7343 = vmatprep.subr.bf16.mxu0 0
        %7344 = vmatpush1.bf16.msra.mxu0 %v7033
        %7345 = vmatprep.subr.bf16.mxu0 0
        %7346 = vmatpush1.bf16.msra.mxu0 %v7034
        %7347 = vmatprep.subr.bf16.mxu0 0
        %7348 = vmatpush1.bf16.msra.mxu0 %v7035
        %7349 = vmatprep.subr.bf16.mxu0 0
        %7350 = vmatpush1.bf16.msra.mxu0 %v7036
        %7351 = vmatprep.subr.bf16.mxu0 0
        %7352 = vmatpush1.bf16.msra.mxu0 %v7037
        %7353 = vmatprep.subr.bf16.mxu0 0
        %7354 = vmatpush1.bf16.msra.mxu0 %v7038
        %7355 = vmatprep.subr.bf16.mxu0 0
        %7356 = vmatpush1.bf16.msra.mxu0 %v7039
        %7357 = vmatprep.subr.bf16.mxu0 0
        %7358 = vmatpush1.bf16.msra.mxu0 %v7040
        %7359 = vmatprep.subr.bf16.mxu0 0
        %7360 = vmatpush1.bf16.msra.mxu0 %v7041
        %7361 = vmatprep.subr.bf16.mxu0 0
        %7362 = vmatpush1.bf16.msra.mxu0 %v7042
        %7363 = vmatprep.mubr.bf16.mxu0 %v6210
        %7364 = vmatmul.mubr.bf16.gmra.mrb[0].mxu0 %v6209
        %v7365 = vpop.f32.mrb[0].mxu0
        %v7366 = vadd.f32 %v7326, %v7365
        %v7367 = vpop.f32.mrb[0].mxu0
        %v7368 = vpop.f32.mrb[0].mxu0
        %v7369 = vpop.f32.mrb[0].mxu0
        %7370 = vdwg.mxu0
        %7371 = vmatprep.subr.bf16.mxu0 0
        %7372 = vmatpush1.bf16.msra.mxu0 %v7043
        %7373 = vmatprep.subr.bf16.mxu0 0
        %7374 = vmatpush1.bf16.msra.mxu0 %v7044
        %7375 = vmatprep.subr.bf16.mxu0 0
        %7376 = vmatpush1.bf16.msra.mxu0 %v7045
        %7377 = vmatprep.subr.bf16.mxu0 0
        %7378 = vmatpush1.bf16.msra.mxu0 %v7046
        %7379 = vmatprep.subr.bf16.mxu0 0
        %7380 = vmatpush1.bf16.msra.mxu0 %v7047
        %7381 = vmatprep.subr.bf16.mxu0 0
        %7382 = vmatpush1.bf16.msra.mxu0 %v7048
        %7383 = vmatprep.subr.bf16.mxu0 0
        %7384 = vmatpush1.bf16.msra.mxu0 %v7049
        %7385 = vmatprep.subr.bf16.mxu0 0
        %7386 = vmatpush1.bf16.msra.mxu0 %v7050
        %7387 = vmatprep.subr.bf16.mxu0 0
        %7388 = vmatpush1.bf16.msra.mxu0 %v7051
        %7389 = vmatprep.subr.bf16.mxu0 0
        %7390 = vmatpush1.bf16.msra.mxu0 %v7052
        %7391 = vmatprep.subr.bf16.mxu0 0
        %7392 = vmatpush1.bf16.msra.mxu0 %v7053
        %7393 = vmatprep.subr.bf16.mxu0 0
        %7394 = vmatpush1.bf16.msra.mxu0 %v7054
        %7395 = vmatprep.subr.bf16.mxu0 0
        %7396 = vmatpush1.bf16.msra.mxu0 %v7055
        %7397 = vmatprep.subr.bf16.mxu0 0
        %7398 = vmatpush1.bf16.msra.mxu0 %v7056
        %7399 = vmatprep.subr.bf16.mxu0 0
        %7400 = vmatpush1.bf16.msra.mxu0 %v7057
        %7401 = vmatprep.subr.bf16.mxu0 0
        %7402 = vmatpush1.bf16.msra.mxu0 %v7058
        %7403 = vmatprep.mubr.bf16.mxu0 %v6212
        %7404 = vmatmul.mubr.bf16.gmra.mrb[0].mxu0 %v6211
        %v7405 = vpop.f32.mrb[0].mxu0
        %v7406 = vadd.f32 %v7366, %v7405
        %v7407 = vpop.f32.mrb[0].mxu0
        %v7408 = vpop.f32.mrb[0].mxu0
        %v7409 = vpop.f32.mrb[0].mxu0
        %7410 = vdwg.mxu0
        %7411 = vmatprep.subr.bf16.mxu0 0
        %7412 = vmatpush1.bf16.msra.mxu0 %v7059
        %7413 = vmatprep.subr.bf16.mxu0 0
        %7414 = vmatpush1.bf16.msra.mxu0 %v7060
        %7415 = vmatprep.subr.bf16.mxu0 0
        %7416 = vmatpush1.bf16.msra.mxu0 %v7061
        %7417 = vmatprep.subr.bf16.mxu0 0
        %7418 = vmatpush1.bf16.msra.mxu0 %v7062
        %7419 = vmatprep.subr.bf16.mxu0 0
        %7420 = vmatpush1.bf16.msra.mxu0 %v7063
        %7421 = vmatprep.subr.bf16.mxu0 0
        %7422 = vmatpush1.bf16.msra.mxu0 %v7064
        %7423 = vmatprep.subr.bf16.mxu0 0
        %7424 = vmatpush1.bf16.msra.mxu0 %v7065
        %7425 = vmatprep.subr.bf16.mxu0 0
        %7426 = vmatpush1.bf16.msra.mxu0 %v7066
        %7427 = vmatprep.subr.bf16.mxu0 0
        %7428 = vmatpush1.bf16.msra.mxu0 %v7067
        %7429 = vmatprep.subr.bf16.mxu0 0
        %7430 = vmatpush1.bf16.msra.mxu0 %v7068
        %7431 = vmatprep.subr.bf16.mxu0 0
        %7432 = vmatpush1.bf16.msra.mxu0 %v7069
        %7433 = vmatprep.subr.bf16.mxu0 0
        %7434 = vmatpush1.bf16.msra.mxu0 %v7070
        %7435 = vmatprep.subr.bf16.mxu0 0
        %7436 = vmatpush1.bf16.msra.mxu0 %v7071
        %7437 = vmatprep.subr.bf16.mxu0 0
        %7438 = vmatpush1.bf16.msra.mxu0 %v7072
        %7439 = vmatprep.subr.bf16.mxu0 0
        %7440 = vmatpush1.bf16.msra.mxu0 %v7073
        %7441 = vmatprep.subr.bf16.mxu0 0
        %7442 = vmatpush1.bf16.msra.mxu0 %v7074
        %7443 = vmatprep.mubr.bf16.mxu0 %v6214
        %7444 = vmatmul.mubr.bf16.gmra.mrb[0].mxu0 %v6213
        %v7445 = vpop.f32.mrb[0].mxu0
        %v7446 = vadd.f32 %v7406, %v7445
        %v7447 = vpop.f32.mrb[0].mxu0
        %v7448 = vpop.f32.mrb[0].mxu0
        %v7449 = vpop.f32.mrb[0].mxu0
        %7450 = vdwg.mxu0
        %7451 = vmatprep.subr.bf16.mxu0 0
        %7452 = vmatpush1.bf16.msra.mxu0 %v7075
        %7453 = vmatprep.subr.bf16.mxu0 0
        %7454 = vmatpush1.bf16.msra.mxu0 %v7076
        %7455 = vmatprep.subr.bf16.mxu0 0
        %7456 = vmatpush1.bf16.msra.mxu0 %v7077
        %7457 = vmatprep.subr.bf16.mxu0 0
        %7458 = vmatpush1.bf16.msra.mxu0 %v7078
        %7459 = vmatprep.subr.bf16.mxu0 0
        %7460 = vmatpush1.bf16.msra.mxu0 %v7079
        %7461 = vmatprep.subr.bf16.mxu0 0
        %7462 = vmatpush1.bf16.msra.mxu0 %v7080
        %7463 = vmatprep.subr.bf16.mxu0 0
        %7464 = vmatpush1.bf16.msra.mxu0 %v7081
        %7465 = vmatprep.subr.bf16.mxu0 0
        %7466 = vmatpush1.bf16.msra.mxu0 %v7082
        %7467 = vmatprep.subr.bf16.mxu0 0
        %7468 = vmatpush1.bf16.msra.mxu0 %v7083
        %7469 = vmatprep.subr.bf16.mxu0 0
        %7470 = vmatpush1.bf16.msra.mxu0 %v7084
        %7471 = vmatprep.subr.bf16.mxu0 0
        %7472 = vmatpush1.bf16.msra.mxu0 %v7085
        %7473 = vmatprep.subr.bf16.mxu0 0
        %7474 = vmatpush1.bf16.msra.mxu0 %v7086
        %7475 = vmatprep.subr.bf16.mxu0 0
        %7476 = vmatpush1.bf16.msra.mxu0 %v7087
        %7477 = vmatprep.subr.bf16.mxu0 0
        %7478 = vmatpush1.bf16.msra.mxu0 %v7088
        %7479 = vmatprep.subr.bf16.mxu0 0
        %7480 = vmatpush1.bf16.msra.mxu0 %v7089
        %7481 = vmatprep.subr.bf16.mxu0 0
        %7482 = vmatpush1.bf16.msra.mxu0 %v7090
        %7483 = vmatprep.mubr.bf16.mxu0 %v6216
        %7484 = vmatmul.mubr.bf16.gmra.mrb[0].mxu0 %v6215
        %v7485 = vpop.f32.mrb[0].mxu0
        %v7486 = vadd.f32 %v7446, %v7485
        %v7487 = vpop.f32.mrb[0].mxu0
        %v7488 = vpop.f32.mrb[0].mxu0
        %v7489 = vpop.f32.mrb[0].mxu0
        %7490 = vdwg.mxu0
        %7491 = vmatprep.subr.bf16.mxu0 0
        %7492 = vmatpush1.bf16.msra.mxu0 %v7091
        %7493 = vmatprep.subr.bf16.mxu0 0
        %7494 = vmatpush1.bf16.msra.mxu0 %v7092
        %7495 = vmatprep.subr.bf16.mxu0 0
        %7496 = vmatpush1.bf16.msra.mxu0 %v7093
        %7497 = vmatprep.subr.bf16.mxu0 0
        %7498 = vmatpush1.bf16.msra.mxu0 %v7094
        %7499 = vmatprep.subr.bf16.mxu0 0
        %7500 = vmatpush1.bf16.msra.mxu0 %v7095
        %7501 = vmatprep.subr.bf16.mxu0 0
        %7502 = vmatpush1.bf16.msra.mxu0 %v7096
        %7503 = vmatprep.subr.bf16.mxu0 0
        %7504 = vmatpush1.bf16.msra.mxu0 %v7097
        %7505 = vmatprep.subr.bf16.mxu0 0
        %7506 = vmatpush1.bf16.msra.mxu0 %v7098
        %7507 = vmatprep.subr.bf16.mxu0 0
        %7508 = vmatpush1.bf16.msra.mxu0 %v7099
        %7509 = vmatprep.subr.bf16.mxu0 0
        %7510 = vmatpush1.bf16.msra.mxu0 %v7100
        %7511 = vmatprep.subr.bf16.mxu0 0
        %7512 = vmatpush1.bf16.msra.mxu0 %v7101
        %7513 = vmatprep.subr.bf16.mxu0 0
        %7514 = vmatpush1.bf16.msra.mxu0 %v7102
        %7515 = vmatprep.subr.bf16.mxu0 0
        %7516 = vmatpush1.bf16.msra.mxu0 %v7103
        %7517 = vmatprep.subr.bf16.mxu0 0
        %7518 = vmatpush1.bf16.msra.mxu0 %v7104
        %7519 = vmatprep.subr.bf16.mxu0 0
        %7520 = vmatpush1.bf16.msra.mxu0 %v7105
        %7521 = vmatprep.subr.bf16.mxu0 0
        %7522 = vmatpush1.bf16.msra.mxu0 %v7106
        %7523 = vmatprep.mubr.bf16.mxu0 %v6218
        %7524 = vmatmul.mubr.bf16.gmra.mrb[0].mxu0 %v6217
        %v7525 = vpop.f32.mrb[0].mxu0
        %v7526 = vadd.f32 %v7486, %v7525
        %v7527 = vpop.f32.mrb[0].mxu0
        %v7528 = vpop.f32.mrb[0].mxu0
        %v7529 = vpop.f32.mrb[0].mxu0
        %7530 = vdwg.mxu0
        %7531 = vmatprep.subr.bf16.mxu0 0
        %7532 = vmatpush1.bf16.msra.mxu0 %v7107
        %7533 = vmatprep.subr.bf16.mxu0 0
        %7534 = vmatpush1.bf16.msra.mxu0 %v7108
        %7535 = vmatprep.subr.bf16.mxu0 0
        %7536 = vmatpush1.bf16.msra.mxu0 %v7109
        %7537 = vmatprep.subr.bf16.mxu0 0
        %7538 = vmatpush1.bf16.msra.mxu0 %v7110
        %7539 = vmatprep.subr.bf16.mxu0 0
        %7540 = vmatpush1.bf16.msra.mxu0 %v7111
        %7541 = vmatprep.subr.bf16.mxu0 0
        %7542 = vmatpush1.bf16.msra.mxu0 %v7112
        %7543 = vmatprep.subr.bf16.mxu0 0
        %7544 = vmatpush1.bf16.msra.mxu0 %v7113
        %7545 = vmatprep.subr.bf16.mxu0 0
        %7546 = vmatpush1.bf16.msra.mxu0 %v7114
        %7547 = vmatprep.subr.bf16.mxu0 0
        %7548 = vmatpush1.bf16.msra.mxu0 %v7115
        %7549 = vmatprep.subr.bf16.mxu0 0
        %7550 = vmatpush1.bf16.msra.mxu0 %v7116
        %7551 = vmatprep.subr.bf16.mxu0 0
        %7552 = vmatpush1.bf16.msra.mxu0 %v7117
        %7553 = vmatprep.subr.bf16.mxu0 0
        %7554 = vmatpush1.bf16.msra.mxu0 %v7118
        %7555 = vmatprep.subr.bf16.mxu0 0
        %7556 = vmatpush1.bf16.msra.mxu0 %v7119
        %7557 = vmatprep.subr.bf16.mxu0 0
        %7558 = vmatpush1.bf16.msra.mxu0 %v7120
        %7559 = vmatprep.subr.bf16.mxu0 0
        %7560 = vmatpush1.bf16.msra.mxu0 %v7121
        %7561 = vmatprep.subr.bf16.mxu0 0
        %7562 = vmatpush1.bf16.msra.mxu0 %v7122
        %7563 = vmatprep.mubr.bf16.mxu0 %v6220
        %7564 = vmatmul.mubr.bf16.gmra.mrb[0].mxu0 %v6219
        %v7565 = vpop.f32.mrb[0].mxu0
        %v7566 = vadd.f32 %v7526, %v7565
        %v7567 = vpop.f32.mrb[0].mxu0
        %v7568 = vpop.f32.mrb[0].mxu0
        %v7569 = vpop.f32.mrb[0].mxu0
        %7570 = vdwg.mxu0
        %v7571 = vadd.f32 %v5577, %v7566
        %v7572 = vld [vmem:[%s14 + $0x1] sm:$0x1]
        %v7573 = vld [vmem:[%s15 + $0x1] sm:$0x1]
        %v7574 = vsel %vm764, %v7571, 0.0
        %7575 = vadd.xlane.f32.xlu0 %v7574
        %v7576 = vpop.xlane.xlu0 %7575
        %v7577 = vmul.f32 %v7576, %v2131
        %v7578 = vsub.f32 %v7571, %v7577
        %v7579 = vmul.f32 %v7578, %v7578
        %v7580 = vsel %vm764, %v7579, 0.0
        %7581 = vadd.xlane.f32.xlu0 %v7580
        %v7582 = vpop.xlane.xlu0 %7581
        %v7583 = vmul.f32 %v7582, %v2131
        %v7584 = vadd.f32 %v7583, 1e-05
        %v7585 = vrsqrt.pop %v7584
        %v7586 = vmul.f32 %v7578, %v7585
        %v7587 = vlaneseq
        %v7588 = vshrl.u32 %v7587, 7
        %v7589 = vsub.s32 0, %v7588
        %v7590 = vrot.slane %v7572, %v7589
        %v7591 = vmul.f32 %v7586, %v7590
        %v7592 = vlaneseq
        %v7593 = vshrl.u32 %v7592, 7
        %v7594 = vsub.s32 0, %v7593
        %v7595 = vrot.slane %v7573, %v7594
        %v7596 = vadd.f32 %v7591, %v7595
        %v7597 = vpack.c.bf16 %v7596, %v7596
        %v7598 = vld [vmem:[%s20] sm:$0xf]
        %v7599 = vld [vmem:[%s20 + $0x4] sm:$0xf]
        %v7600 = vld [vmem:[%s20 + $0x8] sm:$0xf]
        %v7601 = vld [vmem:[%s20 + $0xc] sm:$0xf]
        %v7602 = vld [vmem:[%s21] sm:$0x1]
        %v7604 = vshrl.u32 %v7597, 16
        %v7606 = vrot.slane %v7604, 3
        %v7611 = vunpack.c.l.b16 %v7598
        %v7612 = vunpack.c.l.b16 %v7599
        %v7613 = vunpack.c.l.b16 %v7600
        %v7614 = vunpack.c.l.b16 %v7601
        %v7615 = vpack.c.b16 %v7612, %v7611
        %v7616 = vpack.c.b16 %v7614, %v7613
        %v7620 = vsel %vm764, %v7606, 0
        %7622 = vmatprep.subr.bf16.mxu0 0
        %7623 = vmatpush1.bf16.msra.mxu0 %v7615
        %7624 = vmatprep.subr.bf16.mxu0 0
        %7625 = vmatpush1.bf16.msra.mxu0 %v7616
        %7626 = vmatprep.subr.bf16.mxu0 0
        %7627 = vmatpush1.bf16.msra.mxu0 0
        %7628 = vmatprep.subr.bf16.mxu0 0
        %7629 = vmatpush1.bf16.msra.mxu0 0
        %7630 = vmatprep.subr.bf16.mxu0 0
        %7631 = vmatpush1.bf16.msra.mxu0 0
        %7632 = vmatprep.subr.bf16.mxu0 0
        %7633 = vmatpush1.bf16.msra.mxu0 0
        %7634 = vmatprep.subr.bf16.mxu0 0
        %7635 = vmatpush1.bf16.msra.mxu0 0
        %7636 = vmatprep.subr.bf16.mxu0 0
        %7637 = vmatpush1.bf16.msra.mxu0 0
        %7638 = vmatprep.subr.bf16.mxu0 0
        %7639 = vmatpush1.bf16.msra.mxu0 0
        %7640 = vmatprep.subr.bf16.mxu0 0
        %7641 = vmatpush1.bf16.msra.mxu0 0
        %7642 = vmatprep.subr.bf16.mxu0 0
        %7643 = vmatpush1.bf16.msra.mxu0 0
        %7644 = vmatprep.subr.bf16.mxu0 0
        %7645 = vmatpush1.bf16.msra.mxu0 0
        %7646 = vmatprep.subr.bf16.mxu0 0
        %7647 = vmatpush1.bf16.msra.mxu0 0
        %7648 = vmatprep.subr.bf16.mxu0 0
        %7649 = vmatpush1.bf16.msra.mxu0 0
        %7650 = vmatprep.subr.bf16.mxu0 0
        %7651 = vmatpush1.bf16.msra.mxu0 0
        %7652 = vmatprep.subr.bf16.mxu0 0
        %7653 = vmatpush1.bf16.msra.mxu0 0
        %7654 = vmatprep.mubr.bf16.mxu0 0
        %7655 = vmatmul.mubr.bf16.gmra.mrb[0].mxu0 %v7620
        %v7656 = vpop.f32.mrb[0].mxu0
        %v7657 = vadd.f32 %v7602, %v7656
        %v7658 = vpop.f32.mrb[0].mxu0
        %v7659 = vpop.f32.mrb[0].mxu0
        %v7660 = vpop.f32.mrb[0].mxu0
        %7661 = vdwg.mxu0
        %vm7662 = vcmask 24576
        %7663 = vst.msk [vmem:[%s673] sm:$0x1] %vm7662, %v7657
        %s7664 = sand.u32 %s511, 1
        %s7665 = scalar_lea.sflag [#allocation3], %s7664
        %s7666 = sand.u32 %s511, 1
        %s7667 = scalar_lea.vmem [#allocation2], %s7666
        // Predicated region
        $region109: #{tpu_custom_call.1} parent=107 // pred_check
          %p7668 = pneg %p521
        $region110: #{tpu_custom_call.1} parent=107 // pred_check_branch
          %7670 = sbr.rel (%p7668) target = $region112
        $region111: #{tpu_custom_call.1} parent=107 // pred_region
          %s7672 = ssub.s32 16, 16
          %7673 = vsyncadd %s7665, %s7672
          %s7674 = smul.addr %s36, 16
          %s7675 = scalar_lea.hbm %s22, %s7674
          %s7677 = sshll.u32 %s7667, 4
          %s7678 = int_to_ptr.vmem [resolvable:$true] %s7677
          %7680 = dma.vmem_to_hbm [thread:$0]  %s7678, 16, %s7675, %s7665
        $region112: #{tpu_custom_call.1} parent=107 // pred_fallthru
          _
      $region108: #{tpu_custom_call.1} parent=5 // pred_fallthru
        _
      %p7681 = scmp.le.s32.totalorder 2, %s31
      // Predicated region
      $region113: #{tpu_custom_call.1} parent=5 // pred_check
        %p7682 = pneg %p7681
      $region114: #{tpu_custom_call.1} parent=5 // pred_check_branch
        %7684 = sbr.rel (%p7682) target = $region116
      $region115: #{tpu_custom_call.1} parent=5 // pred_region
        %s7685 = ssub.s32 %s31, 2
        // Predicated region
        $region117: #{tpu_custom_call.1} parent=115 // pred_check
          %p7686 = pneg %p527
        $region118: #{tpu_custom_call.1} parent=115 // pred_check_branch
          %7688 = sbr.rel (%p7686) target = $region120
        $region119: #{tpu_custom_call.1} parent=115 // pred_region
          %s7689 = sand.u32 %s512, 1
          %s7690 = scalar_lea.sflag [#allocation3], %s7689
          %s7691 = sand.u32 %s512, 1
          %s7692 = scalar_lea.vmem [#allocation2], %s7691
          %7693 = dma.done %s7690, 16
        $region120: #{tpu_custom_call.1} parent=115 // pred_fallthru
          _
      $region116: #{tpu_custom_call.1} parent=5 // pred_fallthru
        _
    $region6: #{tpu_custom_call.1} parent=1 // loop_footer
      %s35 = sadd.s32 1, %s31
    $region7: #{tpu_custom_call.1} parent=1 // loop_footer_branch
      %30 = sbr.rel target = $region3
    $region8: #{tpu_custom_call.1} parent=1 // loop_exit
      _
    %7694 = vsyncpa [#allocation3], 1
    %s7695 = scalar_lea.sflag [#allocation3], 1
    %7696 = vsyncpa %s7695, 1

</llo_original>
